<compile_context>
chip_gen: v5e
topology: v5e:2x2
jax: 0.10.0
libtpu: 0.0.40
codegen_flags: <defaults>
</compile_context>

<pallas_src>
import jax
import jax.numpy as jnp
from jax import lax
from jax.experimental import pallas as pl
from jax.experimental.pallas import tpu as pltpu

# Model geometry implied by the PyTorch module.
H = W = 14            # spatial input size
WP = 16               # padded width/height (pad=1 each side)
FLAT = WP * WP        # 256 flat padded pixels per image
PADF = 264            # flat buffer length (max read = 223 + 2*16 + 2 = 257; pad to x8)
OWIN = H * WP         # 224 flat output positions per conv (y=0..13, x=0..15)
C1, C2 = 16, 32
POOL = 7
FEAT = C2 * POOL * POOL   # 1568
HID, OUT = 128, 10


# ----------------------------------------------------------------------------
# Fused kernel: conv1 -> relu -> conv2 -> relu -> pool -> fc1 -> relu -> fc2
# ----------------------------------------------------------------------------
def _fused_mnist_kernel(xpf_ref, w1_ref, b1_ref, w2_ref, b2_ref,
                        wf1_ref, bf1_ref, wf2_ref, bf2_ref,
                        o_ref,
                        h1p_ref, p2_ref, c2s_ref, feat_ref):
    n_imgs = xpf_ref.shape[0]

    # Zero the padded conv1-output buffer once: its untouched border rows
    # provide conv2's zero padding.  The interior is fully rewritten per image.
    h1p_ref[...] = jnp.zeros_like(h1p_ref)

    # Hoisted (loop-invariant) broadcasts / masks.
    b1 = b1_ref[...]                                            # (1, C1)
    b2 = b2_ref[...]                                            # (1, C2)
    xcol = lax.broadcasted_iota(jnp.int32, (OWIN, 1), 0) & (WP - 1)   # flat col = o % 16
    keep = xcol < W                                             # kill garbage cols 14,15

    for n in range(n_imgs):
        # ---- conv1 (Cin=1): 9 VPU broadcast-FMAs over the whole image -------
        c1 = jnp.zeros((OWIN, C1), jnp.float32)
        for t in range(9):
            dy, dx = t // 3, t % 3
            tap = xpf_ref[n, pl.ds(dy * WP + dx, OWIN), :]      # (224, 1)
            c1 = c1 + tap * w1_ref[pl.ds(t, 1), :]              # (224,1)*(1,16)
        c1 = jnp.maximum(c1 + b1, 0.0)
        # Mask the two garbage columns to zero (they become conv2's padding),
        # then write the relu'd map at flat offset 17 = one pad row + one pad col.
        h1p_ref[pl.ds(WP + 1, OWIN), :] = jnp.where(keep, c1, 0.0)

        # ---- conv2: im2col patch + ONE (224,144)x(144,32) MXU matmul --------
        for t in range(9):
            dy, dx = t // 3, t % 3
            p2_ref[:, pl.ds(t * C1, C1)] = h1p_ref[pl.ds(dy * WP + dx, OWIN), :]
        c2 = jnp.dot(p2_ref[...], w2_ref[...],
                     preferred_element_type=jnp.float32)        # (224, 32)
        c2s_ref[...] = jnp.maximum(c2 + b2, 0.0)

        # ---- 2x2 max-pool on the VPU; flatten is folded into fc1's weight ---
        # Horizontal pair-max via stride-2 sublane reads (flat parity == x parity).
        ev = c2s_ref[pl.ds(0, H * 8, stride=2), :]              # (112, 32) x even
        od = c2s_ref[pl.ds(1, H * 8, stride=2), :]              # (112, 32) x odd
        hmax = jnp.maximum(ev, od)                              # row k = y*8 + px
        for py in range(POOL):
            top = hmax[16 * py: 16 * py + 8, :]                 # y = 2*py
            bot = hmax[16 * py + 8: 16 * py + 16, :]            # y = 2*py + 1
            vm = jnp.maximum(top, bot)                          # (8, 32); px=7 is garbage
            for px in range(POOL):
                col = (py * POOL + px) * C2
                feat_ref[pl.ds(n, 1), pl.ds(col, C2)] = vm[px:px + 1, :]

    # ---- fc1 + relu + fc2: one matmul each, whole batch at once -------------
    f = feat_ref[...]                                           # (N, 1568)
    h = jnp.dot(f, wf1_ref[...], preferred_element_type=jnp.float32) + bf1_ref[...]
    h = jnp.maximum(h, 0.0)
    out = jnp.dot(h, wf2_ref[...], preferred_element_type=jnp.float32) + bf2_ref[...]
    o_ref[...] = out.astype(o_ref.dtype)


# ----------------------------------------------------------------------------
# Host-side (one-time) parameter preparation: fold all layout work into weights
# ----------------------------------------------------------------------------
def prepare_params(p):
    # conv weights: OIHW -> tap-major (dy*3+dx [, cin]) x cout
    w1 = jnp.transpose(p["conv1_w"], (2, 3, 1, 0)).reshape(9, C1)
    w2 = jnp.transpose(p["conv2_w"], (2, 3, 1, 0)).reshape(9 * C1, C2)
    # torch flattens NCHW -> index c*49 + py*7 + px; the kernel's feature order
    # is (py*7 + px)*32 + c, so permute fc1's input dimension to match.
    wf1 = jnp.transpose(p["fc1_w"].reshape(HID, C2, POOL, POOL),
                        (2, 3, 1, 0)).reshape(FEAT, HID)
    wf2 = p["fc2_w"].T                                          # (128, 10)
    return {
        "w1": w1, "b1": p["conv1_b"].reshape(1, C1),
        "w2": w2, "b2": p["conv2_b"].reshape(1, C2),
        "wf1": wf1, "bf1": p["fc1_b"].reshape(1, HID),
        "wf2": wf2, "bf2": p["fc2_b"].reshape(1, OUT),
    }


# ----------------------------------------------------------------------------
# Forward pass: one fused pallas_call
# ----------------------------------------------------------------------------
@jax.jit
def inference_forward(x_nchw, prep):
    n = x_nchw.shape[0]
    # Tiny input prep (pad + flatten to the 16-wide flat layout); fused by XLA
    # into the same executable as the kernel.
    xp = jnp.pad(x_nchw.reshape(n, H, W), ((0, 0), (1, 1), (1, 1)))       # (n,16,16)
    xpf = jnp.pad(xp.reshape(n, FLAT), ((0, 0), (0, PADF - FLAT)))[:, :, None]

    return pl.pallas_call(
        _fused_mnist_kernel,
        out_shape=jax.ShapeDtypeStruct((n, OUT), jnp.float32),
        grid=(1,),
        in_specs=[
            pl.BlockSpec((n, PADF, 1), lambda i: (0, 0, 0)),     # padded-flat input
            pl.BlockSpec((9, C1), lambda i: (0, 0)),             # conv1 weight
            pl.BlockSpec((1, C1), lambda i: (0, 0)),             # conv1 bias
            pl.BlockSpec((9 * C1, C2), lambda i: (0, 0)),        # conv2 weight (im2col)
            pl.BlockSpec((1, C2), lambda i: (0, 0)),             # conv2 bias
            pl.BlockSpec((FEAT, HID), lambda i: (0, 0)),         # fc1 weight (permuted)
            pl.BlockSpec((1, HID), lambda i: (0, 0)),            # fc1 bias
            pl.BlockSpec((HID, OUT), lambda i: (0, 0)),          # fc2 weight
            pl.BlockSpec((1, OUT), lambda i: (0, 0)),            # fc2 bias
        ],
        out_specs=pl.BlockSpec((n, OUT), lambda i: (0, 0)),
        scratch_shapes=[
            pltpu.VMEM((PADF, C1), jnp.float32),                 # padded conv1 output
            pltpu.VMEM((OWIN, 9 * C1), jnp.float32),             # conv2 im2col patches
            pltpu.VMEM((OWIN, C2), jnp.float32),                 # relu'd conv2 output
            pltpu.VMEM((n, FEAT), jnp.float32),                  # pooled + flattened feats
        ],
        compiler_params=pltpu.CompilerParams(dimension_semantics=("arbitrary",)),
    )(xpf, prep["w1"], prep["b1"], prep["w2"], prep["b2"],
      prep["wf1"], prep["bf1"], prep["wf2"], prep["bf2"])


# ----------------------------------------------------------------------------
# Pure-JAX reference (torch semantics) and parameter init
# ----------------------------------------------------------------------------
def reference_forward(x_nchw, p):
    x = jnp.transpose(x_nchw, (0, 2, 3, 1))
    w1 = jnp.transpose(p["conv1_w"], (2, 3, 1, 0))
    x = jax.nn.relu(lax.conv_general_dilated(
        x, w1, (1, 1), [(1, 1), (1, 1)],
        dimension_numbers=("NHWC", "HWIO", "NHWC")) + p["conv1_b"])
    w2 = jnp.transpose(p["conv2_w"], (2, 3, 1, 0))
    x = jax.nn.relu(lax.conv_general_dilated(
        x, w2, (1, 1), [(1, 1), (1, 1)],
        dimension_numbers=("NHWC", "HWIO", "NHWC")) + p["conv2_b"])
    x = lax.reduce_window(x, -jnp.inf, lax.max, (1, 2, 2, 1), (1, 2, 2, 1), "VALID")
    n = x.shape[0]
    x = jnp.transpose(x, (0, 3, 1, 2)).reshape(n, 32 * 7 * 7)
    x = jax.nn.relu(x @ p["fc1_w"].T + p["fc1_b"])
    return x @ p["fc2_w"].T + p["fc2_b"]


def init_params():
    keys = jax.random.split(jax.random.PRNGKey(42), 8)
    f32 = jnp.float32
    return {
        "conv1_w": 0.20 * jax.random.normal(keys[0], (16, 1, 3, 3), f32),
        "conv1_b": 0.10 * jax.random.normal(keys[1], (16,), f32),
        "conv2_w": 0.05 * jax.random.normal(keys[2], (32, 16, 3, 3), f32),
        "conv2_b": 0.10 * jax.random.normal(keys[3], (32,), f32),
        "fc1_w": 0.02 * jax.random.normal(keys[4], (128, 32 * 7 * 7), f32),
        "fc1_b": 0.10 * jax.random.normal(keys[5], (128,), f32),
        "fc2_w": 0.05 * jax.random.normal(keys[6], (10, 128), f32),
        "fc2_b": 0.10 * jax.random.normal(keys[7], (10,), f32),
    }


if __name__ == "__main__":
    params = init_params()
    prep = prepare_params(params)
    # Input: NCHW, batch=2, 1 channel, 14x14 (required by view(-1, 32*7*7) after one 2x2 pool).
    x = jax.random.normal(jax.random.PRNGKey(0), (2, 1, 14, 14), jnp.float32)

    out = jax.block_until_ready(inference_forward(x, prep))
    ref = jax.block_until_ready(reference_forward(x, params))

    assert out.shape == (2, 10) and out.dtype == jnp.float32
    assert jnp.allclose(out, ref, atol=1e-3, rtol=1e-3), (out, ref)
    print("KERNEL_OK")
</pallas_src>

<mosaic_0001>
module attributes {stable_mosaic.version = 11 : i64} {
  func.func @_fused_mnist_kernel(%arg0: i32, %arg1: memref<2x264x1xf32, #tpu.memory_space<vmem>>, %arg2: memref<9x16xf32, #tpu.memory_space<vmem>>, %arg3: memref<1x16xf32, #tpu.memory_space<vmem>>, %arg4: memref<144x32xf32, #tpu.memory_space<vmem>>, %arg5: memref<1x32xf32, #tpu.memory_space<vmem>>, %arg6: memref<1568x128xf32, #tpu.memory_space<vmem>>, %arg7: memref<1x128xf32, #tpu.memory_space<vmem>>, %arg8: memref<128x10xf32, #tpu.memory_space<vmem>>, %arg9: memref<1x10xf32, #tpu.memory_space<vmem>>, %arg10: memref<2x10xf32, #tpu.memory_space<vmem>>, %arg11: memref<264x16xf32, #tpu.memory_space<vmem>>, %arg12: memref<224x144xf32, #tpu.memory_space<vmem>>, %arg13: memref<224x32xf32, #tpu.memory_space<vmem>>, %arg14: memref<2x1568xf32, #tpu.memory_space<vmem>>) attributes {dimension_semantics = [#tpu.dimension_semantics<arbitrary>], iteration_bounds = array<i64: 1>, scalar_prefetch = 0 : i64, scratch_operands = 4 : i64, tpu.core_type = #tpu.core_type<tc>, window_params = [{pipeline_mode = #tpu.pipeline_mode<synchronous>, transform_indices = @transform_0, window_bounds = array<i64: 2, 264, 1>}, {pipeline_mode = #tpu.pipeline_mode<synchronous>, transform_indices = @transform_1, window_bounds = array<i64: 9, 16>}, {pipeline_mode = #tpu.pipeline_mode<synchronous>, transform_indices = @transform_2, window_bounds = array<i64: 1, 16>}, {pipeline_mode = #tpu.pipeline_mode<synchronous>, transform_indices = @transform_3, window_bounds = array<i64: 144, 32>}, {pipeline_mode = #tpu.pipeline_mode<synchronous>, transform_indices = @transform_4, window_bounds = array<i64: 1, 32>}, {pipeline_mode = #tpu.pipeline_mode<synchronous>, transform_indices = @transform_5, window_bounds = array<i64: 1568, 128>}, {pipeline_mode = #tpu.pipeline_mode<synchronous>, transform_indices = @transform_6, window_bounds = array<i64: 1, 128>}, {pipeline_mode = #tpu.pipeline_mode<synchronous>, transform_indices = @transform_7, window_bounds = array<i64: 128, 10>}, {pipeline_mode = #tpu.pipeline_mode<synchronous>, transform_indices = @transform_8, window_bounds = array<i64: 1, 10>}, {pipeline_mode = #tpu.pipeline_mode<synchronous>, transform_indices = @transform_9, window_bounds = array<i64: 2, 10>}]} {
    %cst = arith.constant 0.000000e+00 : f32
    %0 = vector.broadcast %cst : f32 to vector<264x16xf32>
    %c0 = arith.constant 0 : index
    %c0_0 = arith.constant 0 : index
    %1 = vector.load %arg11[%c0, %c0_0] : memref<264x16xf32, #tpu.memory_space<vmem>>, vector<264x16xf32>
    tpu.vector_store %arg11[%c0, %c0_0], %0 {strides = array<i32>} : memref<264x16xf32, #tpu.memory_space<vmem>>, vector<264x16xf32>,
    %c0_1 = arith.constant 0 : index
    %c0_2 = arith.constant 0 : index
    %2 = vector.load %arg3[%c0_1, %c0_2] : memref<1x16xf32, #tpu.memory_space<vmem>>, vector<1x16xf32>
    %c0_3 = arith.constant 0 : index
    %c0_4 = arith.constant 0 : index
    %3 = vector.load %arg5[%c0_3, %c0_4] : memref<1x32xf32, #tpu.memory_space<vmem>>, vector<1x32xf32>
    %4 = tpu.iota {dimensions = array<i32: 0>} : vector<224x1xi32>
    %c15_i32 = arith.constant 15 : i32
    %5 = vector.broadcast %c15_i32 : i32 to vector<224x1xi32>
    %6 = arith.andi %4, %5 : vector<224x1xi32>
    %c14_i32 = arith.constant 14 : i32
    %7 = vector.broadcast %c14_i32 : i32 to vector<224x1xi32>
    %8 = arith.cmpi slt, %6, %7 : vector<224x1xi32>
    %cst_5 = arith.constant 0.000000e+00 : f32
    %9 = vector.broadcast %cst_5 : f32 to vector<224x16xf32>
    %c0_6 = arith.constant 0 : index
    %c0_7 = arith.constant 0 : index
    %c0_8 = arith.constant 0 : index
    %10 = vector.load %arg1[%c0_6, %c0_7, %c0_8] : memref<2x264x1xf32, #tpu.memory_space<vmem>>, vector<1x224x1xf32>
    %11 = vector.shape_cast %10 : vector<1x224x1xf32> to vector<224x1xf32>
    %c0_9 = arith.constant 0 : index
    %c0_10 = arith.constant 0 : index
    %12 = vector.load %arg2[%c0_9, %c0_10] : memref<9x16xf32, #tpu.memory_space<vmem>>, vector<1x16xf32>
    %13 = vector.broadcast %11 : vector<224x1xf32> to vector<224x16xf32>
    %14 = vector.broadcast %12 : vector<1x16xf32> to vector<224x16xf32>
    %15 = arith.mulf %13, %14 : vector<224x16xf32>
    %16 = arith.addf %9, %15 : vector<224x16xf32>
    %c0_11 = arith.constant 0 : index
    %c1 = arith.constant 1 : index
    %c0_12 = arith.constant 0 : index
    %17 = vector.load %arg1[%c0_11, %c1, %c0_12] : memref<2x264x1xf32, #tpu.memory_space<vmem>>, vector<1x224x1xf32>
    %18 = vector.shape_cast %17 : vector<1x224x1xf32> to vector<224x1xf32>
    %c1_13 = arith.constant 1 : index
    %c0_14 = arith.constant 0 : index
    %19 = vector.load %arg2[%c1_13, %c0_14] : memref<9x16xf32, #tpu.memory_space<vmem>>, vector<1x16xf32>
    %20 = vector.broadcast %18 : vector<224x1xf32> to vector<224x16xf32>
    %21 = vector.broadcast %19 : vector<1x16xf32> to vector<224x16xf32>
    %22 = arith.mulf %20, %21 : vector<224x16xf32>
    %23 = arith.addf %16, %22 : vector<224x16xf32>
    %c0_15 = arith.constant 0 : index
    %c2 = arith.constant 2 : index
    %c0_16 = arith.constant 0 : index
    %24 = vector.load %arg1[%c0_15, %c2, %c0_16] : memref<2x264x1xf32, #tpu.memory_space<vmem>>, vector<1x224x1xf32>
    %25 = vector.shape_cast %24 : vector<1x224x1xf32> to vector<224x1xf32>
    %c2_17 = arith.constant 2 : index
    %c0_18 = arith.constant 0 : index
    %26 = vector.load %arg2[%c2_17, %c0_18] : memref<9x16xf32, #tpu.memory_space<vmem>>, vector<1x16xf32>
    %27 = vector.broadcast %25 : vector<224x1xf32> to vector<224x16xf32>
    %28 = vector.broadcast %26 : vector<1x16xf32> to vector<224x16xf32>
    %29 = arith.mulf %27, %28 : vector<224x16xf32>
    %30 = arith.addf %23, %29 : vector<224x16xf32>
    %c0_19 = arith.constant 0 : index
    %c16 = arith.constant 16 : index
    %c0_20 = arith.constant 0 : index
    %31 = vector.load %arg1[%c0_19, %c16, %c0_20] : memref<2x264x1xf32, #tpu.memory_space<vmem>>, vector<1x224x1xf32>
    %32 = vector.shape_cast %31 : vector<1x224x1xf32> to vector<224x1xf32>
    %c3 = arith.constant 3 : index
    %c0_21 = arith.constant 0 : index
    %33 = vector.load %arg2[%c3, %c0_21] : memref<9x16xf32, #tpu.memory_space<vmem>>, vector<1x16xf32>
    %34 = vector.broadcast %32 : vector<224x1xf32> to vector<224x16xf32>
    %35 = vector.broadcast %33 : vector<1x16xf32> to vector<224x16xf32>
    %36 = arith.mulf %34, %35 : vector<224x16xf32>
    %37 = arith.addf %30, %36 : vector<224x16xf32>
    %c0_22 = arith.constant 0 : index
    %c17 = arith.constant 17 : index
    %c0_23 = arith.constant 0 : index
    %38 = vector.load %arg1[%c0_22, %c17, %c0_23] : memref<2x264x1xf32, #tpu.memory_space<vmem>>, vector<1x224x1xf32>
    %39 = vector.shape_cast %38 : vector<1x224x1xf32> to vector<224x1xf32>
    %c4 = arith.constant 4 : index
    %c0_24 = arith.constant 0 : index
    %40 = vector.load %arg2[%c4, %c0_24] : memref<9x16xf32, #tpu.memory_space<vmem>>, vector<1x16xf32>
    %41 = vector.broadcast %39 : vector<224x1xf32> to vector<224x16xf32>
    %42 = vector.broadcast %40 : vector<1x16xf32> to vector<224x16xf32>
    %43 = arith.mulf %41, %42 : vector<224x16xf32>
    %44 = arith.addf %37, %43 : vector<224x16xf32>
    %c0_25 = arith.constant 0 : index
    %c18 = arith.constant 18 : index
    %c0_26 = arith.constant 0 : index
    %45 = vector.load %arg1[%c0_25, %c18, %c0_26] : memref<2x264x1xf32, #tpu.memory_space<vmem>>, vector<1x224x1xf32>
    %46 = vector.shape_cast %45 : vector<1x224x1xf32> to vector<224x1xf32>
    %c5 = arith.constant 5 : index
    %c0_27 = arith.constant 0 : index
    %47 = vector.load %arg2[%c5, %c0_27] : memref<9x16xf32, #tpu.memory_space<vmem>>, vector<1x16xf32>
    %48 = vector.broadcast %46 : vector<224x1xf32> to vector<224x16xf32>
    %49 = vector.broadcast %47 : vector<1x16xf32> to vector<224x16xf32>
    %50 = arith.mulf %48, %49 : vector<224x16xf32>
    %51 = arith.addf %44, %50 : vector<224x16xf32>
    %c0_28 = arith.constant 0 : index
    %c32 = arith.constant 32 : index
    %c0_29 = arith.constant 0 : index
    %52 = vector.load %arg1[%c0_28, %c32, %c0_29] : memref<2x264x1xf32, #tpu.memory_space<vmem>>, vector<1x224x1xf32>
    %53 = vector.shape_cast %52 : vector<1x224x1xf32> to vector<224x1xf32>
    %c6 = arith.constant 6 : index
    %c0_30 = arith.constant 0 : index
    %54 = vector.load %arg2[%c6, %c0_30] : memref<9x16xf32, #tpu.memory_space<vmem>>, vector<1x16xf32>
    %55 = vector.broadcast %53 : vector<224x1xf32> to vector<224x16xf32>
    %56 = vector.broadcast %54 : vector<1x16xf32> to vector<224x16xf32>
    %57 = arith.mulf %55, %56 : vector<224x16xf32>
    %58 = arith.addf %51, %57 : vector<224x16xf32>
    %c0_31 = arith.constant 0 : index
    %c33 = arith.constant 33 : index
    %c0_32 = arith.constant 0 : index
    %59 = vector.load %arg1[%c0_31, %c33, %c0_32] : memref<2x264x1xf32, #tpu.memory_space<vmem>>, vector<1x224x1xf32>
    %60 = vector.shape_cast %59 : vector<1x224x1xf32> to vector<224x1xf32>
    %c7 = arith.constant 7 : index
    %c0_33 = arith.constant 0 : index
    %61 = vector.load %arg2[%c7, %c0_33] : memref<9x16xf32, #tpu.memory_space<vmem>>, vector<1x16xf32>
    %62 = vector.broadcast %60 : vector<224x1xf32> to vector<224x16xf32>
    %63 = vector.broadcast %61 : vector<1x16xf32> to vector<224x16xf32>
    %64 = arith.mulf %62, %63 : vector<224x16xf32>
    %65 = arith.addf %58, %64 : vector<224x16xf32>
    %c0_34 = arith.constant 0 : index
    %c34 = arith.constant 34 : index
    %c0_35 = arith.constant 0 : index
    %66 = vector.load %arg1[%c0_34, %c34, %c0_35] : memref<2x264x1xf32, #tpu.memory_space<vmem>>, vector<1x224x1xf32>
    %67 = vector.shape_cast %66 : vector<1x224x1xf32> to vector<224x1xf32>
    %c8 = arith.constant 8 : index
    %c0_36 = arith.constant 0 : index
    %68 = vector.load %arg2[%c8, %c0_36] : memref<9x16xf32, #tpu.memory_space<vmem>>, vector<1x16xf32>
    %69 = vector.broadcast %67 : vector<224x1xf32> to vector<224x16xf32>
    %70 = vector.broadcast %68 : vector<1x16xf32> to vector<224x16xf32>
    %71 = arith.mulf %69, %70 : vector<224x16xf32>
    %72 = arith.addf %65, %71 : vector<224x16xf32>
    %73 = vector.broadcast %2 : vector<1x16xf32> to vector<224x16xf32>
    %74 = arith.addf %72, %73 : vector<224x16xf32>
    %cst_37 = arith.constant 0.000000e+00 : f32
    %75 = vector.broadcast %cst_37 : f32 to vector<224x16xf32>
    %76 = arith.maximumf %74, %75 : vector<224x16xf32>
    %cst_38 = arith.constant 0.000000e+00 : f32
    %77 = vector.shape_cast %8 : vector<224x1xi1> to vector<224x1xi1>
    %78 = vector.broadcast %77 : vector<224x1xi1> to vector<224x16xi1>
    %79 = vector.broadcast %cst_38 : f32 to vector<224x16xf32>
    %80 = arith.select %78, %76, %79 : vector<224x16xi1>, vector<224x16xf32>
    %c17_39 = arith.constant 17 : index
    %c0_40 = arith.constant 0 : index
    %81 = vector.load %arg11[%c17_39, %c0_40] : memref<264x16xf32, #tpu.memory_space<vmem>>, vector<224x16xf32>
    tpu.vector_store %arg11[%c17_39, %c0_40], %80 {strides = array<i32>} : memref<264x16xf32, #tpu.memory_space<vmem>>, vector<224x16xf32>,
    %c0_41 = arith.constant 0 : index
    %c0_42 = arith.constant 0 : index
    %82 = vector.load %arg11[%c0_41, %c0_42] : memref<264x16xf32, #tpu.memory_space<vmem>>, vector<224x16xf32>
    %c0_43 = arith.constant 0 : index
    %c0_44 = arith.constant 0 : index
    %83 = vector.load %arg12[%c0_43, %c0_44] : memref<224x144xf32, #tpu.memory_space<vmem>>, vector<224x16xf32>
    tpu.vector_store %arg12[%c0_43, %c0_44], %82 {strides = array<i32>} : memref<224x144xf32, #tpu.memory_space<vmem>>, vector<224x16xf32>,
    %c1_45 = arith.constant 1 : index
    %c0_46 = arith.constant 0 : index
    %84 = vector.load %arg11[%c1_45, %c0_46] : memref<264x16xf32, #tpu.memory_space<vmem>>, vector<224x16xf32>
    %c0_47 = arith.constant 0 : index
    %c16_48 = arith.constant 16 : index
    %85 = vector.load %arg12[%c0_47, %c16_48] : memref<224x144xf32, #tpu.memory_space<vmem>>, vector<224x16xf32>
    tpu.vector_store %arg12[%c0_47, %c16_48], %84 {strides = array<i32>} : memref<224x144xf32, #tpu.memory_space<vmem>>, vector<224x16xf32>,
    %c2_49 = arith.constant 2 : index
    %c0_50 = arith.constant 0 : index
    %86 = vector.load %arg11[%c2_49, %c0_50] : memref<264x16xf32, #tpu.memory_space<vmem>>, vector<224x16xf32>
    %c0_51 = arith.constant 0 : index
    %c32_52 = arith.constant 32 : index
    %87 = vector.load %arg12[%c0_51, %c32_52] : memref<224x144xf32, #tpu.memory_space<vmem>>, vector<224x16xf32>
    tpu.vector_store %arg12[%c0_51, %c32_52], %86 {strides = array<i32>} : memref<224x144xf32, #tpu.memory_space<vmem>>, vector<224x16xf32>,
    %c16_53 = arith.constant 16 : index
    %c0_54 = arith.constant 0 : index
    %88 = vector.load %arg11[%c16_53, %c0_54] : memref<264x16xf32, #tpu.memory_space<vmem>>, vector<224x16xf32>
    %c0_55 = arith.constant 0 : index
    %c48 = arith.constant 48 : index
    %89 = vector.load %arg12[%c0_55, %c48] : memref<224x144xf32, #tpu.memory_space<vmem>>, vector<224x16xf32>
    tpu.vector_store %arg12[%c0_55, %c48], %88 {strides = array<i32>} : memref<224x144xf32, #tpu.memory_space<vmem>>, vector<224x16xf32>,
    %c17_56 = arith.constant 17 : index
    %c0_57 = arith.constant 0 : index
    %90 = vector.load %arg11[%c17_56, %c0_57] : memref<264x16xf32, #tpu.memory_space<vmem>>, vector<224x16xf32>
    %c0_58 = arith.constant 0 : index
    %c64 = arith.constant 64 : index
    %91 = vector.load %arg12[%c0_58, %c64] : memref<224x144xf32, #tpu.memory_space<vmem>>, vector<224x16xf32>
    tpu.vector_store %arg12[%c0_58, %c64], %90 {strides = array<i32>} : memref<224x144xf32, #tpu.memory_space<vmem>>, vector<224x16xf32>,
    %c18_59 = arith.constant 18 : index
    %c0_60 = arith.constant 0 : index
    %92 = vector.load %arg11[%c18_59, %c0_60] : memref<264x16xf32, #tpu.memory_space<vmem>>, vector<224x16xf32>
    %c0_61 = arith.constant 0 : index
    %c80 = arith.constant 80 : index
    %93 = vector.load %arg12[%c0_61, %c80] : memref<224x144xf32, #tpu.memory_space<vmem>>, vector<224x16xf32>
    tpu.vector_store %arg12[%c0_61, %c80], %92 {strides = array<i32>} : memref<224x144xf32, #tpu.memory_space<vmem>>, vector<224x16xf32>,
    %c32_62 = arith.constant 32 : index
    %c0_63 = arith.constant 0 : index
    %94 = vector.load %arg11[%c32_62, %c0_63] : memref<264x16xf32, #tpu.memory_space<vmem>>, vector<224x16xf32>
    %c0_64 = arith.constant 0 : index
    %c96 = arith.constant 96 : index
    %95 = vector.load %arg12[%c0_64, %c96] : memref<224x144xf32, #tpu.memory_space<vmem>>, vector<224x16xf32>
    tpu.vector_store %arg12[%c0_64, %c96], %94 {strides = array<i32>} : memref<224x144xf32, #tpu.memory_space<vmem>>, vector<224x16xf32>,
    %c33_65 = arith.constant 33 : index
    %c0_66 = arith.constant 0 : index
    %96 = vector.load %arg11[%c33_65, %c0_66] : memref<264x16xf32, #tpu.memory_space<vmem>>, vector<224x16xf32>
    %c0_67 = arith.constant 0 : index
    %c112 = arith.constant 112 : index
    %97 = vector.load %arg12[%c0_67, %c112] : memref<224x144xf32, #tpu.memory_space<vmem>>, vector<224x16xf32>
    tpu.vector_store %arg12[%c0_67, %c112], %96 {strides = array<i32>} : memref<224x144xf32, #tpu.memory_space<vmem>>, vector<224x16xf32>,
    %c34_68 = arith.constant 34 : index
    %c0_69 = arith.constant 0 : index
    %98 = vector.load %arg11[%c34_68, %c0_69] : memref<264x16xf32, #tpu.memory_space<vmem>>, vector<224x16xf32>
    %c0_70 = arith.constant 0 : index
    %c128 = arith.constant 128 : index
    %99 = vector.load %arg12[%c0_70, %c128] : memref<224x144xf32, #tpu.memory_space<vmem>>, vector<224x16xf32>
    tpu.vector_store %arg12[%c0_70, %c128], %98 {strides = array<i32>} : memref<224x144xf32, #tpu.memory_space<vmem>>, vector<224x16xf32>,
    %c0_71 = arith.constant 0 : index
    %c0_72 = arith.constant 0 : index
    %100 = vector.load %arg12[%c0_71, %c0_72] : memref<224x144xf32, #tpu.memory_space<vmem>>, vector<224x144xf32>
    %c0_73 = arith.constant 0 : index
    %c0_74 = arith.constant 0 : index
    %101 = vector.load %arg4[%c0_73, %c0_74] : memref<144x32xf32, #tpu.memory_space<vmem>>, vector<144x32xf32>
    %cst_75 = arith.constant dense<0.000000e+00> : vector<224x32xf32>
    %102 = tpu.matmul %100, %101, %cst_75 {dimension_numbers = #tpu.dot_dimension_numbers<[1], [0], [0], [1], [0, 0, 1, 1], [], []>} : vector<224x144xf32>, vector<144x32xf32>, vector<224x32xf32> -> vector<224x32xf32>
    %103 = vector.broadcast %3 : vector<1x32xf32> to vector<224x32xf32>
    %104 = arith.addf %102, %103 : vector<224x32xf32>
    %cst_76 = arith.constant 0.000000e+00 : f32
    %105 = vector.broadcast %cst_76 : f32 to vector<224x32xf32>
    %106 = arith.maximumf %104, %105 : vector<224x32xf32>
    %c0_77 = arith.constant 0 : index
    %c0_78 = arith.constant 0 : index
    %107 = vector.load %arg13[%c0_77, %c0_78] : memref<224x32xf32, #tpu.memory_space<vmem>>, vector<224x32xf32>
    tpu.vector_store %arg13[%c0_77, %c0_78], %106 {strides = array<i32>} : memref<224x32xf32, #tpu.memory_space<vmem>>, vector<224x32xf32>,
    %c0_79 = arith.constant 0 : index
    %c0_80 = arith.constant 0 : index
    %108 = tpu.strided_load %arg13[%c0_79, %c0_80] {strides = array<i32: 2, 1>} : memref<224x32xf32, #tpu.memory_space<vmem>>, vector<112x32xf32>
    %c1_81 = arith.constant 1 : index
    %c0_82 = arith.constant 0 : index
    %109 = tpu.strided_load %arg13[%c1_81, %c0_82] {strides = array<i32: 2, 1>} : memref<224x32xf32, #tpu.memory_space<vmem>>, vector<112x32xf32>
    %110 = arith.maximumf %108, %109 : vector<112x32xf32>
    %111 = vector.extract_strided_slice %110 {offsets = [0, 0], sizes = [8, 32], strides = [1, 1]} : vector<112x32xf32> to vector<8x32xf32>
    %112 = vector.extract_strided_slice %110 {offsets = [8, 0], sizes = [8, 32], strides = [1, 1]} : vector<112x32xf32> to vector<8x32xf32>
    %113 = arith.maximumf %111, %112 : vector<8x32xf32>
    %114 = vector.extract_strided_slice %113 {offsets = [0, 0], sizes = [1, 32], strides = [1, 1]} : vector<8x32xf32> to vector<1x32xf32>
    %c0_83 = arith.constant 0 : index
    %c0_84 = arith.constant 0 : index
    %115 = vector.load %arg14[%c0_83, %c0_84] : memref<2x1568xf32, #tpu.memory_space<vmem>>, vector<1x32xf32>
    tpu.vector_store %arg14[%c0_83, %c0_84], %114 {strides = array<i32>} : memref<2x1568xf32, #tpu.memory_space<vmem>>, vector<1x32xf32>,
    %116 = vector.extract_strided_slice %113 {offsets = [1, 0], sizes = [1, 32], strides = [1, 1]} : vector<8x32xf32> to vector<1x32xf32>
    %c0_85 = arith.constant 0 : index
    %c32_86 = arith.constant 32 : index
    %117 = vector.load %arg14[%c0_85, %c32_86] : memref<2x1568xf32, #tpu.memory_space<vmem>>, vector<1x32xf32>
    tpu.vector_store %arg14[%c0_85, %c32_86], %116 {strides = array<i32>} : memref<2x1568xf32, #tpu.memory_space<vmem>>, vector<1x32xf32>,
    %118 = vector.extract_strided_slice %113 {offsets = [2, 0], sizes = [1, 32], strides = [1, 1]} : vector<8x32xf32> to vector<1x32xf32>
    %c0_87 = arith.constant 0 : index
    %c64_88 = arith.constant 64 : index
    %119 = vector.load %arg14[%c0_87, %c64_88] : memref<2x1568xf32, #tpu.memory_space<vmem>>, vector<1x32xf32>
    tpu.vector_store %arg14[%c0_87, %c64_88], %118 {strides = array<i32>} : memref<2x1568xf32, #tpu.memory_space<vmem>>, vector<1x32xf32>,
    %120 = vector.extract_strided_slice %113 {offsets = [3, 0], sizes = [1, 32], strides = [1, 1]} : vector<8x32xf32> to vector<1x32xf32>
    %c0_89 = arith.constant 0 : index
    %c96_90 = arith.constant 96 : index
    %121 = vector.load %arg14[%c0_89, %c96_90] : memref<2x1568xf32, #tpu.memory_space<vmem>>, vector<1x32xf32>
    tpu.vector_store %arg14[%c0_89, %c96_90], %120 {strides = array<i32>} : memref<2x1568xf32, #tpu.memory_space<vmem>>, vector<1x32xf32>,
    %122 = vector.extract_strided_slice %113 {offsets = [4, 0], sizes = [1, 32], strides = [1, 1]} : vector<8x32xf32> to vector<1x32xf32>
    %c0_91 = arith.constant 0 : index
    %c128_92 = arith.constant 128 : index
    %123 = vector.load %arg14[%c0_91, %c128_92] : memref<2x1568xf32, #tpu.memory_space<vmem>>, vector<1x32xf32>
    tpu.vector_store %arg14[%c0_91, %c128_92], %122 {strides = array<i32>} : memref<2x1568xf32, #tpu.memory_space<vmem>>, vector<1x32xf32>,
    %124 = vector.extract_strided_slice %113 {offsets = [5, 0], sizes = [1, 32], strides = [1, 1]} : vector<8x32xf32> to vector<1x32xf32>
    %c0_93 = arith.constant 0 : index
    %c160 = arith.constant 160 : index
    %125 = vector.load %arg14[%c0_93, %c160] : memref<2x1568xf32, #tpu.memory_space<vmem>>, vector<1x32xf32>
    tpu.vector_store %arg14[%c0_93, %c160], %124 {strides = array<i32>} : memref<2x1568xf32, #tpu.memory_space<vmem>>, vector<1x32xf32>,
    %126 = vector.extract_strided_slice %113 {offsets = [6, 0], sizes = [1, 32], strides = [1, 1]} : vector<8x32xf32> to vector<1x32xf32>
    %c0_94 = arith.constant 0 : index
    %c192 = arith.constant 192 : index
    %127 = vector.load %arg14[%c0_94, %c192] : memref<2x1568xf32, #tpu.memory_space<vmem>>, vector<1x32xf32>
    tpu.vector_store %arg14[%c0_94, %c192], %126 {strides = array<i32>} : memref<2x1568xf32, #tpu.memory_space<vmem>>, vector<1x32xf32>,
    %128 = vector.extract_strided_slice %110 {offsets = [16, 0], sizes = [8, 32], strides = [1, 1]} : vector<112x32xf32> to vector<8x32xf32>
    %129 = vector.extract_strided_slice %110 {offsets = [24, 0], sizes = [8, 32], strides = [1, 1]} : vector<112x32xf32> to vector<8x32xf32>
    %130 = arith.maximumf %128, %129 : vector<8x32xf32>
    %131 = vector.extract_strided_slice %130 {offsets = [0, 0], sizes = [1, 32], strides = [1, 1]} : vector<8x32xf32> to vector<1x32xf32>
    %c0_95 = arith.constant 0 : index
    %c224 = arith.constant 224 : index
    %132 = vector.load %arg14[%c0_95, %c224] : memref<2x1568xf32, #tpu.memory_space<vmem>>, vector<1x32xf32>
    tpu.vector_store %arg14[%c0_95, %c224], %131 {strides = array<i32>} : memref<2x1568xf32, #tpu.memory_space<vmem>>, vector<1x32xf32>,
    %133 = vector.extract_strided_slice %130 {offsets = [1, 0], sizes = [1, 32], strides = [1, 1]} : vector<8x32xf32> to vector<1x32xf32>
    %c0_96 = arith.constant 0 : index
    %c256 = arith.constant 256 : index
    %134 = vector.load %arg14[%c0_96, %c256] : memref<2x1568xf32, #tpu.memory_space<vmem>>, vector<1x32xf32>
    tpu.vector_store %arg14[%c0_96, %c256], %133 {strides = array<i32>} : memref<2x1568xf32, #tpu.memory_space<vmem>>, vector<1x32xf32>,
    %135 = vector.extract_strided_slice %130 {offsets = [2, 0], sizes = [1, 32], strides = [1, 1]} : vector<8x32xf32> to vector<1x32xf32>
    %c0_97 = arith.constant 0 : index
    %c288 = arith.constant 288 : index
    %136 = vector.load %arg14[%c0_97, %c288] : memref<2x1568xf32, #tpu.memory_space<vmem>>, vector<1x32xf32>
    tpu.vector_store %arg14[%c0_97, %c288], %135 {strides = array<i32>} : memref<2x1568xf32, #tpu.memory_space<vmem>>, vector<1x32xf32>,
    %137 = vector.extract_strided_slice %130 {offsets = [3, 0], sizes = [1, 32], strides = [1, 1]} : vector<8x32xf32> to vector<1x32xf32>
    %c0_98 = arith.constant 0 : index
    %c320 = arith.constant 320 : index
    %138 = vector.load %arg14[%c0_98, %c320] : memref<2x1568xf32, #tpu.memory_space<vmem>>, vector<1x32xf32>
    tpu.vector_store %arg14[%c0_98, %c320], %137 {strides = array<i32>} : memref<2x1568xf32, #tpu.memory_space<vmem>>, vector<1x32xf32>,
    %139 = vector.extract_strided_slice %130 {offsets = [4, 0], sizes = [1, 32], strides = [1, 1]} : vector<8x32xf32> to vector<1x32xf32>
    %c0_99 = arith.constant 0 : index
    %c352 = arith.constant 352 : index
    %140 = vector.load %arg14[%c0_99, %c352] : memref<2x1568xf32, #tpu.memory_space<vmem>>, vector<1x32xf32>
    tpu.vector_store %arg14[%c0_99, %c352], %139 {strides = array<i32>} : memref<2x1568xf32, #tpu.memory_space<vmem>>, vector<1x32xf32>,
    %141 = vector.extract_strided_slice %130 {offsets = [5, 0], sizes = [1, 32], strides = [1, 1]} : vector<8x32xf32> to vector<1x32xf32>
    %c0_100 = arith.constant 0 : index
    %c384 = arith.constant 384 : index
    %142 = vector.load %arg14[%c0_100, %c384] : memref<2x1568xf32, #tpu.memory_space<vmem>>, vector<1x32xf32>
    tpu.vector_store %arg14[%c0_100, %c384], %141 {strides = array<i32>} : memref<2x1568xf32, #tpu.memory_space<vmem>>, vector<1x32xf32>,
    %143 = vector.extract_strided_slice %130 {offsets = [6, 0], sizes = [1, 32], strides = [1, 1]} : vector<8x32xf32> to vector<1x32xf32>
    %c0_101 = arith.constant 0 : index
    %c416 = arith.constant 416 : index
    %144 = vector.load %arg14[%c0_101, %c416] : memref<2x1568xf32, #tpu.memory_space<vmem>>, vector<1x32xf32>
    tpu.vector_store %arg14[%c0_101, %c416], %143 {strides = array<i32>} : memref<2x1568xf32, #tpu.memory_space<vmem>>, vector<1x32xf32>,
    %145 = vector.extract_strided_slice %110 {offsets = [32, 0], sizes = [8, 32], strides = [1, 1]} : vector<112x32xf32> to vector<8x32xf32>
    %146 = vector.extract_strided_slice %110 {offsets = [40, 0], sizes = [8, 32], strides = [1, 1]} : vector<112x32xf32> to vector<8x32xf32>
    %147 = arith.maximumf %145, %146 : vector<8x32xf32>
    %148 = vector.extract_strided_slice %147 {offsets = [0, 0], sizes = [1, 32], strides = [1, 1]} : vector<8x32xf32> to vector<1x32xf32>
    %c0_102 = arith.constant 0 : index
    %c448 = arith.constant 448 : index
    %149 = vector.load %arg14[%c0_102, %c448] : memref<2x1568xf32, #tpu.memory_space<vmem>>, vector<1x32xf32>
    tpu.vector_store %arg14[%c0_102, %c448], %148 {strides = array<i32>} : memref<2x1568xf32, #tpu.memory_space<vmem>>, vector<1x32xf32>,
    %150 = vector.extract_strided_slice %147 {offsets = [1, 0], sizes = [1, 32], strides = [1, 1]} : vector<8x32xf32> to vector<1x32xf32>
    %c0_103 = arith.constant 0 : index
    %c480 = arith.constant 480 : index
    %151 = vector.load %arg14[%c0_103, %c480] : memref<2x1568xf32, #tpu.memory_space<vmem>>, vector<1x32xf32>
    tpu.vector_store %arg14[%c0_103, %c480], %150 {strides = array<i32>} : memref<2x1568xf32, #tpu.memory_space<vmem>>, vector<1x32xf32>,
    %152 = vector.extract_strided_slice %147 {offsets = [2, 0], sizes = [1, 32], strides = [1, 1]} : vector<8x32xf32> to vector<1x32xf32>
    %c0_104 = arith.constant 0 : index
    %c512 = arith.constant 512 : index
    %153 = vector.load %arg14[%c0_104, %c512] : memref<2x1568xf32, #tpu.memory_space<vmem>>, vector<1x32xf32>
    tpu.vector_store %arg14[%c0_104, %c512], %152 {strides = array<i32>} : memref<2x1568xf32, #tpu.memory_space<vmem>>, vector<1x32xf32>,
    %154 = vector.extract_strided_slice %147 {offsets = [3, 0], sizes = [1, 32], strides = [1, 1]} : vector<8x32xf32> to vector<1x32xf32>
    %c0_105 = arith.constant 0 : index
    %c544 = arith.constant 544 : index
    %155 = vector.load %arg14[%c0_105, %c544] : memref<2x1568xf32, #tpu.memory_space<vmem>>, vector<1x32xf32>
    tpu.vector_store %arg14[%c0_105, %c544], %154 {strides = array<i32>} : memref<2x1568xf32, #tpu.memory_space<vmem>>, vector<1x32xf32>,
    %156 = vector.extract_strided_slice %147 {offsets = [4, 0], sizes = [1, 32], strides = [1, 1]} : vector<8x32xf32> to vector<1x32xf32>
    %c0_106 = arith.constant 0 : index
    %c576 = arith.constant 576 : index
    %157 = vector.load %arg14[%c0_106, %c576] : memref<2x1568xf32, #tpu.memory_space<vmem>>, vector<1x32xf32>
    tpu.vector_store %arg14[%c0_106, %c576], %156 {strides = array<i32>} : memref<2x1568xf32, #tpu.memory_space<vmem>>, vector<1x32xf32>,
    %158 = vector.extract_strided_slice %147 {offsets = [5, 0], sizes = [1, 32], strides = [1, 1]} : vector<8x32xf32> to vector<1x32xf32>
    %c0_107 = arith.constant 0 : index
    %c608 = arith.constant 608 : index
    %159 = vector.load %arg14[%c0_107, %c608] : memref<2x1568xf32, #tpu.memory_space<vmem>>, vector<1x32xf32>
    tpu.vector_store %arg14[%c0_107, %c608], %158 {strides = array<i32>} : memref<2x1568xf32, #tpu.memory_space<vmem>>, vector<1x32xf32>,
    %160 = vector.extract_strided_slice %147 {offsets = [6, 0], sizes = [1, 32], strides = [1, 1]} : vector<8x32xf32> to vector<1x32xf32>
    %c0_108 = arith.constant 0 : index
    %c640 = arith.constant 640 : index
    %161 = vector.load %arg14[%c0_108, %c640] : memref<2x1568xf32, #tpu.memory_space<vmem>>, vector<1x32xf32>
    tpu.vector_store %arg14[%c0_108, %c640], %160 {strides = array<i32>} : memref<2x1568xf32, #tpu.memory_space<vmem>>, vector<1x32xf32>,
    %162 = vector.extract_strided_slice %110 {offsets = [48, 0], sizes = [8, 32], strides = [1, 1]} : vector<112x32xf32> to vector<8x32xf32>
    %163 = vector.extract_strided_slice %110 {offsets = [56, 0], sizes = [8, 32], strides = [1, 1]} : vector<112x32xf32> to vector<8x32xf32>
    %164 = arith.maximumf %162, %163 : vector<8x32xf32>
    %165 = vector.extract_strided_slice %164 {offsets = [0, 0], sizes = [1, 32], strides = [1, 1]} : vector<8x32xf32> to vector<1x32xf32>
    %c0_109 = arith.constant 0 : index
    %c672 = arith.constant 672 : index
    %166 = vector.load %arg14[%c0_109, %c672] : memref<2x1568xf32, #tpu.memory_space<vmem>>, vector<1x32xf32>
    tpu.vector_store %arg14[%c0_109, %c672], %165 {strides = array<i32>} : memref<2x1568xf32, #tpu.memory_space<vmem>>, vector<1x32xf32>,
    %167 = vector.extract_strided_slice %164 {offsets = [1, 0], sizes = [1, 32], strides = [1, 1]} : vector<8x32xf32> to vector<1x32xf32>
    %c0_110 = arith.constant 0 : index
    %c704 = arith.constant 704 : index
    %168 = vector.load %arg14[%c0_110, %c704] : memref<2x1568xf32, #tpu.memory_space<vmem>>, vector<1x32xf32>
    tpu.vector_store %arg14[%c0_110, %c704], %167 {strides = array<i32>} : memref<2x1568xf32, #tpu.memory_space<vmem>>, vector<1x32xf32>,
    %169 = vector.extract_strided_slice %164 {offsets = [2, 0], sizes = [1, 32], strides = [1, 1]} : vector<8x32xf32> to vector<1x32xf32>
    %c0_111 = arith.constant 0 : index
    %c736 = arith.constant 736 : index
    %170 = vector.load %arg14[%c0_111, %c736] : memref<2x1568xf32, #tpu.memory_space<vmem>>, vector<1x32xf32>
    tpu.vector_store %arg14[%c0_111, %c736], %169 {strides = array<i32>} : memref<2x1568xf32, #tpu.memory_space<vmem>>, vector<1x32xf32>,
    %171 = vector.extract_strided_slice %164 {offsets = [3, 0], sizes = [1, 32], strides = [1, 1]} : vector<8x32xf32> to vector<1x32xf32>
    %c0_112 = arith.constant 0 : index
    %c768 = arith.constant 768 : index
    %172 = vector.load %arg14[%c0_112, %c768] : memref<2x1568xf32, #tpu.memory_space<vmem>>, vector<1x32xf32>
    tpu.vector_store %arg14[%c0_112, %c768], %171 {strides = array<i32>} : memref<2x1568xf32, #tpu.memory_space<vmem>>, vector<1x32xf32>,
    %173 = vector.extract_strided_slice %164 {offsets = [4, 0], sizes = [1, 32], strides = [1, 1]} : vector<8x32xf32> to vector<1x32xf32>
    %c0_113 = arith.constant 0 : index
    %c800 = arith.constant 800 : index
    %174 = vector.load %arg14[%c0_113, %c800] : memref<2x1568xf32, #tpu.memory_space<vmem>>, vector<1x32xf32>
    tpu.vector_store %arg14[%c0_113, %c800], %173 {strides = array<i32>} : memref<2x1568xf32, #tpu.memory_space<vmem>>, vector<1x32xf32>,
    %175 = vector.extract_strided_slice %164 {offsets = [5, 0], sizes = [1, 32], strides = [1, 1]} : vector<8x32xf32> to vector<1x32xf32>
    %c0_114 = arith.constant 0 : index
    %c832 = arith.constant 832 : index
    %176 = vector.load %arg14[%c0_114, %c832] : memref<2x1568xf32, #tpu.memory_space<vmem>>, vector<1x32xf32>
    tpu.vector_store %arg14[%c0_114, %c832], %175 {strides = array<i32>} : memref<2x1568xf32, #tpu.memory_space<vmem>>, vector<1x32xf32>,
    %177 = vector.extract_strided_slice %164 {offsets = [6, 0], sizes = [1, 32], strides = [1, 1]} : vector<8x32xf32> to vector<1x32xf32>
    %c0_115 = arith.constant 0 : index
    %c864 = arith.constant 864 : index
    %178 = vector.load %arg14[%c0_115, %c864] : memref<2x1568xf32, #tpu.memory_space<vmem>>, vector<1x32xf32>
    tpu.vector_store %arg14[%c0_115, %c864], %177 {strides = array<i32>} : memref<2x1568xf32, #tpu.memory_space<vmem>>, vector<1x32xf32>,
    %179 = vector.extract_strided_slice %110 {offsets = [64, 0], sizes = [8, 32], strides = [1, 1]} : vector<112x32xf32> to vector<8x32xf32>
    %180 = vector.extract_strided_slice %110 {offsets = [72, 0], sizes = [8, 32], strides = [1, 1]} : vector<112x32xf32> to vector<8x32xf32>
    %181 = arith.maximumf %179, %180 : vector<8x32xf32>
    %182 = vector.extract_strided_slice %181 {offsets = [0, 0], sizes = [1, 32], strides = [1, 1]} : vector<8x32xf32> to vector<1x32xf32>
    %c0_116 = arith.constant 0 : index
    %c896 = arith.constant 896 : index
    %183 = vector.load %arg14[%c0_116, %c896] : memref<2x1568xf32, #tpu.memory_space<vmem>>, vector<1x32xf32>
    tpu.vector_store %arg14[%c0_116, %c896], %182 {strides = array<i32>} : memref<2x1568xf32, #tpu.memory_space<vmem>>, vector<1x32xf32>,
    %184 = vector.extract_strided_slice %181 {offsets = [1, 0], sizes = [1, 32], strides = [1, 1]} : vector<8x32xf32> to vector<1x32xf32>
    %c0_117 = arith.constant 0 : index
    %c928 = arith.constant 928 : index
    %185 = vector.load %arg14[%c0_117, %c928] : memref<2x1568xf32, #tpu.memory_space<vmem>>, vector<1x32xf32>
    tpu.vector_store %arg14[%c0_117, %c928], %184 {strides = array<i32>} : memref<2x1568xf32, #tpu.memory_space<vmem>>, vector<1x32xf32>,
    %186 = vector.extract_strided_slice %181 {offsets = [2, 0], sizes = [1, 32], strides = [1, 1]} : vector<8x32xf32> to vector<1x32xf32>
    %c0_118 = arith.constant 0 : index
    %c960 = arith.constant 960 : index
    %187 = vector.load %arg14[%c0_118, %c960] : memref<2x1568xf32, #tpu.memory_space<vmem>>, vector<1x32xf32>
    tpu.vector_store %arg14[%c0_118, %c960], %186 {strides = array<i32>} : memref<2x1568xf32, #tpu.memory_space<vmem>>, vector<1x32xf32>,
    %188 = vector.extract_strided_slice %181 {offsets = [3, 0], sizes = [1, 32], strides = [1, 1]} : vector<8x32xf32> to vector<1x32xf32>
    %c0_119 = arith.constant 0 : index
    %c992 = arith.constant 992 : index
    %189 = vector.load %arg14[%c0_119, %c992] : memref<2x1568xf32, #tpu.memory_space<vmem>>, vector<1x32xf32>
    tpu.vector_store %arg14[%c0_119, %c992], %188 {strides = array<i32>} : memref<2x1568xf32, #tpu.memory_space<vmem>>, vector<1x32xf32>,
    %190 = vector.extract_strided_slice %181 {offsets = [4, 0], sizes = [1, 32], strides = [1, 1]} : vector<8x32xf32> to vector<1x32xf32>
    %c0_120 = arith.constant 0 : index
    %c1024 = arith.constant 1024 : index
    %191 = vector.load %arg14[%c0_120, %c1024] : memref<2x1568xf32, #tpu.memory_space<vmem>>, vector<1x32xf32>
    tpu.vector_store %arg14[%c0_120, %c1024], %190 {strides = array<i32>} : memref<2x1568xf32, #tpu.memory_space<vmem>>, vector<1x32xf32>,
    %192 = vector.extract_strided_slice %181 {offsets = [5, 0], sizes = [1, 32], strides = [1, 1]} : vector<8x32xf32> to vector<1x32xf32>
    %c0_121 = arith.constant 0 : index
    %c1056 = arith.constant 1056 : index
    %193 = vector.load %arg14[%c0_121, %c1056] : memref<2x1568xf32, #tpu.memory_space<vmem>>, vector<1x32xf32>
    tpu.vector_store %arg14[%c0_121, %c1056], %192 {strides = array<i32>} : memref<2x1568xf32, #tpu.memory_space<vmem>>, vector<1x32xf32>,
    %194 = vector.extract_strided_slice %181 {offsets = [6, 0], sizes = [1, 32], strides = [1, 1]} : vector<8x32xf32> to vector<1x32xf32>
    %c0_122 = arith.constant 0 : index
    %c1088 = arith.constant 1088 : index
    %195 = vector.load %arg14[%c0_122, %c1088] : memref<2x1568xf32, #tpu.memory_space<vmem>>, vector<1x32xf32>
    tpu.vector_store %arg14[%c0_122, %c1088], %194 {strides = array<i32>} : memref<2x1568xf32, #tpu.memory_space<vmem>>, vector<1x32xf32>,
    %196 = vector.extract_strided_slice %110 {offsets = [80, 0], sizes = [8, 32], strides = [1, 1]} : vector<112x32xf32> to vector<8x32xf32>
    %197 = vector.extract_strided_slice %110 {offsets = [88, 0], sizes = [8, 32], strides = [1, 1]} : vector<112x32xf32> to vector<8x32xf32>
    %198 = arith.maximumf %196, %197 : vector<8x32xf32>
    %199 = vector.extract_strided_slice %198 {offsets = [0, 0], sizes = [1, 32], strides = [1, 1]} : vector<8x32xf32> to vector<1x32xf32>
    %c0_123 = arith.constant 0 : index
    %c1120 = arith.constant 1120 : index
    %200 = vector.load %arg14[%c0_123, %c1120] : memref<2x1568xf32, #tpu.memory_space<vmem>>, vector<1x32xf32>
    tpu.vector_store %arg14[%c0_123, %c1120], %199 {strides = array<i32>} : memref<2x1568xf32, #tpu.memory_space<vmem>>, vector<1x32xf32>,
    %201 = vector.extract_strided_slice %198 {offsets = [1, 0], sizes = [1, 32], strides = [1, 1]} : vector<8x32xf32> to vector<1x32xf32>
    %c0_124 = arith.constant 0 : index
    %c1152 = arith.constant 1152 : index
    %202 = vector.load %arg14[%c0_124, %c1152] : memref<2x1568xf32, #tpu.memory_space<vmem>>, vector<1x32xf32>
    tpu.vector_store %arg14[%c0_124, %c1152], %201 {strides = array<i32>} : memref<2x1568xf32, #tpu.memory_space<vmem>>, vector<1x32xf32>,
    %203 = vector.extract_strided_slice %198 {offsets = [2, 0], sizes = [1, 32], strides = [1, 1]} : vector<8x32xf32> to vector<1x32xf32>
    %c0_125 = arith.constant 0 : index
    %c1184 = arith.constant 1184 : index
    %204 = vector.load %arg14[%c0_125, %c1184] : memref<2x1568xf32, #tpu.memory_space<vmem>>, vector<1x32xf32>
    tpu.vector_store %arg14[%c0_125, %c1184], %203 {strides = array<i32>} : memref<2x1568xf32, #tpu.memory_space<vmem>>, vector<1x32xf32>,
    %205 = vector.extract_strided_slice %198 {offsets = [3, 0], sizes = [1, 32], strides = [1, 1]} : vector<8x32xf32> to vector<1x32xf32>
    %c0_126 = arith.constant 0 : index
    %c1216 = arith.constant 1216 : index
    %206 = vector.load %arg14[%c0_126, %c1216] : memref<2x1568xf32, #tpu.memory_space<vmem>>, vector<1x32xf32>
    tpu.vector_store %arg14[%c0_126, %c1216], %205 {strides = array<i32>} : memref<2x1568xf32, #tpu.memory_space<vmem>>, vector<1x32xf32>,
    %207 = vector.extract_strided_slice %198 {offsets = [4, 0], sizes = [1, 32], strides = [1, 1]} : vector<8x32xf32> to vector<1x32xf32>
    %c0_127 = arith.constant 0 : index
    %c1248 = arith.constant 1248 : index
    %208 = vector.load %arg14[%c0_127, %c1248] : memref<2x1568xf32, #tpu.memory_space<vmem>>, vector<1x32xf32>
    tpu.vector_store %arg14[%c0_127, %c1248], %207 {strides = array<i32>} : memref<2x1568xf32, #tpu.memory_space<vmem>>, vector<1x32xf32>,
    %209 = vector.extract_strided_slice %198 {offsets = [5, 0], sizes = [1, 32], strides = [1, 1]} : vector<8x32xf32> to vector<1x32xf32>
    %c0_128 = arith.constant 0 : index
    %c1280 = arith.constant 1280 : index
    %210 = vector.load %arg14[%c0_128, %c1280] : memref<2x1568xf32, #tpu.memory_space<vmem>>, vector<1x32xf32>
    tpu.vector_store %arg14[%c0_128, %c1280], %209 {strides = array<i32>} : memref<2x1568xf32, #tpu.memory_space<vmem>>, vector<1x32xf32>,
    %211 = vector.extract_strided_slice %198 {offsets = [6, 0], sizes = [1, 32], strides = [1, 1]} : vector<8x32xf32> to vector<1x32xf32>
    %c0_129 = arith.constant 0 : index
    %c1312 = arith.constant 1312 : index
    %212 = vector.load %arg14[%c0_129, %c1312] : memref<2x1568xf32, #tpu.memory_space<vmem>>, vector<1x32xf32>
    tpu.vector_store %arg14[%c0_129, %c1312], %211 {strides = array<i32>} : memref<2x1568xf32, #tpu.memory_space<vmem>>, vector<1x32xf32>,
    %213 = vector.extract_strided_slice %110 {offsets = [96, 0], sizes = [8, 32], strides = [1, 1]} : vector<112x32xf32> to vector<8x32xf32>
    %214 = vector.extract_strided_slice %110 {offsets = [104, 0], sizes = [8, 32], strides = [1, 1]} : vector<112x32xf32> to vector<8x32xf32>
    %215 = arith.maximumf %213, %214 : vector<8x32xf32>
    %216 = vector.extract_strided_slice %215 {offsets = [0, 0], sizes = [1, 32], strides = [1, 1]} : vector<8x32xf32> to vector<1x32xf32>
    %c0_130 = arith.constant 0 : index
    %c1344 = arith.constant 1344 : index
    %217 = vector.load %arg14[%c0_130, %c1344] : memref<2x1568xf32, #tpu.memory_space<vmem>>, vector<1x32xf32>
    tpu.vector_store %arg14[%c0_130, %c1344], %216 {strides = array<i32>} : memref<2x1568xf32, #tpu.memory_space<vmem>>, vector<1x32xf32>,
    %218 = vector.extract_strided_slice %215 {offsets = [1, 0], sizes = [1, 32], strides = [1, 1]} : vector<8x32xf32> to vector<1x32xf32>
    %c0_131 = arith.constant 0 : index
    %c1376 = arith.constant 1376 : index
    %219 = vector.load %arg14[%c0_131, %c1376] : memref<2x1568xf32, #tpu.memory_space<vmem>>, vector<1x32xf32>
    tpu.vector_store %arg14[%c0_131, %c1376], %218 {strides = array<i32>} : memref<2x1568xf32, #tpu.memory_space<vmem>>, vector<1x32xf32>,
    %220 = vector.extract_strided_slice %215 {offsets = [2, 0], sizes = [1, 32], strides = [1, 1]} : vector<8x32xf32> to vector<1x32xf32>
    %c0_132 = arith.constant 0 : index
    %c1408 = arith.constant 1408 : index
    %221 = vector.load %arg14[%c0_132, %c1408] : memref<2x1568xf32, #tpu.memory_space<vmem>>, vector<1x32xf32>
    tpu.vector_store %arg14[%c0_132, %c1408], %220 {strides = array<i32>} : memref<2x1568xf32, #tpu.memory_space<vmem>>, vector<1x32xf32>,
    %222 = vector.extract_strided_slice %215 {offsets = [3, 0], sizes = [1, 32], strides = [1, 1]} : vector<8x32xf32> to vector<1x32xf32>
    %c0_133 = arith.constant 0 : index
    %c1440 = arith.constant 1440 : index
    %223 = vector.load %arg14[%c0_133, %c1440] : memref<2x1568xf32, #tpu.memory_space<vmem>>, vector<1x32xf32>
    tpu.vector_store %arg14[%c0_133, %c1440], %222 {strides = array<i32>} : memref<2x1568xf32, #tpu.memory_space<vmem>>, vector<1x32xf32>,
    %224 = vector.extract_strided_slice %215 {offsets = [4, 0], sizes = [1, 32], strides = [1, 1]} : vector<8x32xf32> to vector<1x32xf32>
    %c0_134 = arith.constant 0 : index
    %c1472 = arith.constant 1472 : index
    %225 = vector.load %arg14[%c0_134, %c1472] : memref<2x1568xf32, #tpu.memory_space<vmem>>, vector<1x32xf32>
    tpu.vector_store %arg14[%c0_134, %c1472], %224 {strides = array<i32>} : memref<2x1568xf32, #tpu.memory_space<vmem>>, vector<1x32xf32>,
    %226 = vector.extract_strided_slice %215 {offsets = [5, 0], sizes = [1, 32], strides = [1, 1]} : vector<8x32xf32> to vector<1x32xf32>
    %c0_135 = arith.constant 0 : index
    %c1504 = arith.constant 1504 : index
    %227 = vector.load %arg14[%c0_135, %c1504] : memref<2x1568xf32, #tpu.memory_space<vmem>>, vector<1x32xf32>
    tpu.vector_store %arg14[%c0_135, %c1504], %226 {strides = array<i32>} : memref<2x1568xf32, #tpu.memory_space<vmem>>, vector<1x32xf32>,
    %228 = vector.extract_strided_slice %215 {offsets = [6, 0], sizes = [1, 32], strides = [1, 1]} : vector<8x32xf32> to vector<1x32xf32>
    %c0_136 = arith.constant 0 : index
    %c1536 = arith.constant 1536 : index
    %229 = vector.load %arg14[%c0_136, %c1536] : memref<2x1568xf32, #tpu.memory_space<vmem>>, vector<1x32xf32>
    tpu.vector_store %arg14[%c0_136, %c1536], %228 {strides = array<i32>} : memref<2x1568xf32, #tpu.memory_space<vmem>>, vector<1x32xf32>,
    %cst_137 = arith.constant 0.000000e+00 : f32
    %230 = vector.broadcast %cst_137 : f32 to vector<224x16xf32>
    %c1_138 = arith.constant 1 : index
    %c0_139 = arith.constant 0 : index
    %c0_140 = arith.constant 0 : index
    %231 = vector.load %arg1[%c1_138, %c0_139, %c0_140] : memref<2x264x1xf32, #tpu.memory_space<vmem>>, vector<1x224x1xf32>
    %232 = vector.shape_cast %231 : vector<1x224x1xf32> to vector<224x1xf32>
    %c0_141 = arith.constant 0 : index
    %c0_142 = arith.constant 0 : index
    %233 = vector.load %arg2[%c0_141, %c0_142] : memref<9x16xf32, #tpu.memory_space<vmem>>, vector<1x16xf32>
    %234 = vector.broadcast %232 : vector<224x1xf32> to vector<224x16xf32>
    %235 = vector.broadcast %233 : vector<1x16xf32> to vector<224x16xf32>
    %236 = arith.mulf %234, %235 : vector<224x16xf32>
    %237 = arith.addf %230, %236 : vector<224x16xf32>
    %c1_143 = arith.constant 1 : index
    %c1_144 = arith.constant 1 : index
    %c0_145 = arith.constant 0 : index
    %238 = vector.load %arg1[%c1_143, %c1_144, %c0_145] : memref<2x264x1xf32, #tpu.memory_space<vmem>>, vector<1x224x1xf32>
    %239 = vector.shape_cast %238 : vector<1x224x1xf32> to vector<224x1xf32>
    %c1_146 = arith.constant 1 : index
    %c0_147 = arith.constant 0 : index
    %240 = vector.load %arg2[%c1_146, %c0_147] : memref<9x16xf32, #tpu.memory_space<vmem>>, vector<1x16xf32>
    %241 = vector.broadcast %239 : vector<224x1xf32> to vector<224x16xf32>
    %242 = vector.broadcast %240 : vector<1x16xf32> to vector<224x16xf32>
    %243 = arith.mulf %241, %242 : vector<224x16xf32>
    %244 = arith.addf %237, %243 : vector<224x16xf32>
    %c1_148 = arith.constant 1 : index
    %c2_149 = arith.constant 2 : index
    %c0_150 = arith.constant 0 : index
    %245 = vector.load %arg1[%c1_148, %c2_149, %c0_150] : memref<2x264x1xf32, #tpu.memory_space<vmem>>, vector<1x224x1xf32>
    %246 = vector.shape_cast %245 : vector<1x224x1xf32> to vector<224x1xf32>
    %c2_151 = arith.constant 2 : index
    %c0_152 = arith.constant 0 : index
    %247 = vector.load %arg2[%c2_151, %c0_152] : memref<9x16xf32, #tpu.memory_space<vmem>>, vector<1x16xf32>
    %248 = vector.broadcast %246 : vector<224x1xf32> to vector<224x16xf32>
    %249 = vector.broadcast %247 : vector<1x16xf32> to vector<224x16xf32>
    %250 = arith.mulf %248, %249 : vector<224x16xf32>
    %251 = arith.addf %244, %250 : vector<224x16xf32>
    %c1_153 = arith.constant 1 : index
    %c16_154 = arith.constant 16 : index
    %c0_155 = arith.constant 0 : index
    %252 = vector.load %arg1[%c1_153, %c16_154, %c0_155] : memref<2x264x1xf32, #tpu.memory_space<vmem>>, vector<1x224x1xf32>
    %253 = vector.shape_cast %252 : vector<1x224x1xf32> to vector<224x1xf32>
    %c3_156 = arith.constant 3 : index
    %c0_157 = arith.constant 0 : index
    %254 = vector.load %arg2[%c3_156, %c0_157] : memref<9x16xf32, #tpu.memory_space<vmem>>, vector<1x16xf32>
    %255 = vector.broadcast %253 : vector<224x1xf32> to vector<224x16xf32>
    %256 = vector.broadcast %254 : vector<1x16xf32> to vector<224x16xf32>
    %257 = arith.mulf %255, %256 : vector<224x16xf32>
    %258 = arith.addf %251, %257 : vector<224x16xf32>
    %c1_158 = arith.constant 1 : index
    %c17_159 = arith.constant 17 : index
    %c0_160 = arith.constant 0 : index
    %259 = vector.load %arg1[%c1_158, %c17_159, %c0_160] : memref<2x264x1xf32, #tpu.memory_space<vmem>>, vector<1x224x1xf32>
    %260 = vector.shape_cast %259 : vector<1x224x1xf32> to vector<224x1xf32>
    %c4_161 = arith.constant 4 : index
    %c0_162 = arith.constant 0 : index
    %261 = vector.load %arg2[%c4_161, %c0_162] : memref<9x16xf32, #tpu.memory_space<vmem>>, vector<1x16xf32>
    %262 = vector.broadcast %260 : vector<224x1xf32> to vector<224x16xf32>
    %263 = vector.broadcast %261 : vector<1x16xf32> to vector<224x16xf32>
    %264 = arith.mulf %262, %263 : vector<224x16xf32>
    %265 = arith.addf %258, %264 : vector<224x16xf32>
    %c1_163 = arith.constant 1 : index
    %c18_164 = arith.constant 18 : index
    %c0_165 = arith.constant 0 : index
    %266 = vector.load %arg1[%c1_163, %c18_164, %c0_165] : memref<2x264x1xf32, #tpu.memory_space<vmem>>, vector<1x224x1xf32>
    %267 = vector.shape_cast %266 : vector<1x224x1xf32> to vector<224x1xf32>
    %c5_166 = arith.constant 5 : index
    %c0_167 = arith.constant 0 : index
    %268 = vector.load %arg2[%c5_166, %c0_167] : memref<9x16xf32, #tpu.memory_space<vmem>>, vector<1x16xf32>
    %269 = vector.broadcast %267 : vector<224x1xf32> to vector<224x16xf32>
    %270 = vector.broadcast %268 : vector<1x16xf32> to vector<224x16xf32>
    %271 = arith.mulf %269, %270 : vector<224x16xf32>
    %272 = arith.addf %265, %271 : vector<224x16xf32>
    %c1_168 = arith.constant 1 : index
    %c32_169 = arith.constant 32 : index
    %c0_170 = arith.constant 0 : index
    %273 = vector.load %arg1[%c1_168, %c32_169, %c0_170] : memref<2x264x1xf32, #tpu.memory_space<vmem>>, vector<1x224x1xf32>
    %274 = vector.shape_cast %273 : vector<1x224x1xf32> to vector<224x1xf32>
    %c6_171 = arith.constant 6 : index
    %c0_172 = arith.constant 0 : index
    %275 = vector.load %arg2[%c6_171, %c0_172] : memref<9x16xf32, #tpu.memory_space<vmem>>, vector<1x16xf32>
    %276 = vector.broadcast %274 : vector<224x1xf32> to vector<224x16xf32>
    %277 = vector.broadcast %275 : vector<1x16xf32> to vector<224x16xf32>
    %278 = arith.mulf %276, %277 : vector<224x16xf32>
    %279 = arith.addf %272, %278 : vector<224x16xf32>
    %c1_173 = arith.constant 1 : index
    %c33_174 = arith.constant 33 : index
    %c0_175 = arith.constant 0 : index
    %280 = vector.load %arg1[%c1_173, %c33_174, %c0_175] : memref<2x264x1xf32, #tpu.memory_space<vmem>>, vector<1x224x1xf32>
    %281 = vector.shape_cast %280 : vector<1x224x1xf32> to vector<224x1xf32>
    %c7_176 = arith.constant 7 : index
    %c0_177 = arith.constant 0 : index
    %282 = vector.load %arg2[%c7_176, %c0_177] : memref<9x16xf32, #tpu.memory_space<vmem>>, vector<1x16xf32>
    %283 = vector.broadcast %281 : vector<224x1xf32> to vector<224x16xf32>
    %284 = vector.broadcast %282 : vector<1x16xf32> to vector<224x16xf32>
    %285 = arith.mulf %283, %284 : vector<224x16xf32>
    %286 = arith.addf %279, %285 : vector<224x16xf32>
    %c1_178 = arith.constant 1 : index
    %c34_179 = arith.constant 34 : index
    %c0_180 = arith.constant 0 : index
    %287 = vector.load %arg1[%c1_178, %c34_179, %c0_180] : memref<2x264x1xf32, #tpu.memory_space<vmem>>, vector<1x224x1xf32>
    %288 = vector.shape_cast %287 : vector<1x224x1xf32> to vector<224x1xf32>
    %c8_181 = arith.constant 8 : index
    %c0_182 = arith.constant 0 : index
    %289 = vector.load %arg2[%c8_181, %c0_182] : memref<9x16xf32, #tpu.memory_space<vmem>>, vector<1x16xf32>
    %290 = vector.broadcast %288 : vector<224x1xf32> to vector<224x16xf32>
    %291 = vector.broadcast %289 : vector<1x16xf32> to vector<224x16xf32>
    %292 = arith.mulf %290, %291 : vector<224x16xf32>
    %293 = arith.addf %286, %292 : vector<224x16xf32>
    %294 = vector.broadcast %2 : vector<1x16xf32> to vector<224x16xf32>
    %295 = arith.addf %293, %294 : vector<224x16xf32>
    %cst_183 = arith.constant 0.000000e+00 : f32
    %296 = vector.broadcast %cst_183 : f32 to vector<224x16xf32>
    %297 = arith.maximumf %295, %296 : vector<224x16xf32>
    %cst_184 = arith.constant 0.000000e+00 : f32
    %298 = vector.shape_cast %8 : vector<224x1xi1> to vector<224x1xi1>
    %299 = vector.broadcast %298 : vector<224x1xi1> to vector<224x16xi1>
    %300 = vector.broadcast %cst_184 : f32 to vector<224x16xf32>
    %301 = arith.select %299, %297, %300 : vector<224x16xi1>, vector<224x16xf32>
    %c17_185 = arith.constant 17 : index
    %c0_186 = arith.constant 0 : index
    %302 = vector.load %arg11[%c17_185, %c0_186] : memref<264x16xf32, #tpu.memory_space<vmem>>, vector<224x16xf32>
    tpu.vector_store %arg11[%c17_185, %c0_186], %301 {strides = array<i32>} : memref<264x16xf32, #tpu.memory_space<vmem>>, vector<224x16xf32>,
    %c0_187 = arith.constant 0 : index
    %c0_188 = arith.constant 0 : index
    %303 = vector.load %arg11[%c0_187, %c0_188] : memref<264x16xf32, #tpu.memory_space<vmem>>, vector<224x16xf32>
    %c0_189 = arith.constant 0 : index
    %c0_190 = arith.constant 0 : index
    %304 = vector.load %arg12[%c0_189, %c0_190] : memref<224x144xf32, #tpu.memory_space<vmem>>, vector<224x16xf32>
    tpu.vector_store %arg12[%c0_189, %c0_190], %303 {strides = array<i32>} : memref<224x144xf32, #tpu.memory_space<vmem>>, vector<224x16xf32>,
    %c1_191 = arith.constant 1 : index
    %c0_192 = arith.constant 0 : index
    %305 = vector.load %arg11[%c1_191, %c0_192] : memref<264x16xf32, #tpu.memory_space<vmem>>, vector<224x16xf32>
    %c0_193 = arith.constant 0 : index
    %c16_194 = arith.constant 16 : index
    %306 = vector.load %arg12[%c0_193, %c16_194] : memref<224x144xf32, #tpu.memory_space<vmem>>, vector<224x16xf32>
    tpu.vector_store %arg12[%c0_193, %c16_194], %305 {strides = array<i32>} : memref<224x144xf32, #tpu.memory_space<vmem>>, vector<224x16xf32>,
    %c2_195 = arith.constant 2 : index
    %c0_196 = arith.constant 0 : index
    %307 = vector.load %arg11[%c2_195, %c0_196] : memref<264x16xf32, #tpu.memory_space<vmem>>, vector<224x16xf32>
    %c0_197 = arith.constant 0 : index
    %c32_198 = arith.constant 32 : index
    %308 = vector.load %arg12[%c0_197, %c32_198] : memref<224x144xf32, #tpu.memory_space<vmem>>, vector<224x16xf32>
    tpu.vector_store %arg12[%c0_197, %c32_198], %307 {strides = array<i32>} : memref<224x144xf32, #tpu.memory_space<vmem>>, vector<224x16xf32>,
    %c16_199 = arith.constant 16 : index
    %c0_200 = arith.constant 0 : index
    %309 = vector.load %arg11[%c16_199, %c0_200] : memref<264x16xf32, #tpu.memory_space<vmem>>, vector<224x16xf32>
    %c0_201 = arith.constant 0 : index
    %c48_202 = arith.constant 48 : index
    %310 = vector.load %arg12[%c0_201, %c48_202] : memref<224x144xf32, #tpu.memory_space<vmem>>, vector<224x16xf32>
    tpu.vector_store %arg12[%c0_201, %c48_202], %309 {strides = array<i32>} : memref<224x144xf32, #tpu.memory_space<vmem>>, vector<224x16xf32>,
    %c17_203 = arith.constant 17 : index
    %c0_204 = arith.constant 0 : index
    %311 = vector.load %arg11[%c17_203, %c0_204] : memref<264x16xf32, #tpu.memory_space<vmem>>, vector<224x16xf32>
    %c0_205 = arith.constant 0 : index
    %c64_206 = arith.constant 64 : index
    %312 = vector.load %arg12[%c0_205, %c64_206] : memref<224x144xf32, #tpu.memory_space<vmem>>, vector<224x16xf32>
    tpu.vector_store %arg12[%c0_205, %c64_206], %311 {strides = array<i32>} : memref<224x144xf32, #tpu.memory_space<vmem>>, vector<224x16xf32>,
    %c18_207 = arith.constant 18 : index
    %c0_208 = arith.constant 0 : index
    %313 = vector.load %arg11[%c18_207, %c0_208] : memref<264x16xf32, #tpu.memory_space<vmem>>, vector<224x16xf32>
    %c0_209 = arith.constant 0 : index
    %c80_210 = arith.constant 80 : index
    %314 = vector.load %arg12[%c0_209, %c80_210] : memref<224x144xf32, #tpu.memory_space<vmem>>, vector<224x16xf32>
    tpu.vector_store %arg12[%c0_209, %c80_210], %313 {strides = array<i32>} : memref<224x144xf32, #tpu.memory_space<vmem>>, vector<224x16xf32>,
    %c32_211 = arith.constant 32 : index
    %c0_212 = arith.constant 0 : index
    %315 = vector.load %arg11[%c32_211, %c0_212] : memref<264x16xf32, #tpu.memory_space<vmem>>, vector<224x16xf32>
    %c0_213 = arith.constant 0 : index
    %c96_214 = arith.constant 96 : index
    %316 = vector.load %arg12[%c0_213, %c96_214] : memref<224x144xf32, #tpu.memory_space<vmem>>, vector<224x16xf32>
    tpu.vector_store %arg12[%c0_213, %c96_214], %315 {strides = array<i32>} : memref<224x144xf32, #tpu.memory_space<vmem>>, vector<224x16xf32>,
    %c33_215 = arith.constant 33 : index
    %c0_216 = arith.constant 0 : index
    %317 = vector.load %arg11[%c33_215, %c0_216] : memref<264x16xf32, #tpu.memory_space<vmem>>, vector<224x16xf32>
    %c0_217 = arith.constant 0 : index
    %c112_218 = arith.constant 112 : index
    %318 = vector.load %arg12[%c0_217, %c112_218] : memref<224x144xf32, #tpu.memory_space<vmem>>, vector<224x16xf32>
    tpu.vector_store %arg12[%c0_217, %c112_218], %317 {strides = array<i32>} : memref<224x144xf32, #tpu.memory_space<vmem>>, vector<224x16xf32>,
    %c34_219 = arith.constant 34 : index
    %c0_220 = arith.constant 0 : index
    %319 = vector.load %arg11[%c34_219, %c0_220] : memref<264x16xf32, #tpu.memory_space<vmem>>, vector<224x16xf32>
    %c0_221 = arith.constant 0 : index
    %c128_222 = arith.constant 128 : index
    %320 = vector.load %arg12[%c0_221, %c128_222] : memref<224x144xf32, #tpu.memory_space<vmem>>, vector<224x16xf32>
    tpu.vector_store %arg12[%c0_221, %c128_222], %319 {strides = array<i32>} : memref<224x144xf32, #tpu.memory_space<vmem>>, vector<224x16xf32>,
    %c0_223 = arith.constant 0 : index
    %c0_224 = arith.constant 0 : index
    %321 = vector.load %arg12[%c0_223, %c0_224] : memref<224x144xf32, #tpu.memory_space<vmem>>, vector<224x144xf32>
    %c0_225 = arith.constant 0 : index
    %c0_226 = arith.constant 0 : index
    %322 = vector.load %arg4[%c0_225, %c0_226] : memref<144x32xf32, #tpu.memory_space<vmem>>, vector<144x32xf32>
    %cst_227 = arith.constant dense<0.000000e+00> : vector<224x32xf32>
    %323 = tpu.matmul %321, %322, %cst_227 {dimension_numbers = #tpu.dot_dimension_numbers<[1], [0], [0], [1], [0, 0, 1, 1], [], []>} : vector<224x144xf32>, vector<144x32xf32>, vector<224x32xf32> -> vector<224x32xf32>
    %324 = vector.broadcast %3 : vector<1x32xf32> to vector<224x32xf32>
    %325 = arith.addf %323, %324 : vector<224x32xf32>
    %cst_228 = arith.constant 0.000000e+00 : f32
    %326 = vector.broadcast %cst_228 : f32 to vector<224x32xf32>
    %327 = arith.maximumf %325, %326 : vector<224x32xf32>
    %c0_229 = arith.constant 0 : index
    %c0_230 = arith.constant 0 : index
    %328 = vector.load %arg13[%c0_229, %c0_230] : memref<224x32xf32, #tpu.memory_space<vmem>>, vector<224x32xf32>
    tpu.vector_store %arg13[%c0_229, %c0_230], %327 {strides = array<i32>} : memref<224x32xf32, #tpu.memory_space<vmem>>, vector<224x32xf32>,
    %c0_231 = arith.constant 0 : index
    %c0_232 = arith.constant 0 : index
    %329 = tpu.strided_load %arg13[%c0_231, %c0_232] {strides = array<i32: 2, 1>} : memref<224x32xf32, #tpu.memory_space<vmem>>, vector<112x32xf32>
    %c1_233 = arith.constant 1 : index
    %c0_234 = arith.constant 0 : index
    %330 = tpu.strided_load %arg13[%c1_233, %c0_234] {strides = array<i32: 2, 1>} : memref<224x32xf32, #tpu.memory_space<vmem>>, vector<112x32xf32>
    %331 = arith.maximumf %329, %330 : vector<112x32xf32>
    %332 = vector.extract_strided_slice %331 {offsets = [0, 0], sizes = [8, 32], strides = [1, 1]} : vector<112x32xf32> to vector<8x32xf32>
    %333 = vector.extract_strided_slice %331 {offsets = [8, 0], sizes = [8, 32], strides = [1, 1]} : vector<112x32xf32> to vector<8x32xf32>
    %334 = arith.maximumf %332, %333 : vector<8x32xf32>
    %335 = vector.extract_strided_slice %334 {offsets = [0, 0], sizes = [1, 32], strides = [1, 1]} : vector<8x32xf32> to vector<1x32xf32>
    %c1_235 = arith.constant 1 : index
    %c0_236 = arith.constant 0 : index
    %336 = vector.load %arg14[%c1_235, %c0_236] : memref<2x1568xf32, #tpu.memory_space<vmem>>, vector<1x32xf32>
    tpu.vector_store %arg14[%c1_235, %c0_236], %335 {strides = array<i32>} : memref<2x1568xf32, #tpu.memory_space<vmem>>, vector<1x32xf32>,
    %337 = vector.extract_strided_slice %334 {offsets = [1, 0], sizes = [1, 32], strides = [1, 1]} : vector<8x32xf32> to vector<1x32xf32>
    %c1_237 = arith.constant 1 : index
    %c32_238 = arith.constant 32 : index
    %338 = vector.load %arg14[%c1_237, %c32_238] : memref<2x1568xf32, #tpu.memory_space<vmem>>, vector<1x32xf32>
    tpu.vector_store %arg14[%c1_237, %c32_238], %337 {strides = array<i32>} : memref<2x1568xf32, #tpu.memory_space<vmem>>, vector<1x32xf32>,
    %339 = vector.extract_strided_slice %334 {offsets = [2, 0], sizes = [1, 32], strides = [1, 1]} : vector<8x32xf32> to vector<1x32xf32>
    %c1_239 = arith.constant 1 : index
    %c64_240 = arith.constant 64 : index
    %340 = vector.load %arg14[%c1_239, %c64_240] : memref<2x1568xf32, #tpu.memory_space<vmem>>, vector<1x32xf32>
    tpu.vector_store %arg14[%c1_239, %c64_240], %339 {strides = array<i32>} : memref<2x1568xf32, #tpu.memory_space<vmem>>, vector<1x32xf32>,
    %341 = vector.extract_strided_slice %334 {offsets = [3, 0], sizes = [1, 32], strides = [1, 1]} : vector<8x32xf32> to vector<1x32xf32>
    %c1_241 = arith.constant 1 : index
    %c96_242 = arith.constant 96 : index
    %342 = vector.load %arg14[%c1_241, %c96_242] : memref<2x1568xf32, #tpu.memory_space<vmem>>, vector<1x32xf32>
    tpu.vector_store %arg14[%c1_241, %c96_242], %341 {strides = array<i32>} : memref<2x1568xf32, #tpu.memory_space<vmem>>, vector<1x32xf32>,
    %343 = vector.extract_strided_slice %334 {offsets = [4, 0], sizes = [1, 32], strides = [1, 1]} : vector<8x32xf32> to vector<1x32xf32>
    %c1_243 = arith.constant 1 : index
    %c128_244 = arith.constant 128 : index
    %344 = vector.load %arg14[%c1_243, %c128_244] : memref<2x1568xf32, #tpu.memory_space<vmem>>, vector<1x32xf32>
    tpu.vector_store %arg14[%c1_243, %c128_244], %343 {strides = array<i32>} : memref<2x1568xf32, #tpu.memory_space<vmem>>, vector<1x32xf32>,
    %345 = vector.extract_strided_slice %334 {offsets = [5, 0], sizes = [1, 32], strides = [1, 1]} : vector<8x32xf32> to vector<1x32xf32>
    %c1_245 = arith.constant 1 : index
    %c160_246 = arith.constant 160 : index
    %346 = vector.load %arg14[%c1_245, %c160_246] : memref<2x1568xf32, #tpu.memory_space<vmem>>, vector<1x32xf32>
    tpu.vector_store %arg14[%c1_245, %c160_246], %345 {strides = array<i32>} : memref<2x1568xf32, #tpu.memory_space<vmem>>, vector<1x32xf32>,
    %347 = vector.extract_strided_slice %334 {offsets = [6, 0], sizes = [1, 32], strides = [1, 1]} : vector<8x32xf32> to vector<1x32xf32>
    %c1_247 = arith.constant 1 : index
    %c192_248 = arith.constant 192 : index
    %348 = vector.load %arg14[%c1_247, %c192_248] : memref<2x1568xf32, #tpu.memory_space<vmem>>, vector<1x32xf32>
    tpu.vector_store %arg14[%c1_247, %c192_248], %347 {strides = array<i32>} : memref<2x1568xf32, #tpu.memory_space<vmem>>, vector<1x32xf32>,
    %349 = vector.extract_strided_slice %331 {offsets = [16, 0], sizes = [8, 32], strides = [1, 1]} : vector<112x32xf32> to vector<8x32xf32>
    %350 = vector.extract_strided_slice %331 {offsets = [24, 0], sizes = [8, 32], strides = [1, 1]} : vector<112x32xf32> to vector<8x32xf32>
    %351 = arith.maximumf %349, %350 : vector<8x32xf32>
    %352 = vector.extract_strided_slice %351 {offsets = [0, 0], sizes = [1, 32], strides = [1, 1]} : vector<8x32xf32> to vector<1x32xf32>
    %c1_249 = arith.constant 1 : index
    %c224_250 = arith.constant 224 : index
    %353 = vector.load %arg14[%c1_249, %c224_250] : memref<2x1568xf32, #tpu.memory_space<vmem>>, vector<1x32xf32>
    tpu.vector_store %arg14[%c1_249, %c224_250], %352 {strides = array<i32>} : memref<2x1568xf32, #tpu.memory_space<vmem>>, vector<1x32xf32>,
    %354 = vector.extract_strided_slice %351 {offsets = [1, 0], sizes = [1, 32], strides = [1, 1]} : vector<8x32xf32> to vector<1x32xf32>
    %c1_251 = arith.constant 1 : index
    %c256_252 = arith.constant 256 : index
    %355 = vector.load %arg14[%c1_251, %c256_252] : memref<2x1568xf32, #tpu.memory_space<vmem>>, vector<1x32xf32>
    tpu.vector_store %arg14[%c1_251, %c256_252], %354 {strides = array<i32>} : memref<2x1568xf32, #tpu.memory_space<vmem>>, vector<1x32xf32>,
    %356 = vector.extract_strided_slice %351 {offsets = [2, 0], sizes = [1, 32], strides = [1, 1]} : vector<8x32xf32> to vector<1x32xf32>
    %c1_253 = arith.constant 1 : index
    %c288_254 = arith.constant 288 : index
    %357 = vector.load %arg14[%c1_253, %c288_254] : memref<2x1568xf32, #tpu.memory_space<vmem>>, vector<1x32xf32>
    tpu.vector_store %arg14[%c1_253, %c288_254], %356 {strides = array<i32>} : memref<2x1568xf32, #tpu.memory_space<vmem>>, vector<1x32xf32>,
    %358 = vector.extract_strided_slice %351 {offsets = [3, 0], sizes = [1, 32], strides = [1, 1]} : vector<8x32xf32> to vector<1x32xf32>
    %c1_255 = arith.constant 1 : index
    %c320_256 = arith.constant 320 : index
    %359 = vector.load %arg14[%c1_255, %c320_256] : memref<2x1568xf32, #tpu.memory_space<vmem>>, vector<1x32xf32>
    tpu.vector_store %arg14[%c1_255, %c320_256], %358 {strides = array<i32>} : memref<2x1568xf32, #tpu.memory_space<vmem>>, vector<1x32xf32>,
    %360 = vector.extract_strided_slice %351 {offsets = [4, 0], sizes = [1, 32], strides = [1, 1]} : vector<8x32xf32> to vector<1x32xf32>
    %c1_257 = arith.constant 1 : index
    %c352_258 = arith.constant 352 : index
    %361 = vector.load %arg14[%c1_257, %c352_258] : memref<2x1568xf32, #tpu.memory_space<vmem>>, vector<1x32xf32>
    tpu.vector_store %arg14[%c1_257, %c352_258], %360 {strides = array<i32>} : memref<2x1568xf32, #tpu.memory_space<vmem>>, vector<1x32xf32>,
    %362 = vector.extract_strided_slice %351 {offsets = [5, 0], sizes = [1, 32], strides = [1, 1]} : vector<8x32xf32> to vector<1x32xf32>
    %c1_259 = arith.constant 1 : index
    %c384_260 = arith.constant 384 : index
    %363 = vector.load %arg14[%c1_259, %c384_260] : memref<2x1568xf32, #tpu.memory_space<vmem>>, vector<1x32xf32>
    tpu.vector_store %arg14[%c1_259, %c384_260], %362 {strides = array<i32>} : memref<2x1568xf32, #tpu.memory_space<vmem>>, vector<1x32xf32>,
    %364 = vector.extract_strided_slice %351 {offsets = [6, 0], sizes = [1, 32], strides = [1, 1]} : vector<8x32xf32> to vector<1x32xf32>
    %c1_261 = arith.constant 1 : index
    %c416_262 = arith.constant 416 : index
    %365 = vector.load %arg14[%c1_261, %c416_262] : memref<2x1568xf32, #tpu.memory_space<vmem>>, vector<1x32xf32>
    tpu.vector_store %arg14[%c1_261, %c416_262], %364 {strides = array<i32>} : memref<2x1568xf32, #tpu.memory_space<vmem>>, vector<1x32xf32>,
    %366 = vector.extract_strided_slice %331 {offsets = [32, 0], sizes = [8, 32], strides = [1, 1]} : vector<112x32xf32> to vector<8x32xf32>
    %367 = vector.extract_strided_slice %331 {offsets = [40, 0], sizes = [8, 32], strides = [1, 1]} : vector<112x32xf32> to vector<8x32xf32>
    %368 = arith.maximumf %366, %367 : vector<8x32xf32>
    %369 = vector.extract_strided_slice %368 {offsets = [0, 0], sizes = [1, 32], strides = [1, 1]} : vector<8x32xf32> to vector<1x32xf32>
    %c1_263 = arith.constant 1 : index
    %c448_264 = arith.constant 448 : index
    %370 = vector.load %arg14[%c1_263, %c448_264] : memref<2x1568xf32, #tpu.memory_space<vmem>>, vector<1x32xf32>
    tpu.vector_store %arg14[%c1_263, %c448_264], %369 {strides = array<i32>} : memref<2x1568xf32, #tpu.memory_space<vmem>>, vector<1x32xf32>,
    %371 = vector.extract_strided_slice %368 {offsets = [1, 0], sizes = [1, 32], strides = [1, 1]} : vector<8x32xf32> to vector<1x32xf32>
    %c1_265 = arith.constant 1 : index
    %c480_266 = arith.constant 480 : index
    %372 = vector.load %arg14[%c1_265, %c480_266] : memref<2x1568xf32, #tpu.memory_space<vmem>>, vector<1x32xf32>
    tpu.vector_store %arg14[%c1_265, %c480_266], %371 {strides = array<i32>} : memref<2x1568xf32, #tpu.memory_space<vmem>>, vector<1x32xf32>,
    %373 = vector.extract_strided_slice %368 {offsets = [2, 0], sizes = [1, 32], strides = [1, 1]} : vector<8x32xf32> to vector<1x32xf32>
    %c1_267 = arith.constant 1 : index
    %c512_268 = arith.constant 512 : index
    %374 = vector.load %arg14[%c1_267, %c512_268] : memref<2x1568xf32, #tpu.memory_space<vmem>>, vector<1x32xf32>
    tpu.vector_store %arg14[%c1_267, %c512_268], %373 {strides = array<i32>} : memref<2x1568xf32, #tpu.memory_space<vmem>>, vector<1x32xf32>,
    %375 = vector.extract_strided_slice %368 {offsets = [3, 0], sizes = [1, 32], strides = [1, 1]} : vector<8x32xf32> to vector<1x32xf32>
    %c1_269 = arith.constant 1 : index
    %c544_270 = arith.constant 544 : index
    %376 = vector.load %arg14[%c1_269, %c544_270] : memref<2x1568xf32, #tpu.memory_space<vmem>>, vector<1x32xf32>
    tpu.vector_store %arg14[%c1_269, %c544_270], %375 {strides = array<i32>} : memref<2x1568xf32, #tpu.memory_space<vmem>>, vector<1x32xf32>,
    %377 = vector.extract_strided_slice %368 {offsets = [4, 0], sizes = [1, 32], strides = [1, 1]} : vector<8x32xf32> to vector<1x32xf32>
    %c1_271 = arith.constant 1 : index
    %c576_272 = arith.constant 576 : index
    %378 = vector.load %arg14[%c1_271, %c576_272] : memref<2x1568xf32, #tpu.memory_space<vmem>>, vector<1x32xf32>
    tpu.vector_store %arg14[%c1_271, %c576_272], %377 {strides = array<i32>} : memref<2x1568xf32, #tpu.memory_space<vmem>>, vector<1x32xf32>,
    %379 = vector.extract_strided_slice %368 {offsets = [5, 0], sizes = [1, 32], strides = [1, 1]} : vector<8x32xf32> to vector<1x32xf32>
    %c1_273 = arith.constant 1 : index
    %c608_274 = arith.constant 608 : index
    %380 = vector.load %arg14[%c1_273, %c608_274] : memref<2x1568xf32, #tpu.memory_space<vmem>>, vector<1x32xf32>
    tpu.vector_store %arg14[%c1_273, %c608_274], %379 {strides = array<i32>} : memref<2x1568xf32, #tpu.memory_space<vmem>>, vector<1x32xf32>,
    %381 = vector.extract_strided_slice %368 {offsets = [6, 0], sizes = [1, 32], strides = [1, 1]} : vector<8x32xf32> to vector<1x32xf32>
    %c1_275 = arith.constant 1 : index
    %c640_276 = arith.constant 640 : index
    %382 = vector.load %arg14[%c1_275, %c640_276] : memref<2x1568xf32, #tpu.memory_space<vmem>>, vector<1x32xf32>
    tpu.vector_store %arg14[%c1_275, %c640_276], %381 {strides = array<i32>} : memref<2x1568xf32, #tpu.memory_space<vmem>>, vector<1x32xf32>,
    %383 = vector.extract_strided_slice %331 {offsets = [48, 0], sizes = [8, 32], strides = [1, 1]} : vector<112x32xf32> to vector<8x32xf32>
    %384 = vector.extract_strided_slice %331 {offsets = [56, 0], sizes = [8, 32], strides = [1, 1]} : vector<112x32xf32> to vector<8x32xf32>
    %385 = arith.maximumf %383, %384 : vector<8x32xf32>
    %386 = vector.extract_strided_slice %385 {offsets = [0, 0], sizes = [1, 32], strides = [1, 1]} : vector<8x32xf32> to vector<1x32xf32>
    %c1_277 = arith.constant 1 : index
    %c672_278 = arith.constant 672 : index
    %387 = vector.load %arg14[%c1_277, %c672_278] : memref<2x1568xf32, #tpu.memory_space<vmem>>, vector<1x32xf32>
    tpu.vector_store %arg14[%c1_277, %c672_278], %386 {strides = array<i32>} : memref<2x1568xf32, #tpu.memory_space<vmem>>, vector<1x32xf32>,
    %388 = vector.extract_strided_slice %385 {offsets = [1, 0], sizes = [1, 32], strides = [1, 1]} : vector<8x32xf32> to vector<1x32xf32>
    %c1_279 = arith.constant 1 : index
    %c704_280 = arith.constant 704 : index
    %389 = vector.load %arg14[%c1_279, %c704_280] : memref<2x1568xf32, #tpu.memory_space<vmem>>, vector<1x32xf32>
    tpu.vector_store %arg14[%c1_279, %c704_280], %388 {strides = array<i32>} : memref<2x1568xf32, #tpu.memory_space<vmem>>, vector<1x32xf32>,
    %390 = vector.extract_strided_slice %385 {offsets = [2, 0], sizes = [1, 32], strides = [1, 1]} : vector<8x32xf32> to vector<1x32xf32>
    %c1_281 = arith.constant 1 : index
    %c736_282 = arith.constant 736 : index
    %391 = vector.load %arg14[%c1_281, %c736_282] : memref<2x1568xf32, #tpu.memory_space<vmem>>, vector<1x32xf32>
    tpu.vector_store %arg14[%c1_281, %c736_282], %390 {strides = array<i32>} : memref<2x1568xf32, #tpu.memory_space<vmem>>, vector<1x32xf32>,
    %392 = vector.extract_strided_slice %385 {offsets = [3, 0], sizes = [1, 32], strides = [1, 1]} : vector<8x32xf32> to vector<1x32xf32>
    %c1_283 = arith.constant 1 : index
    %c768_284 = arith.constant 768 : index
    %393 = vector.load %arg14[%c1_283, %c768_284] : memref<2x1568xf32, #tpu.memory_space<vmem>>, vector<1x32xf32>
    tpu.vector_store %arg14[%c1_283, %c768_284], %392 {strides = array<i32>} : memref<2x1568xf32, #tpu.memory_space<vmem>>, vector<1x32xf32>,
    %394 = vector.extract_strided_slice %385 {offsets = [4, 0], sizes = [1, 32], strides = [1, 1]} : vector<8x32xf32> to vector<1x32xf32>
    %c1_285 = arith.constant 1 : index
    %c800_286 = arith.constant 800 : index
    %395 = vector.load %arg14[%c1_285, %c800_286] : memref<2x1568xf32, #tpu.memory_space<vmem>>, vector<1x32xf32>
    tpu.vector_store %arg14[%c1_285, %c800_286], %394 {strides = array<i32>} : memref<2x1568xf32, #tpu.memory_space<vmem>>, vector<1x32xf32>,
    %396 = vector.extract_strided_slice %385 {offsets = [5, 0], sizes = [1, 32], strides = [1, 1]} : vector<8x32xf32> to vector<1x32xf32>
    %c1_287 = arith.constant 1 : index
    %c832_288 = arith.constant 832 : index
    %397 = vector.load %arg14[%c1_287, %c832_288] : memref<2x1568xf32, #tpu.memory_space<vmem>>, vector<1x32xf32>
    tpu.vector_store %arg14[%c1_287, %c832_288], %396 {strides = array<i32>} : memref<2x1568xf32, #tpu.memory_space<vmem>>, vector<1x32xf32>,
    %398 = vector.extract_strided_slice %385 {offsets = [6, 0], sizes = [1, 32], strides = [1, 1]} : vector<8x32xf32> to vector<1x32xf32>
    %c1_289 = arith.constant 1 : index
    %c864_290 = arith.constant 864 : index
    %399 = vector.load %arg14[%c1_289, %c864_290] : memref<2x1568xf32, #tpu.memory_space<vmem>>, vector<1x32xf32>
    tpu.vector_store %arg14[%c1_289, %c864_290], %398 {strides = array<i32>} : memref<2x1568xf32, #tpu.memory_space<vmem>>, vector<1x32xf32>,
    %400 = vector.extract_strided_slice %331 {offsets = [64, 0], sizes = [8, 32], strides = [1, 1]} : vector<112x32xf32> to vector<8x32xf32>
    %401 = vector.extract_strided_slice %331 {offsets = [72, 0], sizes = [8, 32], strides = [1, 1]} : vector<112x32xf32> to vector<8x32xf32>
    %402 = arith.maximumf %400, %401 : vector<8x32xf32>
    %403 = vector.extract_strided_slice %402 {offsets = [0, 0], sizes = [1, 32], strides = [1, 1]} : vector<8x32xf32> to vector<1x32xf32>
    %c1_291 = arith.constant 1 : index
    %c896_292 = arith.constant 896 : index
    %404 = vector.load %arg14[%c1_291, %c896_292] : memref<2x1568xf32, #tpu.memory_space<vmem>>, vector<1x32xf32>
    tpu.vector_store %arg14[%c1_291, %c896_292], %403 {strides = array<i32>} : memref<2x1568xf32, #tpu.memory_space<vmem>>, vector<1x32xf32>,
    %405 = vector.extract_strided_slice %402 {offsets = [1, 0], sizes = [1, 32], strides = [1, 1]} : vector<8x32xf32> to vector<1x32xf32>
    %c1_293 = arith.constant 1 : index
    %c928_294 = arith.constant 928 : index
    %406 = vector.load %arg14[%c1_293, %c928_294] : memref<2x1568xf32, #tpu.memory_space<vmem>>, vector<1x32xf32>
    tpu.vector_store %arg14[%c1_293, %c928_294], %405 {strides = array<i32>} : memref<2x1568xf32, #tpu.memory_space<vmem>>, vector<1x32xf32>,
    %407 = vector.extract_strided_slice %402 {offsets = [2, 0], sizes = [1, 32], strides = [1, 1]} : vector<8x32xf32> to vector<1x32xf32>
    %c1_295 = arith.constant 1 : index
    %c960_296 = arith.constant 960 : index
    %408 = vector.load %arg14[%c1_295, %c960_296] : memref<2x1568xf32, #tpu.memory_space<vmem>>, vector<1x32xf32>
    tpu.vector_store %arg14[%c1_295, %c960_296], %407 {strides = array<i32>} : memref<2x1568xf32, #tpu.memory_space<vmem>>, vector<1x32xf32>,
    %409 = vector.extract_strided_slice %402 {offsets = [3, 0], sizes = [1, 32], strides = [1, 1]} : vector<8x32xf32> to vector<1x32xf32>
    %c1_297 = arith.constant 1 : index
    %c992_298 = arith.constant 992 : index
    %410 = vector.load %arg14[%c1_297, %c992_298] : memref<2x1568xf32, #tpu.memory_space<vmem>>, vector<1x32xf32>
    tpu.vector_store %arg14[%c1_297, %c992_298], %409 {strides = array<i32>} : memref<2x1568xf32, #tpu.memory_space<vmem>>, vector<1x32xf32>,
    %411 = vector.extract_strided_slice %402 {offsets = [4, 0], sizes = [1, 32], strides = [1, 1]} : vector<8x32xf32> to vector<1x32xf32>
    %c1_299 = arith.constant 1 : index
    %c1024_300 = arith.constant 1024 : index
    %412 = vector.load %arg14[%c1_299, %c1024_300] : memref<2x1568xf32, #tpu.memory_space<vmem>>, vector<1x32xf32>
    tpu.vector_store %arg14[%c1_299, %c1024_300], %411 {strides = array<i32>} : memref<2x1568xf32, #tpu.memory_space<vmem>>, vector<1x32xf32>,
    %413 = vector.extract_strided_slice %402 {offsets = [5, 0], sizes = [1, 32], strides = [1, 1]} : vector<8x32xf32> to vector<1x32xf32>
    %c1_301 = arith.constant 1 : index
    %c1056_302 = arith.constant 1056 : index
    %414 = vector.load %arg14[%c1_301, %c1056_302] : memref<2x1568xf32, #tpu.memory_space<vmem>>, vector<1x32xf32>
    tpu.vector_store %arg14[%c1_301, %c1056_302], %413 {strides = array<i32>} : memref<2x1568xf32, #tpu.memory_space<vmem>>, vector<1x32xf32>,
    %415 = vector.extract_strided_slice %402 {offsets = [6, 0], sizes = [1, 32], strides = [1, 1]} : vector<8x32xf32> to vector<1x32xf32>
    %c1_303 = arith.constant 1 : index
    %c1088_304 = arith.constant 1088 : index
    %416 = vector.load %arg14[%c1_303, %c1088_304] : memref<2x1568xf32, #tpu.memory_space<vmem>>, vector<1x32xf32>
    tpu.vector_store %arg14[%c1_303, %c1088_304], %415 {strides = array<i32>} : memref<2x1568xf32, #tpu.memory_space<vmem>>, vector<1x32xf32>,
    %417 = vector.extract_strided_slice %331 {offsets = [80, 0], sizes = [8, 32], strides = [1, 1]} : vector<112x32xf32> to vector<8x32xf32>
    %418 = vector.extract_strided_slice %331 {offsets = [88, 0], sizes = [8, 32], strides = [1, 1]} : vector<112x32xf32> to vector<8x32xf32>
    %419 = arith.maximumf %417, %418 : vector<8x32xf32>
    %420 = vector.extract_strided_slice %419 {offsets = [0, 0], sizes = [1, 32], strides = [1, 1]} : vector<8x32xf32> to vector<1x32xf32>
    %c1_305 = arith.constant 1 : index
    %c1120_306 = arith.constant 1120 : index
    %421 = vector.load %arg14[%c1_305, %c1120_306] : memref<2x1568xf32, #tpu.memory_space<vmem>>, vector<1x32xf32>
    tpu.vector_store %arg14[%c1_305, %c1120_306], %420 {strides = array<i32>} : memref<2x1568xf32, #tpu.memory_space<vmem>>, vector<1x32xf32>,
    %422 = vector.extract_strided_slice %419 {offsets = [1, 0], sizes = [1, 32], strides = [1, 1]} : vector<8x32xf32> to vector<1x32xf32>
    %c1_307 = arith.constant 1 : index
    %c1152_308 = arith.constant 1152 : index
    %423 = vector.load %arg14[%c1_307, %c1152_308] : memref<2x1568xf32, #tpu.memory_space<vmem>>, vector<1x32xf32>
    tpu.vector_store %arg14[%c1_307, %c1152_308], %422 {strides = array<i32>} : memref<2x1568xf32, #tpu.memory_space<vmem>>, vector<1x32xf32>,
    %424 = vector.extract_strided_slice %419 {offsets = [2, 0], sizes = [1, 32], strides = [1, 1]} : vector<8x32xf32> to vector<1x32xf32>
    %c1_309 = arith.constant 1 : index
    %c1184_310 = arith.constant 1184 : index
    %425 = vector.load %arg14[%c1_309, %c1184_310] : memref<2x1568xf32, #tpu.memory_space<vmem>>, vector<1x32xf32>
    tpu.vector_store %arg14[%c1_309, %c1184_310], %424 {strides = array<i32>} : memref<2x1568xf32, #tpu.memory_space<vmem>>, vector<1x32xf32>,
    %426 = vector.extract_strided_slice %419 {offsets = [3, 0], sizes = [1, 32], strides = [1, 1]} : vector<8x32xf32> to vector<1x32xf32>
    %c1_311 = arith.constant 1 : index
    %c1216_312 = arith.constant 1216 : index
    %427 = vector.load %arg14[%c1_311, %c1216_312] : memref<2x1568xf32, #tpu.memory_space<vmem>>, vector<1x32xf32>
    tpu.vector_store %arg14[%c1_311, %c1216_312], %426 {strides = array<i32>} : memref<2x1568xf32, #tpu.memory_space<vmem>>, vector<1x32xf32>,
    %428 = vector.extract_strided_slice %419 {offsets = [4, 0], sizes = [1, 32], strides = [1, 1]} : vector<8x32xf32> to vector<1x32xf32>
    %c1_313 = arith.constant 1 : index
    %c1248_314 = arith.constant 1248 : index
    %429 = vector.load %arg14[%c1_313, %c1248_314] : memref<2x1568xf32, #tpu.memory_space<vmem>>, vector<1x32xf32>
    tpu.vector_store %arg14[%c1_313, %c1248_314], %428 {strides = array<i32>} : memref<2x1568xf32, #tpu.memory_space<vmem>>, vector<1x32xf32>,
    %430 = vector.extract_strided_slice %419 {offsets = [5, 0], sizes = [1, 32], strides = [1, 1]} : vector<8x32xf32> to vector<1x32xf32>
    %c1_315 = arith.constant 1 : index
    %c1280_316 = arith.constant 1280 : index
    %431 = vector.load %arg14[%c1_315, %c1280_316] : memref<2x1568xf32, #tpu.memory_space<vmem>>, vector<1x32xf32>
    tpu.vector_store %arg14[%c1_315, %c1280_316], %430 {strides = array<i32>} : memref<2x1568xf32, #tpu.memory_space<vmem>>, vector<1x32xf32>,
    %432 = vector.extract_strided_slice %419 {offsets = [6, 0], sizes = [1, 32], strides = [1, 1]} : vector<8x32xf32> to vector<1x32xf32>
    %c1_317 = arith.constant 1 : index
    %c1312_318 = arith.constant 1312 : index
    %433 = vector.load %arg14[%c1_317, %c1312_318] : memref<2x1568xf32, #tpu.memory_space<vmem>>, vector<1x32xf32>
    tpu.vector_store %arg14[%c1_317, %c1312_318], %432 {strides = array<i32>} : memref<2x1568xf32, #tpu.memory_space<vmem>>, vector<1x32xf32>,
    %434 = vector.extract_strided_slice %331 {offsets = [96, 0], sizes = [8, 32], strides = [1, 1]} : vector<112x32xf32> to vector<8x32xf32>
    %435 = vector.extract_strided_slice %331 {offsets = [104, 0], sizes = [8, 32], strides = [1, 1]} : vector<112x32xf32> to vector<8x32xf32>
    %436 = arith.maximumf %434, %435 : vector<8x32xf32>
    %437 = vector.extract_strided_slice %436 {offsets = [0, 0], sizes = [1, 32], strides = [1, 1]} : vector<8x32xf32> to vector<1x32xf32>
    %c1_319 = arith.constant 1 : index
    %c1344_320 = arith.constant 1344 : index
    %438 = vector.load %arg14[%c1_319, %c1344_320] : memref<2x1568xf32, #tpu.memory_space<vmem>>, vector<1x32xf32>
    tpu.vector_store %arg14[%c1_319, %c1344_320], %437 {strides = array<i32>} : memref<2x1568xf32, #tpu.memory_space<vmem>>, vector<1x32xf32>,
    %439 = vector.extract_strided_slice %436 {offsets = [1, 0], sizes = [1, 32], strides = [1, 1]} : vector<8x32xf32> to vector<1x32xf32>
    %c1_321 = arith.constant 1 : index
    %c1376_322 = arith.constant 1376 : index
    %440 = vector.load %arg14[%c1_321, %c1376_322] : memref<2x1568xf32, #tpu.memory_space<vmem>>, vector<1x32xf32>
    tpu.vector_store %arg14[%c1_321, %c1376_322], %439 {strides = array<i32>} : memref<2x1568xf32, #tpu.memory_space<vmem>>, vector<1x32xf32>,
    %441 = vector.extract_strided_slice %436 {offsets = [2, 0], sizes = [1, 32], strides = [1, 1]} : vector<8x32xf32> to vector<1x32xf32>
    %c1_323 = arith.constant 1 : index
    %c1408_324 = arith.constant 1408 : index
    %442 = vector.load %arg14[%c1_323, %c1408_324] : memref<2x1568xf32, #tpu.memory_space<vmem>>, vector<1x32xf32>
    tpu.vector_store %arg14[%c1_323, %c1408_324], %441 {strides = array<i32>} : memref<2x1568xf32, #tpu.memory_space<vmem>>, vector<1x32xf32>,
    %443 = vector.extract_strided_slice %436 {offsets = [3, 0], sizes = [1, 32], strides = [1, 1]} : vector<8x32xf32> to vector<1x32xf32>
    %c1_325 = arith.constant 1 : index
    %c1440_326 = arith.constant 1440 : index
    %444 = vector.load %arg14[%c1_325, %c1440_326] : memref<2x1568xf32, #tpu.memory_space<vmem>>, vector<1x32xf32>
    tpu.vector_store %arg14[%c1_325, %c1440_326], %443 {strides = array<i32>} : memref<2x1568xf32, #tpu.memory_space<vmem>>, vector<1x32xf32>,
    %445 = vector.extract_strided_slice %436 {offsets = [4, 0], sizes = [1, 32], strides = [1, 1]} : vector<8x32xf32> to vector<1x32xf32>
    %c1_327 = arith.constant 1 : index
    %c1472_328 = arith.constant 1472 : index
    %446 = vector.load %arg14[%c1_327, %c1472_328] : memref<2x1568xf32, #tpu.memory_space<vmem>>, vector<1x32xf32>
    tpu.vector_store %arg14[%c1_327, %c1472_328], %445 {strides = array<i32>} : memref<2x1568xf32, #tpu.memory_space<vmem>>, vector<1x32xf32>,
    %447 = vector.extract_strided_slice %436 {offsets = [5, 0], sizes = [1, 32], strides = [1, 1]} : vector<8x32xf32> to vector<1x32xf32>
    %c1_329 = arith.constant 1 : index
    %c1504_330 = arith.constant 1504 : index
    %448 = vector.load %arg14[%c1_329, %c1504_330] : memref<2x1568xf32, #tpu.memory_space<vmem>>, vector<1x32xf32>
    tpu.vector_store %arg14[%c1_329, %c1504_330], %447 {strides = array<i32>} : memref<2x1568xf32, #tpu.memory_space<vmem>>, vector<1x32xf32>,
    %449 = vector.extract_strided_slice %436 {offsets = [6, 0], sizes = [1, 32], strides = [1, 1]} : vector<8x32xf32> to vector<1x32xf32>
    %c1_331 = arith.constant 1 : index
    %c1536_332 = arith.constant 1536 : index
    %450 = vector.load %arg14[%c1_331, %c1536_332] : memref<2x1568xf32, #tpu.memory_space<vmem>>, vector<1x32xf32>
    tpu.vector_store %arg14[%c1_331, %c1536_332], %449 {strides = array<i32>} : memref<2x1568xf32, #tpu.memory_space<vmem>>, vector<1x32xf32>,
    %c0_333 = arith.constant 0 : index
    %c0_334 = arith.constant 0 : index
    %451 = vector.load %arg14[%c0_333, %c0_334] : memref<2x1568xf32, #tpu.memory_space<vmem>>, vector<2x1568xf32>
    %c0_335 = arith.constant 0 : index
    %c0_336 = arith.constant 0 : index
    %452 = vector.load %arg6[%c0_335, %c0_336] : memref<1568x128xf32, #tpu.memory_space<vmem>>, vector<1568x128xf32>
    %cst_337 = arith.constant dense<0.000000e+00> : vector<2x128xf32>
    %453 = tpu.matmul %451, %452, %cst_337 {dimension_numbers = #tpu.dot_dimension_numbers<[1], [0], [0], [1], [0, 0, 1, 1], [], []>} : vector<2x1568xf32>, vector<1568x128xf32>, vector<2x128xf32> -> vector<2x128xf32>
    %c0_338 = arith.constant 0 : index
    %c0_339 = arith.constant 0 : index
    %454 = vector.load %arg7[%c0_338, %c0_339] : memref<1x128xf32, #tpu.memory_space<vmem>>, vector<1x128xf32>
    %455 = vector.broadcast %454 : vector<1x128xf32> to vector<2x128xf32>
    %456 = arith.addf %453, %455 : vector<2x128xf32>
    %cst_340 = arith.constant 0.000000e+00 : f32
    %457 = vector.broadcast %cst_340 : f32 to vector<2x128xf32>
    %458 = arith.maximumf %456, %457 : vector<2x128xf32>
    %c0_341 = arith.constant 0 : index
    %c0_342 = arith.constant 0 : index
    %459 = vector.load %arg8[%c0_341, %c0_342] : memref<128x10xf32, #tpu.memory_space<vmem>>, vector<128x10xf32>
    %cst_343 = arith.constant dense<0.000000e+00> : vector<2x10xf32>
    %460 = tpu.matmul %458, %459, %cst_343 {dimension_numbers = #tpu.dot_dimension_numbers<[1], [0], [0], [1], [0, 0, 1, 1], [], []>} : vector<2x128xf32>, vector<128x10xf32>, vector<2x10xf32> -> vector<2x10xf32>
    %c0_344 = arith.constant 0 : index
    %c0_345 = arith.constant 0 : index
    %461 = vector.load %arg9[%c0_344, %c0_345] : memref<1x10xf32, #tpu.memory_space<vmem>>, vector<1x10xf32>
    %462 = vector.broadcast %461 : vector<1x10xf32> to vector<2x10xf32>
    %463 = arith.addf %460, %462 : vector<2x10xf32>
    %c0_346 = arith.constant 0 : index
    %c0_347 = arith.constant 0 : index
    %464 = vector.load %arg10[%c0_346, %c0_347] : memref<2x10xf32, #tpu.memory_space<vmem>>, vector<2x10xf32>
    tpu.vector_store %arg10[%c0_346, %c0_347], %463 {strides = array<i32>} : memref<2x10xf32, #tpu.memory_space<vmem>>, vector<2x10xf32>,
    return
  }
  func.func @transform_0(%arg0: i32) -> (i32, i32, i32) {
    %c0_i32 = arith.constant 0 : i32
    %c0_i32_0 = arith.constant 0 : i32
    %c0_i32_1 = arith.constant 0 : i32
    %c0_i32_2 = arith.constant 0 : i32
    return %c0_i32, %c0_i32_0, %c0_i32_1 : i32, i32, i32
  }
  func.func @transform_1(%arg0: i32) -> (i32, i32) {
    %c0_i32 = arith.constant 0 : i32
    %c0_i32_0 = arith.constant 0 : i32
    %c0_i32_1 = arith.constant 0 : i32
    return %c0_i32, %c0_i32_0 : i32, i32
  }
  func.func @transform_2(%arg0: i32) -> (i32, i32) {
    %c0_i32 = arith.constant 0 : i32
    %c0_i32_0 = arith.constant 0 : i32
    %c0_i32_1 = arith.constant 0 : i32
    return %c0_i32, %c0_i32_0 : i32, i32
  }
  func.func @transform_3(%arg0: i32) -> (i32, i32) {
    %c0_i32 = arith.constant 0 : i32
    %c0_i32_0 = arith.constant 0 : i32
    %c0_i32_1 = arith.constant 0 : i32
    return %c0_i32, %c0_i32_0 : i32, i32
  }
  func.func @transform_4(%arg0: i32) -> (i32, i32) {
    %c0_i32 = arith.constant 0 : i32
    %c0_i32_0 = arith.constant 0 : i32
    %c0_i32_1 = arith.constant 0 : i32
    return %c0_i32, %c0_i32_0 : i32, i32
  }
  func.func @transform_5(%arg0: i32) -> (i32, i32) {
    %c0_i32 = arith.constant 0 : i32
    %c0_i32_0 = arith.constant 0 : i32
    %c0_i32_1 = arith.constant 0 : i32
    return %c0_i32, %c0_i32_0 : i32, i32
  }
  func.func @transform_6(%arg0: i32) -> (i32, i32) {
    %c0_i32 = arith.constant 0 : i32
    %c0_i32_0 = arith.constant 0 : i32
    %c0_i32_1 = arith.constant 0 : i32
    return %c0_i32, %c0_i32_0 : i32, i32
  }
  func.func @transform_7(%arg0: i32) -> (i32, i32) {
    %c0_i32 = arith.constant 0 : i32
    %c0_i32_0 = arith.constant 0 : i32
    %c0_i32_1 = arith.constant 0 : i32
    return %c0_i32, %c0_i32_0 : i32, i32
  }
  func.func @transform_8(%arg0: i32) -> (i32, i32) {
    %c0_i32 = arith.constant 0 : i32
    %c0_i32_0 = arith.constant 0 : i32
    %c0_i32_1 = arith.constant 0 : i32
    return %c0_i32, %c0_i32_0 : i32, i32
  }
  func.func @transform_9(%arg0: i32) -> (i32, i32) {
    %c0_i32 = arith.constant 0 : i32
    %c0_i32_0 = arith.constant 0 : i32
    %c0_i32_1 = arith.constant 0 : i32
    return %c0_i32, %c0_i32_0 : i32, i32
  }
}

</mosaic_0001>

<llo_original>
// kernel: inference_forward.1
$region0: #{inference_forward.1}
  #allocation0 [shape = 'u32[]', space=smem, size = 0x4, offset = 0x4, fixed_abs, tag = 'smem constant byte address 0x4 - core index']
  #allocation1 [shape = 'u32[72,128]{1,0:T(1,128)}', space=vmem, size = 0x9000, scoped, tag = 'internal scratch']
  #allocation2 [shape = 'f32[264,16]{1,0:T(8,128)}', space=vmem, size = 0x21000, scoped, tag = 'scratch operand']
  #allocation3 [shape = 'f32[224,144]{1,0:T(8,128)}', space=vmem, size = 0x38000, scoped, tag = 'scratch operand']
  #allocation4 [shape = 'f32[224,32]{1,0:T(8,128)}', space=vmem, size = 0x1c000, scoped, tag = 'scratch operand']
  #allocation5 [shape = 'f32[2,1568]{1,0:T(2,128)}', space=vmem, size = 0x3400, scoped, tag = 'scratch operand']
  %s0 = inlined_call_operand.vmem [shape: f32[2,264,1], index: 0, kind: input, shape index: {}]
  %s1 = inlined_call_operand.vmem [shape: f32[9,16], index: 1, kind: input, shape index: {}]
  %s2 = inlined_call_operand.vmem [shape: f32[1,16], index: 2, kind: input, shape index: {}]
  %s3 = inlined_call_operand.vmem [shape: f32[144,32], index: 3, kind: input, shape index: {}]
  %s4 = inlined_call_operand.vmem [shape: f32[1,32], index: 4, kind: input, shape index: {}]
  %s5 = inlined_call_operand.hbm [shape: f32[1568,128], index: 5, kind: input, shape index: {}]
  %s6 = inlined_call_operand.vmem [shape: f32[1,128], index: 6, kind: input, shape index: {}]
  %s7 = inlined_call_operand.vmem [shape: f32[128,10], index: 7, kind: input, shape index: {}]
  %s8 = inlined_call_operand.vmem [shape: f32[1,10], index: 8, kind: input, shape index: {}]
  %s9 = inlined_call_operand.hbm [shape: f32[2,10], index: 9, kind: output, shape index: {}]
  %s10 = sld [smem:[#allocation0]]
  $region50: #{inference_forward.1} parent=0
    _
  %s12 = ssub.s32 1, %s10
  %s13 = scalar_select 0, %s12, %s10
  $region1: #{inference_forward.1} parent=0
    #allocation6 [shape = 'u8[802816]{0}', space=vmem, size = 0xc4000, scoped, tag = 'input window, operand 5, single buffered']
    #allocation7 [shape = 's32[1]{0}', space=sflag, size = 0x4, scoped, tag = 'scoped memory for inference_forward.1']
    #allocation8 [shape = 's32[1]{0}', space=sflag, size = 0x4, scoped, tag = 'scoped memory for inference_forward.1']
    #allocation9 [shape = 'u8[1024]{0}', space=vmem, size = 0x400, scoped, tag = 'output window, operand 0, single buffered']
    %14 = vsyncpa [#allocation7], 0
    %15 = vsyncpa [#allocation8], 0
    // Predicated region
    $region2: #{inference_forward.1} parent=1 // pred_check
      _
    $region3: #{inference_forward.1} parent=1 // pred_check_branch
      %17 = sbr.rel (0) target = $region5
    $region4: #{inference_forward.1} parent=1 // pred_region
      _
    $region5: #{inference_forward.1} parent=1 // pred_fallthru
      _
    // Predicated region
    $region6: #{inference_forward.1} parent=1 // pred_check
      _
    $region7: #{inference_forward.1} parent=1 // pred_check_branch
      %19 = sbr.rel (0) target = $region9
    $region8: #{inference_forward.1} parent=1 // pred_region
      _
    $region9: #{inference_forward.1} parent=1 // pred_fallthru
      _
    // Predicated region
    $region10: #{inference_forward.1} parent=1 // pred_check
      _
    $region11: #{inference_forward.1} parent=1 // pred_check_branch
      %21 = sbr.rel (0) target = $region13
    $region12: #{inference_forward.1} parent=1 // pred_region
      _
    $region13: #{inference_forward.1} parent=1 // pred_fallthru
      _
    // Predicated region
    $region14: #{inference_forward.1} parent=1 // pred_check
      _
    $region15: #{inference_forward.1} parent=1 // pred_check_branch
      %23 = sbr.rel (0) target = $region17
    $region16: #{inference_forward.1} parent=1 // pred_region
      _
    $region17: #{inference_forward.1} parent=1 // pred_fallthru
      _
    // Predicated region
    $region18: #{inference_forward.1} parent=1 // pred_check
      _
    $region19: #{inference_forward.1} parent=1 // pred_check_branch
      %25 = sbr.rel (0) target = $region21
    $region20: #{inference_forward.1} parent=1 // pred_region
      _
    $region21: #{inference_forward.1} parent=1 // pred_fallthru
      _
    // Predicated region
    $region22: #{inference_forward.1} parent=1 // pred_check
      _
    $region23: #{inference_forward.1} parent=1 // pred_check_branch
      %27 = sbr.rel (0) target = $region25
    $region24: #{inference_forward.1} parent=1 // pred_region
      %29 = vsyncadd [#allocation7], 0
      %s30 = sshll.u32 %s5, 4
      %s31 = int_to_ptr.hbm [resolvable:$true] %s30
      %s32 = sshll.u32 [#allocation6], 4
      %s33 = int_to_ptr.vmem [resolvable:$true] %s32
      %38 = dma.hbm_to_vmem [thread:$0]  %s31, 25088, %s33, [#allocation7], 128, 128, 8
    $region25: #{inference_forward.1} parent=1 // pred_fallthru
      _
    // Predicated region
    $region26: #{inference_forward.1} parent=1 // pred_check
      _
    $region27: #{inference_forward.1} parent=1 // pred_check_branch
      %40 = sbr.rel (0) target = $region29
    $region28: #{inference_forward.1} parent=1 // pred_region
      _
    $region29: #{inference_forward.1} parent=1 // pred_fallthru
      _
    // Predicated region
    $region30: #{inference_forward.1} parent=1 // pred_check
      _
    $region31: #{inference_forward.1} parent=1 // pred_check_branch
      %42 = sbr.rel (0) target = $region33
    $region32: #{inference_forward.1} parent=1 // pred_region
      _
    $region33: #{inference_forward.1} parent=1 // pred_fallthru
      _
    // Predicated region
    $region34: #{inference_forward.1} parent=1 // pred_check
      _
    $region35: #{inference_forward.1} parent=1 // pred_check_branch
      %44 = sbr.rel (0) target = $region37
    $region36: #{inference_forward.1} parent=1 // pred_region
      _
    $region37: #{inference_forward.1} parent=1 // pred_fallthru
      _
    // Predicated region
    $region38: #{inference_forward.1} parent=1 // pred_check
      _
    $region39: #{inference_forward.1} parent=1 // pred_check_branch
      %46 = sbr.rel (0) target = $region41
    $region40: #{inference_forward.1} parent=1 // pred_region
      %48 = dma.done [#allocation7], 25088
    $region41: #{inference_forward.1} parent=1 // pred_fallthru
      _
    %vm49 = vcmask 130048
    %50 = vst.msk [vmem:[#allocation2] sm:$0xff] %vm49, 0.0
    %51 = vst.msk [vmem:[#allocation2 + $0x8] sm:$0xff] %vm49, 0.0
    %52 = vst.msk [vmem:[#allocation2 + $0x10] sm:$0xff] %vm49, 0.0
    %53 = vst.msk [vmem:[#allocation2 + $0x18] sm:$0xff] %vm49, 0.0
    %54 = vst.msk [vmem:[#allocation2 + $0x20] sm:$0xff] %vm49, 0.0
    %55 = vst.msk [vmem:[#allocation2 + $0x28] sm:$0xff] %vm49, 0.0
    %56 = vst.msk [vmem:[#allocation2 + $0x30] sm:$0xff] %vm49, 0.0
    %57 = vst.msk [vmem:[#allocation2 + $0x38] sm:$0xff] %vm49, 0.0
    %58 = vst.msk [vmem:[#allocation2 + $0x40] sm:$0xff] %vm49, 0.0
    %59 = vst.msk [vmem:[#allocation2 + $0x48] sm:$0xff] %vm49, 0.0
    %60 = vst.msk [vmem:[#allocation2 + $0x50] sm:$0xff] %vm49, 0.0
    %61 = vst.msk [vmem:[#allocation2 + $0x58] sm:$0xff] %vm49, 0.0
    %62 = vst.msk [vmem:[#allocation2 + $0x60] sm:$0xff] %vm49, 0.0
    %63 = vst.msk [vmem:[#allocation2 + $0x68] sm:$0xff] %vm49, 0.0
    %64 = vst.msk [vmem:[#allocation2 + $0x70] sm:$0xff] %vm49, 0.0
    %65 = vst.msk [vmem:[#allocation2 + $0x78] sm:$0xff] %vm49, 0.0
    %66 = vst.msk [vmem:[#allocation2 + $0x80] sm:$0xff] %vm49, 0.0
    %67 = vst.msk [vmem:[#allocation2 + $0x88] sm:$0xff] %vm49, 0.0
    %68 = vst.msk [vmem:[#allocation2 + $0x90] sm:$0xff] %vm49, 0.0
    %69 = vst.msk [vmem:[#allocation2 + $0x98] sm:$0xff] %vm49, 0.0
    %70 = vst.msk [vmem:[#allocation2 + $0xa0] sm:$0xff] %vm49, 0.0
    %71 = vst.msk [vmem:[#allocation2 + $0xa8] sm:$0xff] %vm49, 0.0
    %72 = vst.msk [vmem:[#allocation2 + $0xb0] sm:$0xff] %vm49, 0.0
    %73 = vst.msk [vmem:[#allocation2 + $0xb8] sm:$0xff] %vm49, 0.0
    %74 = vst.msk [vmem:[#allocation2 + $0xc0] sm:$0xff] %vm49, 0.0
    %75 = vst.msk [vmem:[#allocation2 + $0xc8] sm:$0xff] %vm49, 0.0
    %76 = vst.msk [vmem:[#allocation2 + $0xd0] sm:$0xff] %vm49, 0.0
    %77 = vst.msk [vmem:[#allocation2 + $0xd8] sm:$0xff] %vm49, 0.0
    %78 = vst.msk [vmem:[#allocation2 + $0xe0] sm:$0xff] %vm49, 0.0
    %79 = vst.msk [vmem:[#allocation2 + $0xe8] sm:$0xff] %vm49, 0.0
    %80 = vst.msk [vmem:[#allocation2 + $0xf0] sm:$0xff] %vm49, 0.0
    %81 = vst.msk [vmem:[#allocation2 + $0xf8] sm:$0xff] %vm49, 0.0
    %82 = vst.msk [vmem:[#allocation2 + $0x100] sm:$0xff] %vm49, 0.0
    %v83 = vld [vmem:[%s2] sm:$0x1]
    %v84 = vld [vmem:[%s4] sm:$0x1]
    %v85 = vlaneseq
    %v86 = vshrl.u32 %v85, 7
    %v87 = vadd.s32 %v86, 8
    %v88 = vadd.s32 %v86, 16
    %v89 = vadd.s32 %v86, 24
    %v90 = vadd.s32 %v86, 32
    %v91 = vadd.s32 %v86, 40
    %v92 = vadd.s32 %v86, 48
    %v93 = vadd.s32 %v86, 56
    %v94 = vadd.s32 %v86, 64
    %v95 = vadd.s32 %v86, 72
    %v96 = vadd.s32 %v86, 80
    %v97 = vadd.s32 %v86, 88
    %v98 = vadd.s32 %v86, 96
    %v99 = vadd.s32 %v86, 104
    %v100 = vadd.s32 %v86, 112
    %v101 = vadd.s32 %v86, 120
    %v102 = vadd.s32 %v86, 128
    %v103 = vadd.s32 %v86, 136
    %v104 = vadd.s32 %v86, 144
    %v105 = vadd.s32 %v86, 152
    %v106 = vadd.s32 %v86, 160
    %v107 = vadd.s32 %v86, 168
    %v108 = vadd.s32 %v86, 176
    %v109 = vadd.s32 %v86, 184
    %v110 = vadd.s32 %v86, 192
    %v111 = vadd.s32 %v86, 200
    %v112 = vadd.s32 %v86, 208
    %v113 = vadd.s32 %v86, 216
    %v114 = vand.u32 %v86, 15
    %v115 = vand.u32 %v87, 15
    %v116 = vand.u32 %v88, 15
    %v117 = vand.u32 %v89, 15
    %v118 = vand.u32 %v90, 15
    %v119 = vand.u32 %v91, 15
    %v120 = vand.u32 %v92, 15
    %v121 = vand.u32 %v93, 15
    %v122 = vand.u32 %v94, 15
    %v123 = vand.u32 %v95, 15
    %v124 = vand.u32 %v96, 15
    %v125 = vand.u32 %v97, 15
    %v126 = vand.u32 %v98, 15
    %v127 = vand.u32 %v99, 15
    %v128 = vand.u32 %v100, 15
    %v129 = vand.u32 %v101, 15
    %v130 = vand.u32 %v102, 15
    %v131 = vand.u32 %v103, 15
    %v132 = vand.u32 %v104, 15
    %v133 = vand.u32 %v105, 15
    %v134 = vand.u32 %v106, 15
    %v135 = vand.u32 %v107, 15
    %v136 = vand.u32 %v108, 15
    %v137 = vand.u32 %v109, 15
    %v138 = vand.u32 %v110, 15
    %v139 = vand.u32 %v111, 15
    %v140 = vand.u32 %v112, 15
    %v141 = vand.u32 %v113, 15
    %vm142 = vcmp.lt.s32.totalorder %v114, 14
    %vm143 = vcmp.lt.s32.totalorder %v115, 14
    %vm144 = vcmp.lt.s32.totalorder %v116, 14
    %vm145 = vcmp.lt.s32.totalorder %v117, 14
    %vm146 = vcmp.lt.s32.totalorder %v118, 14
    %vm147 = vcmp.lt.s32.totalorder %v119, 14
    %vm148 = vcmp.lt.s32.totalorder %v120, 14
    %vm149 = vcmp.lt.s32.totalorder %v121, 14
    %vm150 = vcmp.lt.s32.totalorder %v122, 14
    %vm151 = vcmp.lt.s32.totalorder %v123, 14
    %vm152 = vcmp.lt.s32.totalorder %v124, 14
    %vm153 = vcmp.lt.s32.totalorder %v125, 14
    %vm154 = vcmp.lt.s32.totalorder %v126, 14
    %vm155 = vcmp.lt.s32.totalorder %v127, 14
    %vm156 = vcmp.lt.s32.totalorder %v128, 14
    %vm157 = vcmp.lt.s32.totalorder %v129, 14
    %vm158 = vcmp.lt.s32.totalorder %v130, 14
    %vm159 = vcmp.lt.s32.totalorder %v131, 14
    %vm160 = vcmp.lt.s32.totalorder %v132, 14
    %vm161 = vcmp.lt.s32.totalorder %v133, 14
    %vm162 = vcmp.lt.s32.totalorder %v134, 14
    %vm163 = vcmp.lt.s32.totalorder %v135, 14
    %vm164 = vcmp.lt.s32.totalorder %v136, 14
    %vm165 = vcmp.lt.s32.totalorder %v137, 14
    %vm166 = vcmp.lt.s32.totalorder %v138, 14
    %vm167 = vcmp.lt.s32.totalorder %v139, 14
    %vm168 = vcmp.lt.s32.totalorder %v140, 14
    %vm169 = vcmp.lt.s32.totalorder %v141, 14
    %v170 = vld [vmem:[%s0] sm:$0xff]
    %v171 = vld [vmem:[%s0 + $0x8] sm:$0xff]
    %v172 = vld [vmem:[%s0 + $0x10] sm:$0xff]
    %v173 = vld [vmem:[%s0 + $0x18] sm:$0xff]
    %v174 = vld [vmem:[%s0 + $0x20] sm:$0xff]
    %v175 = vld [vmem:[%s0 + $0x28] sm:$0xff]
    %v176 = vld [vmem:[%s0 + $0x30] sm:$0xff]
    %v177 = vld [vmem:[%s0 + $0x38] sm:$0xff]
    %v178 = vld [vmem:[%s0 + $0x40] sm:$0xff]
    %v179 = vld [vmem:[%s0 + $0x48] sm:$0xff]
    %v180 = vld [vmem:[%s0 + $0x50] sm:$0xff]
    %v181 = vld [vmem:[%s0 + $0x58] sm:$0xff]
    %v182 = vld [vmem:[%s0 + $0x60] sm:$0xff]
    %v183 = vld [vmem:[%s0 + $0x68] sm:$0xff]
    %v184 = vld [vmem:[%s0 + $0x70] sm:$0xff]
    %v185 = vld [vmem:[%s0 + $0x78] sm:$0xff]
    %v186 = vld [vmem:[%s0 + $0x80] sm:$0xff]
    %v187 = vld [vmem:[%s0 + $0x88] sm:$0xff]
    %v188 = vld [vmem:[%s0 + $0x90] sm:$0xff]
    %v189 = vld [vmem:[%s0 + $0x98] sm:$0xff]
    %v190 = vld [vmem:[%s0 + $0xa0] sm:$0xff]
    %v191 = vld [vmem:[%s0 + $0xa8] sm:$0xff]
    %v192 = vld [vmem:[%s0 + $0xb0] sm:$0xff]
    %v193 = vld [vmem:[%s0 + $0xb8] sm:$0xff]
    %v194 = vld [vmem:[%s0 + $0xc0] sm:$0xff]
    %v195 = vld [vmem:[%s0 + $0xc8] sm:$0xff]
    %v196 = vld [vmem:[%s0 + $0xd0] sm:$0xff]
    %v197 = vld [vmem:[%s0 + $0xd8] sm:$0xff]
    %v198 = vld [vmem:[%s1] sm:$0x1]
    %200 = vset.pattern.permute.xlu0 0
    %201 = vperm.xlu0 %200, %v170
    %v202 = vpop.permute.xlu0 %201
    %205 = vset.pattern.permute.xlu0 0
    %206 = vperm.xlu0 %205, %v171
    %v207 = vpop.permute.xlu0 %206
    %210 = vset.pattern.permute.xlu0 0
    %211 = vperm.xlu0 %210, %v172
    %v212 = vpop.permute.xlu0 %211
    %215 = vset.pattern.permute.xlu0 0
    %216 = vperm.xlu0 %215, %v173
    %v217 = vpop.permute.xlu0 %216
    %220 = vset.pattern.permute.xlu0 0
    %221 = vperm.xlu0 %220, %v174
    %v222 = vpop.permute.xlu0 %221
    %225 = vset.pattern.permute.xlu0 0
    %226 = vperm.xlu0 %225, %v175
    %v227 = vpop.permute.xlu0 %226
    %230 = vset.pattern.permute.xlu0 0
    %231 = vperm.xlu0 %230, %v176
    %v232 = vpop.permute.xlu0 %231
    %235 = vset.pattern.permute.xlu0 0
    %236 = vperm.xlu0 %235, %v177
    %v237 = vpop.permute.xlu0 %236
    %240 = vset.pattern.permute.xlu0 0
    %241 = vperm.xlu0 %240, %v178
    %v242 = vpop.permute.xlu0 %241
    %245 = vset.pattern.permute.xlu0 0
    %246 = vperm.xlu0 %245, %v179
    %v247 = vpop.permute.xlu0 %246
    %250 = vset.pattern.permute.xlu0 0
    %251 = vperm.xlu0 %250, %v180
    %v252 = vpop.permute.xlu0 %251
    %255 = vset.pattern.permute.xlu0 0
    %256 = vperm.xlu0 %255, %v181
    %v257 = vpop.permute.xlu0 %256
    %260 = vset.pattern.permute.xlu0 0
    %261 = vperm.xlu0 %260, %v182
    %v262 = vpop.permute.xlu0 %261
    %265 = vset.pattern.permute.xlu0 0
    %266 = vperm.xlu0 %265, %v183
    %v267 = vpop.permute.xlu0 %266
    %270 = vset.pattern.permute.xlu0 0
    %271 = vperm.xlu0 %270, %v184
    %v272 = vpop.permute.xlu0 %271
    %275 = vset.pattern.permute.xlu0 0
    %276 = vperm.xlu0 %275, %v185
    %v277 = vpop.permute.xlu0 %276
    %280 = vset.pattern.permute.xlu0 0
    %281 = vperm.xlu0 %280, %v186
    %v282 = vpop.permute.xlu0 %281
    %285 = vset.pattern.permute.xlu0 0
    %286 = vperm.xlu0 %285, %v187
    %v287 = vpop.permute.xlu0 %286
    %290 = vset.pattern.permute.xlu0 0
    %291 = vperm.xlu0 %290, %v188
    %v292 = vpop.permute.xlu0 %291
    %295 = vset.pattern.permute.xlu0 0
    %296 = vperm.xlu0 %295, %v189
    %v297 = vpop.permute.xlu0 %296
    %300 = vset.pattern.permute.xlu0 0
    %301 = vperm.xlu0 %300, %v190
    %v302 = vpop.permute.xlu0 %301
    %305 = vset.pattern.permute.xlu0 0
    %306 = vperm.xlu0 %305, %v191
    %v307 = vpop.permute.xlu0 %306
    %310 = vset.pattern.permute.xlu0 0
    %311 = vperm.xlu0 %310, %v192
    %v312 = vpop.permute.xlu0 %311
    %315 = vset.pattern.permute.xlu0 0
    %316 = vperm.xlu0 %315, %v193
    %v317 = vpop.permute.xlu0 %316
    %320 = vset.pattern.permute.xlu0 0
    %321 = vperm.xlu0 %320, %v194
    %v322 = vpop.permute.xlu0 %321
    %325 = vset.pattern.permute.xlu0 0
    %326 = vperm.xlu0 %325, %v195
    %v327 = vpop.permute.xlu0 %326
    %330 = vset.pattern.permute.xlu0 0
    %331 = vperm.xlu0 %330, %v196
    %v332 = vpop.permute.xlu0 %331
    %335 = vset.pattern.permute.xlu0 0
    %336 = vperm.xlu0 %335, %v197
    %v337 = vpop.permute.xlu0 %336
    %v339 = vperm.slane %v198, 0
    %v340 = vmul.f32 %v202, %v339
    %v341 = vmul.f32 %v207, %v339
    %v342 = vmul.f32 %v212, %v339
    %v343 = vmul.f32 %v217, %v339
    %v344 = vmul.f32 %v222, %v339
    %v345 = vmul.f32 %v227, %v339
    %v346 = vmul.f32 %v232, %v339
    %v347 = vmul.f32 %v237, %v339
    %v348 = vmul.f32 %v242, %v339
    %v349 = vmul.f32 %v247, %v339
    %v350 = vmul.f32 %v252, %v339
    %v351 = vmul.f32 %v257, %v339
    %v352 = vmul.f32 %v262, %v339
    %v353 = vmul.f32 %v267, %v339
    %v354 = vmul.f32 %v272, %v339
    %v355 = vmul.f32 %v277, %v339
    %v356 = vmul.f32 %v282, %v339
    %v357 = vmul.f32 %v287, %v339
    %v358 = vmul.f32 %v292, %v339
    %v359 = vmul.f32 %v297, %v339
    %v360 = vmul.f32 %v302, %v339
    %v361 = vmul.f32 %v307, %v339
    %v362 = vmul.f32 %v312, %v339
    %v363 = vmul.f32 %v317, %v339
    %v364 = vmul.f32 %v322, %v339
    %v365 = vmul.f32 %v327, %v339
    %v366 = vmul.f32 %v332, %v339
    %v367 = vmul.f32 %v337, %v339
    %v368 = vadd.f32 %v340, 0.0
    %v369 = vadd.f32 %v341, 0.0
    %v370 = vadd.f32 %v342, 0.0
    %v371 = vadd.f32 %v343, 0.0
    %v372 = vadd.f32 %v344, 0.0
    %v373 = vadd.f32 %v345, 0.0
    %v374 = vadd.f32 %v346, 0.0
    %v375 = vadd.f32 %v347, 0.0
    %v376 = vadd.f32 %v348, 0.0
    %v377 = vadd.f32 %v349, 0.0
    %v378 = vadd.f32 %v350, 0.0
    %v379 = vadd.f32 %v351, 0.0
    %v380 = vadd.f32 %v352, 0.0
    %v381 = vadd.f32 %v353, 0.0
    %v382 = vadd.f32 %v354, 0.0
    %v383 = vadd.f32 %v355, 0.0
    %v384 = vadd.f32 %v356, 0.0
    %v385 = vadd.f32 %v357, 0.0
    %v386 = vadd.f32 %v358, 0.0
    %v387 = vadd.f32 %v359, 0.0
    %v388 = vadd.f32 %v360, 0.0
    %v389 = vadd.f32 %v361, 0.0
    %v390 = vadd.f32 %v362, 0.0
    %v391 = vadd.f32 %v363, 0.0
    %v392 = vadd.f32 %v364, 0.0
    %v393 = vadd.f32 %v365, 0.0
    %v394 = vadd.f32 %v366, 0.0
    %v395 = vadd.f32 %v367, 0.0
    %v396 = vld [vmem:[%s0 + $0x1] sm:$0xff]
    %v397 = vld [vmem:[%s0 + $0x9] sm:$0xff]
    %v398 = vld [vmem:[%s0 + $0x11] sm:$0xff]
    %v399 = vld [vmem:[%s0 + $0x19] sm:$0xff]
    %v400 = vld [vmem:[%s0 + $0x21] sm:$0xff]
    %v401 = vld [vmem:[%s0 + $0x29] sm:$0xff]
    %v402 = vld [vmem:[%s0 + $0x31] sm:$0xff]
    %v403 = vld [vmem:[%s0 + $0x39] sm:$0xff]
    %v404 = vld [vmem:[%s0 + $0x41] sm:$0xff]
    %v405 = vld [vmem:[%s0 + $0x49] sm:$0xff]
    %v406 = vld [vmem:[%s0 + $0x51] sm:$0xff]
    %v407 = vld [vmem:[%s0 + $0x59] sm:$0xff]
    %v408 = vld [vmem:[%s0 + $0x61] sm:$0xff]
    %v409 = vld [vmem:[%s0 + $0x69] sm:$0xff]
    %v410 = vld [vmem:[%s0 + $0x71] sm:$0xff]
    %v411 = vld [vmem:[%s0 + $0x79] sm:$0xff]
    %v412 = vld [vmem:[%s0 + $0x81] sm:$0xff]
    %v413 = vld [vmem:[%s0 + $0x89] sm:$0xff]
    %v414 = vld [vmem:[%s0 + $0x91] sm:$0xff]
    %v415 = vld [vmem:[%s0 + $0x99] sm:$0xff]
    %v416 = vld [vmem:[%s0 + $0xa1] sm:$0xff]
    %v417 = vld [vmem:[%s0 + $0xa9] sm:$0xff]
    %v418 = vld [vmem:[%s0 + $0xb1] sm:$0xff]
    %v419 = vld [vmem:[%s0 + $0xb9] sm:$0xff]
    %v420 = vld [vmem:[%s0 + $0xc1] sm:$0xff]
    %v421 = vld [vmem:[%s0 + $0xc9] sm:$0xff]
    %v422 = vld [vmem:[%s0 + $0xd1] sm:$0xff]
    %v423 = vld [vmem:[%s0 + $0xd9] sm:$0xff]
    %v424 = vld [vmem:[%s1 + $0x1] sm:$0x1]
    %426 = vset.pattern.permute.xlu0 0
    %427 = vperm.xlu0 %426, %v396
    %v428 = vpop.permute.xlu0 %427
    %431 = vset.pattern.permute.xlu0 0
    %432 = vperm.xlu0 %431, %v397
    %v433 = vpop.permute.xlu0 %432
    %436 = vset.pattern.permute.xlu0 0
    %437 = vperm.xlu0 %436, %v398
    %v438 = vpop.permute.xlu0 %437
    %441 = vset.pattern.permute.xlu0 0
    %442 = vperm.xlu0 %441, %v399
    %v443 = vpop.permute.xlu0 %442
    %446 = vset.pattern.permute.xlu0 0
    %447 = vperm.xlu0 %446, %v400
    %v448 = vpop.permute.xlu0 %447
    %451 = vset.pattern.permute.xlu0 0
    %452 = vperm.xlu0 %451, %v401
    %v453 = vpop.permute.xlu0 %452
    %456 = vset.pattern.permute.xlu0 0
    %457 = vperm.xlu0 %456, %v402
    %v458 = vpop.permute.xlu0 %457
    %461 = vset.pattern.permute.xlu0 0
    %462 = vperm.xlu0 %461, %v403
    %v463 = vpop.permute.xlu0 %462
    %466 = vset.pattern.permute.xlu0 0
    %467 = vperm.xlu0 %466, %v404
    %v468 = vpop.permute.xlu0 %467
    %471 = vset.pattern.permute.xlu0 0
    %472 = vperm.xlu0 %471, %v405
    %v473 = vpop.permute.xlu0 %472
    %476 = vset.pattern.permute.xlu0 0
    %477 = vperm.xlu0 %476, %v406
    %v478 = vpop.permute.xlu0 %477
    %481 = vset.pattern.permute.xlu0 0
    %482 = vperm.xlu0 %481, %v407
    %v483 = vpop.permute.xlu0 %482
    %486 = vset.pattern.permute.xlu0 0
    %487 = vperm.xlu0 %486, %v408
    %v488 = vpop.permute.xlu0 %487
    %491 = vset.pattern.permute.xlu0 0
    %492 = vperm.xlu0 %491, %v409
    %v493 = vpop.permute.xlu0 %492
    %496 = vset.pattern.permute.xlu0 0
    %497 = vperm.xlu0 %496, %v410
    %v498 = vpop.permute.xlu0 %497
    %501 = vset.pattern.permute.xlu0 0
    %502 = vperm.xlu0 %501, %v411
    %v503 = vpop.permute.xlu0 %502
    %506 = vset.pattern.permute.xlu0 0
    %507 = vperm.xlu0 %506, %v412
    %v508 = vpop.permute.xlu0 %507
    %511 = vset.pattern.permute.xlu0 0
    %512 = vperm.xlu0 %511, %v413
    %v513 = vpop.permute.xlu0 %512
    %516 = vset.pattern.permute.xlu0 0
    %517 = vperm.xlu0 %516, %v414
    %v518 = vpop.permute.xlu0 %517
    %521 = vset.pattern.permute.xlu0 0
    %522 = vperm.xlu0 %521, %v415
    %v523 = vpop.permute.xlu0 %522
    %526 = vset.pattern.permute.xlu0 0
    %527 = vperm.xlu0 %526, %v416
    %v528 = vpop.permute.xlu0 %527
    %531 = vset.pattern.permute.xlu0 0
    %532 = vperm.xlu0 %531, %v417
    %v533 = vpop.permute.xlu0 %532
    %536 = vset.pattern.permute.xlu0 0
    %537 = vperm.xlu0 %536, %v418
    %v538 = vpop.permute.xlu0 %537
    %541 = vset.pattern.permute.xlu0 0
    %542 = vperm.xlu0 %541, %v419
    %v543 = vpop.permute.xlu0 %542
    %546 = vset.pattern.permute.xlu0 0
    %547 = vperm.xlu0 %546, %v420
    %v548 = vpop.permute.xlu0 %547
    %551 = vset.pattern.permute.xlu0 0
    %552 = vperm.xlu0 %551, %v421
    %v553 = vpop.permute.xlu0 %552
    %556 = vset.pattern.permute.xlu0 0
    %557 = vperm.xlu0 %556, %v422
    %v558 = vpop.permute.xlu0 %557
    %561 = vset.pattern.permute.xlu0 0
    %562 = vperm.xlu0 %561, %v423
    %v563 = vpop.permute.xlu0 %562
    %v565 = vperm.slane %v424, 0
    %v566 = vmul.f32 %v428, %v565
    %v567 = vmul.f32 %v433, %v565
    %v568 = vmul.f32 %v438, %v565
    %v569 = vmul.f32 %v443, %v565
    %v570 = vmul.f32 %v448, %v565
    %v571 = vmul.f32 %v453, %v565
    %v572 = vmul.f32 %v458, %v565
    %v573 = vmul.f32 %v463, %v565
    %v574 = vmul.f32 %v468, %v565
    %v575 = vmul.f32 %v473, %v565
    %v576 = vmul.f32 %v478, %v565
    %v577 = vmul.f32 %v483, %v565
    %v578 = vmul.f32 %v488, %v565
    %v579 = vmul.f32 %v493, %v565
    %v580 = vmul.f32 %v498, %v565
    %v581 = vmul.f32 %v503, %v565
    %v582 = vmul.f32 %v508, %v565
    %v583 = vmul.f32 %v513, %v565
    %v584 = vmul.f32 %v518, %v565
    %v585 = vmul.f32 %v523, %v565
    %v586 = vmul.f32 %v528, %v565
    %v587 = vmul.f32 %v533, %v565
    %v588 = vmul.f32 %v538, %v565
    %v589 = vmul.f32 %v543, %v565
    %v590 = vmul.f32 %v548, %v565
    %v591 = vmul.f32 %v553, %v565
    %v592 = vmul.f32 %v558, %v565
    %v593 = vmul.f32 %v563, %v565
    %v594 = vadd.f32 %v368, %v566
    %v595 = vadd.f32 %v369, %v567
    %v596 = vadd.f32 %v370, %v568
    %v597 = vadd.f32 %v371, %v569
    %v598 = vadd.f32 %v372, %v570
    %v599 = vadd.f32 %v373, %v571
    %v600 = vadd.f32 %v374, %v572
    %v601 = vadd.f32 %v375, %v573
    %v602 = vadd.f32 %v376, %v574
    %v603 = vadd.f32 %v377, %v575
    %v604 = vadd.f32 %v378, %v576
    %v605 = vadd.f32 %v379, %v577
    %v606 = vadd.f32 %v380, %v578
    %v607 = vadd.f32 %v381, %v579
    %v608 = vadd.f32 %v382, %v580
    %v609 = vadd.f32 %v383, %v581
    %v610 = vadd.f32 %v384, %v582
    %v611 = vadd.f32 %v385, %v583
    %v612 = vadd.f32 %v386, %v584
    %v613 = vadd.f32 %v387, %v585
    %v614 = vadd.f32 %v388, %v586
    %v615 = vadd.f32 %v389, %v587
    %v616 = vadd.f32 %v390, %v588
    %v617 = vadd.f32 %v391, %v589
    %v618 = vadd.f32 %v392, %v590
    %v619 = vadd.f32 %v393, %v591
    %v620 = vadd.f32 %v394, %v592
    %v621 = vadd.f32 %v395, %v593
    %v622 = vld [vmem:[%s0 + $0x2] sm:$0xff]
    %v623 = vld [vmem:[%s0 + $0xa] sm:$0xff]
    %v624 = vld [vmem:[%s0 + $0x12] sm:$0xff]
    %v625 = vld [vmem:[%s0 + $0x1a] sm:$0xff]
    %v626 = vld [vmem:[%s0 + $0x22] sm:$0xff]
    %v627 = vld [vmem:[%s0 + $0x2a] sm:$0xff]
    %v628 = vld [vmem:[%s0 + $0x32] sm:$0xff]
    %v629 = vld [vmem:[%s0 + $0x3a] sm:$0xff]
    %v630 = vld [vmem:[%s0 + $0x42] sm:$0xff]
    %v631 = vld [vmem:[%s0 + $0x4a] sm:$0xff]
    %v632 = vld [vmem:[%s0 + $0x52] sm:$0xff]
    %v633 = vld [vmem:[%s0 + $0x5a] sm:$0xff]
    %v634 = vld [vmem:[%s0 + $0x62] sm:$0xff]
    %v635 = vld [vmem:[%s0 + $0x6a] sm:$0xff]
    %v636 = vld [vmem:[%s0 + $0x72] sm:$0xff]
    %v637 = vld [vmem:[%s0 + $0x7a] sm:$0xff]
    %v638 = vld [vmem:[%s0 + $0x82] sm:$0xff]
    %v639 = vld [vmem:[%s0 + $0x8a] sm:$0xff]
    %v640 = vld [vmem:[%s0 + $0x92] sm:$0xff]
    %v641 = vld [vmem:[%s0 + $0x9a] sm:$0xff]
    %v642 = vld [vmem:[%s0 + $0xa2] sm:$0xff]
    %v643 = vld [vmem:[%s0 + $0xaa] sm:$0xff]
    %v644 = vld [vmem:[%s0 + $0xb2] sm:$0xff]
    %v645 = vld [vmem:[%s0 + $0xba] sm:$0xff]
    %v646 = vld [vmem:[%s0 + $0xc2] sm:$0xff]
    %v647 = vld [vmem:[%s0 + $0xca] sm:$0xff]
    %v648 = vld [vmem:[%s0 + $0xd2] sm:$0xff]
    %v649 = vld [vmem:[%s0 + $0xda] sm:$0xff]
    %v650 = vld [vmem:[%s1 + $0x2] sm:$0x1]
    %652 = vset.pattern.permute.xlu0 0
    %653 = vperm.xlu0 %652, %v622
    %v654 = vpop.permute.xlu0 %653
    %657 = vset.pattern.permute.xlu0 0
    %658 = vperm.xlu0 %657, %v623
    %v659 = vpop.permute.xlu0 %658
    %662 = vset.pattern.permute.xlu0 0
    %663 = vperm.xlu0 %662, %v624
    %v664 = vpop.permute.xlu0 %663
    %667 = vset.pattern.permute.xlu0 0
    %668 = vperm.xlu0 %667, %v625
    %v669 = vpop.permute.xlu0 %668
    %672 = vset.pattern.permute.xlu0 0
    %673 = vperm.xlu0 %672, %v626
    %v674 = vpop.permute.xlu0 %673
    %677 = vset.pattern.permute.xlu0 0
    %678 = vperm.xlu0 %677, %v627
    %v679 = vpop.permute.xlu0 %678
    %682 = vset.pattern.permute.xlu0 0
    %683 = vperm.xlu0 %682, %v628
    %v684 = vpop.permute.xlu0 %683
    %687 = vset.pattern.permute.xlu0 0
    %688 = vperm.xlu0 %687, %v629
    %v689 = vpop.permute.xlu0 %688
    %692 = vset.pattern.permute.xlu0 0
    %693 = vperm.xlu0 %692, %v630
    %v694 = vpop.permute.xlu0 %693
    %697 = vset.pattern.permute.xlu0 0
    %698 = vperm.xlu0 %697, %v631
    %v699 = vpop.permute.xlu0 %698
    %702 = vset.pattern.permute.xlu0 0
    %703 = vperm.xlu0 %702, %v632
    %v704 = vpop.permute.xlu0 %703
    %707 = vset.pattern.permute.xlu0 0
    %708 = vperm.xlu0 %707, %v633
    %v709 = vpop.permute.xlu0 %708
    %712 = vset.pattern.permute.xlu0 0
    %713 = vperm.xlu0 %712, %v634
    %v714 = vpop.permute.xlu0 %713
    %717 = vset.pattern.permute.xlu0 0
    %718 = vperm.xlu0 %717, %v635
    %v719 = vpop.permute.xlu0 %718
    %722 = vset.pattern.permute.xlu0 0
    %723 = vperm.xlu0 %722, %v636
    %v724 = vpop.permute.xlu0 %723
    %727 = vset.pattern.permute.xlu0 0
    %728 = vperm.xlu0 %727, %v637
    %v729 = vpop.permute.xlu0 %728
    %732 = vset.pattern.permute.xlu0 0
    %733 = vperm.xlu0 %732, %v638
    %v734 = vpop.permute.xlu0 %733
    %737 = vset.pattern.permute.xlu0 0
    %738 = vperm.xlu0 %737, %v639
    %v739 = vpop.permute.xlu0 %738
    %742 = vset.pattern.permute.xlu0 0
    %743 = vperm.xlu0 %742, %v640
    %v744 = vpop.permute.xlu0 %743
    %747 = vset.pattern.permute.xlu0 0
    %748 = vperm.xlu0 %747, %v641
    %v749 = vpop.permute.xlu0 %748
    %752 = vset.pattern.permute.xlu0 0
    %753 = vperm.xlu0 %752, %v642
    %v754 = vpop.permute.xlu0 %753
    %757 = vset.pattern.permute.xlu0 0
    %758 = vperm.xlu0 %757, %v643
    %v759 = vpop.permute.xlu0 %758
    %762 = vset.pattern.permute.xlu0 0
    %763 = vperm.xlu0 %762, %v644
    %v764 = vpop.permute.xlu0 %763
    %767 = vset.pattern.permute.xlu0 0
    %768 = vperm.xlu0 %767, %v645
    %v769 = vpop.permute.xlu0 %768
    %772 = vset.pattern.permute.xlu0 0
    %773 = vperm.xlu0 %772, %v646
    %v774 = vpop.permute.xlu0 %773
    %777 = vset.pattern.permute.xlu0 0
    %778 = vperm.xlu0 %777, %v647
    %v779 = vpop.permute.xlu0 %778
    %782 = vset.pattern.permute.xlu0 0
    %783 = vperm.xlu0 %782, %v648
    %v784 = vpop.permute.xlu0 %783
    %787 = vset.pattern.permute.xlu0 0
    %788 = vperm.xlu0 %787, %v649
    %v789 = vpop.permute.xlu0 %788
    %v791 = vperm.slane %v650, 0
    %v792 = vmul.f32 %v654, %v791
    %v793 = vmul.f32 %v659, %v791
    %v794 = vmul.f32 %v664, %v791
    %v795 = vmul.f32 %v669, %v791
    %v796 = vmul.f32 %v674, %v791
    %v797 = vmul.f32 %v679, %v791
    %v798 = vmul.f32 %v684, %v791
    %v799 = vmul.f32 %v689, %v791
    %v800 = vmul.f32 %v694, %v791
    %v801 = vmul.f32 %v699, %v791
    %v802 = vmul.f32 %v704, %v791
    %v803 = vmul.f32 %v709, %v791
    %v804 = vmul.f32 %v714, %v791
    %v805 = vmul.f32 %v719, %v791
    %v806 = vmul.f32 %v724, %v791
    %v807 = vmul.f32 %v729, %v791
    %v808 = vmul.f32 %v734, %v791
    %v809 = vmul.f32 %v739, %v791
    %v810 = vmul.f32 %v744, %v791
    %v811 = vmul.f32 %v749, %v791
    %v812 = vmul.f32 %v754, %v791
    %v813 = vmul.f32 %v759, %v791
    %v814 = vmul.f32 %v764, %v791
    %v815 = vmul.f32 %v769, %v791
    %v816 = vmul.f32 %v774, %v791
    %v817 = vmul.f32 %v779, %v791
    %v818 = vmul.f32 %v784, %v791
    %v819 = vmul.f32 %v789, %v791
    %v820 = vadd.f32 %v594, %v792
    %v821 = vadd.f32 %v595, %v793
    %v822 = vadd.f32 %v596, %v794
    %v823 = vadd.f32 %v597, %v795
    %v824 = vadd.f32 %v598, %v796
    %v825 = vadd.f32 %v599, %v797
    %v826 = vadd.f32 %v600, %v798
    %v827 = vadd.f32 %v601, %v799
    %v828 = vadd.f32 %v602, %v800
    %v829 = vadd.f32 %v603, %v801
    %v830 = vadd.f32 %v604, %v802
    %v831 = vadd.f32 %v605, %v803
    %v832 = vadd.f32 %v606, %v804
    %v833 = vadd.f32 %v607, %v805
    %v834 = vadd.f32 %v608, %v806
    %v835 = vadd.f32 %v609, %v807
    %v836 = vadd.f32 %v610, %v808
    %v837 = vadd.f32 %v611, %v809
    %v838 = vadd.f32 %v612, %v810
    %v839 = vadd.f32 %v613, %v811
    %v840 = vadd.f32 %v614, %v812
    %v841 = vadd.f32 %v615, %v813
    %v842 = vadd.f32 %v616, %v814
    %v843 = vadd.f32 %v617, %v815
    %v844 = vadd.f32 %v618, %v816
    %v845 = vadd.f32 %v619, %v817
    %v846 = vadd.f32 %v620, %v818
    %v847 = vadd.f32 %v621, %v819
    %v848 = vld [vmem:[%s0 + $0x10] sm:$0xff]
    %v849 = vld [vmem:[%s0 + $0x18] sm:$0xff]
    %v850 = vld [vmem:[%s0 + $0x20] sm:$0xff]
    %v851 = vld [vmem:[%s0 + $0x28] sm:$0xff]
    %v852 = vld [vmem:[%s0 + $0x30] sm:$0xff]
    %v853 = vld [vmem:[%s0 + $0x38] sm:$0xff]
    %v854 = vld [vmem:[%s0 + $0x40] sm:$0xff]
    %v855 = vld [vmem:[%s0 + $0x48] sm:$0xff]
    %v856 = vld [vmem:[%s0 + $0x50] sm:$0xff]
    %v857 = vld [vmem:[%s0 + $0x58] sm:$0xff]
    %v858 = vld [vmem:[%s0 + $0x60] sm:$0xff]
    %v859 = vld [vmem:[%s0 + $0x68] sm:$0xff]
    %v860 = vld [vmem:[%s0 + $0x70] sm:$0xff]
    %v861 = vld [vmem:[%s0 + $0x78] sm:$0xff]
    %v862 = vld [vmem:[%s0 + $0x80] sm:$0xff]
    %v863 = vld [vmem:[%s0 + $0x88] sm:$0xff]
    %v864 = vld [vmem:[%s0 + $0x90] sm:$0xff]
    %v865 = vld [vmem:[%s0 + $0x98] sm:$0xff]
    %v866 = vld [vmem:[%s0 + $0xa0] sm:$0xff]
    %v867 = vld [vmem:[%s0 + $0xa8] sm:$0xff]
    %v868 = vld [vmem:[%s0 + $0xb0] sm:$0xff]
    %v869 = vld [vmem:[%s0 + $0xb8] sm:$0xff]
    %v870 = vld [vmem:[%s0 + $0xc0] sm:$0xff]
    %v871 = vld [vmem:[%s0 + $0xc8] sm:$0xff]
    %v872 = vld [vmem:[%s0 + $0xd0] sm:$0xff]
    %v873 = vld [vmem:[%s0 + $0xd8] sm:$0xff]
    %v874 = vld [vmem:[%s0 + $0xe0] sm:$0xff]
    %v875 = vld [vmem:[%s0 + $0xe8] sm:$0xff]
    %v876 = vld [vmem:[%s1 + $0x3] sm:$0x1]
    %878 = vset.pattern.permute.xlu0 0
    %879 = vperm.xlu0 %878, %v848
    %v880 = vpop.permute.xlu0 %879
    %883 = vset.pattern.permute.xlu0 0
    %884 = vperm.xlu0 %883, %v849
    %v885 = vpop.permute.xlu0 %884
    %888 = vset.pattern.permute.xlu0 0
    %889 = vperm.xlu0 %888, %v850
    %v890 = vpop.permute.xlu0 %889
    %893 = vset.pattern.permute.xlu0 0
    %894 = vperm.xlu0 %893, %v851
    %v895 = vpop.permute.xlu0 %894
    %898 = vset.pattern.permute.xlu0 0
    %899 = vperm.xlu0 %898, %v852
    %v900 = vpop.permute.xlu0 %899
    %903 = vset.pattern.permute.xlu0 0
    %904 = vperm.xlu0 %903, %v853
    %v905 = vpop.permute.xlu0 %904
    %908 = vset.pattern.permute.xlu0 0
    %909 = vperm.xlu0 %908, %v854
    %v910 = vpop.permute.xlu0 %909
    %913 = vset.pattern.permute.xlu0 0
    %914 = vperm.xlu0 %913, %v855
    %v915 = vpop.permute.xlu0 %914
    %918 = vset.pattern.permute.xlu0 0
    %919 = vperm.xlu0 %918, %v856
    %v920 = vpop.permute.xlu0 %919
    %923 = vset.pattern.permute.xlu0 0
    %924 = vperm.xlu0 %923, %v857
    %v925 = vpop.permute.xlu0 %924
    %928 = vset.pattern.permute.xlu0 0
    %929 = vperm.xlu0 %928, %v858
    %v930 = vpop.permute.xlu0 %929
    %933 = vset.pattern.permute.xlu0 0
    %934 = vperm.xlu0 %933, %v859
    %v935 = vpop.permute.xlu0 %934
    %938 = vset.pattern.permute.xlu0 0
    %939 = vperm.xlu0 %938, %v860
    %v940 = vpop.permute.xlu0 %939
    %943 = vset.pattern.permute.xlu0 0
    %944 = vperm.xlu0 %943, %v861
    %v945 = vpop.permute.xlu0 %944
    %948 = vset.pattern.permute.xlu0 0
    %949 = vperm.xlu0 %948, %v862
    %v950 = vpop.permute.xlu0 %949
    %953 = vset.pattern.permute.xlu0 0
    %954 = vperm.xlu0 %953, %v863
    %v955 = vpop.permute.xlu0 %954
    %958 = vset.pattern.permute.xlu0 0
    %959 = vperm.xlu0 %958, %v864
    %v960 = vpop.permute.xlu0 %959
    %963 = vset.pattern.permute.xlu0 0
    %964 = vperm.xlu0 %963, %v865
    %v965 = vpop.permute.xlu0 %964
    %968 = vset.pattern.permute.xlu0 0
    %969 = vperm.xlu0 %968, %v866
    %v970 = vpop.permute.xlu0 %969
    %973 = vset.pattern.permute.xlu0 0
    %974 = vperm.xlu0 %973, %v867
    %v975 = vpop.permute.xlu0 %974
    %978 = vset.pattern.permute.xlu0 0
    %979 = vperm.xlu0 %978, %v868
    %v980 = vpop.permute.xlu0 %979
    %983 = vset.pattern.permute.xlu0 0
    %984 = vperm.xlu0 %983, %v869
    %v985 = vpop.permute.xlu0 %984
    %988 = vset.pattern.permute.xlu0 0
    %989 = vperm.xlu0 %988, %v870
    %v990 = vpop.permute.xlu0 %989
    %993 = vset.pattern.permute.xlu0 0
    %994 = vperm.xlu0 %993, %v871
    %v995 = vpop.permute.xlu0 %994
    %998 = vset.pattern.permute.xlu0 0
    %999 = vperm.xlu0 %998, %v872
    %v1000 = vpop.permute.xlu0 %999
    %1003 = vset.pattern.permute.xlu0 0
    %1004 = vperm.xlu0 %1003, %v873
    %v1005 = vpop.permute.xlu0 %1004
    %1008 = vset.pattern.permute.xlu0 0
    %1009 = vperm.xlu0 %1008, %v874
    %v1010 = vpop.permute.xlu0 %1009
    %1013 = vset.pattern.permute.xlu0 0
    %1014 = vperm.xlu0 %1013, %v875
    %v1015 = vpop.permute.xlu0 %1014
    %v1017 = vperm.slane %v876, 0
    %v1018 = vmul.f32 %v880, %v1017
    %v1019 = vmul.f32 %v885, %v1017
    %v1020 = vmul.f32 %v890, %v1017
    %v1021 = vmul.f32 %v895, %v1017
    %v1022 = vmul.f32 %v900, %v1017
    %v1023 = vmul.f32 %v905, %v1017
    %v1024 = vmul.f32 %v910, %v1017
    %v1025 = vmul.f32 %v915, %v1017
    %v1026 = vmul.f32 %v920, %v1017
    %v1027 = vmul.f32 %v925, %v1017
    %v1028 = vmul.f32 %v930, %v1017
    %v1029 = vmul.f32 %v935, %v1017
    %v1030 = vmul.f32 %v940, %v1017
    %v1031 = vmul.f32 %v945, %v1017
    %v1032 = vmul.f32 %v950, %v1017
    %v1033 = vmul.f32 %v955, %v1017
    %v1034 = vmul.f32 %v960, %v1017
    %v1035 = vmul.f32 %v965, %v1017
    %v1036 = vmul.f32 %v970, %v1017
    %v1037 = vmul.f32 %v975, %v1017
    %v1038 = vmul.f32 %v980, %v1017
    %v1039 = vmul.f32 %v985, %v1017
    %v1040 = vmul.f32 %v990, %v1017
    %v1041 = vmul.f32 %v995, %v1017
    %v1042 = vmul.f32 %v1000, %v1017
    %v1043 = vmul.f32 %v1005, %v1017
    %v1044 = vmul.f32 %v1010, %v1017
    %v1045 = vmul.f32 %v1015, %v1017
    %v1046 = vadd.f32 %v820, %v1018
    %v1047 = vadd.f32 %v821, %v1019
    %v1048 = vadd.f32 %v822, %v1020
    %v1049 = vadd.f32 %v823, %v1021
    %v1050 = vadd.f32 %v824, %v1022
    %v1051 = vadd.f32 %v825, %v1023
    %v1052 = vadd.f32 %v826, %v1024
    %v1053 = vadd.f32 %v827, %v1025
    %v1054 = vadd.f32 %v828, %v1026
    %v1055 = vadd.f32 %v829, %v1027
    %v1056 = vadd.f32 %v830, %v1028
    %v1057 = vadd.f32 %v831, %v1029
    %v1058 = vadd.f32 %v832, %v1030
    %v1059 = vadd.f32 %v833, %v1031
    %v1060 = vadd.f32 %v834, %v1032
    %v1061 = vadd.f32 %v835, %v1033
    %v1062 = vadd.f32 %v836, %v1034
    %v1063 = vadd.f32 %v837, %v1035
    %v1064 = vadd.f32 %v838, %v1036
    %v1065 = vadd.f32 %v839, %v1037
    %v1066 = vadd.f32 %v840, %v1038
    %v1067 = vadd.f32 %v841, %v1039
    %v1068 = vadd.f32 %v842, %v1040
    %v1069 = vadd.f32 %v843, %v1041
    %v1070 = vadd.f32 %v844, %v1042
    %v1071 = vadd.f32 %v845, %v1043
    %v1072 = vadd.f32 %v846, %v1044
    %v1073 = vadd.f32 %v847, %v1045
    %v1074 = vld [vmem:[%s0 + $0x11] sm:$0xff]
    %v1075 = vld [vmem:[%s0 + $0x19] sm:$0xff]
    %v1076 = vld [vmem:[%s0 + $0x21] sm:$0xff]
    %v1077 = vld [vmem:[%s0 + $0x29] sm:$0xff]
    %v1078 = vld [vmem:[%s0 + $0x31] sm:$0xff]
    %v1079 = vld [vmem:[%s0 + $0x39] sm:$0xff]
    %v1080 = vld [vmem:[%s0 + $0x41] sm:$0xff]
    %v1081 = vld [vmem:[%s0 + $0x49] sm:$0xff]
    %v1082 = vld [vmem:[%s0 + $0x51] sm:$0xff]
    %v1083 = vld [vmem:[%s0 + $0x59] sm:$0xff]
    %v1084 = vld [vmem:[%s0 + $0x61] sm:$0xff]
    %v1085 = vld [vmem:[%s0 + $0x69] sm:$0xff]
    %v1086 = vld [vmem:[%s0 + $0x71] sm:$0xff]
    %v1087 = vld [vmem:[%s0 + $0x79] sm:$0xff]
    %v1088 = vld [vmem:[%s0 + $0x81] sm:$0xff]
    %v1089 = vld [vmem:[%s0 + $0x89] sm:$0xff]
    %v1090 = vld [vmem:[%s0 + $0x91] sm:$0xff]
    %v1091 = vld [vmem:[%s0 + $0x99] sm:$0xff]
    %v1092 = vld [vmem:[%s0 + $0xa1] sm:$0xff]
    %v1093 = vld [vmem:[%s0 + $0xa9] sm:$0xff]
    %v1094 = vld [vmem:[%s0 + $0xb1] sm:$0xff]
    %v1095 = vld [vmem:[%s0 + $0xb9] sm:$0xff]
    %v1096 = vld [vmem:[%s0 + $0xc1] sm:$0xff]
    %v1097 = vld [vmem:[%s0 + $0xc9] sm:$0xff]
    %v1098 = vld [vmem:[%s0 + $0xd1] sm:$0xff]
    %v1099 = vld [vmem:[%s0 + $0xd9] sm:$0xff]
    %v1100 = vld [vmem:[%s0 + $0xe1] sm:$0xff]
    %v1101 = vld [vmem:[%s0 + $0xe9] sm:$0xff]
    %v1102 = vld [vmem:[%s1 + $0x4] sm:$0x1]
    %1104 = vset.pattern.permute.xlu0 0
    %1105 = vperm.xlu0 %1104, %v1074
    %v1106 = vpop.permute.xlu0 %1105
    %1109 = vset.pattern.permute.xlu0 0
    %1110 = vperm.xlu0 %1109, %v1075
    %v1111 = vpop.permute.xlu0 %1110
    %1114 = vset.pattern.permute.xlu0 0
    %1115 = vperm.xlu0 %1114, %v1076
    %v1116 = vpop.permute.xlu0 %1115
    %1119 = vset.pattern.permute.xlu0 0
    %1120 = vperm.xlu0 %1119, %v1077
    %v1121 = vpop.permute.xlu0 %1120
    %1124 = vset.pattern.permute.xlu0 0
    %1125 = vperm.xlu0 %1124, %v1078
    %v1126 = vpop.permute.xlu0 %1125
    %1129 = vset.pattern.permute.xlu0 0
    %1130 = vperm.xlu0 %1129, %v1079
    %v1131 = vpop.permute.xlu0 %1130
    %1134 = vset.pattern.permute.xlu0 0
    %1135 = vperm.xlu0 %1134, %v1080
    %v1136 = vpop.permute.xlu0 %1135
    %1139 = vset.pattern.permute.xlu0 0
    %1140 = vperm.xlu0 %1139, %v1081
    %v1141 = vpop.permute.xlu0 %1140
    %1144 = vset.pattern.permute.xlu0 0
    %1145 = vperm.xlu0 %1144, %v1082
    %v1146 = vpop.permute.xlu0 %1145
    %1149 = vset.pattern.permute.xlu0 0
    %1150 = vperm.xlu0 %1149, %v1083
    %v1151 = vpop.permute.xlu0 %1150
    %1154 = vset.pattern.permute.xlu0 0
    %1155 = vperm.xlu0 %1154, %v1084
    %v1156 = vpop.permute.xlu0 %1155
    %1159 = vset.pattern.permute.xlu0 0
    %1160 = vperm.xlu0 %1159, %v1085
    %v1161 = vpop.permute.xlu0 %1160
    %1164 = vset.pattern.permute.xlu0 0
    %1165 = vperm.xlu0 %1164, %v1086
    %v1166 = vpop.permute.xlu0 %1165
    %1169 = vset.pattern.permute.xlu0 0
    %1170 = vperm.xlu0 %1169, %v1087
    %v1171 = vpop.permute.xlu0 %1170
    %1174 = vset.pattern.permute.xlu0 0
    %1175 = vperm.xlu0 %1174, %v1088
    %v1176 = vpop.permute.xlu0 %1175
    %1179 = vset.pattern.permute.xlu0 0
    %1180 = vperm.xlu0 %1179, %v1089
    %v1181 = vpop.permute.xlu0 %1180
    %1184 = vset.pattern.permute.xlu0 0
    %1185 = vperm.xlu0 %1184, %v1090
    %v1186 = vpop.permute.xlu0 %1185
    %1189 = vset.pattern.permute.xlu0 0
    %1190 = vperm.xlu0 %1189, %v1091
    %v1191 = vpop.permute.xlu0 %1190
    %1194 = vset.pattern.permute.xlu0 0
    %1195 = vperm.xlu0 %1194, %v1092
    %v1196 = vpop.permute.xlu0 %1195
    %1199 = vset.pattern.permute.xlu0 0
    %1200 = vperm.xlu0 %1199, %v1093
    %v1201 = vpop.permute.xlu0 %1200
    %1204 = vset.pattern.permute.xlu0 0
    %1205 = vperm.xlu0 %1204, %v1094
    %v1206 = vpop.permute.xlu0 %1205
    %1209 = vset.pattern.permute.xlu0 0
    %1210 = vperm.xlu0 %1209, %v1095
    %v1211 = vpop.permute.xlu0 %1210
    %1214 = vset.pattern.permute.xlu0 0
    %1215 = vperm.xlu0 %1214, %v1096
    %v1216 = vpop.permute.xlu0 %1215
    %1219 = vset.pattern.permute.xlu0 0
    %1220 = vperm.xlu0 %1219, %v1097
    %v1221 = vpop.permute.xlu0 %1220
    %1224 = vset.pattern.permute.xlu0 0
    %1225 = vperm.xlu0 %1224, %v1098
    %v1226 = vpop.permute.xlu0 %1225
    %1229 = vset.pattern.permute.xlu0 0
    %1230 = vperm.xlu0 %1229, %v1099
    %v1231 = vpop.permute.xlu0 %1230
    %1234 = vset.pattern.permute.xlu0 0
    %1235 = vperm.xlu0 %1234, %v1100
    %v1236 = vpop.permute.xlu0 %1235
    %1239 = vset.pattern.permute.xlu0 0
    %1240 = vperm.xlu0 %1239, %v1101
    %v1241 = vpop.permute.xlu0 %1240
    %v1243 = vperm.slane %v1102, 0
    %v1244 = vmul.f32 %v1106, %v1243
    %v1245 = vmul.f32 %v1111, %v1243
    %v1246 = vmul.f32 %v1116, %v1243
    %v1247 = vmul.f32 %v1121, %v1243
    %v1248 = vmul.f32 %v1126, %v1243
    %v1249 = vmul.f32 %v1131, %v1243
    %v1250 = vmul.f32 %v1136, %v1243
    %v1251 = vmul.f32 %v1141, %v1243
    %v1252 = vmul.f32 %v1146, %v1243
    %v1253 = vmul.f32 %v1151, %v1243
    %v1254 = vmul.f32 %v1156, %v1243
    %v1255 = vmul.f32 %v1161, %v1243
    %v1256 = vmul.f32 %v1166, %v1243
    %v1257 = vmul.f32 %v1171, %v1243
    %v1258 = vmul.f32 %v1176, %v1243
    %v1259 = vmul.f32 %v1181, %v1243
    %v1260 = vmul.f32 %v1186, %v1243
    %v1261 = vmul.f32 %v1191, %v1243
    %v1262 = vmul.f32 %v1196, %v1243
    %v1263 = vmul.f32 %v1201, %v1243
    %v1264 = vmul.f32 %v1206, %v1243
    %v1265 = vmul.f32 %v1211, %v1243
    %v1266 = vmul.f32 %v1216, %v1243
    %v1267 = vmul.f32 %v1221, %v1243
    %v1268 = vmul.f32 %v1226, %v1243
    %v1269 = vmul.f32 %v1231, %v1243
    %v1270 = vmul.f32 %v1236, %v1243
    %v1271 = vmul.f32 %v1241, %v1243
    %v1272 = vadd.f32 %v1046, %v1244
    %v1273 = vadd.f32 %v1047, %v1245
    %v1274 = vadd.f32 %v1048, %v1246
    %v1275 = vadd.f32 %v1049, %v1247
    %v1276 = vadd.f32 %v1050, %v1248
    %v1277 = vadd.f32 %v1051, %v1249
    %v1278 = vadd.f32 %v1052, %v1250
    %v1279 = vadd.f32 %v1053, %v1251
    %v1280 = vadd.f32 %v1054, %v1252
    %v1281 = vadd.f32 %v1055, %v1253
    %v1282 = vadd.f32 %v1056, %v1254
    %v1283 = vadd.f32 %v1057, %v1255
    %v1284 = vadd.f32 %v1058, %v1256
    %v1285 = vadd.f32 %v1059, %v1257
    %v1286 = vadd.f32 %v1060, %v1258
    %v1287 = vadd.f32 %v1061, %v1259
    %v1288 = vadd.f32 %v1062, %v1260
    %v1289 = vadd.f32 %v1063, %v1261
    %v1290 = vadd.f32 %v1064, %v1262
    %v1291 = vadd.f32 %v1065, %v1263
    %v1292 = vadd.f32 %v1066, %v1264
    %v1293 = vadd.f32 %v1067, %v1265
    %v1294 = vadd.f32 %v1068, %v1266
    %v1295 = vadd.f32 %v1069, %v1267
    %v1296 = vadd.f32 %v1070, %v1268
    %v1297 = vadd.f32 %v1071, %v1269
    %v1298 = vadd.f32 %v1072, %v1270
    %v1299 = vadd.f32 %v1073, %v1271
    %v1300 = vld [vmem:[%s0 + $0x12] sm:$0xff]
    %v1301 = vld [vmem:[%s0 + $0x1a] sm:$0xff]
    %v1302 = vld [vmem:[%s0 + $0x22] sm:$0xff]
    %v1303 = vld [vmem:[%s0 + $0x2a] sm:$0xff]
    %v1304 = vld [vmem:[%s0 + $0x32] sm:$0xff]
    %v1305 = vld [vmem:[%s0 + $0x3a] sm:$0xff]
    %v1306 = vld [vmem:[%s0 + $0x42] sm:$0xff]
    %v1307 = vld [vmem:[%s0 + $0x4a] sm:$0xff]
    %v1308 = vld [vmem:[%s0 + $0x52] sm:$0xff]
    %v1309 = vld [vmem:[%s0 + $0x5a] sm:$0xff]
    %v1310 = vld [vmem:[%s0 + $0x62] sm:$0xff]
    %v1311 = vld [vmem:[%s0 + $0x6a] sm:$0xff]
    %v1312 = vld [vmem:[%s0 + $0x72] sm:$0xff]
    %v1313 = vld [vmem:[%s0 + $0x7a] sm:$0xff]
    %v1314 = vld [vmem:[%s0 + $0x82] sm:$0xff]
    %v1315 = vld [vmem:[%s0 + $0x8a] sm:$0xff]
    %v1316 = vld [vmem:[%s0 + $0x92] sm:$0xff]
    %v1317 = vld [vmem:[%s0 + $0x9a] sm:$0xff]
    %v1318 = vld [vmem:[%s0 + $0xa2] sm:$0xff]
    %v1319 = vld [vmem:[%s0 + $0xaa] sm:$0xff]
    %v1320 = vld [vmem:[%s0 + $0xb2] sm:$0xff]
    %v1321 = vld [vmem:[%s0 + $0xba] sm:$0xff]
    %v1322 = vld [vmem:[%s0 + $0xc2] sm:$0xff]
    %v1323 = vld [vmem:[%s0 + $0xca] sm:$0xff]
    %v1324 = vld [vmem:[%s0 + $0xd2] sm:$0xff]
    %v1325 = vld [vmem:[%s0 + $0xda] sm:$0xff]
    %v1326 = vld [vmem:[%s0 + $0xe2] sm:$0xff]
    %v1327 = vld [vmem:[%s0 + $0xea] sm:$0xff]
    %v1328 = vld [vmem:[%s1 + $0x5] sm:$0x1]
    %1330 = vset.pattern.permute.xlu0 0
    %1331 = vperm.xlu0 %1330, %v1300
    %v1332 = vpop.permute.xlu0 %1331
    %1335 = vset.pattern.permute.xlu0 0
    %1336 = vperm.xlu0 %1335, %v1301
    %v1337 = vpop.permute.xlu0 %1336
    %1340 = vset.pattern.permute.xlu0 0
    %1341 = vperm.xlu0 %1340, %v1302
    %v1342 = vpop.permute.xlu0 %1341
    %1345 = vset.pattern.permute.xlu0 0
    %1346 = vperm.xlu0 %1345, %v1303
    %v1347 = vpop.permute.xlu0 %1346
    %1350 = vset.pattern.permute.xlu0 0
    %1351 = vperm.xlu0 %1350, %v1304
    %v1352 = vpop.permute.xlu0 %1351
    %1355 = vset.pattern.permute.xlu0 0
    %1356 = vperm.xlu0 %1355, %v1305
    %v1357 = vpop.permute.xlu0 %1356
    %1360 = vset.pattern.permute.xlu0 0
    %1361 = vperm.xlu0 %1360, %v1306
    %v1362 = vpop.permute.xlu0 %1361
    %1365 = vset.pattern.permute.xlu0 0
    %1366 = vperm.xlu0 %1365, %v1307
    %v1367 = vpop.permute.xlu0 %1366
    %1370 = vset.pattern.permute.xlu0 0
    %1371 = vperm.xlu0 %1370, %v1308
    %v1372 = vpop.permute.xlu0 %1371
    %1375 = vset.pattern.permute.xlu0 0
    %1376 = vperm.xlu0 %1375, %v1309
    %v1377 = vpop.permute.xlu0 %1376
    %1380 = vset.pattern.permute.xlu0 0
    %1381 = vperm.xlu0 %1380, %v1310
    %v1382 = vpop.permute.xlu0 %1381
    %1385 = vset.pattern.permute.xlu0 0
    %1386 = vperm.xlu0 %1385, %v1311
    %v1387 = vpop.permute.xlu0 %1386
    %1390 = vset.pattern.permute.xlu0 0
    %1391 = vperm.xlu0 %1390, %v1312
    %v1392 = vpop.permute.xlu0 %1391
    %1395 = vset.pattern.permute.xlu0 0
    %1396 = vperm.xlu0 %1395, %v1313
    %v1397 = vpop.permute.xlu0 %1396
    %1400 = vset.pattern.permute.xlu0 0
    %1401 = vperm.xlu0 %1400, %v1314
    %v1402 = vpop.permute.xlu0 %1401
    %1405 = vset.pattern.permute.xlu0 0
    %1406 = vperm.xlu0 %1405, %v1315
    %v1407 = vpop.permute.xlu0 %1406
    %1410 = vset.pattern.permute.xlu0 0
    %1411 = vperm.xlu0 %1410, %v1316
    %v1412 = vpop.permute.xlu0 %1411
    %1415 = vset.pattern.permute.xlu0 0
    %1416 = vperm.xlu0 %1415, %v1317
    %v1417 = vpop.permute.xlu0 %1416
    %1420 = vset.pattern.permute.xlu0 0
    %1421 = vperm.xlu0 %1420, %v1318
    %v1422 = vpop.permute.xlu0 %1421
    %1425 = vset.pattern.permute.xlu0 0
    %1426 = vperm.xlu0 %1425, %v1319
    %v1427 = vpop.permute.xlu0 %1426
    %1430 = vset.pattern.permute.xlu0 0
    %1431 = vperm.xlu0 %1430, %v1320
    %v1432 = vpop.permute.xlu0 %1431
    %1435 = vset.pattern.permute.xlu0 0
    %1436 = vperm.xlu0 %1435, %v1321
    %v1437 = vpop.permute.xlu0 %1436
    %1440 = vset.pattern.permute.xlu0 0
    %1441 = vperm.xlu0 %1440, %v1322
    %v1442 = vpop.permute.xlu0 %1441
    %1445 = vset.pattern.permute.xlu0 0
    %1446 = vperm.xlu0 %1445, %v1323
    %v1447 = vpop.permute.xlu0 %1446
    %1450 = vset.pattern.permute.xlu0 0
    %1451 = vperm.xlu0 %1450, %v1324
    %v1452 = vpop.permute.xlu0 %1451
    %1455 = vset.pattern.permute.xlu0 0
    %1456 = vperm.xlu0 %1455, %v1325
    %v1457 = vpop.permute.xlu0 %1456
    %1460 = vset.pattern.permute.xlu0 0
    %1461 = vperm.xlu0 %1460, %v1326
    %v1462 = vpop.permute.xlu0 %1461
    %1465 = vset.pattern.permute.xlu0 0
    %1466 = vperm.xlu0 %1465, %v1327
    %v1467 = vpop.permute.xlu0 %1466
    %v1469 = vperm.slane %v1328, 0
    %v1470 = vmul.f32 %v1332, %v1469
    %v1471 = vmul.f32 %v1337, %v1469
    %v1472 = vmul.f32 %v1342, %v1469
    %v1473 = vmul.f32 %v1347, %v1469
    %v1474 = vmul.f32 %v1352, %v1469
    %v1475 = vmul.f32 %v1357, %v1469
    %v1476 = vmul.f32 %v1362, %v1469
    %v1477 = vmul.f32 %v1367, %v1469
    %v1478 = vmul.f32 %v1372, %v1469
    %v1479 = vmul.f32 %v1377, %v1469
    %v1480 = vmul.f32 %v1382, %v1469
    %v1481 = vmul.f32 %v1387, %v1469
    %v1482 = vmul.f32 %v1392, %v1469
    %v1483 = vmul.f32 %v1397, %v1469
    %v1484 = vmul.f32 %v1402, %v1469
    %v1485 = vmul.f32 %v1407, %v1469
    %v1486 = vmul.f32 %v1412, %v1469
    %v1487 = vmul.f32 %v1417, %v1469
    %v1488 = vmul.f32 %v1422, %v1469
    %v1489 = vmul.f32 %v1427, %v1469
    %v1490 = vmul.f32 %v1432, %v1469
    %v1491 = vmul.f32 %v1437, %v1469
    %v1492 = vmul.f32 %v1442, %v1469
    %v1493 = vmul.f32 %v1447, %v1469
    %v1494 = vmul.f32 %v1452, %v1469
    %v1495 = vmul.f32 %v1457, %v1469
    %v1496 = vmul.f32 %v1462, %v1469
    %v1497 = vmul.f32 %v1467, %v1469
    %v1498 = vadd.f32 %v1272, %v1470
    %v1499 = vadd.f32 %v1273, %v1471
    %v1500 = vadd.f32 %v1274, %v1472
    %v1501 = vadd.f32 %v1275, %v1473
    %v1502 = vadd.f32 %v1276, %v1474
    %v1503 = vadd.f32 %v1277, %v1475
    %v1504 = vadd.f32 %v1278, %v1476
    %v1505 = vadd.f32 %v1279, %v1477
    %v1506 = vadd.f32 %v1280, %v1478
    %v1507 = vadd.f32 %v1281, %v1479
    %v1508 = vadd.f32 %v1282, %v1480
    %v1509 = vadd.f32 %v1283, %v1481
    %v1510 = vadd.f32 %v1284, %v1482
    %v1511 = vadd.f32 %v1285, %v1483
    %v1512 = vadd.f32 %v1286, %v1484
    %v1513 = vadd.f32 %v1287, %v1485
    %v1514 = vadd.f32 %v1288, %v1486
    %v1515 = vadd.f32 %v1289, %v1487
    %v1516 = vadd.f32 %v1290, %v1488
    %v1517 = vadd.f32 %v1291, %v1489
    %v1518 = vadd.f32 %v1292, %v1490
    %v1519 = vadd.f32 %v1293, %v1491
    %v1520 = vadd.f32 %v1294, %v1492
    %v1521 = vadd.f32 %v1295, %v1493
    %v1522 = vadd.f32 %v1296, %v1494
    %v1523 = vadd.f32 %v1297, %v1495
    %v1524 = vadd.f32 %v1298, %v1496
    %v1525 = vadd.f32 %v1299, %v1497
    %v1526 = vld [vmem:[%s0 + $0x20] sm:$0xff]
    %v1527 = vld [vmem:[%s0 + $0x28] sm:$0xff]
    %v1528 = vld [vmem:[%s0 + $0x30] sm:$0xff]
    %v1529 = vld [vmem:[%s0 + $0x38] sm:$0xff]
    %v1530 = vld [vmem:[%s0 + $0x40] sm:$0xff]
    %v1531 = vld [vmem:[%s0 + $0x48] sm:$0xff]
    %v1532 = vld [vmem:[%s0 + $0x50] sm:$0xff]
    %v1533 = vld [vmem:[%s0 + $0x58] sm:$0xff]
    %v1534 = vld [vmem:[%s0 + $0x60] sm:$0xff]
    %v1535 = vld [vmem:[%s0 + $0x68] sm:$0xff]
    %v1536 = vld [vmem:[%s0 + $0x70] sm:$0xff]
    %v1537 = vld [vmem:[%s0 + $0x78] sm:$0xff]
    %v1538 = vld [vmem:[%s0 + $0x80] sm:$0xff]
    %v1539 = vld [vmem:[%s0 + $0x88] sm:$0xff]
    %v1540 = vld [vmem:[%s0 + $0x90] sm:$0xff]
    %v1541 = vld [vmem:[%s0 + $0x98] sm:$0xff]
    %v1542 = vld [vmem:[%s0 + $0xa0] sm:$0xff]
    %v1543 = vld [vmem:[%s0 + $0xa8] sm:$0xff]
    %v1544 = vld [vmem:[%s0 + $0xb0] sm:$0xff]
    %v1545 = vld [vmem:[%s0 + $0xb8] sm:$0xff]
    %v1546 = vld [vmem:[%s0 + $0xc0] sm:$0xff]
    %v1547 = vld [vmem:[%s0 + $0xc8] sm:$0xff]
    %v1548 = vld [vmem:[%s0 + $0xd0] sm:$0xff]
    %v1549 = vld [vmem:[%s0 + $0xd8] sm:$0xff]
    %v1550 = vld [vmem:[%s0 + $0xe0] sm:$0xff]
    %v1551 = vld [vmem:[%s0 + $0xe8] sm:$0xff]
    %v1552 = vld [vmem:[%s0 + $0xf0] sm:$0xff]
    %v1553 = vld [vmem:[%s0 + $0xf8] sm:$0xff]
    %v1554 = vld [vmem:[%s1 + $0x6] sm:$0x1]
    %1556 = vset.pattern.permute.xlu0 0
    %1557 = vperm.xlu0 %1556, %v1526
    %v1558 = vpop.permute.xlu0 %1557
    %1561 = vset.pattern.permute.xlu0 0
    %1562 = vperm.xlu0 %1561, %v1527
    %v1563 = vpop.permute.xlu0 %1562
    %1566 = vset.pattern.permute.xlu0 0
    %1567 = vperm.xlu0 %1566, %v1528
    %v1568 = vpop.permute.xlu0 %1567
    %1571 = vset.pattern.permute.xlu0 0
    %1572 = vperm.xlu0 %1571, %v1529
    %v1573 = vpop.permute.xlu0 %1572
    %1576 = vset.pattern.permute.xlu0 0
    %1577 = vperm.xlu0 %1576, %v1530
    %v1578 = vpop.permute.xlu0 %1577
    %1581 = vset.pattern.permute.xlu0 0
    %1582 = vperm.xlu0 %1581, %v1531
    %v1583 = vpop.permute.xlu0 %1582
    %1586 = vset.pattern.permute.xlu0 0
    %1587 = vperm.xlu0 %1586, %v1532
    %v1588 = vpop.permute.xlu0 %1587
    %1591 = vset.pattern.permute.xlu0 0
    %1592 = vperm.xlu0 %1591, %v1533
    %v1593 = vpop.permute.xlu0 %1592
    %1596 = vset.pattern.permute.xlu0 0
    %1597 = vperm.xlu0 %1596, %v1534
    %v1598 = vpop.permute.xlu0 %1597
    %1601 = vset.pattern.permute.xlu0 0
    %1602 = vperm.xlu0 %1601, %v1535
    %v1603 = vpop.permute.xlu0 %1602
    %1606 = vset.pattern.permute.xlu0 0
    %1607 = vperm.xlu0 %1606, %v1536
    %v1608 = vpop.permute.xlu0 %1607
    %1611 = vset.pattern.permute.xlu0 0
    %1612 = vperm.xlu0 %1611, %v1537
    %v1613 = vpop.permute.xlu0 %1612
    %1616 = vset.pattern.permute.xlu0 0
    %1617 = vperm.xlu0 %1616, %v1538
    %v1618 = vpop.permute.xlu0 %1617
    %1621 = vset.pattern.permute.xlu0 0
    %1622 = vperm.xlu0 %1621, %v1539
    %v1623 = vpop.permute.xlu0 %1622
    %1626 = vset.pattern.permute.xlu0 0
    %1627 = vperm.xlu0 %1626, %v1540
    %v1628 = vpop.permute.xlu0 %1627
    %1631 = vset.pattern.permute.xlu0 0
    %1632 = vperm.xlu0 %1631, %v1541
    %v1633 = vpop.permute.xlu0 %1632
    %1636 = vset.pattern.permute.xlu0 0
    %1637 = vperm.xlu0 %1636, %v1542
    %v1638 = vpop.permute.xlu0 %1637
    %1641 = vset.pattern.permute.xlu0 0
    %1642 = vperm.xlu0 %1641, %v1543
    %v1643 = vpop.permute.xlu0 %1642
    %1646 = vset.pattern.permute.xlu0 0
    %1647 = vperm.xlu0 %1646, %v1544
    %v1648 = vpop.permute.xlu0 %1647
    %1651 = vset.pattern.permute.xlu0 0
    %1652 = vperm.xlu0 %1651, %v1545
    %v1653 = vpop.permute.xlu0 %1652
    %1656 = vset.pattern.permute.xlu0 0
    %1657 = vperm.xlu0 %1656, %v1546
    %v1658 = vpop.permute.xlu0 %1657
    %1661 = vset.pattern.permute.xlu0 0
    %1662 = vperm.xlu0 %1661, %v1547
    %v1663 = vpop.permute.xlu0 %1662
    %1666 = vset.pattern.permute.xlu0 0
    %1667 = vperm.xlu0 %1666, %v1548
    %v1668 = vpop.permute.xlu0 %1667
    %1671 = vset.pattern.permute.xlu0 0
    %1672 = vperm.xlu0 %1671, %v1549
    %v1673 = vpop.permute.xlu0 %1672
    %1676 = vset.pattern.permute.xlu0 0
    %1677 = vperm.xlu0 %1676, %v1550
    %v1678 = vpop.permute.xlu0 %1677
    %1681 = vset.pattern.permute.xlu0 0
    %1682 = vperm.xlu0 %1681, %v1551
    %v1683 = vpop.permute.xlu0 %1682
    %1686 = vset.pattern.permute.xlu0 0
    %1687 = vperm.xlu0 %1686, %v1552
    %v1688 = vpop.permute.xlu0 %1687
    %1691 = vset.pattern.permute.xlu0 0
    %1692 = vperm.xlu0 %1691, %v1553
    %v1693 = vpop.permute.xlu0 %1692
    %v1695 = vperm.slane %v1554, 0
    %v1696 = vmul.f32 %v1558, %v1695
    %v1697 = vmul.f32 %v1563, %v1695
    %v1698 = vmul.f32 %v1568, %v1695
    %v1699 = vmul.f32 %v1573, %v1695
    %v1700 = vmul.f32 %v1578, %v1695
    %v1701 = vmul.f32 %v1583, %v1695
    %v1702 = vmul.f32 %v1588, %v1695
    %v1703 = vmul.f32 %v1593, %v1695
    %v1704 = vmul.f32 %v1598, %v1695
    %v1705 = vmul.f32 %v1603, %v1695
    %v1706 = vmul.f32 %v1608, %v1695
    %v1707 = vmul.f32 %v1613, %v1695
    %v1708 = vmul.f32 %v1618, %v1695
    %v1709 = vmul.f32 %v1623, %v1695
    %v1710 = vmul.f32 %v1628, %v1695
    %v1711 = vmul.f32 %v1633, %v1695
    %v1712 = vmul.f32 %v1638, %v1695
    %v1713 = vmul.f32 %v1643, %v1695
    %v1714 = vmul.f32 %v1648, %v1695
    %v1715 = vmul.f32 %v1653, %v1695
    %v1716 = vmul.f32 %v1658, %v1695
    %v1717 = vmul.f32 %v1663, %v1695
    %v1718 = vmul.f32 %v1668, %v1695
    %v1719 = vmul.f32 %v1673, %v1695
    %v1720 = vmul.f32 %v1678, %v1695
    %v1721 = vmul.f32 %v1683, %v1695
    %v1722 = vmul.f32 %v1688, %v1695
    %v1723 = vmul.f32 %v1693, %v1695
    %v1724 = vadd.f32 %v1498, %v1696
    %v1725 = vadd.f32 %v1499, %v1697
    %v1726 = vadd.f32 %v1500, %v1698
    %v1727 = vadd.f32 %v1501, %v1699
    %v1728 = vadd.f32 %v1502, %v1700
    %v1729 = vadd.f32 %v1503, %v1701
    %v1730 = vadd.f32 %v1504, %v1702
    %v1731 = vadd.f32 %v1505, %v1703
    %v1732 = vadd.f32 %v1506, %v1704
    %v1733 = vadd.f32 %v1507, %v1705
    %v1734 = vadd.f32 %v1508, %v1706
    %v1735 = vadd.f32 %v1509, %v1707
    %v1736 = vadd.f32 %v1510, %v1708
    %v1737 = vadd.f32 %v1511, %v1709
    %v1738 = vadd.f32 %v1512, %v1710
    %v1739 = vadd.f32 %v1513, %v1711
    %v1740 = vadd.f32 %v1514, %v1712
    %v1741 = vadd.f32 %v1515, %v1713
    %v1742 = vadd.f32 %v1516, %v1714
    %v1743 = vadd.f32 %v1517, %v1715
    %v1744 = vadd.f32 %v1518, %v1716
    %v1745 = vadd.f32 %v1519, %v1717
    %v1746 = vadd.f32 %v1520, %v1718
    %v1747 = vadd.f32 %v1521, %v1719
    %v1748 = vadd.f32 %v1522, %v1720
    %v1749 = vadd.f32 %v1523, %v1721
    %v1750 = vadd.f32 %v1524, %v1722
    %v1751 = vadd.f32 %v1525, %v1723
    %v1752 = vld [vmem:[%s0 + $0x21] sm:$0xff]
    %v1753 = vld [vmem:[%s0 + $0x29] sm:$0xff]
    %v1754 = vld [vmem:[%s0 + $0x31] sm:$0xff]
    %v1755 = vld [vmem:[%s0 + $0x39] sm:$0xff]
    %v1756 = vld [vmem:[%s0 + $0x41] sm:$0xff]
    %v1757 = vld [vmem:[%s0 + $0x49] sm:$0xff]
    %v1758 = vld [vmem:[%s0 + $0x51] sm:$0xff]
    %v1759 = vld [vmem:[%s0 + $0x59] sm:$0xff]
    %v1760 = vld [vmem:[%s0 + $0x61] sm:$0xff]
    %v1761 = vld [vmem:[%s0 + $0x69] sm:$0xff]
    %v1762 = vld [vmem:[%s0 + $0x71] sm:$0xff]
    %v1763 = vld [vmem:[%s0 + $0x79] sm:$0xff]
    %v1764 = vld [vmem:[%s0 + $0x81] sm:$0xff]
    %v1765 = vld [vmem:[%s0 + $0x89] sm:$0xff]
    %v1766 = vld [vmem:[%s0 + $0x91] sm:$0xff]
    %v1767 = vld [vmem:[%s0 + $0x99] sm:$0xff]
    %v1768 = vld [vmem:[%s0 + $0xa1] sm:$0xff]
    %v1769 = vld [vmem:[%s0 + $0xa9] sm:$0xff]
    %v1770 = vld [vmem:[%s0 + $0xb1] sm:$0xff]
    %v1771 = vld [vmem:[%s0 + $0xb9] sm:$0xff]
    %v1772 = vld [vmem:[%s0 + $0xc1] sm:$0xff]
    %v1773 = vld [vmem:[%s0 + $0xc9] sm:$0xff]
    %v1774 = vld [vmem:[%s0 + $0xd1] sm:$0xff]
    %v1775 = vld [vmem:[%s0 + $0xd9] sm:$0xff]
    %v1776 = vld [vmem:[%s0 + $0xe1] sm:$0xff]
    %v1777 = vld [vmem:[%s0 + $0xe9] sm:$0xff]
    %v1778 = vld [vmem:[%s0 + $0xf1] sm:$0xff]
    %v1779 = vld [vmem:[%s0 + $0xf9] sm:$0xff]
    %v1780 = vld [vmem:[%s1 + $0x7] sm:$0x1]
    %1782 = vset.pattern.permute.xlu0 0
    %1783 = vperm.xlu0 %1782, %v1752
    %v1784 = vpop.permute.xlu0 %1783
    %1787 = vset.pattern.permute.xlu0 0
    %1788 = vperm.xlu0 %1787, %v1753
    %v1789 = vpop.permute.xlu0 %1788
    %1792 = vset.pattern.permute.xlu0 0
    %1793 = vperm.xlu0 %1792, %v1754
    %v1794 = vpop.permute.xlu0 %1793
    %1797 = vset.pattern.permute.xlu0 0
    %1798 = vperm.xlu0 %1797, %v1755
    %v1799 = vpop.permute.xlu0 %1798
    %1802 = vset.pattern.permute.xlu0 0
    %1803 = vperm.xlu0 %1802, %v1756
    %v1804 = vpop.permute.xlu0 %1803
    %1807 = vset.pattern.permute.xlu0 0
    %1808 = vperm.xlu0 %1807, %v1757
    %v1809 = vpop.permute.xlu0 %1808
    %1812 = vset.pattern.permute.xlu0 0
    %1813 = vperm.xlu0 %1812, %v1758
    %v1814 = vpop.permute.xlu0 %1813
    %1817 = vset.pattern.permute.xlu0 0
    %1818 = vperm.xlu0 %1817, %v1759
    %v1819 = vpop.permute.xlu0 %1818
    %1822 = vset.pattern.permute.xlu0 0
    %1823 = vperm.xlu0 %1822, %v1760
    %v1824 = vpop.permute.xlu0 %1823
    %1827 = vset.pattern.permute.xlu0 0
    %1828 = vperm.xlu0 %1827, %v1761
    %v1829 = vpop.permute.xlu0 %1828
    %1832 = vset.pattern.permute.xlu0 0
    %1833 = vperm.xlu0 %1832, %v1762
    %v1834 = vpop.permute.xlu0 %1833
    %1837 = vset.pattern.permute.xlu0 0
    %1838 = vperm.xlu0 %1837, %v1763
    %v1839 = vpop.permute.xlu0 %1838
    %1842 = vset.pattern.permute.xlu0 0
    %1843 = vperm.xlu0 %1842, %v1764
    %v1844 = vpop.permute.xlu0 %1843
    %1847 = vset.pattern.permute.xlu0 0
    %1848 = vperm.xlu0 %1847, %v1765
    %v1849 = vpop.permute.xlu0 %1848
    %1852 = vset.pattern.permute.xlu0 0
    %1853 = vperm.xlu0 %1852, %v1766
    %v1854 = vpop.permute.xlu0 %1853
    %1857 = vset.pattern.permute.xlu0 0
    %1858 = vperm.xlu0 %1857, %v1767
    %v1859 = vpop.permute.xlu0 %1858
    %1862 = vset.pattern.permute.xlu0 0
    %1863 = vperm.xlu0 %1862, %v1768
    %v1864 = vpop.permute.xlu0 %1863
    %1867 = vset.pattern.permute.xlu0 0
    %1868 = vperm.xlu0 %1867, %v1769
    %v1869 = vpop.permute.xlu0 %1868
    %1872 = vset.pattern.permute.xlu0 0
    %1873 = vperm.xlu0 %1872, %v1770
    %v1874 = vpop.permute.xlu0 %1873
    %1877 = vset.pattern.permute.xlu0 0
    %1878 = vperm.xlu0 %1877, %v1771
    %v1879 = vpop.permute.xlu0 %1878
    %1882 = vset.pattern.permute.xlu0 0
    %1883 = vperm.xlu0 %1882, %v1772
    %v1884 = vpop.permute.xlu0 %1883
    %1887 = vset.pattern.permute.xlu0 0
    %1888 = vperm.xlu0 %1887, %v1773
    %v1889 = vpop.permute.xlu0 %1888
    %1892 = vset.pattern.permute.xlu0 0
    %1893 = vperm.xlu0 %1892, %v1774
    %v1894 = vpop.permute.xlu0 %1893
    %1897 = vset.pattern.permute.xlu0 0
    %1898 = vperm.xlu0 %1897, %v1775
    %v1899 = vpop.permute.xlu0 %1898
    %1902 = vset.pattern.permute.xlu0 0
    %1903 = vperm.xlu0 %1902, %v1776
    %v1904 = vpop.permute.xlu0 %1903
    %1907 = vset.pattern.permute.xlu0 0
    %1908 = vperm.xlu0 %1907, %v1777
    %v1909 = vpop.permute.xlu0 %1908
    %1912 = vset.pattern.permute.xlu0 0
    %1913 = vperm.xlu0 %1912, %v1778
    %v1914 = vpop.permute.xlu0 %1913
    %1917 = vset.pattern.permute.xlu0 0
    %1918 = vperm.xlu0 %1917, %v1779
    %v1919 = vpop.permute.xlu0 %1918
    %v1921 = vperm.slane %v1780, 0
    %v1922 = vmul.f32 %v1784, %v1921
    %v1923 = vmul.f32 %v1789, %v1921
    %v1924 = vmul.f32 %v1794, %v1921
    %v1925 = vmul.f32 %v1799, %v1921
    %v1926 = vmul.f32 %v1804, %v1921
    %v1927 = vmul.f32 %v1809, %v1921
    %v1928 = vmul.f32 %v1814, %v1921
    %v1929 = vmul.f32 %v1819, %v1921
    %v1930 = vmul.f32 %v1824, %v1921
    %v1931 = vmul.f32 %v1829, %v1921
    %v1932 = vmul.f32 %v1834, %v1921
    %v1933 = vmul.f32 %v1839, %v1921
    %v1934 = vmul.f32 %v1844, %v1921
    %v1935 = vmul.f32 %v1849, %v1921
    %v1936 = vmul.f32 %v1854, %v1921
    %v1937 = vmul.f32 %v1859, %v1921
    %v1938 = vmul.f32 %v1864, %v1921
    %v1939 = vmul.f32 %v1869, %v1921
    %v1940 = vmul.f32 %v1874, %v1921
    %v1941 = vmul.f32 %v1879, %v1921
    %v1942 = vmul.f32 %v1884, %v1921
    %v1943 = vmul.f32 %v1889, %v1921
    %v1944 = vmul.f32 %v1894, %v1921
    %v1945 = vmul.f32 %v1899, %v1921
    %v1946 = vmul.f32 %v1904, %v1921
    %v1947 = vmul.f32 %v1909, %v1921
    %v1948 = vmul.f32 %v1914, %v1921
    %v1949 = vmul.f32 %v1919, %v1921
    %v1950 = vadd.f32 %v1724, %v1922
    %v1951 = vadd.f32 %v1725, %v1923
    %v1952 = vadd.f32 %v1726, %v1924
    %v1953 = vadd.f32 %v1727, %v1925
    %v1954 = vadd.f32 %v1728, %v1926
    %v1955 = vadd.f32 %v1729, %v1927
    %v1956 = vadd.f32 %v1730, %v1928
    %v1957 = vadd.f32 %v1731, %v1929
    %v1958 = vadd.f32 %v1732, %v1930
    %v1959 = vadd.f32 %v1733, %v1931
    %v1960 = vadd.f32 %v1734, %v1932
    %v1961 = vadd.f32 %v1735, %v1933
    %v1962 = vadd.f32 %v1736, %v1934
    %v1963 = vadd.f32 %v1737, %v1935
    %v1964 = vadd.f32 %v1738, %v1936
    %v1965 = vadd.f32 %v1739, %v1937
    %v1966 = vadd.f32 %v1740, %v1938
    %v1967 = vadd.f32 %v1741, %v1939
    %v1968 = vadd.f32 %v1742, %v1940
    %v1969 = vadd.f32 %v1743, %v1941
    %v1970 = vadd.f32 %v1744, %v1942
    %v1971 = vadd.f32 %v1745, %v1943
    %v1972 = vadd.f32 %v1746, %v1944
    %v1973 = vadd.f32 %v1747, %v1945
    %v1974 = vadd.f32 %v1748, %v1946
    %v1975 = vadd.f32 %v1749, %v1947
    %v1976 = vadd.f32 %v1750, %v1948
    %v1977 = vadd.f32 %v1751, %v1949
    %v1978 = vld [vmem:[%s0 + $0x22] sm:$0xff]
    %v1979 = vld [vmem:[%s0 + $0x2a] sm:$0xff]
    %v1980 = vld [vmem:[%s0 + $0x32] sm:$0xff]
    %v1981 = vld [vmem:[%s0 + $0x3a] sm:$0xff]
    %v1982 = vld [vmem:[%s0 + $0x42] sm:$0xff]
    %v1983 = vld [vmem:[%s0 + $0x4a] sm:$0xff]
    %v1984 = vld [vmem:[%s0 + $0x52] sm:$0xff]
    %v1985 = vld [vmem:[%s0 + $0x5a] sm:$0xff]
    %v1986 = vld [vmem:[%s0 + $0x62] sm:$0xff]
    %v1987 = vld [vmem:[%s0 + $0x6a] sm:$0xff]
    %v1988 = vld [vmem:[%s0 + $0x72] sm:$0xff]
    %v1989 = vld [vmem:[%s0 + $0x7a] sm:$0xff]
    %v1990 = vld [vmem:[%s0 + $0x82] sm:$0xff]
    %v1991 = vld [vmem:[%s0 + $0x8a] sm:$0xff]
    %v1992 = vld [vmem:[%s0 + $0x92] sm:$0xff]
    %v1993 = vld [vmem:[%s0 + $0x9a] sm:$0xff]
    %v1994 = vld [vmem:[%s0 + $0xa2] sm:$0xff]
    %v1995 = vld [vmem:[%s0 + $0xaa] sm:$0xff]
    %v1996 = vld [vmem:[%s0 + $0xb2] sm:$0xff]
    %v1997 = vld [vmem:[%s0 + $0xba] sm:$0xff]
    %v1998 = vld [vmem:[%s0 + $0xc2] sm:$0xff]
    %v1999 = vld [vmem:[%s0 + $0xca] sm:$0xff]
    %v2000 = vld [vmem:[%s0 + $0xd2] sm:$0xff]
    %v2001 = vld [vmem:[%s0 + $0xda] sm:$0xff]
    %v2002 = vld [vmem:[%s0 + $0xe2] sm:$0xff]
    %v2003 = vld [vmem:[%s0 + $0xea] sm:$0xff]
    %v2004 = vld [vmem:[%s0 + $0xf2] sm:$0xff]
    %v2005 = vld [vmem:[%s0 + $0xfa] sm:$0xff]
    %v2006 = vld [vmem:[%s1 + $0x8] sm:$0x1]
    %2008 = vset.pattern.permute.xlu0 0
    %2009 = vperm.xlu0 %2008, %v1978
    %v2010 = vpop.permute.xlu0 %2009
    %2013 = vset.pattern.permute.xlu0 0
    %2014 = vperm.xlu0 %2013, %v1979
    %v2015 = vpop.permute.xlu0 %2014
    %2018 = vset.pattern.permute.xlu0 0
    %2019 = vperm.xlu0 %2018, %v1980
    %v2020 = vpop.permute.xlu0 %2019
    %2023 = vset.pattern.permute.xlu0 0
    %2024 = vperm.xlu0 %2023, %v1981
    %v2025 = vpop.permute.xlu0 %2024
    %2028 = vset.pattern.permute.xlu0 0
    %2029 = vperm.xlu0 %2028, %v1982
    %v2030 = vpop.permute.xlu0 %2029
    %2033 = vset.pattern.permute.xlu0 0
    %2034 = vperm.xlu0 %2033, %v1983
    %v2035 = vpop.permute.xlu0 %2034
    %2038 = vset.pattern.permute.xlu0 0
    %2039 = vperm.xlu0 %2038, %v1984
    %v2040 = vpop.permute.xlu0 %2039
    %2043 = vset.pattern.permute.xlu0 0
    %2044 = vperm.xlu0 %2043, %v1985
    %v2045 = vpop.permute.xlu0 %2044
    %2048 = vset.pattern.permute.xlu0 0
    %2049 = vperm.xlu0 %2048, %v1986
    %v2050 = vpop.permute.xlu0 %2049
    %2053 = vset.pattern.permute.xlu0 0
    %2054 = vperm.xlu0 %2053, %v1987
    %v2055 = vpop.permute.xlu0 %2054
    %2058 = vset.pattern.permute.xlu0 0
    %2059 = vperm.xlu0 %2058, %v1988
    %v2060 = vpop.permute.xlu0 %2059
    %2063 = vset.pattern.permute.xlu0 0
    %2064 = vperm.xlu0 %2063, %v1989
    %v2065 = vpop.permute.xlu0 %2064
    %2068 = vset.pattern.permute.xlu0 0
    %2069 = vperm.xlu0 %2068, %v1990
    %v2070 = vpop.permute.xlu0 %2069
    %2073 = vset.pattern.permute.xlu0 0
    %2074 = vperm.xlu0 %2073, %v1991
    %v2075 = vpop.permute.xlu0 %2074
    %2078 = vset.pattern.permute.xlu0 0
    %2079 = vperm.xlu0 %2078, %v1992
    %v2080 = vpop.permute.xlu0 %2079
    %2083 = vset.pattern.permute.xlu0 0
    %2084 = vperm.xlu0 %2083, %v1993
    %v2085 = vpop.permute.xlu0 %2084
    %2088 = vset.pattern.permute.xlu0 0
    %2089 = vperm.xlu0 %2088, %v1994
    %v2090 = vpop.permute.xlu0 %2089
    %2093 = vset.pattern.permute.xlu0 0
    %2094 = vperm.xlu0 %2093, %v1995
    %v2095 = vpop.permute.xlu0 %2094
    %2098 = vset.pattern.permute.xlu0 0
    %2099 = vperm.xlu0 %2098, %v1996
    %v2100 = vpop.permute.xlu0 %2099
    %2103 = vset.pattern.permute.xlu0 0
    %2104 = vperm.xlu0 %2103, %v1997
    %v2105 = vpop.permute.xlu0 %2104
    %2108 = vset.pattern.permute.xlu0 0
    %2109 = vperm.xlu0 %2108, %v1998
    %v2110 = vpop.permute.xlu0 %2109
    %2113 = vset.pattern.permute.xlu0 0
    %2114 = vperm.xlu0 %2113, %v1999
    %v2115 = vpop.permute.xlu0 %2114
    %2118 = vset.pattern.permute.xlu0 0
    %2119 = vperm.xlu0 %2118, %v2000
    %v2120 = vpop.permute.xlu0 %2119
    %2123 = vset.pattern.permute.xlu0 0
    %2124 = vperm.xlu0 %2123, %v2001
    %v2125 = vpop.permute.xlu0 %2124
    %2128 = vset.pattern.permute.xlu0 0
    %2129 = vperm.xlu0 %2128, %v2002
    %v2130 = vpop.permute.xlu0 %2129
    %2133 = vset.pattern.permute.xlu0 0
    %2134 = vperm.xlu0 %2133, %v2003
    %v2135 = vpop.permute.xlu0 %2134
    %2138 = vset.pattern.permute.xlu0 0
    %2139 = vperm.xlu0 %2138, %v2004
    %v2140 = vpop.permute.xlu0 %2139
    %2143 = vset.pattern.permute.xlu0 0
    %2144 = vperm.xlu0 %2143, %v2005
    %v2145 = vpop.permute.xlu0 %2144
    %v2147 = vperm.slane %v2006, 0
    %v2148 = vmul.f32 %v2010, %v2147
    %v2149 = vmul.f32 %v2015, %v2147
    %v2150 = vmul.f32 %v2020, %v2147
    %v2151 = vmul.f32 %v2025, %v2147
    %v2152 = vmul.f32 %v2030, %v2147
    %v2153 = vmul.f32 %v2035, %v2147
    %v2154 = vmul.f32 %v2040, %v2147
    %v2155 = vmul.f32 %v2045, %v2147
    %v2156 = vmul.f32 %v2050, %v2147
    %v2157 = vmul.f32 %v2055, %v2147
    %v2158 = vmul.f32 %v2060, %v2147
    %v2159 = vmul.f32 %v2065, %v2147
    %v2160 = vmul.f32 %v2070, %v2147
    %v2161 = vmul.f32 %v2075, %v2147
    %v2162 = vmul.f32 %v2080, %v2147
    %v2163 = vmul.f32 %v2085, %v2147
    %v2164 = vmul.f32 %v2090, %v2147
    %v2165 = vmul.f32 %v2095, %v2147
    %v2166 = vmul.f32 %v2100, %v2147
    %v2167 = vmul.f32 %v2105, %v2147
    %v2168 = vmul.f32 %v2110, %v2147
    %v2169 = vmul.f32 %v2115, %v2147
    %v2170 = vmul.f32 %v2120, %v2147
    %v2171 = vmul.f32 %v2125, %v2147
    %v2172 = vmul.f32 %v2130, %v2147
    %v2173 = vmul.f32 %v2135, %v2147
    %v2174 = vmul.f32 %v2140, %v2147
    %v2175 = vmul.f32 %v2145, %v2147
    %v2176 = vadd.f32 %v1950, %v2148
    %v2177 = vadd.f32 %v1951, %v2149
    %v2178 = vadd.f32 %v1952, %v2150
    %v2179 = vadd.f32 %v1953, %v2151
    %v2180 = vadd.f32 %v1954, %v2152
    %v2181 = vadd.f32 %v1955, %v2153
    %v2182 = vadd.f32 %v1956, %v2154
    %v2183 = vadd.f32 %v1957, %v2155
    %v2184 = vadd.f32 %v1958, %v2156
    %v2185 = vadd.f32 %v1959, %v2157
    %v2186 = vadd.f32 %v1960, %v2158
    %v2187 = vadd.f32 %v1961, %v2159
    %v2188 = vadd.f32 %v1962, %v2160
    %v2189 = vadd.f32 %v1963, %v2161
    %v2190 = vadd.f32 %v1964, %v2162
    %v2191 = vadd.f32 %v1965, %v2163
    %v2192 = vadd.f32 %v1966, %v2164
    %v2193 = vadd.f32 %v1967, %v2165
    %v2194 = vadd.f32 %v1968, %v2166
    %v2195 = vadd.f32 %v1969, %v2167
    %v2196 = vadd.f32 %v1970, %v2168
    %v2197 = vadd.f32 %v1971, %v2169
    %v2198 = vadd.f32 %v1972, %v2170
    %v2199 = vadd.f32 %v1973, %v2171
    %v2200 = vadd.f32 %v1974, %v2172
    %v2201 = vadd.f32 %v1975, %v2173
    %v2202 = vadd.f32 %v1976, %v2174
    %v2203 = vadd.f32 %v1977, %v2175
    %v2205 = vperm.slane %v83, 0
    %v2207 = vadd.f32 %v2176, %v2205
    %v2208 = vadd.f32 %v2177, %v2205
    %v2209 = vadd.f32 %v2178, %v2205
    %v2210 = vadd.f32 %v2179, %v2205
    %v2211 = vadd.f32 %v2180, %v2205
    %v2212 = vadd.f32 %v2181, %v2205
    %v2213 = vadd.f32 %v2182, %v2205
    %v2214 = vadd.f32 %v2183, %v2205
    %v2215 = vadd.f32 %v2184, %v2205
    %v2216 = vadd.f32 %v2185, %v2205
    %v2217 = vadd.f32 %v2186, %v2205
    %v2218 = vadd.f32 %v2187, %v2205
    %v2219 = vadd.f32 %v2188, %v2205
    %v2220 = vadd.f32 %v2189, %v2205
    %v2221 = vadd.f32 %v2190, %v2205
    %v2222 = vadd.f32 %v2191, %v2205
    %v2223 = vadd.f32 %v2192, %v2205
    %v2224 = vadd.f32 %v2193, %v2205
    %v2225 = vadd.f32 %v2194, %v2205
    %v2226 = vadd.f32 %v2195, %v2205
    %v2227 = vadd.f32 %v2196, %v2205
    %v2228 = vadd.f32 %v2197, %v2205
    %v2229 = vadd.f32 %v2198, %v2205
    %v2230 = vadd.f32 %v2199, %v2205
    %v2231 = vadd.f32 %v2200, %v2205
    %v2232 = vadd.f32 %v2201, %v2205
    %v2233 = vadd.f32 %v2202, %v2205
    %v2234 = vadd.f32 %v2203, %v2205
    %v2235 = vmax.f32 %v2207, 0.0
    %v2236 = vmax.f32 %v2208, 0.0
    %v2237 = vmax.f32 %v2209, 0.0
    %v2238 = vmax.f32 %v2210, 0.0
    %v2239 = vmax.f32 %v2211, 0.0
    %v2240 = vmax.f32 %v2212, 0.0
    %v2241 = vmax.f32 %v2213, 0.0
    %v2242 = vmax.f32 %v2214, 0.0
    %v2243 = vmax.f32 %v2215, 0.0
    %v2244 = vmax.f32 %v2216, 0.0
    %v2245 = vmax.f32 %v2217, 0.0
    %v2246 = vmax.f32 %v2218, 0.0
    %v2247 = vmax.f32 %v2219, 0.0
    %v2248 = vmax.f32 %v2220, 0.0
    %v2249 = vmax.f32 %v2221, 0.0
    %v2250 = vmax.f32 %v2222, 0.0
    %v2251 = vmax.f32 %v2223, 0.0
    %v2252 = vmax.f32 %v2224, 0.0
    %v2253 = vmax.f32 %v2225, 0.0
    %v2254 = vmax.f32 %v2226, 0.0
    %v2255 = vmax.f32 %v2227, 0.0
    %v2256 = vmax.f32 %v2228, 0.0
    %v2257 = vmax.f32 %v2229, 0.0
    %v2258 = vmax.f32 %v2230, 0.0
    %v2259 = vmax.f32 %v2231, 0.0
    %v2260 = vmax.f32 %v2232, 0.0
    %v2261 = vmax.f32 %v2233, 0.0
    %v2262 = vmax.f32 %v2234, 0.0
    %v2263 = vsel %vm142, 1, 0
    %v2264 = vsel %vm143, 1, 0
    %v2265 = vsel %vm144, 1, 0
    %v2266 = vsel %vm145, 1, 0
    %v2267 = vsel %vm146, 1, 0
    %v2268 = vsel %vm147, 1, 0
    %v2269 = vsel %vm148, 1, 0
    %v2270 = vsel %vm149, 1, 0
    %v2271 = vsel %vm150, 1, 0
    %v2272 = vsel %vm151, 1, 0
    %v2273 = vsel %vm152, 1, 0
    %v2274 = vsel %vm153, 1, 0
    %v2275 = vsel %vm154, 1, 0
    %v2276 = vsel %vm155, 1, 0
    %v2277 = vsel %vm156, 1, 0
    %v2278 = vsel %vm157, 1, 0
    %v2279 = vsel %vm158, 1, 0
    %v2280 = vsel %vm159, 1, 0
    %v2281 = vsel %vm160, 1, 0
    %v2282 = vsel %vm161, 1, 0
    %v2283 = vsel %vm162, 1, 0
    %v2284 = vsel %vm163, 1, 0
    %v2285 = vsel %vm164, 1, 0
    %v2286 = vsel %vm165, 1, 0
    %v2287 = vsel %vm166, 1, 0
    %v2288 = vsel %vm167, 1, 0
    %v2289 = vsel %vm168, 1, 0
    %v2290 = vsel %vm169, 1, 0
    %vm2291 = vcmp.eq.s32.totalorder %v2263, 1
    %vm2292 = vcmp.eq.s32.totalorder %v2264, 1
    %vm2293 = vcmp.eq.s32.totalorder %v2265, 1
    %vm2294 = vcmp.eq.s32.totalorder %v2266, 1
    %vm2295 = vcmp.eq.s32.totalorder %v2267, 1
    %vm2296 = vcmp.eq.s32.totalorder %v2268, 1
    %vm2297 = vcmp.eq.s32.totalorder %v2269, 1
    %vm2298 = vcmp.eq.s32.totalorder %v2270, 1
    %vm2299 = vcmp.eq.s32.totalorder %v2271, 1
    %vm2300 = vcmp.eq.s32.totalorder %v2272, 1
    %vm2301 = vcmp.eq.s32.totalorder %v2273, 1
    %vm2302 = vcmp.eq.s32.totalorder %v2274, 1
    %vm2303 = vcmp.eq.s32.totalorder %v2275, 1
    %vm2304 = vcmp.eq.s32.totalorder %v2276, 1
    %vm2305 = vcmp.eq.s32.totalorder %v2277, 1
    %vm2306 = vcmp.eq.s32.totalorder %v2278, 1
    %vm2307 = vcmp.eq.s32.totalorder %v2279, 1
    %vm2308 = vcmp.eq.s32.totalorder %v2280, 1
    %vm2309 = vcmp.eq.s32.totalorder %v2281, 1
    %vm2310 = vcmp.eq.s32.totalorder %v2282, 1
    %vm2311 = vcmp.eq.s32.totalorder %v2283, 1
    %vm2312 = vcmp.eq.s32.totalorder %v2284, 1
    %vm2313 = vcmp.eq.s32.totalorder %v2285, 1
    %vm2314 = vcmp.eq.s32.totalorder %v2286, 1
    %vm2315 = vcmp.eq.s32.totalorder %v2287, 1
    %vm2316 = vcmp.eq.s32.totalorder %v2288, 1
    %vm2317 = vcmp.eq.s32.totalorder %v2289, 1
    %vm2318 = vcmp.eq.s32.totalorder %v2290, 1
    %v2319 = vsel %vm2291, %v2235, 0.0
    %v2320 = vsel %vm2292, %v2236, 0.0
    %v2321 = vsel %vm2293, %v2237, 0.0
    %v2322 = vsel %vm2294, %v2238, 0.0
    %v2323 = vsel %vm2295, %v2239, 0.0
    %v2324 = vsel %vm2296, %v2240, 0.0
    %v2325 = vsel %vm2297, %v2241, 0.0
    %v2326 = vsel %vm2298, %v2242, 0.0
    %v2327 = vsel %vm2299, %v2243, 0.0
    %v2328 = vsel %vm2300, %v2244, 0.0
    %v2329 = vsel %vm2301, %v2245, 0.0
    %v2330 = vsel %vm2302, %v2246, 0.0
    %v2331 = vsel %vm2303, %v2247, 0.0
    %v2332 = vsel %vm2304, %v2248, 0.0
    %v2333 = vsel %vm2305, %v2249, 0.0
    %v2334 = vsel %vm2306, %v2250, 0.0
    %v2335 = vsel %vm2307, %v2251, 0.0
    %v2336 = vsel %vm2308, %v2252, 0.0
    %v2337 = vsel %vm2309, %v2253, 0.0
    %v2338 = vsel %vm2310, %v2254, 0.0
    %v2339 = vsel %vm2311, %v2255, 0.0
    %v2340 = vsel %vm2312, %v2256, 0.0
    %v2341 = vsel %vm2313, %v2257, 0.0
    %v2342 = vsel %vm2314, %v2258, 0.0
    %v2343 = vsel %vm2315, %v2259, 0.0
    %v2344 = vsel %vm2316, %v2260, 0.0
    %v2345 = vsel %vm2317, %v2261, 0.0
    %v2346 = vsel %vm2318, %v2262, 0.0
    %2347 = vst.msk [vmem:[#allocation2 + $0x11] sm:$0xff] %vm49, %v2319
    %2348 = vst.msk [vmem:[#allocation2 + $0x19] sm:$0xff] %vm49, %v2320
    %2349 = vst.msk [vmem:[#allocation2 + $0x21] sm:$0xff] %vm49, %v2321
    %2350 = vst.msk [vmem:[#allocation2 + $0x29] sm:$0xff] %vm49, %v2322
    %2351 = vst.msk [vmem:[#allocation2 + $0x31] sm:$0xff] %vm49, %v2323
    %2352 = vst.msk [vmem:[#allocation2 + $0x39] sm:$0xff] %vm49, %v2324
    %2353 = vst.msk [vmem:[#allocation2 + $0x41] sm:$0xff] %vm49, %v2325
    %2354 = vst.msk [vmem:[#allocation2 + $0x49] sm:$0xff] %vm49, %v2326
    %2355 = vst.msk [vmem:[#allocation2 + $0x51] sm:$0xff] %vm49, %v2327
    %2356 = vst.msk [vmem:[#allocation2 + $0x59] sm:$0xff] %vm49, %v2328
    %2357 = vst.msk [vmem:[#allocation2 + $0x61] sm:$0xff] %vm49, %v2329
    %2358 = vst.msk [vmem:[#allocation2 + $0x69] sm:$0xff] %vm49, %v2330
    %2359 = vst.msk [vmem:[#allocation2 + $0x71] sm:$0xff] %vm49, %v2331
    %2360 = vst.msk [vmem:[#allocation2 + $0x79] sm:$0xff] %vm49, %v2332
    %2361 = vst.msk [vmem:[#allocation2 + $0x81] sm:$0xff] %vm49, %v2333
    %2362 = vst.msk [vmem:[#allocation2 + $0x89] sm:$0xff] %vm49, %v2334
    %2363 = vst.msk [vmem:[#allocation2 + $0x91] sm:$0xff] %vm49, %v2335
    %2364 = vst.msk [vmem:[#allocation2 + $0x99] sm:$0xff] %vm49, %v2336
    %2365 = vst.msk [vmem:[#allocation2 + $0xa1] sm:$0xff] %vm49, %v2337
    %2366 = vst.msk [vmem:[#allocation2 + $0xa9] sm:$0xff] %vm49, %v2338
    %2367 = vst.msk [vmem:[#allocation2 + $0xb1] sm:$0xff] %vm49, %v2339
    %2368 = vst.msk [vmem:[#allocation2 + $0xb9] sm:$0xff] %vm49, %v2340
    %2369 = vst.msk [vmem:[#allocation2 + $0xc1] sm:$0xff] %vm49, %v2341
    %2370 = vst.msk [vmem:[#allocation2 + $0xc9] sm:$0xff] %vm49, %v2342
    %2371 = vst.msk [vmem:[#allocation2 + $0xd1] sm:$0xff] %vm49, %v2343
    %2372 = vst.msk [vmem:[#allocation2 + $0xd9] sm:$0xff] %vm49, %v2344
    %2373 = vst.msk [vmem:[#allocation2 + $0xe1] sm:$0xff] %vm49, %v2345
    %2374 = vst.msk [vmem:[#allocation2 + $0xe9] sm:$0xff] %vm49, %v2346
    %v2375 = vld [vmem:[#allocation2] sm:$0xff]
    %v2376 = vld [vmem:[#allocation2 + $0x8] sm:$0xff]
    %v2377 = vld [vmem:[#allocation2 + $0x10] sm:$0xff]
    %v2378 = vld [vmem:[#allocation2 + $0x18] sm:$0xff]
    %v2379 = vld [vmem:[#allocation2 + $0x20] sm:$0xff]
    %v2380 = vld [vmem:[#allocation2 + $0x28] sm:$0xff]
    %v2381 = vld [vmem:[#allocation2 + $0x30] sm:$0xff]
    %v2382 = vld [vmem:[#allocation2 + $0x38] sm:$0xff]
    %v2383 = vld [vmem:[#allocation2 + $0x40] sm:$0xff]
    %v2384 = vld [vmem:[#allocation2 + $0x48] sm:$0xff]
    %v2385 = vld [vmem:[#allocation2 + $0x50] sm:$0xff]
    %v2386 = vld [vmem:[#allocation2 + $0x58] sm:$0xff]
    %v2387 = vld [vmem:[#allocation2 + $0x60] sm:$0xff]
    %v2388 = vld [vmem:[#allocation2 + $0x68] sm:$0xff]
    %v2389 = vld [vmem:[#allocation2 + $0x70] sm:$0xff]
    %v2390 = vld [vmem:[#allocation2 + $0x78] sm:$0xff]
    %v2391 = vld [vmem:[#allocation2 + $0x80] sm:$0xff]
    %v2392 = vld [vmem:[#allocation2 + $0x88] sm:$0xff]
    %v2393 = vld [vmem:[#allocation2 + $0x90] sm:$0xff]
    %v2394 = vld [vmem:[#allocation2 + $0x98] sm:$0xff]
    %v2395 = vld [vmem:[#allocation2 + $0xa0] sm:$0xff]
    %v2396 = vld [vmem:[#allocation2 + $0xa8] sm:$0xff]
    %v2397 = vld [vmem:[#allocation2 + $0xb0] sm:$0xff]
    %v2398 = vld [vmem:[#allocation2 + $0xb8] sm:$0xff]
    %v2399 = vld [vmem:[#allocation2 + $0xc0] sm:$0xff]
    %v2400 = vld [vmem:[#allocation2 + $0xc8] sm:$0xff]
    %v2401 = vld [vmem:[#allocation2 + $0xd0] sm:$0xff]
    %v2402 = vld [vmem:[#allocation2 + $0xd8] sm:$0xff]
    %2403 = vst.msk [vmem:[#allocation3] sm:$0xff] %vm49, %v2375
    %2404 = vst.msk [vmem:[#allocation3 + $0x10] sm:$0xff] %vm49, %v2376
    %2405 = vst.msk [vmem:[#allocation3 + $0x20] sm:$0xff] %vm49, %v2377
    %2406 = vst.msk [vmem:[#allocation3 + $0x30] sm:$0xff] %vm49, %v2378
    %2407 = vst.msk [vmem:[#allocation3 + $0x40] sm:$0xff] %vm49, %v2379
    %2408 = vst.msk [vmem:[#allocation3 + $0x50] sm:$0xff] %vm49, %v2380
    %2409 = vst.msk [vmem:[#allocation3 + $0x60] sm:$0xff] %vm49, %v2381
    %2410 = vst.msk [vmem:[#allocation3 + $0x70] sm:$0xff] %vm49, %v2382
    %2411 = vst.msk [vmem:[#allocation3 + $0x80] sm:$0xff] %vm49, %v2383
    %2412 = vst.msk [vmem:[#allocation3 + $0x90] sm:$0xff] %vm49, %v2384
    %2413 = vst.msk [vmem:[#allocation3 + $0xa0] sm:$0xff] %vm49, %v2385
    %2414 = vst.msk [vmem:[#allocation3 + $0xb0] sm:$0xff] %vm49, %v2386
    %2415 = vst.msk [vmem:[#allocation3 + $0xc0] sm:$0xff] %vm49, %v2387
    %2416 = vst.msk [vmem:[#allocation3 + $0xd0] sm:$0xff] %vm49, %v2388
    %2417 = vst.msk [vmem:[#allocation3 + $0xe0] sm:$0xff] %vm49, %v2389
    %2418 = vst.msk [vmem:[#allocation3 + $0xf0] sm:$0xff] %vm49, %v2390
    %2419 = vst.msk [vmem:[#allocation3 + $0x100] sm:$0xff] %vm49, %v2391
    %2420 = vst.msk [vmem:[#allocation3 + $0x110] sm:$0xff] %vm49, %v2392
    %2421 = vst.msk [vmem:[#allocation3 + $0x120] sm:$0xff] %vm49, %v2393
    %2422 = vst.msk [vmem:[#allocation3 + $0x130] sm:$0xff] %vm49, %v2394
    %2423 = vst.msk [vmem:[#allocation3 + $0x140] sm:$0xff] %vm49, %v2395
    %2424 = vst.msk [vmem:[#allocation3 + $0x150] sm:$0xff] %vm49, %v2396
    %2425 = vst.msk [vmem:[#allocation3 + $0x160] sm:$0xff] %vm49, %v2397
    %2426 = vst.msk [vmem:[#allocation3 + $0x170] sm:$0xff] %vm49, %v2398
    %2427 = vst.msk [vmem:[#allocation3 + $0x180] sm:$0xff] %vm49, %v2399
    %2428 = vst.msk [vmem:[#allocation3 + $0x190] sm:$0xff] %vm49, %v2400
    %2429 = vst.msk [vmem:[#allocation3 + $0x1a0] sm:$0xff] %vm49, %v2401
    %2430 = vst.msk [vmem:[#allocation3 + $0x1b0] sm:$0xff] %vm49, %v2402
    %v2431 = vld [vmem:[#allocation2 + $0x1] sm:$0xff]
    %v2432 = vld [vmem:[#allocation2 + $0x9] sm:$0xff]
    %v2433 = vld [vmem:[#allocation2 + $0x11] sm:$0xff]
    %v2434 = vld [vmem:[#allocation2 + $0x19] sm:$0xff]
    %v2435 = vld [vmem:[#allocation2 + $0x21] sm:$0xff]
    %v2436 = vld [vmem:[#allocation2 + $0x29] sm:$0xff]
    %v2437 = vld [vmem:[#allocation2 + $0x31] sm:$0xff]
    %v2438 = vld [vmem:[#allocation2 + $0x39] sm:$0xff]
    %v2439 = vld [vmem:[#allocation2 + $0x41] sm:$0xff]
    %v2440 = vld [vmem:[#allocation2 + $0x49] sm:$0xff]
    %v2441 = vld [vmem:[#allocation2 + $0x51] sm:$0xff]
    %v2442 = vld [vmem:[#allocation2 + $0x59] sm:$0xff]
    %v2443 = vld [vmem:[#allocation2 + $0x61] sm:$0xff]
    %v2444 = vld [vmem:[#allocation2 + $0x69] sm:$0xff]
    %v2445 = vld [vmem:[#allocation2 + $0x71] sm:$0xff]
    %v2446 = vld [vmem:[#allocation2 + $0x79] sm:$0xff]
    %v2447 = vld [vmem:[#allocation2 + $0x81] sm:$0xff]
    %v2448 = vld [vmem:[#allocation2 + $0x89] sm:$0xff]
    %v2449 = vld [vmem:[#allocation2 + $0x91] sm:$0xff]
    %v2450 = vld [vmem:[#allocation2 + $0x99] sm:$0xff]
    %v2451 = vld [vmem:[#allocation2 + $0xa1] sm:$0xff]
    %v2452 = vld [vmem:[#allocation2 + $0xa9] sm:$0xff]
    %v2453 = vld [vmem:[#allocation2 + $0xb1] sm:$0xff]
    %v2454 = vld [vmem:[#allocation2 + $0xb9] sm:$0xff]
    %v2455 = vld [vmem:[#allocation2 + $0xc1] sm:$0xff]
    %v2456 = vld [vmem:[#allocation2 + $0xc9] sm:$0xff]
    %v2457 = vld [vmem:[#allocation2 + $0xd1] sm:$0xff]
    %v2458 = vld [vmem:[#allocation2 + $0xd9] sm:$0xff]
    %2487 = vrot.lane.b32.xlu0 %v2431, 16
    %v2488 = vpop.permute.xlu0 %2487
    %2489 = vrot.lane.b32.xlu0 %v2432, 16
    %v2490 = vpop.permute.xlu0 %2489
    %2491 = vrot.lane.b32.xlu0 %v2433, 16
    %v2492 = vpop.permute.xlu0 %2491
    %2493 = vrot.lane.b32.xlu0 %v2434, 16
    %v2494 = vpop.permute.xlu0 %2493
    %2495 = vrot.lane.b32.xlu0 %v2435, 16
    %v2496 = vpop.permute.xlu0 %2495
    %2497 = vrot.lane.b32.xlu0 %v2436, 16
    %v2498 = vpop.permute.xlu0 %2497
    %2499 = vrot.lane.b32.xlu0 %v2437, 16
    %v2500 = vpop.permute.xlu0 %2499
    %2501 = vrot.lane.b32.xlu0 %v2438, 16
    %v2502 = vpop.permute.xlu0 %2501
    %2503 = vrot.lane.b32.xlu0 %v2439, 16
    %v2504 = vpop.permute.xlu0 %2503
    %2505 = vrot.lane.b32.xlu0 %v2440, 16
    %v2506 = vpop.permute.xlu0 %2505
    %2507 = vrot.lane.b32.xlu0 %v2441, 16
    %v2508 = vpop.permute.xlu0 %2507
    %2509 = vrot.lane.b32.xlu0 %v2442, 16
    %v2510 = vpop.permute.xlu0 %2509
    %2511 = vrot.lane.b32.xlu0 %v2443, 16
    %v2512 = vpop.permute.xlu0 %2511
    %2513 = vrot.lane.b32.xlu0 %v2444, 16
    %v2514 = vpop.permute.xlu0 %2513
    %2515 = vrot.lane.b32.xlu0 %v2445, 16
    %v2516 = vpop.permute.xlu0 %2515
    %2517 = vrot.lane.b32.xlu0 %v2446, 16
    %v2518 = vpop.permute.xlu0 %2517
    %2519 = vrot.lane.b32.xlu0 %v2447, 16
    %v2520 = vpop.permute.xlu0 %2519
    %2521 = vrot.lane.b32.xlu0 %v2448, 16
    %v2522 = vpop.permute.xlu0 %2521
    %2523 = vrot.lane.b32.xlu0 %v2449, 16
    %v2524 = vpop.permute.xlu0 %2523
    %2525 = vrot.lane.b32.xlu0 %v2450, 16
    %v2526 = vpop.permute.xlu0 %2525
    %2527 = vrot.lane.b32.xlu0 %v2451, 16
    %v2528 = vpop.permute.xlu0 %2527
    %2529 = vrot.lane.b32.xlu0 %v2452, 16
    %v2530 = vpop.permute.xlu0 %2529
    %2531 = vrot.lane.b32.xlu0 %v2453, 16
    %v2532 = vpop.permute.xlu0 %2531
    %2533 = vrot.lane.b32.xlu0 %v2454, 16
    %v2534 = vpop.permute.xlu0 %2533
    %2535 = vrot.lane.b32.xlu0 %v2455, 16
    %v2536 = vpop.permute.xlu0 %2535
    %2537 = vrot.lane.b32.xlu0 %v2456, 16
    %v2538 = vpop.permute.xlu0 %2537
    %2539 = vrot.lane.b32.xlu0 %v2457, 16
    %v2540 = vpop.permute.xlu0 %2539
    %2541 = vrot.lane.b32.xlu0 %v2458, 16
    %v2542 = vpop.permute.xlu0 %2541
    %vm2571 = vcmask 261248
    %2572 = vst.msk [vmem:[#allocation3] sm:$0xff] %vm2571, %v2488
    %2573 = vst.msk [vmem:[#allocation3 + $0x10] sm:$0xff] %vm2571, %v2490
    %2574 = vst.msk [vmem:[#allocation3 + $0x20] sm:$0xff] %vm2571, %v2492
    %2575 = vst.msk [vmem:[#allocation3 + $0x30] sm:$0xff] %vm2571, %v2494
    %2576 = vst.msk [vmem:[#allocation3 + $0x40] sm:$0xff] %vm2571, %v2496
    %2577 = vst.msk [vmem:[#allocation3 + $0x50] sm:$0xff] %vm2571, %v2498
    %2578 = vst.msk [vmem:[#allocation3 + $0x60] sm:$0xff] %vm2571, %v2500
    %2579 = vst.msk [vmem:[#allocation3 + $0x70] sm:$0xff] %vm2571, %v2502
    %2580 = vst.msk [vmem:[#allocation3 + $0x80] sm:$0xff] %vm2571, %v2504
    %2581 = vst.msk [vmem:[#allocation3 + $0x90] sm:$0xff] %vm2571, %v2506
    %2582 = vst.msk [vmem:[#allocation3 + $0xa0] sm:$0xff] %vm2571, %v2508
    %2583 = vst.msk [vmem:[#allocation3 + $0xb0] sm:$0xff] %vm2571, %v2510
    %2584 = vst.msk [vmem:[#allocation3 + $0xc0] sm:$0xff] %vm2571, %v2512
    %2585 = vst.msk [vmem:[#allocation3 + $0xd0] sm:$0xff] %vm2571, %v2514
    %2586 = vst.msk [vmem:[#allocation3 + $0xe0] sm:$0xff] %vm2571, %v2516
    %2587 = vst.msk [vmem:[#allocation3 + $0xf0] sm:$0xff] %vm2571, %v2518
    %2588 = vst.msk [vmem:[#allocation3 + $0x100] sm:$0xff] %vm2571, %v2520
    %2589 = vst.msk [vmem:[#allocation3 + $0x110] sm:$0xff] %vm2571, %v2522
    %2590 = vst.msk [vmem:[#allocation3 + $0x120] sm:$0xff] %vm2571, %v2524
    %2591 = vst.msk [vmem:[#allocation3 + $0x130] sm:$0xff] %vm2571, %v2526
    %2592 = vst.msk [vmem:[#allocation3 + $0x140] sm:$0xff] %vm2571, %v2528
    %2593 = vst.msk [vmem:[#allocation3 + $0x150] sm:$0xff] %vm2571, %v2530
    %2594 = vst.msk [vmem:[#allocation3 + $0x160] sm:$0xff] %vm2571, %v2532
    %2595 = vst.msk [vmem:[#allocation3 + $0x170] sm:$0xff] %vm2571, %v2534
    %2596 = vst.msk [vmem:[#allocation3 + $0x180] sm:$0xff] %vm2571, %v2536
    %2597 = vst.msk [vmem:[#allocation3 + $0x190] sm:$0xff] %vm2571, %v2538
    %2598 = vst.msk [vmem:[#allocation3 + $0x1a0] sm:$0xff] %vm2571, %v2540
    %2599 = vst.msk [vmem:[#allocation3 + $0x1b0] sm:$0xff] %vm2571, %v2542
    %v2600 = vld [vmem:[#allocation2 + $0x2] sm:$0xff]
    %v2601 = vld [vmem:[#allocation2 + $0xa] sm:$0xff]
    %v2602 = vld [vmem:[#allocation2 + $0x12] sm:$0xff]
    %v2603 = vld [vmem:[#allocation2 + $0x1a] sm:$0xff]
    %v2604 = vld [vmem:[#allocation2 + $0x22] sm:$0xff]
    %v2605 = vld [vmem:[#allocation2 + $0x2a] sm:$0xff]
    %v2606 = vld [vmem:[#allocation2 + $0x32] sm:$0xff]
    %v2607 = vld [vmem:[#allocation2 + $0x3a] sm:$0xff]
    %v2608 = vld [vmem:[#allocation2 + $0x42] sm:$0xff]
    %v2609 = vld [vmem:[#allocation2 + $0x4a] sm:$0xff]
    %v2610 = vld [vmem:[#allocation2 + $0x52] sm:$0xff]
    %v2611 = vld [vmem:[#allocation2 + $0x5a] sm:$0xff]
    %v2612 = vld [vmem:[#allocation2 + $0x62] sm:$0xff]
    %v2613 = vld [vmem:[#allocation2 + $0x6a] sm:$0xff]
    %v2614 = vld [vmem:[#allocation2 + $0x72] sm:$0xff]
    %v2615 = vld [vmem:[#allocation2 + $0x7a] sm:$0xff]
    %v2616 = vld [vmem:[#allocation2 + $0x82] sm:$0xff]
    %v2617 = vld [vmem:[#allocation2 + $0x8a] sm:$0xff]
    %v2618 = vld [vmem:[#allocation2 + $0x92] sm:$0xff]
    %v2619 = vld [vmem:[#allocation2 + $0x9a] sm:$0xff]
    %v2620 = vld [vmem:[#allocation2 + $0xa2] sm:$0xff]
    %v2621 = vld [vmem:[#allocation2 + $0xaa] sm:$0xff]
    %v2622 = vld [vmem:[#allocation2 + $0xb2] sm:$0xff]
    %v2623 = vld [vmem:[#allocation2 + $0xba] sm:$0xff]
    %v2624 = vld [vmem:[#allocation2 + $0xc2] sm:$0xff]
    %v2625 = vld [vmem:[#allocation2 + $0xca] sm:$0xff]
    %v2626 = vld [vmem:[#allocation2 + $0xd2] sm:$0xff]
    %v2627 = vld [vmem:[#allocation2 + $0xda] sm:$0xff]
    %2656 = vrot.lane.b32.xlu0 %v2600, 32
    %v2657 = vpop.permute.xlu0 %2656
    %2658 = vrot.lane.b32.xlu0 %v2601, 32
    %v2659 = vpop.permute.xlu0 %2658
    %2660 = vrot.lane.b32.xlu0 %v2602, 32
    %v2661 = vpop.permute.xlu0 %2660
    %2662 = vrot.lane.b32.xlu0 %v2603, 32
    %v2663 = vpop.permute.xlu0 %2662
    %2664 = vrot.lane.b32.xlu0 %v2604, 32
    %v2665 = vpop.permute.xlu0 %2664
    %2666 = vrot.lane.b32.xlu0 %v2605, 32
    %v2667 = vpop.permute.xlu0 %2666
    %2668 = vrot.lane.b32.xlu0 %v2606, 32
    %v2669 = vpop.permute.xlu0 %2668
    %2670 = vrot.lane.b32.xlu0 %v2607, 32
    %v2671 = vpop.permute.xlu0 %2670
    %2672 = vrot.lane.b32.xlu0 %v2608, 32
    %v2673 = vpop.permute.xlu0 %2672
    %2674 = vrot.lane.b32.xlu0 %v2609, 32
    %v2675 = vpop.permute.xlu0 %2674
    %2676 = vrot.lane.b32.xlu0 %v2610, 32
    %v2677 = vpop.permute.xlu0 %2676
    %2678 = vrot.lane.b32.xlu0 %v2611, 32
    %v2679 = vpop.permute.xlu0 %2678
    %2680 = vrot.lane.b32.xlu0 %v2612, 32
    %v2681 = vpop.permute.xlu0 %2680
    %2682 = vrot.lane.b32.xlu0 %v2613, 32
    %v2683 = vpop.permute.xlu0 %2682
    %2684 = vrot.lane.b32.xlu0 %v2614, 32
    %v2685 = vpop.permute.xlu0 %2684
    %2686 = vrot.lane.b32.xlu0 %v2615, 32
    %v2687 = vpop.permute.xlu0 %2686
    %2688 = vrot.lane.b32.xlu0 %v2616, 32
    %v2689 = vpop.permute.xlu0 %2688
    %2690 = vrot.lane.b32.xlu0 %v2617, 32
    %v2691 = vpop.permute.xlu0 %2690
    %2692 = vrot.lane.b32.xlu0 %v2618, 32
    %v2693 = vpop.permute.xlu0 %2692
    %2694 = vrot.lane.b32.xlu0 %v2619, 32
    %v2695 = vpop.permute.xlu0 %2694
    %2696 = vrot.lane.b32.xlu0 %v2620, 32
    %v2697 = vpop.permute.xlu0 %2696
    %2698 = vrot.lane.b32.xlu0 %v2621, 32
    %v2699 = vpop.permute.xlu0 %2698
    %2700 = vrot.lane.b32.xlu0 %v2622, 32
    %v2701 = vpop.permute.xlu0 %2700
    %2702 = vrot.lane.b32.xlu0 %v2623, 32
    %v2703 = vpop.permute.xlu0 %2702
    %2704 = vrot.lane.b32.xlu0 %v2624, 32
    %v2705 = vpop.permute.xlu0 %2704
    %2706 = vrot.lane.b32.xlu0 %v2625, 32
    %v2707 = vpop.permute.xlu0 %2706
    %2708 = vrot.lane.b32.xlu0 %v2626, 32
    %v2709 = vpop.permute.xlu0 %2708
    %2710 = vrot.lane.b32.xlu0 %v2627, 32
    %v2711 = vpop.permute.xlu0 %2710
    %vm2740 = vcmask 392448
    %2741 = vst.msk [vmem:[#allocation3] sm:$0xff] %vm2740, %v2657
    %2742 = vst.msk [vmem:[#allocation3 + $0x10] sm:$0xff] %vm2740, %v2659
    %2743 = vst.msk [vmem:[#allocation3 + $0x20] sm:$0xff] %vm2740, %v2661
    %2744 = vst.msk [vmem:[#allocation3 + $0x30] sm:$0xff] %vm2740, %v2663
    %2745 = vst.msk [vmem:[#allocation3 + $0x40] sm:$0xff] %vm2740, %v2665
    %2746 = vst.msk [vmem:[#allocation3 + $0x50] sm:$0xff] %vm2740, %v2667
    %2747 = vst.msk [vmem:[#allocation3 + $0x60] sm:$0xff] %vm2740, %v2669
    %2748 = vst.msk [vmem:[#allocation3 + $0x70] sm:$0xff] %vm2740, %v2671
    %2749 = vst.msk [vmem:[#allocation3 + $0x80] sm:$0xff] %vm2740, %v2673
    %2750 = vst.msk [vmem:[#allocation3 + $0x90] sm:$0xff] %vm2740, %v2675
    %2751 = vst.msk [vmem:[#allocation3 + $0xa0] sm:$0xff] %vm2740, %v2677
    %2752 = vst.msk [vmem:[#allocation3 + $0xb0] sm:$0xff] %vm2740, %v2679
    %2753 = vst.msk [vmem:[#allocation3 + $0xc0] sm:$0xff] %vm2740, %v2681
    %2754 = vst.msk [vmem:[#allocation3 + $0xd0] sm:$0xff] %vm2740, %v2683
    %2755 = vst.msk [vmem:[#allocation3 + $0xe0] sm:$0xff] %vm2740, %v2685
    %2756 = vst.msk [vmem:[#allocation3 + $0xf0] sm:$0xff] %vm2740, %v2687
    %2757 = vst.msk [vmem:[#allocation3 + $0x100] sm:$0xff] %vm2740, %v2689
    %2758 = vst.msk [vmem:[#allocation3 + $0x110] sm:$0xff] %vm2740, %v2691
    %2759 = vst.msk [vmem:[#allocation3 + $0x120] sm:$0xff] %vm2740, %v2693
    %2760 = vst.msk [vmem:[#allocation3 + $0x130] sm:$0xff] %vm2740, %v2695
    %2761 = vst.msk [vmem:[#allocation3 + $0x140] sm:$0xff] %vm2740, %v2697
    %2762 = vst.msk [vmem:[#allocation3 + $0x150] sm:$0xff] %vm2740, %v2699
    %2763 = vst.msk [vmem:[#allocation3 + $0x160] sm:$0xff] %vm2740, %v2701
    %2764 = vst.msk [vmem:[#allocation3 + $0x170] sm:$0xff] %vm2740, %v2703
    %2765 = vst.msk [vmem:[#allocation3 + $0x180] sm:$0xff] %vm2740, %v2705
    %2766 = vst.msk [vmem:[#allocation3 + $0x190] sm:$0xff] %vm2740, %v2707
    %2767 = vst.msk [vmem:[#allocation3 + $0x1a0] sm:$0xff] %vm2740, %v2709
    %2768 = vst.msk [vmem:[#allocation3 + $0x1b0] sm:$0xff] %vm2740, %v2711
    %v2769 = vld [vmem:[#allocation2 + $0x10] sm:$0xff]
    %v2770 = vld [vmem:[#allocation2 + $0x18] sm:$0xff]
    %v2771 = vld [vmem:[#allocation2 + $0x20] sm:$0xff]
    %v2772 = vld [vmem:[#allocation2 + $0x28] sm:$0xff]
    %v2773 = vld [vmem:[#allocation2 + $0x30] sm:$0xff]
    %v2774 = vld [vmem:[#allocation2 + $0x38] sm:$0xff]
    %v2775 = vld [vmem:[#allocation2 + $0x40] sm:$0xff]
    %v2776 = vld [vmem:[#allocation2 + $0x48] sm:$0xff]
    %v2777 = vld [vmem:[#allocation2 + $0x50] sm:$0xff]
    %v2778 = vld [vmem:[#allocation2 + $0x58] sm:$0xff]
    %v2779 = vld [vmem:[#allocation2 + $0x60] sm:$0xff]
    %v2780 = vld [vmem:[#allocation2 + $0x68] sm:$0xff]
    %v2781 = vld [vmem:[#allocation2 + $0x70] sm:$0xff]
    %v2782 = vld [vmem:[#allocation2 + $0x78] sm:$0xff]
    %v2783 = vld [vmem:[#allocation2 + $0x80] sm:$0xff]
    %v2784 = vld [vmem:[#allocation2 + $0x88] sm:$0xff]
    %v2785 = vld [vmem:[#allocation2 + $0x90] sm:$0xff]
    %v2786 = vld [vmem:[#allocation2 + $0x98] sm:$0xff]
    %v2787 = vld [vmem:[#allocation2 + $0xa0] sm:$0xff]
    %v2788 = vld [vmem:[#allocation2 + $0xa8] sm:$0xff]
    %v2789 = vld [vmem:[#allocation2 + $0xb0] sm:$0xff]
    %v2790 = vld [vmem:[#allocation2 + $0xb8] sm:$0xff]
    %v2791 = vld [vmem:[#allocation2 + $0xc0] sm:$0xff]
    %v2792 = vld [vmem:[#allocation2 + $0xc8] sm:$0xff]
    %v2793 = vld [vmem:[#allocation2 + $0xd0] sm:$0xff]
    %v2794 = vld [vmem:[#allocation2 + $0xd8] sm:$0xff]
    %v2795 = vld [vmem:[#allocation2 + $0xe0] sm:$0xff]
    %v2796 = vld [vmem:[#allocation2 + $0xe8] sm:$0xff]
    %2825 = vrot.lane.b32.xlu0 %v2769, 48
    %v2826 = vpop.permute.xlu0 %2825
    %2827 = vrot.lane.b32.xlu0 %v2770, 48
    %v2828 = vpop.permute.xlu0 %2827
    %2829 = vrot.lane.b32.xlu0 %v2771, 48
    %v2830 = vpop.permute.xlu0 %2829
    %2831 = vrot.lane.b32.xlu0 %v2772, 48
    %v2832 = vpop.permute.xlu0 %2831
    %2833 = vrot.lane.b32.xlu0 %v2773, 48
    %v2834 = vpop.permute.xlu0 %2833
    %2835 = vrot.lane.b32.xlu0 %v2774, 48
    %v2836 = vpop.permute.xlu0 %2835
    %2837 = vrot.lane.b32.xlu0 %v2775, 48
    %v2838 = vpop.permute.xlu0 %2837
    %2839 = vrot.lane.b32.xlu0 %v2776, 48
    %v2840 = vpop.permute.xlu0 %2839
    %2841 = vrot.lane.b32.xlu0 %v2777, 48
    %v2842 = vpop.permute.xlu0 %2841
    %2843 = vrot.lane.b32.xlu0 %v2778, 48
    %v2844 = vpop.permute.xlu0 %2843
    %2845 = vrot.lane.b32.xlu0 %v2779, 48
    %v2846 = vpop.permute.xlu0 %2845
    %2847 = vrot.lane.b32.xlu0 %v2780, 48
    %v2848 = vpop.permute.xlu0 %2847
    %2849 = vrot.lane.b32.xlu0 %v2781, 48
    %v2850 = vpop.permute.xlu0 %2849
    %2851 = vrot.lane.b32.xlu0 %v2782, 48
    %v2852 = vpop.permute.xlu0 %2851
    %2853 = vrot.lane.b32.xlu0 %v2783, 48
    %v2854 = vpop.permute.xlu0 %2853
    %2855 = vrot.lane.b32.xlu0 %v2784, 48
    %v2856 = vpop.permute.xlu0 %2855
    %2857 = vrot.lane.b32.xlu0 %v2785, 48
    %v2858 = vpop.permute.xlu0 %2857
    %2859 = vrot.lane.b32.xlu0 %v2786, 48
    %v2860 = vpop.permute.xlu0 %2859
    %2861 = vrot.lane.b32.xlu0 %v2787, 48
    %v2862 = vpop.permute.xlu0 %2861
    %2863 = vrot.lane.b32.xlu0 %v2788, 48
    %v2864 = vpop.permute.xlu0 %2863
    %2865 = vrot.lane.b32.xlu0 %v2789, 48
    %v2866 = vpop.permute.xlu0 %2865
    %2867 = vrot.lane.b32.xlu0 %v2790, 48
    %v2868 = vpop.permute.xlu0 %2867
    %2869 = vrot.lane.b32.xlu0 %v2791, 48
    %v2870 = vpop.permute.xlu0 %2869
    %2871 = vrot.lane.b32.xlu0 %v2792, 48
    %v2872 = vpop.permute.xlu0 %2871
    %2873 = vrot.lane.b32.xlu0 %v2793, 48
    %v2874 = vpop.permute.xlu0 %2873
    %2875 = vrot.lane.b32.xlu0 %v2794, 48
    %v2876 = vpop.permute.xlu0 %2875
    %2877 = vrot.lane.b32.xlu0 %v2795, 48
    %v2878 = vpop.permute.xlu0 %2877
    %2879 = vrot.lane.b32.xlu0 %v2796, 48
    %v2880 = vpop.permute.xlu0 %2879
    %vm2909 = vcmask 523648
    %2910 = vst.msk [vmem:[#allocation3] sm:$0xff] %vm2909, %v2826
    %2911 = vst.msk [vmem:[#allocation3 + $0x10] sm:$0xff] %vm2909, %v2828
    %2912 = vst.msk [vmem:[#allocation3 + $0x20] sm:$0xff] %vm2909, %v2830
    %2913 = vst.msk [vmem:[#allocation3 + $0x30] sm:$0xff] %vm2909, %v2832
    %2914 = vst.msk [vmem:[#allocation3 + $0x40] sm:$0xff] %vm2909, %v2834
    %2915 = vst.msk [vmem:[#allocation3 + $0x50] sm:$0xff] %vm2909, %v2836
    %2916 = vst.msk [vmem:[#allocation3 + $0x60] sm:$0xff] %vm2909, %v2838
    %2917 = vst.msk [vmem:[#allocation3 + $0x70] sm:$0xff] %vm2909, %v2840
    %2918 = vst.msk [vmem:[#allocation3 + $0x80] sm:$0xff] %vm2909, %v2842
    %2919 = vst.msk [vmem:[#allocation3 + $0x90] sm:$0xff] %vm2909, %v2844
    %2920 = vst.msk [vmem:[#allocation3 + $0xa0] sm:$0xff] %vm2909, %v2846
    %2921 = vst.msk [vmem:[#allocation3 + $0xb0] sm:$0xff] %vm2909, %v2848
    %2922 = vst.msk [vmem:[#allocation3 + $0xc0] sm:$0xff] %vm2909, %v2850
    %2923 = vst.msk [vmem:[#allocation3 + $0xd0] sm:$0xff] %vm2909, %v2852
    %2924 = vst.msk [vmem:[#allocation3 + $0xe0] sm:$0xff] %vm2909, %v2854
    %2925 = vst.msk [vmem:[#allocation3 + $0xf0] sm:$0xff] %vm2909, %v2856
    %2926 = vst.msk [vmem:[#allocation3 + $0x100] sm:$0xff] %vm2909, %v2858
    %2927 = vst.msk [vmem:[#allocation3 + $0x110] sm:$0xff] %vm2909, %v2860
    %2928 = vst.msk [vmem:[#allocation3 + $0x120] sm:$0xff] %vm2909, %v2862
    %2929 = vst.msk [vmem:[#allocation3 + $0x130] sm:$0xff] %vm2909, %v2864
    %2930 = vst.msk [vmem:[#allocation3 + $0x140] sm:$0xff] %vm2909, %v2866
    %2931 = vst.msk [vmem:[#allocation3 + $0x150] sm:$0xff] %vm2909, %v2868
    %2932 = vst.msk [vmem:[#allocation3 + $0x160] sm:$0xff] %vm2909, %v2870
    %2933 = vst.msk [vmem:[#allocation3 + $0x170] sm:$0xff] %vm2909, %v2872
    %2934 = vst.msk [vmem:[#allocation3 + $0x180] sm:$0xff] %vm2909, %v2874
    %2935 = vst.msk [vmem:[#allocation3 + $0x190] sm:$0xff] %vm2909, %v2876
    %2936 = vst.msk [vmem:[#allocation3 + $0x1a0] sm:$0xff] %vm2909, %v2878
    %2937 = vst.msk [vmem:[#allocation3 + $0x1b0] sm:$0xff] %vm2909, %v2880
    %v2938 = vld [vmem:[#allocation2 + $0x11] sm:$0xff]
    %v2939 = vld [vmem:[#allocation2 + $0x19] sm:$0xff]
    %v2940 = vld [vmem:[#allocation2 + $0x21] sm:$0xff]
    %v2941 = vld [vmem:[#allocation2 + $0x29] sm:$0xff]
    %v2942 = vld [vmem:[#allocation2 + $0x31] sm:$0xff]
    %v2943 = vld [vmem:[#allocation2 + $0x39] sm:$0xff]
    %v2944 = vld [vmem:[#allocation2 + $0x41] sm:$0xff]
    %v2945 = vld [vmem:[#allocation2 + $0x49] sm:$0xff]
    %v2946 = vld [vmem:[#allocation2 + $0x51] sm:$0xff]
    %v2947 = vld [vmem:[#allocation2 + $0x59] sm:$0xff]
    %v2948 = vld [vmem:[#allocation2 + $0x61] sm:$0xff]
    %v2949 = vld [vmem:[#allocation2 + $0x69] sm:$0xff]
    %v2950 = vld [vmem:[#allocation2 + $0x71] sm:$0xff]
    %v2951 = vld [vmem:[#allocation2 + $0x79] sm:$0xff]
    %v2952 = vld [vmem:[#allocation2 + $0x81] sm:$0xff]
    %v2953 = vld [vmem:[#allocation2 + $0x89] sm:$0xff]
    %v2954 = vld [vmem:[#allocation2 + $0x91] sm:$0xff]
    %v2955 = vld [vmem:[#allocation2 + $0x99] sm:$0xff]
    %v2956 = vld [vmem:[#allocation2 + $0xa1] sm:$0xff]
    %v2957 = vld [vmem:[#allocation2 + $0xa9] sm:$0xff]
    %v2958 = vld [vmem:[#allocation2 + $0xb1] sm:$0xff]
    %v2959 = vld [vmem:[#allocation2 + $0xb9] sm:$0xff]
    %v2960 = vld [vmem:[#allocation2 + $0xc1] sm:$0xff]
    %v2961 = vld [vmem:[#allocation2 + $0xc9] sm:$0xff]
    %v2962 = vld [vmem:[#allocation2 + $0xd1] sm:$0xff]
    %v2963 = vld [vmem:[#allocation2 + $0xd9] sm:$0xff]
    %v2964 = vld [vmem:[#allocation2 + $0xe1] sm:$0xff]
    %v2965 = vld [vmem:[#allocation2 + $0xe9] sm:$0xff]
    %2994 = vrot.lane.b32.xlu0 %v2938, 64
    %v2995 = vpop.permute.xlu0 %2994
    %2996 = vrot.lane.b32.xlu0 %v2939, 64
    %v2997 = vpop.permute.xlu0 %2996
    %2998 = vrot.lane.b32.xlu0 %v2940, 64
    %v2999 = vpop.permute.xlu0 %2998
    %3000 = vrot.lane.b32.xlu0 %v2941, 64
    %v3001 = vpop.permute.xlu0 %3000
    %3002 = vrot.lane.b32.xlu0 %v2942, 64
    %v3003 = vpop.permute.xlu0 %3002
    %3004 = vrot.lane.b32.xlu0 %v2943, 64
    %v3005 = vpop.permute.xlu0 %3004
    %3006 = vrot.lane.b32.xlu0 %v2944, 64
    %v3007 = vpop.permute.xlu0 %3006
    %3008 = vrot.lane.b32.xlu0 %v2945, 64
    %v3009 = vpop.permute.xlu0 %3008
    %3010 = vrot.lane.b32.xlu0 %v2946, 64
    %v3011 = vpop.permute.xlu0 %3010
    %3012 = vrot.lane.b32.xlu0 %v2947, 64
    %v3013 = vpop.permute.xlu0 %3012
    %3014 = vrot.lane.b32.xlu0 %v2948, 64
    %v3015 = vpop.permute.xlu0 %3014
    %3016 = vrot.lane.b32.xlu0 %v2949, 64
    %v3017 = vpop.permute.xlu0 %3016
    %3018 = vrot.lane.b32.xlu0 %v2950, 64
    %v3019 = vpop.permute.xlu0 %3018
    %3020 = vrot.lane.b32.xlu0 %v2951, 64
    %v3021 = vpop.permute.xlu0 %3020
    %3022 = vrot.lane.b32.xlu0 %v2952, 64
    %v3023 = vpop.permute.xlu0 %3022
    %3024 = vrot.lane.b32.xlu0 %v2953, 64
    %v3025 = vpop.permute.xlu0 %3024
    %3026 = vrot.lane.b32.xlu0 %v2954, 64
    %v3027 = vpop.permute.xlu0 %3026
    %3028 = vrot.lane.b32.xlu0 %v2955, 64
    %v3029 = vpop.permute.xlu0 %3028
    %3030 = vrot.lane.b32.xlu0 %v2956, 64
    %v3031 = vpop.permute.xlu0 %3030
    %3032 = vrot.lane.b32.xlu0 %v2957, 64
    %v3033 = vpop.permute.xlu0 %3032
    %3034 = vrot.lane.b32.xlu0 %v2958, 64
    %v3035 = vpop.permute.xlu0 %3034
    %3036 = vrot.lane.b32.xlu0 %v2959, 64
    %v3037 = vpop.permute.xlu0 %3036
    %3038 = vrot.lane.b32.xlu0 %v2960, 64
    %v3039 = vpop.permute.xlu0 %3038
    %3040 = vrot.lane.b32.xlu0 %v2961, 64
    %v3041 = vpop.permute.xlu0 %3040
    %3042 = vrot.lane.b32.xlu0 %v2962, 64
    %v3043 = vpop.permute.xlu0 %3042
    %3044 = vrot.lane.b32.xlu0 %v2963, 64
    %v3045 = vpop.permute.xlu0 %3044
    %3046 = vrot.lane.b32.xlu0 %v2964, 64
    %v3047 = vpop.permute.xlu0 %3046
    %3048 = vrot.lane.b32.xlu0 %v2965, 64
    %v3049 = vpop.permute.xlu0 %3048
    %vm3078 = vcmask 654848
    %3079 = vst.msk [vmem:[#allocation3] sm:$0xff] %vm3078, %v2995
    %3080 = vst.msk [vmem:[#allocation3 + $0x10] sm:$0xff] %vm3078, %v2997
    %3081 = vst.msk [vmem:[#allocation3 + $0x20] sm:$0xff] %vm3078, %v2999
    %3082 = vst.msk [vmem:[#allocation3 + $0x30] sm:$0xff] %vm3078, %v3001
    %3083 = vst.msk [vmem:[#allocation3 + $0x40] sm:$0xff] %vm3078, %v3003
    %3084 = vst.msk [vmem:[#allocation3 + $0x50] sm:$0xff] %vm3078, %v3005
    %3085 = vst.msk [vmem:[#allocation3 + $0x60] sm:$0xff] %vm3078, %v3007
    %3086 = vst.msk [vmem:[#allocation3 + $0x70] sm:$0xff] %vm3078, %v3009
    %3087 = vst.msk [vmem:[#allocation3 + $0x80] sm:$0xff] %vm3078, %v3011
    %3088 = vst.msk [vmem:[#allocation3 + $0x90] sm:$0xff] %vm3078, %v3013
    %3089 = vst.msk [vmem:[#allocation3 + $0xa0] sm:$0xff] %vm3078, %v3015
    %3090 = vst.msk [vmem:[#allocation3 + $0xb0] sm:$0xff] %vm3078, %v3017
    %3091 = vst.msk [vmem:[#allocation3 + $0xc0] sm:$0xff] %vm3078, %v3019
    %3092 = vst.msk [vmem:[#allocation3 + $0xd0] sm:$0xff] %vm3078, %v3021
    %3093 = vst.msk [vmem:[#allocation3 + $0xe0] sm:$0xff] %vm3078, %v3023
    %3094 = vst.msk [vmem:[#allocation3 + $0xf0] sm:$0xff] %vm3078, %v3025
    %3095 = vst.msk [vmem:[#allocation3 + $0x100] sm:$0xff] %vm3078, %v3027
    %3096 = vst.msk [vmem:[#allocation3 + $0x110] sm:$0xff] %vm3078, %v3029
    %3097 = vst.msk [vmem:[#allocation3 + $0x120] sm:$0xff] %vm3078, %v3031
    %3098 = vst.msk [vmem:[#allocation3 + $0x130] sm:$0xff] %vm3078, %v3033
    %3099 = vst.msk [vmem:[#allocation3 + $0x140] sm:$0xff] %vm3078, %v3035
    %3100 = vst.msk [vmem:[#allocation3 + $0x150] sm:$0xff] %vm3078, %v3037
    %3101 = vst.msk [vmem:[#allocation3 + $0x160] sm:$0xff] %vm3078, %v3039
    %3102 = vst.msk [vmem:[#allocation3 + $0x170] sm:$0xff] %vm3078, %v3041
    %3103 = vst.msk [vmem:[#allocation3 + $0x180] sm:$0xff] %vm3078, %v3043
    %3104 = vst.msk [vmem:[#allocation3 + $0x190] sm:$0xff] %vm3078, %v3045
    %3105 = vst.msk [vmem:[#allocation3 + $0x1a0] sm:$0xff] %vm3078, %v3047
    %3106 = vst.msk [vmem:[#allocation3 + $0x1b0] sm:$0xff] %vm3078, %v3049
    %v3107 = vld [vmem:[#allocation2 + $0x12] sm:$0xff]
    %v3108 = vld [vmem:[#allocation2 + $0x1a] sm:$0xff]
    %v3109 = vld [vmem:[#allocation2 + $0x22] sm:$0xff]
    %v3110 = vld [vmem:[#allocation2 + $0x2a] sm:$0xff]
    %v3111 = vld [vmem:[#allocation2 + $0x32] sm:$0xff]
    %v3112 = vld [vmem:[#allocation2 + $0x3a] sm:$0xff]
    %v3113 = vld [vmem:[#allocation2 + $0x42] sm:$0xff]
    %v3114 = vld [vmem:[#allocation2 + $0x4a] sm:$0xff]
    %v3115 = vld [vmem:[#allocation2 + $0x52] sm:$0xff]
    %v3116 = vld [vmem:[#allocation2 + $0x5a] sm:$0xff]
    %v3117 = vld [vmem:[#allocation2 + $0x62] sm:$0xff]
    %v3118 = vld [vmem:[#allocation2 + $0x6a] sm:$0xff]
    %v3119 = vld [vmem:[#allocation2 + $0x72] sm:$0xff]
    %v3120 = vld [vmem:[#allocation2 + $0x7a] sm:$0xff]
    %v3121 = vld [vmem:[#allocation2 + $0x82] sm:$0xff]
    %v3122 = vld [vmem:[#allocation2 + $0x8a] sm:$0xff]
    %v3123 = vld [vmem:[#allocation2 + $0x92] sm:$0xff]
    %v3124 = vld [vmem:[#allocation2 + $0x9a] sm:$0xff]
    %v3125 = vld [vmem:[#allocation2 + $0xa2] sm:$0xff]
    %v3126 = vld [vmem:[#allocation2 + $0xaa] sm:$0xff]
    %v3127 = vld [vmem:[#allocation2 + $0xb2] sm:$0xff]
    %v3128 = vld [vmem:[#allocation2 + $0xba] sm:$0xff]
    %v3129 = vld [vmem:[#allocation2 + $0xc2] sm:$0xff]
    %v3130 = vld [vmem:[#allocation2 + $0xca] sm:$0xff]
    %v3131 = vld [vmem:[#allocation2 + $0xd2] sm:$0xff]
    %v3132 = vld [vmem:[#allocation2 + $0xda] sm:$0xff]
    %v3133 = vld [vmem:[#allocation2 + $0xe2] sm:$0xff]
    %v3134 = vld [vmem:[#allocation2 + $0xea] sm:$0xff]
    %3163 = vrot.lane.b32.xlu0 %v3107, 80
    %v3164 = vpop.permute.xlu0 %3163
    %3165 = vrot.lane.b32.xlu0 %v3108, 80
    %v3166 = vpop.permute.xlu0 %3165
    %3167 = vrot.lane.b32.xlu0 %v3109, 80
    %v3168 = vpop.permute.xlu0 %3167
    %3169 = vrot.lane.b32.xlu0 %v3110, 80
    %v3170 = vpop.permute.xlu0 %3169
    %3171 = vrot.lane.b32.xlu0 %v3111, 80
    %v3172 = vpop.permute.xlu0 %3171
    %3173 = vrot.lane.b32.xlu0 %v3112, 80
    %v3174 = vpop.permute.xlu0 %3173
    %3175 = vrot.lane.b32.xlu0 %v3113, 80
    %v3176 = vpop.permute.xlu0 %3175
    %3177 = vrot.lane.b32.xlu0 %v3114, 80
    %v3178 = vpop.permute.xlu0 %3177
    %3179 = vrot.lane.b32.xlu0 %v3115, 80
    %v3180 = vpop.permute.xlu0 %3179
    %3181 = vrot.lane.b32.xlu0 %v3116, 80
    %v3182 = vpop.permute.xlu0 %3181
    %3183 = vrot.lane.b32.xlu0 %v3117, 80
    %v3184 = vpop.permute.xlu0 %3183
    %3185 = vrot.lane.b32.xlu0 %v3118, 80
    %v3186 = vpop.permute.xlu0 %3185
    %3187 = vrot.lane.b32.xlu0 %v3119, 80
    %v3188 = vpop.permute.xlu0 %3187
    %3189 = vrot.lane.b32.xlu0 %v3120, 80
    %v3190 = vpop.permute.xlu0 %3189
    %3191 = vrot.lane.b32.xlu0 %v3121, 80
    %v3192 = vpop.permute.xlu0 %3191
    %3193 = vrot.lane.b32.xlu0 %v3122, 80
    %v3194 = vpop.permute.xlu0 %3193
    %3195 = vrot.lane.b32.xlu0 %v3123, 80
    %v3196 = vpop.permute.xlu0 %3195
    %3197 = vrot.lane.b32.xlu0 %v3124, 80
    %v3198 = vpop.permute.xlu0 %3197
    %3199 = vrot.lane.b32.xlu0 %v3125, 80
    %v3200 = vpop.permute.xlu0 %3199
    %3201 = vrot.lane.b32.xlu0 %v3126, 80
    %v3202 = vpop.permute.xlu0 %3201
    %3203 = vrot.lane.b32.xlu0 %v3127, 80
    %v3204 = vpop.permute.xlu0 %3203
    %3205 = vrot.lane.b32.xlu0 %v3128, 80
    %v3206 = vpop.permute.xlu0 %3205
    %3207 = vrot.lane.b32.xlu0 %v3129, 80
    %v3208 = vpop.permute.xlu0 %3207
    %3209 = vrot.lane.b32.xlu0 %v3130, 80
    %v3210 = vpop.permute.xlu0 %3209
    %3211 = vrot.lane.b32.xlu0 %v3131, 80
    %v3212 = vpop.permute.xlu0 %3211
    %3213 = vrot.lane.b32.xlu0 %v3132, 80
    %v3214 = vpop.permute.xlu0 %3213
    %3215 = vrot.lane.b32.xlu0 %v3133, 80
    %v3216 = vpop.permute.xlu0 %3215
    %3217 = vrot.lane.b32.xlu0 %v3134, 80
    %v3218 = vpop.permute.xlu0 %3217
    %vm3247 = vcmask 786048
    %3248 = vst.msk [vmem:[#allocation3] sm:$0xff] %vm3247, %v3164
    %3249 = vst.msk [vmem:[#allocation3 + $0x10] sm:$0xff] %vm3247, %v3166
    %3250 = vst.msk [vmem:[#allocation3 + $0x20] sm:$0xff] %vm3247, %v3168
    %3251 = vst.msk [vmem:[#allocation3 + $0x30] sm:$0xff] %vm3247, %v3170
    %3252 = vst.msk [vmem:[#allocation3 + $0x40] sm:$0xff] %vm3247, %v3172
    %3253 = vst.msk [vmem:[#allocation3 + $0x50] sm:$0xff] %vm3247, %v3174
    %3254 = vst.msk [vmem:[#allocation3 + $0x60] sm:$0xff] %vm3247, %v3176
    %3255 = vst.msk [vmem:[#allocation3 + $0x70] sm:$0xff] %vm3247, %v3178
    %3256 = vst.msk [vmem:[#allocation3 + $0x80] sm:$0xff] %vm3247, %v3180
    %3257 = vst.msk [vmem:[#allocation3 + $0x90] sm:$0xff] %vm3247, %v3182
    %3258 = vst.msk [vmem:[#allocation3 + $0xa0] sm:$0xff] %vm3247, %v3184
    %3259 = vst.msk [vmem:[#allocation3 + $0xb0] sm:$0xff] %vm3247, %v3186
    %3260 = vst.msk [vmem:[#allocation3 + $0xc0] sm:$0xff] %vm3247, %v3188
    %3261 = vst.msk [vmem:[#allocation3 + $0xd0] sm:$0xff] %vm3247, %v3190
    %3262 = vst.msk [vmem:[#allocation3 + $0xe0] sm:$0xff] %vm3247, %v3192
    %3263 = vst.msk [vmem:[#allocation3 + $0xf0] sm:$0xff] %vm3247, %v3194
    %3264 = vst.msk [vmem:[#allocation3 + $0x100] sm:$0xff] %vm3247, %v3196
    %3265 = vst.msk [vmem:[#allocation3 + $0x110] sm:$0xff] %vm3247, %v3198
    %3266 = vst.msk [vmem:[#allocation3 + $0x120] sm:$0xff] %vm3247, %v3200
    %3267 = vst.msk [vmem:[#allocation3 + $0x130] sm:$0xff] %vm3247, %v3202
    %3268 = vst.msk [vmem:[#allocation3 + $0x140] sm:$0xff] %vm3247, %v3204
    %3269 = vst.msk [vmem:[#allocation3 + $0x150] sm:$0xff] %vm3247, %v3206
    %3270 = vst.msk [vmem:[#allocation3 + $0x160] sm:$0xff] %vm3247, %v3208
    %3271 = vst.msk [vmem:[#allocation3 + $0x170] sm:$0xff] %vm3247, %v3210
    %3272 = vst.msk [vmem:[#allocation3 + $0x180] sm:$0xff] %vm3247, %v3212
    %3273 = vst.msk [vmem:[#allocation3 + $0x190] sm:$0xff] %vm3247, %v3214
    %3274 = vst.msk [vmem:[#allocation3 + $0x1a0] sm:$0xff] %vm3247, %v3216
    %3275 = vst.msk [vmem:[#allocation3 + $0x1b0] sm:$0xff] %vm3247, %v3218
    %v3276 = vld [vmem:[#allocation2 + $0x20] sm:$0xff]
    %v3277 = vld [vmem:[#allocation2 + $0x28] sm:$0xff]
    %v3278 = vld [vmem:[#allocation2 + $0x30] sm:$0xff]
    %v3279 = vld [vmem:[#allocation2 + $0x38] sm:$0xff]
    %v3280 = vld [vmem:[#allocation2 + $0x40] sm:$0xff]
    %v3281 = vld [vmem:[#allocation2 + $0x48] sm:$0xff]
    %v3282 = vld [vmem:[#allocation2 + $0x50] sm:$0xff]
    %v3283 = vld [vmem:[#allocation2 + $0x58] sm:$0xff]
    %v3284 = vld [vmem:[#allocation2 + $0x60] sm:$0xff]
    %v3285 = vld [vmem:[#allocation2 + $0x68] sm:$0xff]
    %v3286 = vld [vmem:[#allocation2 + $0x70] sm:$0xff]
    %v3287 = vld [vmem:[#allocation2 + $0x78] sm:$0xff]
    %v3288 = vld [vmem:[#allocation2 + $0x80] sm:$0xff]
    %v3289 = vld [vmem:[#allocation2 + $0x88] sm:$0xff]
    %v3290 = vld [vmem:[#allocation2 + $0x90] sm:$0xff]
    %v3291 = vld [vmem:[#allocation2 + $0x98] sm:$0xff]
    %v3292 = vld [vmem:[#allocation2 + $0xa0] sm:$0xff]
    %v3293 = vld [vmem:[#allocation2 + $0xa8] sm:$0xff]
    %v3294 = vld [vmem:[#allocation2 + $0xb0] sm:$0xff]
    %v3295 = vld [vmem:[#allocation2 + $0xb8] sm:$0xff]
    %v3296 = vld [vmem:[#allocation2 + $0xc0] sm:$0xff]
    %v3297 = vld [vmem:[#allocation2 + $0xc8] sm:$0xff]
    %v3298 = vld [vmem:[#allocation2 + $0xd0] sm:$0xff]
    %v3299 = vld [vmem:[#allocation2 + $0xd8] sm:$0xff]
    %v3300 = vld [vmem:[#allocation2 + $0xe0] sm:$0xff]
    %v3301 = vld [vmem:[#allocation2 + $0xe8] sm:$0xff]
    %v3302 = vld [vmem:[#allocation2 + $0xf0] sm:$0xff]
    %v3303 = vld [vmem:[#allocation2 + $0xf8] sm:$0xff]
    %3332 = vrot.lane.b32.xlu0 %v3276, 96
    %v3333 = vpop.permute.xlu0 %3332
    %3334 = vrot.lane.b32.xlu0 %v3277, 96
    %v3335 = vpop.permute.xlu0 %3334
    %3336 = vrot.lane.b32.xlu0 %v3278, 96
    %v3337 = vpop.permute.xlu0 %3336
    %3338 = vrot.lane.b32.xlu0 %v3279, 96
    %v3339 = vpop.permute.xlu0 %3338
    %3340 = vrot.lane.b32.xlu0 %v3280, 96
    %v3341 = vpop.permute.xlu0 %3340
    %3342 = vrot.lane.b32.xlu0 %v3281, 96
    %v3343 = vpop.permute.xlu0 %3342
    %3344 = vrot.lane.b32.xlu0 %v3282, 96
    %v3345 = vpop.permute.xlu0 %3344
    %3346 = vrot.lane.b32.xlu0 %v3283, 96
    %v3347 = vpop.permute.xlu0 %3346
    %3348 = vrot.lane.b32.xlu0 %v3284, 96
    %v3349 = vpop.permute.xlu0 %3348
    %3350 = vrot.lane.b32.xlu0 %v3285, 96
    %v3351 = vpop.permute.xlu0 %3350
    %3352 = vrot.lane.b32.xlu0 %v3286, 96
    %v3353 = vpop.permute.xlu0 %3352
    %3354 = vrot.lane.b32.xlu0 %v3287, 96
    %v3355 = vpop.permute.xlu0 %3354
    %3356 = vrot.lane.b32.xlu0 %v3288, 96
    %v3357 = vpop.permute.xlu0 %3356
    %3358 = vrot.lane.b32.xlu0 %v3289, 96
    %v3359 = vpop.permute.xlu0 %3358
    %3360 = vrot.lane.b32.xlu0 %v3290, 96
    %v3361 = vpop.permute.xlu0 %3360
    %3362 = vrot.lane.b32.xlu0 %v3291, 96
    %v3363 = vpop.permute.xlu0 %3362
    %3364 = vrot.lane.b32.xlu0 %v3292, 96
    %v3365 = vpop.permute.xlu0 %3364
    %3366 = vrot.lane.b32.xlu0 %v3293, 96
    %v3367 = vpop.permute.xlu0 %3366
    %3368 = vrot.lane.b32.xlu0 %v3294, 96
    %v3369 = vpop.permute.xlu0 %3368
    %3370 = vrot.lane.b32.xlu0 %v3295, 96
    %v3371 = vpop.permute.xlu0 %3370
    %3372 = vrot.lane.b32.xlu0 %v3296, 96
    %v3373 = vpop.permute.xlu0 %3372
    %3374 = vrot.lane.b32.xlu0 %v3297, 96
    %v3375 = vpop.permute.xlu0 %3374
    %3376 = vrot.lane.b32.xlu0 %v3298, 96
    %v3377 = vpop.permute.xlu0 %3376
    %3378 = vrot.lane.b32.xlu0 %v3299, 96
    %v3379 = vpop.permute.xlu0 %3378
    %3380 = vrot.lane.b32.xlu0 %v3300, 96
    %v3381 = vpop.permute.xlu0 %3380
    %3382 = vrot.lane.b32.xlu0 %v3301, 96
    %v3383 = vpop.permute.xlu0 %3382
    %3384 = vrot.lane.b32.xlu0 %v3302, 96
    %v3385 = vpop.permute.xlu0 %3384
    %3386 = vrot.lane.b32.xlu0 %v3303, 96
    %v3387 = vpop.permute.xlu0 %3386
    %vm3416 = vcmask 917248
    %3417 = vst.msk [vmem:[#allocation3] sm:$0xff] %vm3416, %v3333
    %3418 = vst.msk [vmem:[#allocation3 + $0x10] sm:$0xff] %vm3416, %v3335
    %3419 = vst.msk [vmem:[#allocation3 + $0x20] sm:$0xff] %vm3416, %v3337
    %3420 = vst.msk [vmem:[#allocation3 + $0x30] sm:$0xff] %vm3416, %v3339
    %3421 = vst.msk [vmem:[#allocation3 + $0x40] sm:$0xff] %vm3416, %v3341
    %3422 = vst.msk [vmem:[#allocation3 + $0x50] sm:$0xff] %vm3416, %v3343
    %3423 = vst.msk [vmem:[#allocation3 + $0x60] sm:$0xff] %vm3416, %v3345
    %3424 = vst.msk [vmem:[#allocation3 + $0x70] sm:$0xff] %vm3416, %v3347
    %3425 = vst.msk [vmem:[#allocation3 + $0x80] sm:$0xff] %vm3416, %v3349
    %3426 = vst.msk [vmem:[#allocation3 + $0x90] sm:$0xff] %vm3416, %v3351
    %3427 = vst.msk [vmem:[#allocation3 + $0xa0] sm:$0xff] %vm3416, %v3353
    %3428 = vst.msk [vmem:[#allocation3 + $0xb0] sm:$0xff] %vm3416, %v3355
    %3429 = vst.msk [vmem:[#allocation3 + $0xc0] sm:$0xff] %vm3416, %v3357
    %3430 = vst.msk [vmem:[#allocation3 + $0xd0] sm:$0xff] %vm3416, %v3359
    %3431 = vst.msk [vmem:[#allocation3 + $0xe0] sm:$0xff] %vm3416, %v3361
    %3432 = vst.msk [vmem:[#allocation3 + $0xf0] sm:$0xff] %vm3416, %v3363
    %3433 = vst.msk [vmem:[#allocation3 + $0x100] sm:$0xff] %vm3416, %v3365
    %3434 = vst.msk [vmem:[#allocation3 + $0x110] sm:$0xff] %vm3416, %v3367
    %3435 = vst.msk [vmem:[#allocation3 + $0x120] sm:$0xff] %vm3416, %v3369
    %3436 = vst.msk [vmem:[#allocation3 + $0x130] sm:$0xff] %vm3416, %v3371
    %3437 = vst.msk [vmem:[#allocation3 + $0x140] sm:$0xff] %vm3416, %v3373
    %3438 = vst.msk [vmem:[#allocation3 + $0x150] sm:$0xff] %vm3416, %v3375
    %3439 = vst.msk [vmem:[#allocation3 + $0x160] sm:$0xff] %vm3416, %v3377
    %3440 = vst.msk [vmem:[#allocation3 + $0x170] sm:$0xff] %vm3416, %v3379
    %3441 = vst.msk [vmem:[#allocation3 + $0x180] sm:$0xff] %vm3416, %v3381
    %3442 = vst.msk [vmem:[#allocation3 + $0x190] sm:$0xff] %vm3416, %v3383
    %3443 = vst.msk [vmem:[#allocation3 + $0x1a0] sm:$0xff] %vm3416, %v3385
    %3444 = vst.msk [vmem:[#allocation3 + $0x1b0] sm:$0xff] %vm3416, %v3387
    %v3445 = vld [vmem:[#allocation2 + $0x21] sm:$0xff]
    %v3446 = vld [vmem:[#allocation2 + $0x29] sm:$0xff]
    %v3447 = vld [vmem:[#allocation2 + $0x31] sm:$0xff]
    %v3448 = vld [vmem:[#allocation2 + $0x39] sm:$0xff]
    %v3449 = vld [vmem:[#allocation2 + $0x41] sm:$0xff]
    %v3450 = vld [vmem:[#allocation2 + $0x49] sm:$0xff]
    %v3451 = vld [vmem:[#allocation2 + $0x51] sm:$0xff]
    %v3452 = vld [vmem:[#allocation2 + $0x59] sm:$0xff]
    %v3453 = vld [vmem:[#allocation2 + $0x61] sm:$0xff]
    %v3454 = vld [vmem:[#allocation2 + $0x69] sm:$0xff]
    %v3455 = vld [vmem:[#allocation2 + $0x71] sm:$0xff]
    %v3456 = vld [vmem:[#allocation2 + $0x79] sm:$0xff]
    %v3457 = vld [vmem:[#allocation2 + $0x81] sm:$0xff]
    %v3458 = vld [vmem:[#allocation2 + $0x89] sm:$0xff]
    %v3459 = vld [vmem:[#allocation2 + $0x91] sm:$0xff]
    %v3460 = vld [vmem:[#allocation2 + $0x99] sm:$0xff]
    %v3461 = vld [vmem:[#allocation2 + $0xa1] sm:$0xff]
    %v3462 = vld [vmem:[#allocation2 + $0xa9] sm:$0xff]
    %v3463 = vld [vmem:[#allocation2 + $0xb1] sm:$0xff]
    %v3464 = vld [vmem:[#allocation2 + $0xb9] sm:$0xff]
    %v3465 = vld [vmem:[#allocation2 + $0xc1] sm:$0xff]
    %v3466 = vld [vmem:[#allocation2 + $0xc9] sm:$0xff]
    %v3467 = vld [vmem:[#allocation2 + $0xd1] sm:$0xff]
    %v3468 = vld [vmem:[#allocation2 + $0xd9] sm:$0xff]
    %v3469 = vld [vmem:[#allocation2 + $0xe1] sm:$0xff]
    %v3470 = vld [vmem:[#allocation2 + $0xe9] sm:$0xff]
    %v3471 = vld [vmem:[#allocation2 + $0xf1] sm:$0xff]
    %v3472 = vld [vmem:[#allocation2 + $0xf9] sm:$0xff]
    %3501 = vrot.lane.b32.xlu0 %v3445, 112
    %v3502 = vpop.permute.xlu0 %3501
    %3503 = vrot.lane.b32.xlu0 %v3446, 112
    %v3504 = vpop.permute.xlu0 %3503
    %3505 = vrot.lane.b32.xlu0 %v3447, 112
    %v3506 = vpop.permute.xlu0 %3505
    %3507 = vrot.lane.b32.xlu0 %v3448, 112
    %v3508 = vpop.permute.xlu0 %3507
    %3509 = vrot.lane.b32.xlu0 %v3449, 112
    %v3510 = vpop.permute.xlu0 %3509
    %3511 = vrot.lane.b32.xlu0 %v3450, 112
    %v3512 = vpop.permute.xlu0 %3511
    %3513 = vrot.lane.b32.xlu0 %v3451, 112
    %v3514 = vpop.permute.xlu0 %3513
    %3515 = vrot.lane.b32.xlu0 %v3452, 112
    %v3516 = vpop.permute.xlu0 %3515
    %3517 = vrot.lane.b32.xlu0 %v3453, 112
    %v3518 = vpop.permute.xlu0 %3517
    %3519 = vrot.lane.b32.xlu0 %v3454, 112
    %v3520 = vpop.permute.xlu0 %3519
    %3521 = vrot.lane.b32.xlu0 %v3455, 112
    %v3522 = vpop.permute.xlu0 %3521
    %3523 = vrot.lane.b32.xlu0 %v3456, 112
    %v3524 = vpop.permute.xlu0 %3523
    %3525 = vrot.lane.b32.xlu0 %v3457, 112
    %v3526 = vpop.permute.xlu0 %3525
    %3527 = vrot.lane.b32.xlu0 %v3458, 112
    %v3528 = vpop.permute.xlu0 %3527
    %3529 = vrot.lane.b32.xlu0 %v3459, 112
    %v3530 = vpop.permute.xlu0 %3529
    %3531 = vrot.lane.b32.xlu0 %v3460, 112
    %v3532 = vpop.permute.xlu0 %3531
    %3533 = vrot.lane.b32.xlu0 %v3461, 112
    %v3534 = vpop.permute.xlu0 %3533
    %3535 = vrot.lane.b32.xlu0 %v3462, 112
    %v3536 = vpop.permute.xlu0 %3535
    %3537 = vrot.lane.b32.xlu0 %v3463, 112
    %v3538 = vpop.permute.xlu0 %3537
    %3539 = vrot.lane.b32.xlu0 %v3464, 112
    %v3540 = vpop.permute.xlu0 %3539
    %3541 = vrot.lane.b32.xlu0 %v3465, 112
    %v3542 = vpop.permute.xlu0 %3541
    %3543 = vrot.lane.b32.xlu0 %v3466, 112
    %v3544 = vpop.permute.xlu0 %3543
    %3545 = vrot.lane.b32.xlu0 %v3467, 112
    %v3546 = vpop.permute.xlu0 %3545
    %3547 = vrot.lane.b32.xlu0 %v3468, 112
    %v3548 = vpop.permute.xlu0 %3547
    %3549 = vrot.lane.b32.xlu0 %v3469, 112
    %v3550 = vpop.permute.xlu0 %3549
    %3551 = vrot.lane.b32.xlu0 %v3470, 112
    %v3552 = vpop.permute.xlu0 %3551
    %3553 = vrot.lane.b32.xlu0 %v3471, 112
    %v3554 = vpop.permute.xlu0 %3553
    %3555 = vrot.lane.b32.xlu0 %v3472, 112
    %v3556 = vpop.permute.xlu0 %3555
    %vm3585 = vcmask 1048448
    %3586 = vst.msk [vmem:[#allocation3] sm:$0xff] %vm3585, %v3502
    %3587 = vst.msk [vmem:[#allocation3 + $0x10] sm:$0xff] %vm3585, %v3504
    %3588 = vst.msk [vmem:[#allocation3 + $0x20] sm:$0xff] %vm3585, %v3506
    %3589 = vst.msk [vmem:[#allocation3 + $0x30] sm:$0xff] %vm3585, %v3508
    %3590 = vst.msk [vmem:[#allocation3 + $0x40] sm:$0xff] %vm3585, %v3510
    %3591 = vst.msk [vmem:[#allocation3 + $0x50] sm:$0xff] %vm3585, %v3512
    %3592 = vst.msk [vmem:[#allocation3 + $0x60] sm:$0xff] %vm3585, %v3514
    %3593 = vst.msk [vmem:[#allocation3 + $0x70] sm:$0xff] %vm3585, %v3516
    %3594 = vst.msk [vmem:[#allocation3 + $0x80] sm:$0xff] %vm3585, %v3518
    %3595 = vst.msk [vmem:[#allocation3 + $0x90] sm:$0xff] %vm3585, %v3520
    %3596 = vst.msk [vmem:[#allocation3 + $0xa0] sm:$0xff] %vm3585, %v3522
    %3597 = vst.msk [vmem:[#allocation3 + $0xb0] sm:$0xff] %vm3585, %v3524
    %3598 = vst.msk [vmem:[#allocation3 + $0xc0] sm:$0xff] %vm3585, %v3526
    %3599 = vst.msk [vmem:[#allocation3 + $0xd0] sm:$0xff] %vm3585, %v3528
    %3600 = vst.msk [vmem:[#allocation3 + $0xe0] sm:$0xff] %vm3585, %v3530
    %3601 = vst.msk [vmem:[#allocation3 + $0xf0] sm:$0xff] %vm3585, %v3532
    %3602 = vst.msk [vmem:[#allocation3 + $0x100] sm:$0xff] %vm3585, %v3534
    %3603 = vst.msk [vmem:[#allocation3 + $0x110] sm:$0xff] %vm3585, %v3536
    %3604 = vst.msk [vmem:[#allocation3 + $0x120] sm:$0xff] %vm3585, %v3538
    %3605 = vst.msk [vmem:[#allocation3 + $0x130] sm:$0xff] %vm3585, %v3540
    %3606 = vst.msk [vmem:[#allocation3 + $0x140] sm:$0xff] %vm3585, %v3542
    %3607 = vst.msk [vmem:[#allocation3 + $0x150] sm:$0xff] %vm3585, %v3544
    %3608 = vst.msk [vmem:[#allocation3 + $0x160] sm:$0xff] %vm3585, %v3546
    %3609 = vst.msk [vmem:[#allocation3 + $0x170] sm:$0xff] %vm3585, %v3548
    %3610 = vst.msk [vmem:[#allocation3 + $0x180] sm:$0xff] %vm3585, %v3550
    %3611 = vst.msk [vmem:[#allocation3 + $0x190] sm:$0xff] %vm3585, %v3552
    %3612 = vst.msk [vmem:[#allocation3 + $0x1a0] sm:$0xff] %vm3585, %v3554
    %3613 = vst.msk [vmem:[#allocation3 + $0x1b0] sm:$0xff] %vm3585, %v3556
    %v3614 = vld [vmem:[#allocation2 + $0x22] sm:$0xff]
    %v3615 = vld [vmem:[#allocation2 + $0x2a] sm:$0xff]
    %v3616 = vld [vmem:[#allocation2 + $0x32] sm:$0xff]
    %v3617 = vld [vmem:[#allocation2 + $0x3a] sm:$0xff]
    %v3618 = vld [vmem:[#allocation2 + $0x42] sm:$0xff]
    %v3619 = vld [vmem:[#allocation2 + $0x4a] sm:$0xff]
    %v3620 = vld [vmem:[#allocation2 + $0x52] sm:$0xff]
    %v3621 = vld [vmem:[#allocation2 + $0x5a] sm:$0xff]
    %v3622 = vld [vmem:[#allocation2 + $0x62] sm:$0xff]
    %v3623 = vld [vmem:[#allocation2 + $0x6a] sm:$0xff]
    %v3624 = vld [vmem:[#allocation2 + $0x72] sm:$0xff]
    %v3625 = vld [vmem:[#allocation2 + $0x7a] sm:$0xff]
    %v3626 = vld [vmem:[#allocation2 + $0x82] sm:$0xff]
    %v3627 = vld [vmem:[#allocation2 + $0x8a] sm:$0xff]
    %v3628 = vld [vmem:[#allocation2 + $0x92] sm:$0xff]
    %v3629 = vld [vmem:[#allocation2 + $0x9a] sm:$0xff]
    %v3630 = vld [vmem:[#allocation2 + $0xa2] sm:$0xff]
    %v3631 = vld [vmem:[#allocation2 + $0xaa] sm:$0xff]
    %v3632 = vld [vmem:[#allocation2 + $0xb2] sm:$0xff]
    %v3633 = vld [vmem:[#allocation2 + $0xba] sm:$0xff]
    %v3634 = vld [vmem:[#allocation2 + $0xc2] sm:$0xff]
    %v3635 = vld [vmem:[#allocation2 + $0xca] sm:$0xff]
    %v3636 = vld [vmem:[#allocation2 + $0xd2] sm:$0xff]
    %v3637 = vld [vmem:[#allocation2 + $0xda] sm:$0xff]
    %v3638 = vld [vmem:[#allocation2 + $0xe2] sm:$0xff]
    %v3639 = vld [vmem:[#allocation2 + $0xea] sm:$0xff]
    %v3640 = vld [vmem:[#allocation2 + $0xf2] sm:$0xff]
    %v3641 = vld [vmem:[#allocation2 + $0xfa] sm:$0xff]
    %3642 = vst.msk [vmem:[#allocation3 + $0x8] sm:$0xff] %vm49, %v3614
    %3643 = vst.msk [vmem:[#allocation3 + $0x18] sm:$0xff] %vm49, %v3615
    %3644 = vst.msk [vmem:[#allocation3 + $0x28] sm:$0xff] %vm49, %v3616
    %3645 = vst.msk [vmem:[#allocation3 + $0x38] sm:$0xff] %vm49, %v3617
    %3646 = vst.msk [vmem:[#allocation3 + $0x48] sm:$0xff] %vm49, %v3618
    %3647 = vst.msk [vmem:[#allocation3 + $0x58] sm:$0xff] %vm49, %v3619
    %3648 = vst.msk [vmem:[#allocation3 + $0x68] sm:$0xff] %vm49, %v3620
    %3649 = vst.msk [vmem:[#allocation3 + $0x78] sm:$0xff] %vm49, %v3621
    %3650 = vst.msk [vmem:[#allocation3 + $0x88] sm:$0xff] %vm49, %v3622
    %3651 = vst.msk [vmem:[#allocation3 + $0x98] sm:$0xff] %vm49, %v3623
    %3652 = vst.msk [vmem:[#allocation3 + $0xa8] sm:$0xff] %vm49, %v3624
    %3653 = vst.msk [vmem:[#allocation3 + $0xb8] sm:$0xff] %vm49, %v3625
    %3654 = vst.msk [vmem:[#allocation3 + $0xc8] sm:$0xff] %vm49, %v3626
    %3655 = vst.msk [vmem:[#allocation3 + $0xd8] sm:$0xff] %vm49, %v3627
    %3656 = vst.msk [vmem:[#allocation3 + $0xe8] sm:$0xff] %vm49, %v3628
    %3657 = vst.msk [vmem:[#allocation3 + $0xf8] sm:$0xff] %vm49, %v3629
    %3658 = vst.msk [vmem:[#allocation3 + $0x108] sm:$0xff] %vm49, %v3630
    %3659 = vst.msk [vmem:[#allocation3 + $0x118] sm:$0xff] %vm49, %v3631
    %3660 = vst.msk [vmem:[#allocation3 + $0x128] sm:$0xff] %vm49, %v3632
    %3661 = vst.msk [vmem:[#allocation3 + $0x138] sm:$0xff] %vm49, %v3633
    %3662 = vst.msk [vmem:[#allocation3 + $0x148] sm:$0xff] %vm49, %v3634
    %3663 = vst.msk [vmem:[#allocation3 + $0x158] sm:$0xff] %vm49, %v3635
    %3664 = vst.msk [vmem:[#allocation3 + $0x168] sm:$0xff] %vm49, %v3636
    %3665 = vst.msk [vmem:[#allocation3 + $0x178] sm:$0xff] %vm49, %v3637
    %3666 = vst.msk [vmem:[#allocation3 + $0x188] sm:$0xff] %vm49, %v3638
    %3667 = vst.msk [vmem:[#allocation3 + $0x198] sm:$0xff] %vm49, %v3639
    %3668 = vst.msk [vmem:[#allocation3 + $0x1a8] sm:$0xff] %vm49, %v3640
    %3669 = vst.msk [vmem:[#allocation3 + $0x1b8] sm:$0xff] %vm49, %v3641
    %v3670 = vld [vmem:[#allocation3] sm:$0xff]
    %v3671 = vld [vmem:[#allocation3 + $0x8] sm:$0xff]
    %v3672 = vld [vmem:[#allocation3 + $0x10] sm:$0xff]
    %v3673 = vld [vmem:[#allocation3 + $0x18] sm:$0xff]
    %v3674 = vld [vmem:[#allocation3 + $0x20] sm:$0xff]
    %v3675 = vld [vmem:[#allocation3 + $0x28] sm:$0xff]
    %v3676 = vld [vmem:[#allocation3 + $0x30] sm:$0xff]
    %v3677 = vld [vmem:[#allocation3 + $0x38] sm:$0xff]
    %v3678 = vld [vmem:[#allocation3 + $0x40] sm:$0xff]
    %v3679 = vld [vmem:[#allocation3 + $0x48] sm:$0xff]
    %v3680 = vld [vmem:[#allocation3 + $0x50] sm:$0xff]
    %v3681 = vld [vmem:[#allocation3 + $0x58] sm:$0xff]
    %v3682 = vld [vmem:[#allocation3 + $0x60] sm:$0xff]
    %v3683 = vld [vmem:[#allocation3 + $0x68] sm:$0xff]
    %v3684 = vld [vmem:[#allocation3 + $0x70] sm:$0xff]
    %v3685 = vld [vmem:[#allocation3 + $0x78] sm:$0xff]
    %v3686 = vld [vmem:[#allocation3 + $0x80] sm:$0xff]
    %v3687 = vld [vmem:[#allocation3 + $0x88] sm:$0xff]
    %v3688 = vld [vmem:[#allocation3 + $0x90] sm:$0xff]
    %v3689 = vld [vmem:[#allocation3 + $0x98] sm:$0xff]
    %v3690 = vld [vmem:[#allocation3 + $0xa0] sm:$0xff]
    %v3691 = vld [vmem:[#allocation3 + $0xa8] sm:$0xff]
    %v3692 = vld [vmem:[#allocation3 + $0xb0] sm:$0xff]
    %v3693 = vld [vmem:[#allocation3 + $0xb8] sm:$0xff]
    %v3694 = vld [vmem:[#allocation3 + $0xc0] sm:$0xff]
    %v3695 = vld [vmem:[#allocation3 + $0xc8] sm:$0xff]
    %v3696 = vld [vmem:[#allocation3 + $0xd0] sm:$0xff]
    %v3697 = vld [vmem:[#allocation3 + $0xd8] sm:$0xff]
    %v3698 = vld [vmem:[#allocation3 + $0xe0] sm:$0xff]
    %v3699 = vld [vmem:[#allocation3 + $0xe8] sm:$0xff]
    %v3700 = vld [vmem:[#allocation3 + $0xf0] sm:$0xff]
    %v3701 = vld [vmem:[#allocation3 + $0xf8] sm:$0xff]
    %v3702 = vld [vmem:[#allocation3 + $0x100] sm:$0xff]
    %v3703 = vld [vmem:[#allocation3 + $0x108] sm:$0xff]
    %v3704 = vld [vmem:[#allocation3 + $0x110] sm:$0xff]
    %v3705 = vld [vmem:[#allocation3 + $0x118] sm:$0xff]
    %v3706 = vld [vmem:[#allocation3 + $0x120] sm:$0xff]
    %v3707 = vld [vmem:[#allocation3 + $0x128] sm:$0xff]
    %v3708 = vld [vmem:[#allocation3 + $0x130] sm:$0xff]
    %v3709 = vld [vmem:[#allocation3 + $0x138] sm:$0xff]
    %v3710 = vld [vmem:[#allocation3 + $0x140] sm:$0xff]
    %v3711 = vld [vmem:[#allocation3 + $0x148] sm:$0xff]
    %v3712 = vld [vmem:[#allocation3 + $0x150] sm:$0xff]
    %v3713 = vld [vmem:[#allocation3 + $0x158] sm:$0xff]
    %v3714 = vld [vmem:[#allocation3 + $0x160] sm:$0xff]
    %v3715 = vld [vmem:[#allocation3 + $0x168] sm:$0xff]
    %v3716 = vld [vmem:[#allocation3 + $0x170] sm:$0xff]
    %v3717 = vld [vmem:[#allocation3 + $0x178] sm:$0xff]
    %v3718 = vld [vmem:[#allocation3 + $0x180] sm:$0xff]
    %v3719 = vld [vmem:[#allocation3 + $0x188] sm:$0xff]
    %v3720 = vld [vmem:[#allocation3 + $0x190] sm:$0xff]
    %v3721 = vld [vmem:[#allocation3 + $0x198] sm:$0xff]
    %v3722 = vld [vmem:[#allocation3 + $0x1a0] sm:$0xff]
    %v3723 = vld [vmem:[#allocation3 + $0x1a8] sm:$0xff]
    %v3724 = vld [vmem:[#allocation3 + $0x1b0] sm:$0xff]
    %v3725 = vld [vmem:[#allocation3 + $0x1b8] sm:$0xff]
    %v3726 = vld [vmem:[%s3] sm:$0xff]
    %v3727 = vld [vmem:[%s3 + $0x8] sm:$0xff]
    %v3728 = vld [vmem:[%s3 + $0x10] sm:$0xff]
    %v3729 = vld [vmem:[%s3 + $0x18] sm:$0xff]
    %v3730 = vld [vmem:[%s3 + $0x20] sm:$0xff]
    %v3731 = vld [vmem:[%s3 + $0x28] sm:$0xff]
    %v3732 = vld [vmem:[%s3 + $0x30] sm:$0xff]
    %v3733 = vld [vmem:[%s3 + $0x38] sm:$0xff]
    %v3734 = vld [vmem:[%s3 + $0x40] sm:$0xff]
    %v3735 = vld [vmem:[%s3 + $0x48] sm:$0xff]
    %v3736 = vld [vmem:[%s3 + $0x50] sm:$0xff]
    %v3737 = vld [vmem:[%s3 + $0x58] sm:$0xff]
    %v3738 = vld [vmem:[%s3 + $0x60] sm:$0xff]
    %v3739 = vld [vmem:[%s3 + $0x68] sm:$0xff]
    %v3740 = vld [vmem:[%s3 + $0x70] sm:$0xff]
    %v3741 = vld [vmem:[%s3 + $0x78] sm:$0xff]
    %v3742 = vld [vmem:[%s3 + $0x80] sm:$0xff]
    %v3743 = vld [vmem:[%s3 + $0x88] sm:$0xff]
    %v3745 = vperm.slane %v84, 0
    %v3748 = vsel %vm49, %v3671, 0
    %v3751 = vsel %vm49, %v3673, 0
    %v3754 = vsel %vm49, %v3675, 0
    %v3757 = vsel %vm49, %v3677, 0
    %v3760 = vsel %vm49, %v3679, 0
    %v3763 = vsel %vm49, %v3681, 0
    %v3766 = vsel %vm49, %v3683, 0
    %v3769 = vsel %vm49, %v3685, 0
    %v3772 = vsel %vm49, %v3687, 0
    %v3775 = vsel %vm49, %v3689, 0
    %v3778 = vsel %vm49, %v3691, 0
    %v3781 = vsel %vm49, %v3693, 0
    %v3784 = vsel %vm49, %v3695, 0
    %v3787 = vsel %vm49, %v3697, 0
    %v3790 = vsel %vm49, %v3699, 0
    %v3793 = vsel %vm49, %v3701, 0
    %v3796 = vsel %vm49, %v3703, 0
    %v3799 = vsel %vm49, %v3705, 0
    %v3802 = vsel %vm49, %v3707, 0
    %v3805 = vsel %vm49, %v3709, 0
    %v3808 = vsel %vm49, %v3711, 0
    %v3811 = vsel %vm49, %v3713, 0
    %v3814 = vsel %vm49, %v3715, 0
    %v3817 = vsel %vm49, %v3717, 0
    %v3820 = vsel %vm49, %v3719, 0
    %v3823 = vsel %vm49, %v3721, 0
    %v3826 = vsel %vm49, %v3723, 0
    %v3829 = vsel %vm49, %v3725, 0
    %3831 = vmatpush.msra.mxu0 %v3741
    %3832 = vmatpush.msra.mxu0 %v3740
    %3833 = vmatpush.msra.mxu0 %v3739
    %3834 = vmatpush.msra.mxu0 %v3738
    %3835 = vmatpush.msra.mxu0 %v3737
    %3836 = vmatpush.msra.mxu0 %v3736
    %3837 = vmatpush.msra.mxu0 %v3735
    %3838 = vmatpush.msra.mxu0 %v3734
    %3839 = vmatpush.msra.mxu0 %v3733
    %3840 = vmatpush.msra.mxu0 %v3732
    %3841 = vmatpush.msra.mxu0 %v3731
    %3842 = vmatpush.msra.mxu0 %v3730
    %3843 = vmatpush.msra.mxu0 %v3729
    %3844 = vmatpush.msra.mxu0 %v3728
    %3845 = vmatpush.msra.mxu0 %v3727
    %3846 = vmatpush.msra.mxu0 %v3726
    %3847 = vmatmul.f32.gmra.mxu0 %v3670
    %v3848 = vpop.f32.mrf.mxu0
    %v3849 = vadd.f32 %v3745, %v3848
    %3850 = vmatmul.f32.gmra.mxu0 %v3672
    %v3851 = vpop.f32.mrf.mxu0
    %v3852 = vadd.f32 %v3745, %v3851
    %3853 = vmatmul.f32.gmra.mxu0 %v3674
    %v3854 = vpop.f32.mrf.mxu0
    %v3855 = vadd.f32 %v3745, %v3854
    %3856 = vmatmul.f32.gmra.mxu0 %v3676
    %v3857 = vpop.f32.mrf.mxu0
    %v3858 = vadd.f32 %v3745, %v3857
    %3859 = vmatmul.f32.gmra.mxu0 %v3678
    %v3860 = vpop.f32.mrf.mxu0
    %v3861 = vadd.f32 %v3745, %v3860
    %3862 = vmatmul.f32.gmra.mxu0 %v3680
    %v3863 = vpop.f32.mrf.mxu0
    %v3864 = vadd.f32 %v3745, %v3863
    %3865 = vmatmul.f32.gmra.mxu0 %v3682
    %v3866 = vpop.f32.mrf.mxu0
    %v3867 = vadd.f32 %v3745, %v3866
    %3868 = vmatmul.f32.gmra.mxu0 %v3684
    %v3869 = vpop.f32.mrf.mxu0
    %v3870 = vadd.f32 %v3745, %v3869
    %3871 = vmatmul.f32.gmra.mxu0 %v3686
    %v3872 = vpop.f32.mrf.mxu0
    %v3873 = vadd.f32 %v3745, %v3872
    %3874 = vmatmul.f32.gmra.mxu0 %v3688
    %v3875 = vpop.f32.mrf.mxu0
    %v3876 = vadd.f32 %v3745, %v3875
    %3877 = vmatmul.f32.gmra.mxu0 %v3690
    %v3878 = vpop.f32.mrf.mxu0
    %v3879 = vadd.f32 %v3745, %v3878
    %3880 = vmatmul.f32.gmra.mxu0 %v3692
    %v3881 = vpop.f32.mrf.mxu0
    %v3882 = vadd.f32 %v3745, %v3881
    %3883 = vmatmul.f32.gmra.mxu0 %v3694
    %v3884 = vpop.f32.mrf.mxu0
    %v3885 = vadd.f32 %v3745, %v3884
    %3886 = vmatmul.f32.gmra.mxu0 %v3696
    %v3887 = vpop.f32.mrf.mxu0
    %v3888 = vadd.f32 %v3745, %v3887
    %3889 = vmatmul.f32.gmra.mxu0 %v3698
    %v3890 = vpop.f32.mrf.mxu0
    %v3891 = vadd.f32 %v3745, %v3890
    %3892 = vmatmul.f32.gmra.mxu0 %v3700
    %v3893 = vpop.f32.mrf.mxu0
    %v3894 = vadd.f32 %v3745, %v3893
    %3895 = vmatmul.f32.gmra.mxu0 %v3702
    %v3896 = vpop.f32.mrf.mxu0
    %v3897 = vadd.f32 %v3745, %v3896
    %3898 = vmatmul.f32.gmra.mxu0 %v3704
    %v3899 = vpop.f32.mrf.mxu0
    %v3900 = vadd.f32 %v3745, %v3899
    %3901 = vmatmul.f32.gmra.mxu0 %v3706
    %v3902 = vpop.f32.mrf.mxu0
    %v3903 = vadd.f32 %v3745, %v3902
    %3904 = vmatmul.f32.gmra.mxu0 %v3708
    %v3905 = vpop.f32.mrf.mxu0
    %v3906 = vadd.f32 %v3745, %v3905
    %3907 = vmatmul.f32.gmra.mxu0 %v3710
    %v3908 = vpop.f32.mrf.mxu0
    %v3909 = vadd.f32 %v3745, %v3908
    %3910 = vmatmul.f32.gmra.mxu0 %v3712
    %v3911 = vpop.f32.mrf.mxu0
    %v3912 = vadd.f32 %v3745, %v3911
    %3913 = vmatmul.f32.gmra.mxu0 %v3714
    %v3914 = vpop.f32.mrf.mxu0
    %v3915 = vadd.f32 %v3745, %v3914
    %3916 = vmatmul.f32.gmra.mxu0 %v3716
    %v3917 = vpop.f32.mrf.mxu0
    %v3918 = vadd.f32 %v3745, %v3917
    %3919 = vmatmul.f32.gmra.mxu0 %v3718
    %v3920 = vpop.f32.mrf.mxu0
    %v3921 = vadd.f32 %v3745, %v3920
    %3922 = vmatmul.f32.gmra.mxu0 %v3720
    %v3923 = vpop.f32.mrf.mxu0
    %v3924 = vadd.f32 %v3745, %v3923
    %3925 = vmatmul.f32.gmra.mxu0 %v3722
    %v3926 = vpop.f32.mrf.mxu0
    %v3927 = vadd.f32 %v3745, %v3926
    %3928 = vmatmul.f32.gmra.mxu0 %v3724
    %v3929 = vpop.f32.mrf.mxu0
    %v3930 = vadd.f32 %v3745, %v3929
    %3931 = vdwg.mxu0
    %3932 = vmatpush.msra.mxu0 0.0
    %3933 = vmatpush.msra.mxu0 0.0
    %3934 = vmatpush.msra.mxu0 0.0
    %3935 = vmatpush.msra.mxu0 0.0
    %3936 = vmatpush.msra.mxu0 0.0
    %3937 = vmatpush.msra.mxu0 0.0
    %3938 = vmatpush.msra.mxu0 0.0
    %3939 = vmatpush.msra.mxu0 0.0
    %3940 = vmatpush.msra.mxu0 0.0
    %3941 = vmatpush.msra.mxu0 0.0
    %3942 = vmatpush.msra.mxu0 0.0
    %3943 = vmatpush.msra.mxu0 0.0
    %3944 = vmatpush.msra.mxu0 0.0
    %3945 = vmatpush.msra.mxu0 0.0
    %3946 = vmatpush.msra.mxu0 %v3743
    %3947 = vmatpush.msra.mxu0 %v3742
    %3948 = vmatmul.f32.gmra.mxu0 %v3748
    %v3949 = vpop.f32.mrf.mxu0
    %v3950 = vadd.f32 %v3849, %v3949
    %3951 = vmatmul.f32.gmra.mxu0 %v3751
    %v3952 = vpop.f32.mrf.mxu0
    %v3953 = vadd.f32 %v3852, %v3952
    %3954 = vmatmul.f32.gmra.mxu0 %v3754
    %v3955 = vpop.f32.mrf.mxu0
    %v3956 = vadd.f32 %v3855, %v3955
    %3957 = vmatmul.f32.gmra.mxu0 %v3757
    %v3958 = vpop.f32.mrf.mxu0
    %v3959 = vadd.f32 %v3858, %v3958
    %3960 = vmatmul.f32.gmra.mxu0 %v3760
    %v3961 = vpop.f32.mrf.mxu0
    %v3962 = vadd.f32 %v3861, %v3961
    %3963 = vmatmul.f32.gmra.mxu0 %v3763
    %v3964 = vpop.f32.mrf.mxu0
    %v3965 = vadd.f32 %v3864, %v3964
    %3966 = vmatmul.f32.gmra.mxu0 %v3766
    %v3967 = vpop.f32.mrf.mxu0
    %v3968 = vadd.f32 %v3867, %v3967
    %3969 = vmatmul.f32.gmra.mxu0 %v3769
    %v3970 = vpop.f32.mrf.mxu0
    %v3971 = vadd.f32 %v3870, %v3970
    %3972 = vmatmul.f32.gmra.mxu0 %v3772
    %v3973 = vpop.f32.mrf.mxu0
    %v3974 = vadd.f32 %v3873, %v3973
    %3975 = vmatmul.f32.gmra.mxu0 %v3775
    %v3976 = vpop.f32.mrf.mxu0
    %v3977 = vadd.f32 %v3876, %v3976
    %3978 = vmatmul.f32.gmra.mxu0 %v3778
    %v3979 = vpop.f32.mrf.mxu0
    %v3980 = vadd.f32 %v3879, %v3979
    %3981 = vmatmul.f32.gmra.mxu0 %v3781
    %v3982 = vpop.f32.mrf.mxu0
    %v3983 = vadd.f32 %v3882, %v3982
    %3984 = vmatmul.f32.gmra.mxu0 %v3784
    %v3985 = vpop.f32.mrf.mxu0
    %v3986 = vadd.f32 %v3885, %v3985
    %3987 = vmatmul.f32.gmra.mxu0 %v3787
    %v3988 = vpop.f32.mrf.mxu0
    %v3989 = vadd.f32 %v3888, %v3988
    %3990 = vmatmul.f32.gmra.mxu0 %v3790
    %v3991 = vpop.f32.mrf.mxu0
    %v3992 = vadd.f32 %v3891, %v3991
    %3993 = vmatmul.f32.gmra.mxu0 %v3793
    %v3994 = vpop.f32.mrf.mxu0
    %v3995 = vadd.f32 %v3894, %v3994
    %3996 = vmatmul.f32.gmra.mxu0 %v3796
    %v3997 = vpop.f32.mrf.mxu0
    %v3998 = vadd.f32 %v3897, %v3997
    %3999 = vmatmul.f32.gmra.mxu0 %v3799
    %v4000 = vpop.f32.mrf.mxu0
    %v4001 = vadd.f32 %v3900, %v4000
    %4002 = vmatmul.f32.gmra.mxu0 %v3802
    %v4003 = vpop.f32.mrf.mxu0
    %v4004 = vadd.f32 %v3903, %v4003
    %4005 = vmatmul.f32.gmra.mxu0 %v3805
    %v4006 = vpop.f32.mrf.mxu0
    %v4007 = vadd.f32 %v3906, %v4006
    %4008 = vmatmul.f32.gmra.mxu0 %v3808
    %v4009 = vpop.f32.mrf.mxu0
    %v4010 = vadd.f32 %v3909, %v4009
    %4011 = vmatmul.f32.gmra.mxu0 %v3811
    %v4012 = vpop.f32.mrf.mxu0
    %v4013 = vadd.f32 %v3912, %v4012
    %4014 = vmatmul.f32.gmra.mxu0 %v3814
    %v4015 = vpop.f32.mrf.mxu0
    %v4016 = vadd.f32 %v3915, %v4015
    %4017 = vmatmul.f32.gmra.mxu0 %v3817
    %v4018 = vpop.f32.mrf.mxu0
    %v4019 = vadd.f32 %v3918, %v4018
    %4020 = vmatmul.f32.gmra.mxu0 %v3820
    %v4021 = vpop.f32.mrf.mxu0
    %v4022 = vadd.f32 %v3921, %v4021
    %4023 = vmatmul.f32.gmra.mxu0 %v3823
    %v4024 = vpop.f32.mrf.mxu0
    %v4025 = vadd.f32 %v3924, %v4024
    %4026 = vmatmul.f32.gmra.mxu0 %v3826
    %v4027 = vpop.f32.mrf.mxu0
    %v4028 = vadd.f32 %v3927, %v4027
    %4029 = vmatmul.f32.gmra.mxu0 %v3829
    %v4030 = vpop.f32.mrf.mxu0
    %v4031 = vadd.f32 %v3930, %v4030
    %4032 = vdwg.mxu0
    %v4033 = vmax.f32 %v3950, 0.0
    %v4034 = vmax.f32 %v3953, 0.0
    %v4035 = vmax.f32 %v3956, 0.0
    %v4036 = vmax.f32 %v3959, 0.0
    %v4037 = vmax.f32 %v3962, 0.0
    %v4038 = vmax.f32 %v3965, 0.0
    %v4039 = vmax.f32 %v3968, 0.0
    %v4040 = vmax.f32 %v3971, 0.0
    %v4041 = vmax.f32 %v3974, 0.0
    %v4042 = vmax.f32 %v3977, 0.0
    %v4043 = vmax.f32 %v3980, 0.0
    %v4044 = vmax.f32 %v3983, 0.0
    %v4045 = vmax.f32 %v3986, 0.0
    %v4046 = vmax.f32 %v3989, 0.0
    %v4047 = vmax.f32 %v3992, 0.0
    %v4048 = vmax.f32 %v3995, 0.0
    %v4049 = vmax.f32 %v3998, 0.0
    %v4050 = vmax.f32 %v4001, 0.0
    %v4051 = vmax.f32 %v4004, 0.0
    %v4052 = vmax.f32 %v4007, 0.0
    %v4053 = vmax.f32 %v4010, 0.0
    %v4054 = vmax.f32 %v4013, 0.0
    %v4055 = vmax.f32 %v4016, 0.0
    %v4056 = vmax.f32 %v4019, 0.0
    %v4057 = vmax.f32 %v4022, 0.0
    %v4058 = vmax.f32 %v4025, 0.0
    %v4059 = vmax.f32 %v4028, 0.0
    %v4060 = vmax.f32 %v4031, 0.0
    %vm4061 = vcmask 261120
    %4062 = vst.msk [vmem:[#allocation4] sm:$0xff] %vm4061, %v4033
    %4063 = vst.msk [vmem:[#allocation4 + $0x8] sm:$0xff] %vm4061, %v4034
    %4064 = vst.msk [vmem:[#allocation4 + $0x10] sm:$0xff] %vm4061, %v4035
    %4065 = vst.msk [vmem:[#allocation4 + $0x18] sm:$0xff] %vm4061, %v4036
    %4066 = vst.msk [vmem:[#allocation4 + $0x20] sm:$0xff] %vm4061, %v4037
    %4067 = vst.msk [vmem:[#allocation4 + $0x28] sm:$0xff] %vm4061, %v4038
    %4068 = vst.msk [vmem:[#allocation4 + $0x30] sm:$0xff] %vm4061, %v4039
    %4069 = vst.msk [vmem:[#allocation4 + $0x38] sm:$0xff] %vm4061, %v4040
    %4070 = vst.msk [vmem:[#allocation4 + $0x40] sm:$0xff] %vm4061, %v4041
    %4071 = vst.msk [vmem:[#allocation4 + $0x48] sm:$0xff] %vm4061, %v4042
    %4072 = vst.msk [vmem:[#allocation4 + $0x50] sm:$0xff] %vm4061, %v4043
    %4073 = vst.msk [vmem:[#allocation4 + $0x58] sm:$0xff] %vm4061, %v4044
    %4074 = vst.msk [vmem:[#allocation4 + $0x60] sm:$0xff] %vm4061, %v4045
    %4075 = vst.msk [vmem:[#allocation4 + $0x68] sm:$0xff] %vm4061, %v4046
    %4076 = vst.msk [vmem:[#allocation4 + $0x70] sm:$0xff] %vm4061, %v4047
    %4077 = vst.msk [vmem:[#allocation4 + $0x78] sm:$0xff] %vm4061, %v4048
    %4078 = vst.msk [vmem:[#allocation4 + $0x80] sm:$0xff] %vm4061, %v4049
    %4079 = vst.msk [vmem:[#allocation4 + $0x88] sm:$0xff] %vm4061, %v4050
    %4080 = vst.msk [vmem:[#allocation4 + $0x90] sm:$0xff] %vm4061, %v4051
    %4081 = vst.msk [vmem:[#allocation4 + $0x98] sm:$0xff] %vm4061, %v4052
    %4082 = vst.msk [vmem:[#allocation4 + $0xa0] sm:$0xff] %vm4061, %v4053
    %4083 = vst.msk [vmem:[#allocation4 + $0xa8] sm:$0xff] %vm4061, %v4054
    %4084 = vst.msk [vmem:[#allocation4 + $0xb0] sm:$0xff] %vm4061, %v4055
    %4085 = vst.msk [vmem:[#allocation4 + $0xb8] sm:$0xff] %vm4061, %v4056
    %4086 = vst.msk [vmem:[#allocation4 + $0xc0] sm:$0xff] %vm4061, %v4057
    %4087 = vst.msk [vmem:[#allocation4 + $0xc8] sm:$0xff] %vm4061, %v4058
    %4088 = vst.msk [vmem:[#allocation4 + $0xd0] sm:$0xff] %vm4061, %v4059
    %4089 = vst.msk [vmem:[#allocation4 + $0xd8] sm:$0xff] %vm4061, %v4060
    %v4090 = vld [vmem:[#allocation4] ss:$2 sm:$0xff]
    %s4091 = scalar_lea.vmem [#allocation4], 16
    %v4092 = vld [vmem:[%s4091] ss:$2 sm:$0xff]
    %s4093 = scalar_lea.vmem [#allocation4], 32
    %v4094 = vld [vmem:[%s4093] ss:$2 sm:$0xff]
    %s4095 = scalar_lea.vmem [#allocation4], 48
    %v4096 = vld [vmem:[%s4095] ss:$2 sm:$0xff]
    %s4097 = scalar_lea.vmem [#allocation4], 64
    %v4098 = vld [vmem:[%s4097] ss:$2 sm:$0xff]
    %s4099 = scalar_lea.vmem [#allocation4], 80
    %v4100 = vld [vmem:[%s4099] ss:$2 sm:$0xff]
    %s4101 = scalar_lea.vmem [#allocation4], 96
    %v4102 = vld [vmem:[%s4101] ss:$2 sm:$0xff]
    %s4103 = scalar_lea.vmem [#allocation4], 112
    %v4104 = vld [vmem:[%s4103] ss:$2 sm:$0xff]
    %s4105 = scalar_lea.vmem [#allocation4], 128
    %v4106 = vld [vmem:[%s4105] ss:$2 sm:$0xff]
    %s4107 = scalar_lea.vmem [#allocation4], 144
    %v4108 = vld [vmem:[%s4107] ss:$2 sm:$0xff]
    %s4109 = scalar_lea.vmem [#allocation4], 160
    %v4110 = vld [vmem:[%s4109] ss:$2 sm:$0xff]
    %s4111 = scalar_lea.vmem [#allocation4], 176
    %v4112 = vld [vmem:[%s4111] ss:$2 sm:$0xff]
    %s4113 = scalar_lea.vmem [#allocation4], 192
    %v4114 = vld [vmem:[%s4113] ss:$2 sm:$0xff]
    %s4115 = scalar_lea.vmem [#allocation4], 208
    %v4116 = vld [vmem:[%s4115] ss:$2 sm:$0xff]
    %s4117 = scalar_lea.vmem [#allocation4], 1
    %v4118 = vld [vmem:[%s4117] ss:$2 sm:$0xff]
    %s4119 = scalar_lea.vmem [#allocation4], 17
    %v4120 = vld [vmem:[%s4119] ss:$2 sm:$0xff]
    %s4121 = scalar_lea.vmem [#allocation4], 33
    %v4122 = vld [vmem:[%s4121] ss:$2 sm:$0xff]
    %s4123 = scalar_lea.vmem [#allocation4], 49
    %v4124 = vld [vmem:[%s4123] ss:$2 sm:$0xff]
    %s4125 = scalar_lea.vmem [#allocation4], 65
    %v4126 = vld [vmem:[%s4125] ss:$2 sm:$0xff]
    %s4127 = scalar_lea.vmem [#allocation4], 81
    %v4128 = vld [vmem:[%s4127] ss:$2 sm:$0xff]
    %s4129 = scalar_lea.vmem [#allocation4], 97
    %v4130 = vld [vmem:[%s4129] ss:$2 sm:$0xff]
    %s4131 = scalar_lea.vmem [#allocation4], 113
    %v4132 = vld [vmem:[%s4131] ss:$2 sm:$0xff]
    %s4133 = scalar_lea.vmem [#allocation4], 129
    %v4134 = vld [vmem:[%s4133] ss:$2 sm:$0xff]
    %s4135 = scalar_lea.vmem [#allocation4], 145
    %v4136 = vld [vmem:[%s4135] ss:$2 sm:$0xff]
    %s4137 = scalar_lea.vmem [#allocation4], 161
    %v4138 = vld [vmem:[%s4137] ss:$2 sm:$0xff]
    %s4139 = scalar_lea.vmem [#allocation4], 177
    %v4140 = vld [vmem:[%s4139] ss:$2 sm:$0xff]
    %s4141 = scalar_lea.vmem [#allocation4], 193
    %v4142 = vld [vmem:[%s4141] ss:$2 sm:$0xff]
    %s4143 = scalar_lea.vmem [#allocation4], 209
    %v4144 = vld [vmem:[%s4143] ss:$2 sm:$0xff]
    %v4145 = vmax.f32 %v4090, %v4118
    %v4146 = vmax.f32 %v4092, %v4120
    %v4147 = vmax.f32 %v4094, %v4122
    %v4148 = vmax.f32 %v4096, %v4124
    %v4149 = vmax.f32 %v4098, %v4126
    %v4150 = vmax.f32 %v4100, %v4128
    %v4151 = vmax.f32 %v4102, %v4130
    %v4152 = vmax.f32 %v4104, %v4132
    %v4153 = vmax.f32 %v4106, %v4134
    %v4154 = vmax.f32 %v4108, %v4136
    %v4155 = vmax.f32 %v4110, %v4138
    %v4156 = vmax.f32 %v4112, %v4140
    %v4157 = vmax.f32 %v4114, %v4142
    %v4158 = vmax.f32 %v4116, %v4144
    %v4159 = vmax.f32 %v4145, %v4146
    %vm4160 = vcmask 253952
    %4161 = vst.msk [vmem:[#allocation5] sm:$0x1] %vm4160, %v4159
    %v4163 = vrot.slane %v4159, 7
    %v4164 = vrot.slane %v4163, 2
    %4165 = vrot.lane.b32.xlu0 %v4164, 32
    %v4166 = vpop.permute.xlu0 %4165
    %vm4168 = vcmask 516352
    %4169 = vst.msk [vmem:[#allocation5] sm:$0x1] %vm4168, %v4166
    %4170 = vst.sshfl [vmem:[#allocation1] sm:$0xff pattern:$0x73625140] %v4159
    %s4171 = scalar_lea.vmem [#allocation1], 1
    %v4172 = vld [vmem:[%s4171] ss:$4 sm:$0xff]
    %4173 = vrot.lane.b32.xlu0 %v4172, 64
    %v4174 = vpop.permute.xlu0 %4173
    %vm4176 = vcmask 778752
    %4177 = vst.msk [vmem:[#allocation5] sm:$0x1] %vm4176, %v4174
    %4178 = vst.sshfl [vmem:[#allocation1] sm:$0xff pattern:$0x73625140] %v4159
    %s4179 = scalar_lea.vmem [#allocation1], 1
    %v4180 = vld [vmem:[%s4179] ss:$4 sm:$0xff]
    %v4181 = vrot.slane %v4180, 7
    %v4182 = vrot.slane %v4181, 2
    %4183 = vrot.lane.b32.xlu0 %v4182, 96
    %v4184 = vpop.permute.xlu0 %4183
    %vm4186 = vcmask 1041152
    %4187 = vst.msk [vmem:[#allocation5] sm:$0x1] %vm4186, %v4184
    %4188 = vst.sshfl [vmem:[#allocation1] sm:$0xff pattern:$0x73625140] %v4159
    %s4189 = scalar_lea.vmem [#allocation1], 2
    %v4190 = vld [vmem:[%s4189] ss:$4 sm:$0xff]
    %4192 = vst.msk [vmem:[#allocation5 + $0x2] sm:$0x1] %vm4160, %v4190
    %4193 = vst.sshfl [vmem:[#allocation1] sm:$0xff pattern:$0x73625140] %v4159
    %s4194 = scalar_lea.vmem [#allocation1], 2
    %v4195 = vld [vmem:[%s4194] ss:$4 sm:$0xff]
    %v4196 = vrot.slane %v4195, 7
    %v4197 = vrot.slane %v4196, 2
    %4198 = vrot.lane.b32.xlu0 %v4197, 32
    %v4199 = vpop.permute.xlu0 %4198
    %4201 = vst.msk [vmem:[#allocation5 + $0x2] sm:$0x1] %vm4168, %v4199
    %4202 = vst.sshfl [vmem:[#allocation1] sm:$0xff pattern:$0x73625140] %v4159
    %s4203 = scalar_lea.vmem [#allocation1], 3
    %v4204 = vld [vmem:[%s4203] ss:$4 sm:$0xff]
    %4205 = vrot.lane.b32.xlu0 %v4204, 64
    %v4206 = vpop.permute.xlu0 %4205
    %4208 = vst.msk [vmem:[#allocation5 + $0x2] sm:$0x1] %vm4176, %v4206
    %v4209 = vmax.f32 %v4147, %v4148
    %4211 = vrot.lane.b32.xlu0 %v4209, 96
    %v4212 = vpop.permute.xlu0 %4211
    %4214 = vst.msk [vmem:[#allocation5 + $0x2] sm:$0x1] %vm4186, %v4212
    %v4215 = vrot.slane %v4209, 7
    %v4216 = vrot.slane %v4215, 2
    %4218 = vst.msk [vmem:[#allocation5 + $0x4] sm:$0x1] %vm4160, %v4216
    %4219 = vst.sshfl [vmem:[#allocation1] sm:$0xff pattern:$0x73625140] %v4209
    %s4220 = scalar_lea.vmem [#allocation1], 1
    %v4221 = vld [vmem:[%s4220] ss:$4 sm:$0xff]
    %4222 = vrot.lane.b32.xlu0 %v4221, 32
    %v4223 = vpop.permute.xlu0 %4222
    %4225 = vst.msk [vmem:[#allocation5 + $0x4] sm:$0x1] %vm4168, %v4223
    %4226 = vst.sshfl [vmem:[#allocation1] sm:$0xff pattern:$0x73625140] %v4209
    %s4227 = scalar_lea.vmem [#allocation1], 1
    %v4228 = vld [vmem:[%s4227] ss:$4 sm:$0xff]
    %v4229 = vrot.slane %v4228, 7
    %v4230 = vrot.slane %v4229, 2
    %4231 = vrot.lane.b32.xlu0 %v4230, 64
    %v4232 = vpop.permute.xlu0 %4231
    %4234 = vst.msk [vmem:[#allocation5 + $0x4] sm:$0x1] %vm4176, %v4232
    %4235 = vst.sshfl [vmem:[#allocation1] sm:$0xff pattern:$0x73625140] %v4209
    %s4236 = scalar_lea.vmem [#allocation1], 2
    %v4237 = vld [vmem:[%s4236] ss:$4 sm:$0xff]
    %4238 = vrot.lane.b32.xlu0 %v4237, 96
    %v4239 = vpop.permute.xlu0 %4238
    %4241 = vst.msk [vmem:[#allocation5 + $0x4] sm:$0x1] %vm4186, %v4239
    %4242 = vst.sshfl [vmem:[#allocation1] sm:$0xff pattern:$0x73625140] %v4209
    %s4243 = scalar_lea.vmem [#allocation1], 2
    %v4244 = vld [vmem:[%s4243] ss:$4 sm:$0xff]
    %v4245 = vrot.slane %v4244, 7
    %v4246 = vrot.slane %v4245, 2
    %4248 = vst.msk [vmem:[#allocation5 + $0x6] sm:$0x1] %vm4160, %v4246
    %4249 = vst.sshfl [vmem:[#allocation1] sm:$0xff pattern:$0x73625140] %v4209
    %s4250 = scalar_lea.vmem [#allocation1], 3
    %v4251 = vld [vmem:[%s4250] ss:$4 sm:$0xff]
    %4252 = vrot.lane.b32.xlu0 %v4251, 32
    %v4253 = vpop.permute.xlu0 %4252
    %4255 = vst.msk [vmem:[#allocation5 + $0x6] sm:$0x1] %vm4168, %v4253
    %v4256 = vmax.f32 %v4149, %v4150
    %4258 = vrot.lane.b32.xlu0 %v4256, 64
    %v4259 = vpop.permute.xlu0 %4258
    %4261 = vst.msk [vmem:[#allocation5 + $0x6] sm:$0x1] %vm4176, %v4259
    %v4262 = vrot.slane %v4256, 7
    %v4263 = vrot.slane %v4262, 2
    %4264 = vrot.lane.b32.xlu0 %v4263, 96
    %v4265 = vpop.permute.xlu0 %4264
    %4267 = vst.msk [vmem:[#allocation5 + $0x6] sm:$0x1] %vm4186, %v4265
    %4268 = vst.sshfl [vmem:[#allocation1] sm:$0xff pattern:$0x73625140] %v4256
    %s4269 = scalar_lea.vmem [#allocation1], 1
    %v4270 = vld [vmem:[%s4269] ss:$4 sm:$0xff]
    %4272 = vst.msk [vmem:[#allocation5 + $0x8] sm:$0x1] %vm4160, %v4270
    %4273 = vst.sshfl [vmem:[#allocation1] sm:$0xff pattern:$0x73625140] %v4256
    %s4274 = scalar_lea.vmem [#allocation1], 1
    %v4275 = vld [vmem:[%s4274] ss:$4 sm:$0xff]
    %v4276 = vrot.slane %v4275, 7
    %v4277 = vrot.slane %v4276, 2
    %4278 = vrot.lane.b32.xlu0 %v4277, 32
    %v4279 = vpop.permute.xlu0 %4278
    %4281 = vst.msk [vmem:[#allocation5 + $0x8] sm:$0x1] %vm4168, %v4279
    %4282 = vst.sshfl [vmem:[#allocation1] sm:$0xff pattern:$0x73625140] %v4256
    %s4283 = scalar_lea.vmem [#allocation1], 2
    %v4284 = vld [vmem:[%s4283] ss:$4 sm:$0xff]
    %4285 = vrot.lane.b32.xlu0 %v4284, 64
    %v4286 = vpop.permute.xlu0 %4285
    %4288 = vst.msk [vmem:[#allocation5 + $0x8] sm:$0x1] %vm4176, %v4286
    %4289 = vst.sshfl [vmem:[#allocation1] sm:$0xff pattern:$0x73625140] %v4256
    %s4290 = scalar_lea.vmem [#allocation1], 2
    %v4291 = vld [vmem:[%s4290] ss:$4 sm:$0xff]
    %v4292 = vrot.slane %v4291, 7
    %v4293 = vrot.slane %v4292, 2
    %4294 = vrot.lane.b32.xlu0 %v4293, 96
    %v4295 = vpop.permute.xlu0 %4294
    %4297 = vst.msk [vmem:[#allocation5 + $0x8] sm:$0x1] %vm4186, %v4295
    %4298 = vst.sshfl [vmem:[#allocation1] sm:$0xff pattern:$0x73625140] %v4256
    %s4299 = scalar_lea.vmem [#allocation1], 3
    %v4300 = vld [vmem:[%s4299] ss:$4 sm:$0xff]
    %4302 = vst.msk [vmem:[#allocation5 + $0xa] sm:$0x1] %vm4160, %v4300
    %v4303 = vmax.f32 %v4151, %v4152
    %4305 = vrot.lane.b32.xlu0 %v4303, 32
    %v4306 = vpop.permute.xlu0 %4305
    %4308 = vst.msk [vmem:[#allocation5 + $0xa] sm:$0x1] %vm4168, %v4306
    %v4309 = vrot.slane %v4303, 7
    %v4310 = vrot.slane %v4309, 2
    %4311 = vrot.lane.b32.xlu0 %v4310, 64
    %v4312 = vpop.permute.xlu0 %4311
    %4314 = vst.msk [vmem:[#allocation5 + $0xa] sm:$0x1] %vm4176, %v4312
    %4315 = vst.sshfl [vmem:[#allocation1] sm:$0xff pattern:$0x73625140] %v4303
    %s4316 = scalar_lea.vmem [#allocation1], 1
    %v4317 = vld [vmem:[%s4316] ss:$4 sm:$0xff]
    %4318 = vrot.lane.b32.xlu0 %v4317, 96
    %v4319 = vpop.permute.xlu0 %4318
    %4321 = vst.msk [vmem:[#allocation5 + $0xa] sm:$0x1] %vm4186, %v4319
    %4322 = vst.sshfl [vmem:[#allocation1] sm:$0xff pattern:$0x73625140] %v4303
    %s4323 = scalar_lea.vmem [#allocation1], 1
    %v4324 = vld [vmem:[%s4323] ss:$4 sm:$0xff]
    %v4325 = vrot.slane %v4324, 7
    %v4326 = vrot.slane %v4325, 2
    %4328 = vst.msk [vmem:[#allocation5 + $0xc] sm:$0x1] %vm4160, %v4326
    %4329 = vst.sshfl [vmem:[#allocation1] sm:$0xff pattern:$0x73625140] %v4303
    %s4330 = scalar_lea.vmem [#allocation1], 2
    %v4331 = vld [vmem:[%s4330] ss:$4 sm:$0xff]
    %4332 = vrot.lane.b32.xlu0 %v4331, 32
    %v4333 = vpop.permute.xlu0 %4332
    %4335 = vst.msk [vmem:[#allocation5 + $0xc] sm:$0x1] %vm4168, %v4333
    %4336 = vst.sshfl [vmem:[#allocation1] sm:$0xff pattern:$0x73625140] %v4303
    %s4337 = scalar_lea.vmem [#allocation1], 2
    %v4338 = vld [vmem:[%s4337] ss:$4 sm:$0xff]
    %v4339 = vrot.slane %v4338, 7
    %v4340 = vrot.slane %v4339, 2
    %4341 = vrot.lane.b32.xlu0 %v4340, 64
    %v4342 = vpop.permute.xlu0 %4341
    %4344 = vst.msk [vmem:[#allocation5 + $0xc] sm:$0x1] %vm4176, %v4342
    %4345 = vst.sshfl [vmem:[#allocation1] sm:$0xff pattern:$0x73625140] %v4303
    %s4346 = scalar_lea.vmem [#allocation1], 3
    %v4347 = vld [vmem:[%s4346] ss:$4 sm:$0xff]
    %4348 = vrot.lane.b32.xlu0 %v4347, 96
    %v4349 = vpop.permute.xlu0 %4348
    %4351 = vst.msk [vmem:[#allocation5 + $0xc] sm:$0x1] %vm4186, %v4349
    %v4352 = vmax.f32 %v4153, %v4154
    %4353 = vst.msk [vmem:[#allocation5 + $0xe] sm:$0x1] %vm4160, %v4352
    %v4355 = vrot.slane %v4352, 7
    %v4356 = vrot.slane %v4355, 2
    %4357 = vrot.lane.b32.xlu0 %v4356, 32
    %v4358 = vpop.permute.xlu0 %4357
    %4360 = vst.msk [vmem:[#allocation5 + $0xe] sm:$0x1] %vm4168, %v4358
    %4361 = vst.sshfl [vmem:[#allocation1] sm:$0xff pattern:$0x73625140] %v4352
    %s4362 = scalar_lea.vmem [#allocation1], 1
    %v4363 = vld [vmem:[%s4362] ss:$4 sm:$0xff]
    %4364 = vrot.lane.b32.xlu0 %v4363, 64
    %v4365 = vpop.permute.xlu0 %4364
    %4367 = vst.msk [vmem:[#allocation5 + $0xe] sm:$0x1] %vm4176, %v4365
    %4368 = vst.sshfl [vmem:[#allocation1] sm:$0xff pattern:$0x73625140] %v4352
    %s4369 = scalar_lea.vmem [#allocation1], 1
    %v4370 = vld [vmem:[%s4369] ss:$4 sm:$0xff]
    %v4371 = vrot.slane %v4370, 7
    %v4372 = vrot.slane %v4371, 2
    %4373 = vrot.lane.b32.xlu0 %v4372, 96
    %v4374 = vpop.permute.xlu0 %4373
    %4376 = vst.msk [vmem:[#allocation5 + $0xe] sm:$0x1] %vm4186, %v4374
    %4377 = vst.sshfl [vmem:[#allocation1] sm:$0xff pattern:$0x73625140] %v4352
    %s4378 = scalar_lea.vmem [#allocation1], 2
    %v4379 = vld [vmem:[%s4378] ss:$4 sm:$0xff]
    %4381 = vst.msk [vmem:[#allocation5 + $0x10] sm:$0x1] %vm4160, %v4379
    %4382 = vst.sshfl [vmem:[#allocation1] sm:$0xff pattern:$0x73625140] %v4352
    %s4383 = scalar_lea.vmem [#allocation1], 2
    %v4384 = vld [vmem:[%s4383] ss:$4 sm:$0xff]
    %v4385 = vrot.slane %v4384, 7
    %v4386 = vrot.slane %v4385, 2
    %4387 = vrot.lane.b32.xlu0 %v4386, 32
    %v4388 = vpop.permute.xlu0 %4387
    %4390 = vst.msk [vmem:[#allocation5 + $0x10] sm:$0x1] %vm4168, %v4388
    %4391 = vst.sshfl [vmem:[#allocation1] sm:$0xff pattern:$0x73625140] %v4352
    %s4392 = scalar_lea.vmem [#allocation1], 3
    %v4393 = vld [vmem:[%s4392] ss:$4 sm:$0xff]
    %4394 = vrot.lane.b32.xlu0 %v4393, 64
    %v4395 = vpop.permute.xlu0 %4394
    %4397 = vst.msk [vmem:[#allocation5 + $0x10] sm:$0x1] %vm4176, %v4395
    %v4398 = vmax.f32 %v4155, %v4156
    %4400 = vrot.lane.b32.xlu0 %v4398, 96
    %v4401 = vpop.permute.xlu0 %4400
    %4403 = vst.msk [vmem:[#allocation5 + $0x10] sm:$0x1] %vm4186, %v4401
    %v4404 = vrot.slane %v4398, 7
    %v4405 = vrot.slane %v4404, 2
    %4407 = vst.msk [vmem:[#allocation5 + $0x12] sm:$0x1] %vm4160, %v4405
    %4408 = vst.sshfl [vmem:[#allocation1] sm:$0xff pattern:$0x73625140] %v4398
    %s4409 = scalar_lea.vmem [#allocation1], 1
    %v4410 = vld [vmem:[%s4409] ss:$4 sm:$0xff]
    %4411 = vrot.lane.b32.xlu0 %v4410, 32
    %v4412 = vpop.permute.xlu0 %4411
    %4414 = vst.msk [vmem:[#allocation5 + $0x12] sm:$0x1] %vm4168, %v4412
    %4415 = vst.sshfl [vmem:[#allocation1] sm:$0xff pattern:$0x73625140] %v4398
    %s4416 = scalar_lea.vmem [#allocation1], 1
    %v4417 = vld [vmem:[%s4416] ss:$4 sm:$0xff]
    %v4418 = vrot.slane %v4417, 7
    %v4419 = vrot.slane %v4418, 2
    %4420 = vrot.lane.b32.xlu0 %v4419, 64
    %v4421 = vpop.permute.xlu0 %4420
    %4423 = vst.msk [vmem:[#allocation5 + $0x12] sm:$0x1] %vm4176, %v4421
    %4424 = vst.sshfl [vmem:[#allocation1] sm:$0xff pattern:$0x73625140] %v4398
    %s4425 = scalar_lea.vmem [#allocation1], 2
    %v4426 = vld [vmem:[%s4425] ss:$4 sm:$0xff]
    %4427 = vrot.lane.b32.xlu0 %v4426, 96
    %v4428 = vpop.permute.xlu0 %4427
    %4430 = vst.msk [vmem:[#allocation5 + $0x12] sm:$0x1] %vm4186, %v4428
    %4431 = vst.sshfl [vmem:[#allocation1] sm:$0xff pattern:$0x73625140] %v4398
    %s4432 = scalar_lea.vmem [#allocation1], 2
    %v4433 = vld [vmem:[%s4432] ss:$4 sm:$0xff]
    %v4434 = vrot.slane %v4433, 7
    %v4435 = vrot.slane %v4434, 2
    %4437 = vst.msk [vmem:[#allocation5 + $0x14] sm:$0x1] %vm4160, %v4435
    %4438 = vst.sshfl [vmem:[#allocation1] sm:$0xff pattern:$0x73625140] %v4398
    %s4439 = scalar_lea.vmem [#allocation1], 3
    %v4440 = vld [vmem:[%s4439] ss:$4 sm:$0xff]
    %4441 = vrot.lane.b32.xlu0 %v4440, 32
    %v4442 = vpop.permute.xlu0 %4441
    %4444 = vst.msk [vmem:[#allocation5 + $0x14] sm:$0x1] %vm4168, %v4442
    %v4445 = vmax.f32 %v4157, %v4158
    %4447 = vrot.lane.b32.xlu0 %v4445, 64
    %v4448 = vpop.permute.xlu0 %4447
    %4450 = vst.msk [vmem:[#allocation5 + $0x14] sm:$0x1] %vm4176, %v4448
    %v4451 = vrot.slane %v4445, 7
    %v4452 = vrot.slane %v4451, 2
    %4453 = vrot.lane.b32.xlu0 %v4452, 96
    %v4454 = vpop.permute.xlu0 %4453
    %4456 = vst.msk [vmem:[#allocation5 + $0x14] sm:$0x1] %vm4186, %v4454
    %4457 = vst.sshfl [vmem:[#allocation1] sm:$0xff pattern:$0x73625140] %v4445
    %s4458 = scalar_lea.vmem [#allocation1], 1
    %v4459 = vld [vmem:[%s4458] ss:$4 sm:$0xff]
    %4461 = vst.msk [vmem:[#allocation5 + $0x16] sm:$0x1] %vm4160, %v4459
    %4462 = vst.sshfl [vmem:[#allocation1] sm:$0xff pattern:$0x73625140] %v4445
    %s4463 = scalar_lea.vmem [#allocation1], 1
    %v4464 = vld [vmem:[%s4463] ss:$4 sm:$0xff]
    %v4465 = vrot.slane %v4464, 7
    %v4466 = vrot.slane %v4465, 2
    %4467 = vrot.lane.b32.xlu0 %v4466, 32
    %v4468 = vpop.permute.xlu0 %4467
    %4470 = vst.msk [vmem:[#allocation5 + $0x16] sm:$0x1] %vm4168, %v4468
    %4471 = vst.sshfl [vmem:[#allocation1] sm:$0xff pattern:$0x73625140] %v4445
    %s4472 = scalar_lea.vmem [#allocation1], 2
    %v4473 = vld [vmem:[%s4472] ss:$4 sm:$0xff]
    %4474 = vrot.lane.b32.xlu0 %v4473, 64
    %v4475 = vpop.permute.xlu0 %4474
    %4477 = vst.msk [vmem:[#allocation5 + $0x16] sm:$0x1] %vm4176, %v4475
    %4478 = vst.sshfl [vmem:[#allocation1] sm:$0xff pattern:$0x73625140] %v4445
    %s4479 = scalar_lea.vmem [#allocation1], 2
    %v4480 = vld [vmem:[%s4479] ss:$4 sm:$0xff]
    %v4481 = vrot.slane %v4480, 7
    %v4482 = vrot.slane %v4481, 2
    %4483 = vrot.lane.b32.xlu0 %v4482, 96
    %v4484 = vpop.permute.xlu0 %4483
    %4486 = vst.msk [vmem:[#allocation5 + $0x16] sm:$0x1] %vm4186, %v4484
    %4487 = vst.sshfl [vmem:[#allocation1] sm:$0xff pattern:$0x73625140] %v4445
    %s4488 = scalar_lea.vmem [#allocation1], 3
    %v4489 = vld [vmem:[%s4488] ss:$4 sm:$0xff]
    %4491 = vst.msk [vmem:[#allocation5 + $0x18] sm:$0x1] %vm4160, %v4489
    %s4492 = scalar_lea.vmem %s0, 264
    %v4493 = vld [vmem:[%s4492] sm:$0xff]
    %v4494 = vld [vmem:[%s4492 + $0x8] sm:$0xff]
    %v4495 = vld [vmem:[%s4492 + $0x10] sm:$0xff]
    %v4496 = vld [vmem:[%s4492 + $0x18] sm:$0xff]
    %v4497 = vld [vmem:[%s4492 + $0x20] sm:$0xff]
    %v4498 = vld [vmem:[%s4492 + $0x28] sm:$0xff]
    %v4499 = vld [vmem:[%s4492 + $0x30] sm:$0xff]
    %v4500 = vld [vmem:[%s4492 + $0x38] sm:$0xff]
    %v4501 = vld [vmem:[%s4492 + $0x40] sm:$0xff]
    %v4502 = vld [vmem:[%s4492 + $0x48] sm:$0xff]
    %v4503 = vld [vmem:[%s4492 + $0x50] sm:$0xff]
    %v4504 = vld [vmem:[%s4492 + $0x58] sm:$0xff]
    %v4505 = vld [vmem:[%s4492 + $0x60] sm:$0xff]
    %v4506 = vld [vmem:[%s4492 + $0x68] sm:$0xff]
    %v4507 = vld [vmem:[%s4492 + $0x70] sm:$0xff]
    %v4508 = vld [vmem:[%s4492 + $0x78] sm:$0xff]
    %v4509 = vld [vmem:[%s4492 + $0x80] sm:$0xff]
    %v4510 = vld [vmem:[%s4492 + $0x88] sm:$0xff]
    %v4511 = vld [vmem:[%s4492 + $0x90] sm:$0xff]
    %v4512 = vld [vmem:[%s4492 + $0x98] sm:$0xff]
    %v4513 = vld [vmem:[%s4492 + $0xa0] sm:$0xff]
    %v4514 = vld [vmem:[%s4492 + $0xa8] sm:$0xff]
    %v4515 = vld [vmem:[%s4492 + $0xb0] sm:$0xff]
    %v4516 = vld [vmem:[%s4492 + $0xb8] sm:$0xff]
    %v4517 = vld [vmem:[%s4492 + $0xc0] sm:$0xff]
    %v4518 = vld [vmem:[%s4492 + $0xc8] sm:$0xff]
    %v4519 = vld [vmem:[%s4492 + $0xd0] sm:$0xff]
    %v4520 = vld [vmem:[%s4492 + $0xd8] sm:$0xff]
    %v4521 = vld [vmem:[%s1] sm:$0x1]
    %4523 = vset.pattern.permute.xlu0 0
    %4524 = vperm.xlu0 %4523, %v4493
    %v4525 = vpop.permute.xlu0 %4524
    %4528 = vset.pattern.permute.xlu0 0
    %4529 = vperm.xlu0 %4528, %v4494
    %v4530 = vpop.permute.xlu0 %4529
    %4533 = vset.pattern.permute.xlu0 0
    %4534 = vperm.xlu0 %4533, %v4495
    %v4535 = vpop.permute.xlu0 %4534
    %4538 = vset.pattern.permute.xlu0 0
    %4539 = vperm.xlu0 %4538, %v4496
    %v4540 = vpop.permute.xlu0 %4539
    %4543 = vset.pattern.permute.xlu0 0
    %4544 = vperm.xlu0 %4543, %v4497
    %v4545 = vpop.permute.xlu0 %4544
    %4548 = vset.pattern.permute.xlu0 0
    %4549 = vperm.xlu0 %4548, %v4498
    %v4550 = vpop.permute.xlu0 %4549
    %4553 = vset.pattern.permute.xlu0 0
    %4554 = vperm.xlu0 %4553, %v4499
    %v4555 = vpop.permute.xlu0 %4554
    %4558 = vset.pattern.permute.xlu0 0
    %4559 = vperm.xlu0 %4558, %v4500
    %v4560 = vpop.permute.xlu0 %4559
    %4563 = vset.pattern.permute.xlu0 0
    %4564 = vperm.xlu0 %4563, %v4501
    %v4565 = vpop.permute.xlu0 %4564
    %4568 = vset.pattern.permute.xlu0 0
    %4569 = vperm.xlu0 %4568, %v4502
    %v4570 = vpop.permute.xlu0 %4569
    %4573 = vset.pattern.permute.xlu0 0
    %4574 = vperm.xlu0 %4573, %v4503
    %v4575 = vpop.permute.xlu0 %4574
    %4578 = vset.pattern.permute.xlu0 0
    %4579 = vperm.xlu0 %4578, %v4504
    %v4580 = vpop.permute.xlu0 %4579
    %4583 = vset.pattern.permute.xlu0 0
    %4584 = vperm.xlu0 %4583, %v4505
    %v4585 = vpop.permute.xlu0 %4584
    %4588 = vset.pattern.permute.xlu0 0
    %4589 = vperm.xlu0 %4588, %v4506
    %v4590 = vpop.permute.xlu0 %4589
    %4593 = vset.pattern.permute.xlu0 0
    %4594 = vperm.xlu0 %4593, %v4507
    %v4595 = vpop.permute.xlu0 %4594
    %4598 = vset.pattern.permute.xlu0 0
    %4599 = vperm.xlu0 %4598, %v4508
    %v4600 = vpop.permute.xlu0 %4599
    %4603 = vset.pattern.permute.xlu0 0
    %4604 = vperm.xlu0 %4603, %v4509
    %v4605 = vpop.permute.xlu0 %4604
    %4608 = vset.pattern.permute.xlu0 0
    %4609 = vperm.xlu0 %4608, %v4510
    %v4610 = vpop.permute.xlu0 %4609
    %4613 = vset.pattern.permute.xlu0 0
    %4614 = vperm.xlu0 %4613, %v4511
    %v4615 = vpop.permute.xlu0 %4614
    %4618 = vset.pattern.permute.xlu0 0
    %4619 = vperm.xlu0 %4618, %v4512
    %v4620 = vpop.permute.xlu0 %4619
    %4623 = vset.pattern.permute.xlu0 0
    %4624 = vperm.xlu0 %4623, %v4513
    %v4625 = vpop.permute.xlu0 %4624
    %4628 = vset.pattern.permute.xlu0 0
    %4629 = vperm.xlu0 %4628, %v4514
    %v4630 = vpop.permute.xlu0 %4629
    %4633 = vset.pattern.permute.xlu0 0
    %4634 = vperm.xlu0 %4633, %v4515
    %v4635 = vpop.permute.xlu0 %4634
    %4638 = vset.pattern.permute.xlu0 0
    %4639 = vperm.xlu0 %4638, %v4516
    %v4640 = vpop.permute.xlu0 %4639
    %4643 = vset.pattern.permute.xlu0 0
    %4644 = vperm.xlu0 %4643, %v4517
    %v4645 = vpop.permute.xlu0 %4644
    %4648 = vset.pattern.permute.xlu0 0
    %4649 = vperm.xlu0 %4648, %v4518
    %v4650 = vpop.permute.xlu0 %4649
    %4653 = vset.pattern.permute.xlu0 0
    %4654 = vperm.xlu0 %4653, %v4519
    %v4655 = vpop.permute.xlu0 %4654
    %4658 = vset.pattern.permute.xlu0 0
    %4659 = vperm.xlu0 %4658, %v4520
    %v4660 = vpop.permute.xlu0 %4659
    %v4662 = vperm.slane %v4521, 0
    %v4663 = vmul.f32 %v4525, %v4662
    %v4664 = vmul.f32 %v4530, %v4662
    %v4665 = vmul.f32 %v4535, %v4662
    %v4666 = vmul.f32 %v4540, %v4662
    %v4667 = vmul.f32 %v4545, %v4662
    %v4668 = vmul.f32 %v4550, %v4662
    %v4669 = vmul.f32 %v4555, %v4662
    %v4670 = vmul.f32 %v4560, %v4662
    %v4671 = vmul.f32 %v4565, %v4662
    %v4672 = vmul.f32 %v4570, %v4662
    %v4673 = vmul.f32 %v4575, %v4662
    %v4674 = vmul.f32 %v4580, %v4662
    %v4675 = vmul.f32 %v4585, %v4662
    %v4676 = vmul.f32 %v4590, %v4662
    %v4677 = vmul.f32 %v4595, %v4662
    %v4678 = vmul.f32 %v4600, %v4662
    %v4679 = vmul.f32 %v4605, %v4662
    %v4680 = vmul.f32 %v4610, %v4662
    %v4681 = vmul.f32 %v4615, %v4662
    %v4682 = vmul.f32 %v4620, %v4662
    %v4683 = vmul.f32 %v4625, %v4662
    %v4684 = vmul.f32 %v4630, %v4662
    %v4685 = vmul.f32 %v4635, %v4662
    %v4686 = vmul.f32 %v4640, %v4662
    %v4687 = vmul.f32 %v4645, %v4662
    %v4688 = vmul.f32 %v4650, %v4662
    %v4689 = vmul.f32 %v4655, %v4662
    %v4690 = vmul.f32 %v4660, %v4662
    %v4691 = vadd.f32 %v4663, 0.0
    %v4692 = vadd.f32 %v4664, 0.0
    %v4693 = vadd.f32 %v4665, 0.0
    %v4694 = vadd.f32 %v4666, 0.0
    %v4695 = vadd.f32 %v4667, 0.0
    %v4696 = vadd.f32 %v4668, 0.0
    %v4697 = vadd.f32 %v4669, 0.0
    %v4698 = vadd.f32 %v4670, 0.0
    %v4699 = vadd.f32 %v4671, 0.0
    %v4700 = vadd.f32 %v4672, 0.0
    %v4701 = vadd.f32 %v4673, 0.0
    %v4702 = vadd.f32 %v4674, 0.0
    %v4703 = vadd.f32 %v4675, 0.0
    %v4704 = vadd.f32 %v4676, 0.0
    %v4705 = vadd.f32 %v4677, 0.0
    %v4706 = vadd.f32 %v4678, 0.0
    %v4707 = vadd.f32 %v4679, 0.0
    %v4708 = vadd.f32 %v4680, 0.0
    %v4709 = vadd.f32 %v4681, 0.0
    %v4710 = vadd.f32 %v4682, 0.0
    %v4711 = vadd.f32 %v4683, 0.0
    %v4712 = vadd.f32 %v4684, 0.0
    %v4713 = vadd.f32 %v4685, 0.0
    %v4714 = vadd.f32 %v4686, 0.0
    %v4715 = vadd.f32 %v4687, 0.0
    %v4716 = vadd.f32 %v4688, 0.0
    %v4717 = vadd.f32 %v4689, 0.0
    %v4718 = vadd.f32 %v4690, 0.0
    %v4719 = vld [vmem:[%s4492 + $0x1] sm:$0xff]
    %v4720 = vld [vmem:[%s4492 + $0x9] sm:$0xff]
    %v4721 = vld [vmem:[%s4492 + $0x11] sm:$0xff]
    %v4722 = vld [vmem:[%s4492 + $0x19] sm:$0xff]
    %v4723 = vld [vmem:[%s4492 + $0x21] sm:$0xff]
    %v4724 = vld [vmem:[%s4492 + $0x29] sm:$0xff]
    %v4725 = vld [vmem:[%s4492 + $0x31] sm:$0xff]
    %v4726 = vld [vmem:[%s4492 + $0x39] sm:$0xff]
    %v4727 = vld [vmem:[%s4492 + $0x41] sm:$0xff]
    %v4728 = vld [vmem:[%s4492 + $0x49] sm:$0xff]
    %v4729 = vld [vmem:[%s4492 + $0x51] sm:$0xff]
    %v4730 = vld [vmem:[%s4492 + $0x59] sm:$0xff]
    %v4731 = vld [vmem:[%s4492 + $0x61] sm:$0xff]
    %v4732 = vld [vmem:[%s4492 + $0x69] sm:$0xff]
    %v4733 = vld [vmem:[%s4492 + $0x71] sm:$0xff]
    %v4734 = vld [vmem:[%s4492 + $0x79] sm:$0xff]
    %v4735 = vld [vmem:[%s4492 + $0x81] sm:$0xff]
    %v4736 = vld [vmem:[%s4492 + $0x89] sm:$0xff]
    %v4737 = vld [vmem:[%s4492 + $0x91] sm:$0xff]
    %v4738 = vld [vmem:[%s4492 + $0x99] sm:$0xff]
    %v4739 = vld [vmem:[%s4492 + $0xa1] sm:$0xff]
    %v4740 = vld [vmem:[%s4492 + $0xa9] sm:$0xff]
    %v4741 = vld [vmem:[%s4492 + $0xb1] sm:$0xff]
    %v4742 = vld [vmem:[%s4492 + $0xb9] sm:$0xff]
    %v4743 = vld [vmem:[%s4492 + $0xc1] sm:$0xff]
    %v4744 = vld [vmem:[%s4492 + $0xc9] sm:$0xff]
    %v4745 = vld [vmem:[%s4492 + $0xd1] sm:$0xff]
    %v4746 = vld [vmem:[%s4492 + $0xd9] sm:$0xff]
    %v4747 = vld [vmem:[%s1 + $0x1] sm:$0x1]
    %4749 = vset.pattern.permute.xlu0 0
    %4750 = vperm.xlu0 %4749, %v4719
    %v4751 = vpop.permute.xlu0 %4750
    %4754 = vset.pattern.permute.xlu0 0
    %4755 = vperm.xlu0 %4754, %v4720
    %v4756 = vpop.permute.xlu0 %4755
    %4759 = vset.pattern.permute.xlu0 0
    %4760 = vperm.xlu0 %4759, %v4721
    %v4761 = vpop.permute.xlu0 %4760
    %4764 = vset.pattern.permute.xlu0 0
    %4765 = vperm.xlu0 %4764, %v4722
    %v4766 = vpop.permute.xlu0 %4765
    %4769 = vset.pattern.permute.xlu0 0
    %4770 = vperm.xlu0 %4769, %v4723
    %v4771 = vpop.permute.xlu0 %4770
    %4774 = vset.pattern.permute.xlu0 0
    %4775 = vperm.xlu0 %4774, %v4724
    %v4776 = vpop.permute.xlu0 %4775
    %4779 = vset.pattern.permute.xlu0 0
    %4780 = vperm.xlu0 %4779, %v4725
    %v4781 = vpop.permute.xlu0 %4780
    %4784 = vset.pattern.permute.xlu0 0
    %4785 = vperm.xlu0 %4784, %v4726
    %v4786 = vpop.permute.xlu0 %4785
    %4789 = vset.pattern.permute.xlu0 0
    %4790 = vperm.xlu0 %4789, %v4727
    %v4791 = vpop.permute.xlu0 %4790
    %4794 = vset.pattern.permute.xlu0 0
    %4795 = vperm.xlu0 %4794, %v4728
    %v4796 = vpop.permute.xlu0 %4795
    %4799 = vset.pattern.permute.xlu0 0
    %4800 = vperm.xlu0 %4799, %v4729
    %v4801 = vpop.permute.xlu0 %4800
    %4804 = vset.pattern.permute.xlu0 0
    %4805 = vperm.xlu0 %4804, %v4730
    %v4806 = vpop.permute.xlu0 %4805
    %4809 = vset.pattern.permute.xlu0 0
    %4810 = vperm.xlu0 %4809, %v4731
    %v4811 = vpop.permute.xlu0 %4810
    %4814 = vset.pattern.permute.xlu0 0
    %4815 = vperm.xlu0 %4814, %v4732
    %v4816 = vpop.permute.xlu0 %4815
    %4819 = vset.pattern.permute.xlu0 0
    %4820 = vperm.xlu0 %4819, %v4733
    %v4821 = vpop.permute.xlu0 %4820
    %4824 = vset.pattern.permute.xlu0 0
    %4825 = vperm.xlu0 %4824, %v4734
    %v4826 = vpop.permute.xlu0 %4825
    %4829 = vset.pattern.permute.xlu0 0
    %4830 = vperm.xlu0 %4829, %v4735
    %v4831 = vpop.permute.xlu0 %4830
    %4834 = vset.pattern.permute.xlu0 0
    %4835 = vperm.xlu0 %4834, %v4736
    %v4836 = vpop.permute.xlu0 %4835
    %4839 = vset.pattern.permute.xlu0 0
    %4840 = vperm.xlu0 %4839, %v4737
    %v4841 = vpop.permute.xlu0 %4840
    %4844 = vset.pattern.permute.xlu0 0
    %4845 = vperm.xlu0 %4844, %v4738
    %v4846 = vpop.permute.xlu0 %4845
    %4849 = vset.pattern.permute.xlu0 0
    %4850 = vperm.xlu0 %4849, %v4739
    %v4851 = vpop.permute.xlu0 %4850
    %4854 = vset.pattern.permute.xlu0 0
    %4855 = vperm.xlu0 %4854, %v4740
    %v4856 = vpop.permute.xlu0 %4855
    %4859 = vset.pattern.permute.xlu0 0
    %4860 = vperm.xlu0 %4859, %v4741
    %v4861 = vpop.permute.xlu0 %4860
    %4864 = vset.pattern.permute.xlu0 0
    %4865 = vperm.xlu0 %4864, %v4742
    %v4866 = vpop.permute.xlu0 %4865
    %4869 = vset.pattern.permute.xlu0 0
    %4870 = vperm.xlu0 %4869, %v4743
    %v4871 = vpop.permute.xlu0 %4870
    %4874 = vset.pattern.permute.xlu0 0
    %4875 = vperm.xlu0 %4874, %v4744
    %v4876 = vpop.permute.xlu0 %4875
    %4879 = vset.pattern.permute.xlu0 0
    %4880 = vperm.xlu0 %4879, %v4745
    %v4881 = vpop.permute.xlu0 %4880
    %4884 = vset.pattern.permute.xlu0 0
    %4885 = vperm.xlu0 %4884, %v4746
    %v4886 = vpop.permute.xlu0 %4885
    %v4888 = vperm.slane %v4747, 0
    %v4889 = vmul.f32 %v4751, %v4888
    %v4890 = vmul.f32 %v4756, %v4888
    %v4891 = vmul.f32 %v4761, %v4888
    %v4892 = vmul.f32 %v4766, %v4888
    %v4893 = vmul.f32 %v4771, %v4888
    %v4894 = vmul.f32 %v4776, %v4888
    %v4895 = vmul.f32 %v4781, %v4888
    %v4896 = vmul.f32 %v4786, %v4888
    %v4897 = vmul.f32 %v4791, %v4888
    %v4898 = vmul.f32 %v4796, %v4888
    %v4899 = vmul.f32 %v4801, %v4888
    %v4900 = vmul.f32 %v4806, %v4888
    %v4901 = vmul.f32 %v4811, %v4888
    %v4902 = vmul.f32 %v4816, %v4888
    %v4903 = vmul.f32 %v4821, %v4888
    %v4904 = vmul.f32 %v4826, %v4888
    %v4905 = vmul.f32 %v4831, %v4888
    %v4906 = vmul.f32 %v4836, %v4888
    %v4907 = vmul.f32 %v4841, %v4888
    %v4908 = vmul.f32 %v4846, %v4888
    %v4909 = vmul.f32 %v4851, %v4888
    %v4910 = vmul.f32 %v4856, %v4888
    %v4911 = vmul.f32 %v4861, %v4888
    %v4912 = vmul.f32 %v4866, %v4888
    %v4913 = vmul.f32 %v4871, %v4888
    %v4914 = vmul.f32 %v4876, %v4888
    %v4915 = vmul.f32 %v4881, %v4888
    %v4916 = vmul.f32 %v4886, %v4888
    %v4917 = vadd.f32 %v4691, %v4889
    %v4918 = vadd.f32 %v4692, %v4890
    %v4919 = vadd.f32 %v4693, %v4891
    %v4920 = vadd.f32 %v4694, %v4892
    %v4921 = vadd.f32 %v4695, %v4893
    %v4922 = vadd.f32 %v4696, %v4894
    %v4923 = vadd.f32 %v4697, %v4895
    %v4924 = vadd.f32 %v4698, %v4896
    %v4925 = vadd.f32 %v4699, %v4897
    %v4926 = vadd.f32 %v4700, %v4898
    %v4927 = vadd.f32 %v4701, %v4899
    %v4928 = vadd.f32 %v4702, %v4900
    %v4929 = vadd.f32 %v4703, %v4901
    %v4930 = vadd.f32 %v4704, %v4902
    %v4931 = vadd.f32 %v4705, %v4903
    %v4932 = vadd.f32 %v4706, %v4904
    %v4933 = vadd.f32 %v4707, %v4905
    %v4934 = vadd.f32 %v4708, %v4906
    %v4935 = vadd.f32 %v4709, %v4907
    %v4936 = vadd.f32 %v4710, %v4908
    %v4937 = vadd.f32 %v4711, %v4909
    %v4938 = vadd.f32 %v4712, %v4910
    %v4939 = vadd.f32 %v4713, %v4911
    %v4940 = vadd.f32 %v4714, %v4912
    %v4941 = vadd.f32 %v4715, %v4913
    %v4942 = vadd.f32 %v4716, %v4914
    %v4943 = vadd.f32 %v4717, %v4915
    %v4944 = vadd.f32 %v4718, %v4916
    %v4945 = vld [vmem:[%s4492 + $0x2] sm:$0xff]
    %v4946 = vld [vmem:[%s4492 + $0xa] sm:$0xff]
    %v4947 = vld [vmem:[%s4492 + $0x12] sm:$0xff]
    %v4948 = vld [vmem:[%s4492 + $0x1a] sm:$0xff]
    %v4949 = vld [vmem:[%s4492 + $0x22] sm:$0xff]
    %v4950 = vld [vmem:[%s4492 + $0x2a] sm:$0xff]
    %v4951 = vld [vmem:[%s4492 + $0x32] sm:$0xff]
    %v4952 = vld [vmem:[%s4492 + $0x3a] sm:$0xff]
    %v4953 = vld [vmem:[%s4492 + $0x42] sm:$0xff]
    %v4954 = vld [vmem:[%s4492 + $0x4a] sm:$0xff]
    %v4955 = vld [vmem:[%s4492 + $0x52] sm:$0xff]
    %v4956 = vld [vmem:[%s4492 + $0x5a] sm:$0xff]
    %v4957 = vld [vmem:[%s4492 + $0x62] sm:$0xff]
    %v4958 = vld [vmem:[%s4492 + $0x6a] sm:$0xff]
    %v4959 = vld [vmem:[%s4492 + $0x72] sm:$0xff]
    %v4960 = vld [vmem:[%s4492 + $0x7a] sm:$0xff]
    %v4961 = vld [vmem:[%s4492 + $0x82] sm:$0xff]
    %v4962 = vld [vmem:[%s4492 + $0x8a] sm:$0xff]
    %v4963 = vld [vmem:[%s4492 + $0x92] sm:$0xff]
    %v4964 = vld [vmem:[%s4492 + $0x9a] sm:$0xff]
    %v4965 = vld [vmem:[%s4492 + $0xa2] sm:$0xff]
    %v4966 = vld [vmem:[%s4492 + $0xaa] sm:$0xff]
    %v4967 = vld [vmem:[%s4492 + $0xb2] sm:$0xff]
    %v4968 = vld [vmem:[%s4492 + $0xba] sm:$0xff]
    %v4969 = vld [vmem:[%s4492 + $0xc2] sm:$0xff]
    %v4970 = vld [vmem:[%s4492 + $0xca] sm:$0xff]
    %v4971 = vld [vmem:[%s4492 + $0xd2] sm:$0xff]
    %v4972 = vld [vmem:[%s4492 + $0xda] sm:$0xff]
    %v4973 = vld [vmem:[%s1 + $0x2] sm:$0x1]
    %4975 = vset.pattern.permute.xlu0 0
    %4976 = vperm.xlu0 %4975, %v4945
    %v4977 = vpop.permute.xlu0 %4976
    %4980 = vset.pattern.permute.xlu0 0
    %4981 = vperm.xlu0 %4980, %v4946
    %v4982 = vpop.permute.xlu0 %4981
    %4985 = vset.pattern.permute.xlu0 0
    %4986 = vperm.xlu0 %4985, %v4947
    %v4987 = vpop.permute.xlu0 %4986
    %4990 = vset.pattern.permute.xlu0 0
    %4991 = vperm.xlu0 %4990, %v4948
    %v4992 = vpop.permute.xlu0 %4991
    %4995 = vset.pattern.permute.xlu0 0
    %4996 = vperm.xlu0 %4995, %v4949
    %v4997 = vpop.permute.xlu0 %4996
    %5000 = vset.pattern.permute.xlu0 0
    %5001 = vperm.xlu0 %5000, %v4950
    %v5002 = vpop.permute.xlu0 %5001
    %5005 = vset.pattern.permute.xlu0 0
    %5006 = vperm.xlu0 %5005, %v4951
    %v5007 = vpop.permute.xlu0 %5006
    %5010 = vset.pattern.permute.xlu0 0
    %5011 = vperm.xlu0 %5010, %v4952
    %v5012 = vpop.permute.xlu0 %5011
    %5015 = vset.pattern.permute.xlu0 0
    %5016 = vperm.xlu0 %5015, %v4953
    %v5017 = vpop.permute.xlu0 %5016
    %5020 = vset.pattern.permute.xlu0 0
    %5021 = vperm.xlu0 %5020, %v4954
    %v5022 = vpop.permute.xlu0 %5021
    %5025 = vset.pattern.permute.xlu0 0
    %5026 = vperm.xlu0 %5025, %v4955
    %v5027 = vpop.permute.xlu0 %5026
    %5030 = vset.pattern.permute.xlu0 0
    %5031 = vperm.xlu0 %5030, %v4956
    %v5032 = vpop.permute.xlu0 %5031
    %5035 = vset.pattern.permute.xlu0 0
    %5036 = vperm.xlu0 %5035, %v4957
    %v5037 = vpop.permute.xlu0 %5036
    %5040 = vset.pattern.permute.xlu0 0
    %5041 = vperm.xlu0 %5040, %v4958
    %v5042 = vpop.permute.xlu0 %5041
    %5045 = vset.pattern.permute.xlu0 0
    %5046 = vperm.xlu0 %5045, %v4959
    %v5047 = vpop.permute.xlu0 %5046
    %5050 = vset.pattern.permute.xlu0 0
    %5051 = vperm.xlu0 %5050, %v4960
    %v5052 = vpop.permute.xlu0 %5051
    %5055 = vset.pattern.permute.xlu0 0
    %5056 = vperm.xlu0 %5055, %v4961
    %v5057 = vpop.permute.xlu0 %5056
    %5060 = vset.pattern.permute.xlu0 0
    %5061 = vperm.xlu0 %5060, %v4962
    %v5062 = vpop.permute.xlu0 %5061
    %5065 = vset.pattern.permute.xlu0 0
    %5066 = vperm.xlu0 %5065, %v4963
    %v5067 = vpop.permute.xlu0 %5066
    %5070 = vset.pattern.permute.xlu0 0
    %5071 = vperm.xlu0 %5070, %v4964
    %v5072 = vpop.permute.xlu0 %5071
    %5075 = vset.pattern.permute.xlu0 0
    %5076 = vperm.xlu0 %5075, %v4965
    %v5077 = vpop.permute.xlu0 %5076
    %5080 = vset.pattern.permute.xlu0 0
    %5081 = vperm.xlu0 %5080, %v4966
    %v5082 = vpop.permute.xlu0 %5081
    %5085 = vset.pattern.permute.xlu0 0
    %5086 = vperm.xlu0 %5085, %v4967
    %v5087 = vpop.permute.xlu0 %5086
    %5090 = vset.pattern.permute.xlu0 0
    %5091 = vperm.xlu0 %5090, %v4968
    %v5092 = vpop.permute.xlu0 %5091
    %5095 = vset.pattern.permute.xlu0 0
    %5096 = vperm.xlu0 %5095, %v4969
    %v5097 = vpop.permute.xlu0 %5096
    %5100 = vset.pattern.permute.xlu0 0
    %5101 = vperm.xlu0 %5100, %v4970
    %v5102 = vpop.permute.xlu0 %5101
    %5105 = vset.pattern.permute.xlu0 0
    %5106 = vperm.xlu0 %5105, %v4971
    %v5107 = vpop.permute.xlu0 %5106
    %5110 = vset.pattern.permute.xlu0 0
    %5111 = vperm.xlu0 %5110, %v4972
    %v5112 = vpop.permute.xlu0 %5111
    %v5114 = vperm.slane %v4973, 0
    %v5115 = vmul.f32 %v4977, %v5114
    %v5116 = vmul.f32 %v4982, %v5114
    %v5117 = vmul.f32 %v4987, %v5114
    %v5118 = vmul.f32 %v4992, %v5114
    %v5119 = vmul.f32 %v4997, %v5114
    %v5120 = vmul.f32 %v5002, %v5114
    %v5121 = vmul.f32 %v5007, %v5114
    %v5122 = vmul.f32 %v5012, %v5114
    %v5123 = vmul.f32 %v5017, %v5114
    %v5124 = vmul.f32 %v5022, %v5114
    %v5125 = vmul.f32 %v5027, %v5114
    %v5126 = vmul.f32 %v5032, %v5114
    %v5127 = vmul.f32 %v5037, %v5114
    %v5128 = vmul.f32 %v5042, %v5114
    %v5129 = vmul.f32 %v5047, %v5114
    %v5130 = vmul.f32 %v5052, %v5114
    %v5131 = vmul.f32 %v5057, %v5114
    %v5132 = vmul.f32 %v5062, %v5114
    %v5133 = vmul.f32 %v5067, %v5114
    %v5134 = vmul.f32 %v5072, %v5114
    %v5135 = vmul.f32 %v5077, %v5114
    %v5136 = vmul.f32 %v5082, %v5114
    %v5137 = vmul.f32 %v5087, %v5114
    %v5138 = vmul.f32 %v5092, %v5114
    %v5139 = vmul.f32 %v5097, %v5114
    %v5140 = vmul.f32 %v5102, %v5114
    %v5141 = vmul.f32 %v5107, %v5114
    %v5142 = vmul.f32 %v5112, %v5114
    %v5143 = vadd.f32 %v4917, %v5115
    %v5144 = vadd.f32 %v4918, %v5116
    %v5145 = vadd.f32 %v4919, %v5117
    %v5146 = vadd.f32 %v4920, %v5118
    %v5147 = vadd.f32 %v4921, %v5119
    %v5148 = vadd.f32 %v4922, %v5120
    %v5149 = vadd.f32 %v4923, %v5121
    %v5150 = vadd.f32 %v4924, %v5122
    %v5151 = vadd.f32 %v4925, %v5123
    %v5152 = vadd.f32 %v4926, %v5124
    %v5153 = vadd.f32 %v4927, %v5125
    %v5154 = vadd.f32 %v4928, %v5126
    %v5155 = vadd.f32 %v4929, %v5127
    %v5156 = vadd.f32 %v4930, %v5128
    %v5157 = vadd.f32 %v4931, %v5129
    %v5158 = vadd.f32 %v4932, %v5130
    %v5159 = vadd.f32 %v4933, %v5131
    %v5160 = vadd.f32 %v4934, %v5132
    %v5161 = vadd.f32 %v4935, %v5133
    %v5162 = vadd.f32 %v4936, %v5134
    %v5163 = vadd.f32 %v4937, %v5135
    %v5164 = vadd.f32 %v4938, %v5136
    %v5165 = vadd.f32 %v4939, %v5137
    %v5166 = vadd.f32 %v4940, %v5138
    %v5167 = vadd.f32 %v4941, %v5139
    %v5168 = vadd.f32 %v4942, %v5140
    %v5169 = vadd.f32 %v4943, %v5141
    %v5170 = vadd.f32 %v4944, %v5142
    %v5171 = vld [vmem:[%s4492 + $0x10] sm:$0xff]
    %v5172 = vld [vmem:[%s4492 + $0x18] sm:$0xff]
    %v5173 = vld [vmem:[%s4492 + $0x20] sm:$0xff]
    %v5174 = vld [vmem:[%s4492 + $0x28] sm:$0xff]
    %v5175 = vld [vmem:[%s4492 + $0x30] sm:$0xff]
    %v5176 = vld [vmem:[%s4492 + $0x38] sm:$0xff]
    %v5177 = vld [vmem:[%s4492 + $0x40] sm:$0xff]
    %v5178 = vld [vmem:[%s4492 + $0x48] sm:$0xff]
    %v5179 = vld [vmem:[%s4492 + $0x50] sm:$0xff]
    %v5180 = vld [vmem:[%s4492 + $0x58] sm:$0xff]
    %v5181 = vld [vmem:[%s4492 + $0x60] sm:$0xff]
    %v5182 = vld [vmem:[%s4492 + $0x68] sm:$0xff]
    %v5183 = vld [vmem:[%s4492 + $0x70] sm:$0xff]
    %v5184 = vld [vmem:[%s4492 + $0x78] sm:$0xff]
    %v5185 = vld [vmem:[%s4492 + $0x80] sm:$0xff]
    %v5186 = vld [vmem:[%s4492 + $0x88] sm:$0xff]
    %v5187 = vld [vmem:[%s4492 + $0x90] sm:$0xff]
    %v5188 = vld [vmem:[%s4492 + $0x98] sm:$0xff]
    %v5189 = vld [vmem:[%s4492 + $0xa0] sm:$0xff]
    %v5190 = vld [vmem:[%s4492 + $0xa8] sm:$0xff]
    %v5191 = vld [vmem:[%s4492 + $0xb0] sm:$0xff]
    %v5192 = vld [vmem:[%s4492 + $0xb8] sm:$0xff]
    %v5193 = vld [vmem:[%s4492 + $0xc0] sm:$0xff]
    %v5194 = vld [vmem:[%s4492 + $0xc8] sm:$0xff]
    %v5195 = vld [vmem:[%s4492 + $0xd0] sm:$0xff]
    %v5196 = vld [vmem:[%s4492 + $0xd8] sm:$0xff]
    %v5197 = vld [vmem:[%s4492 + $0xe0] sm:$0xff]
    %v5198 = vld [vmem:[%s4492 + $0xe8] sm:$0xff]
    %v5199 = vld [vmem:[%s1 + $0x3] sm:$0x1]
    %5201 = vset.pattern.permute.xlu0 0
    %5202 = vperm.xlu0 %5201, %v5171
    %v5203 = vpop.permute.xlu0 %5202
    %5206 = vset.pattern.permute.xlu0 0
    %5207 = vperm.xlu0 %5206, %v5172
    %v5208 = vpop.permute.xlu0 %5207
    %5211 = vset.pattern.permute.xlu0 0
    %5212 = vperm.xlu0 %5211, %v5173
    %v5213 = vpop.permute.xlu0 %5212
    %5216 = vset.pattern.permute.xlu0 0
    %5217 = vperm.xlu0 %5216, %v5174
    %v5218 = vpop.permute.xlu0 %5217
    %5221 = vset.pattern.permute.xlu0 0
    %5222 = vperm.xlu0 %5221, %v5175
    %v5223 = vpop.permute.xlu0 %5222
    %5226 = vset.pattern.permute.xlu0 0
    %5227 = vperm.xlu0 %5226, %v5176
    %v5228 = vpop.permute.xlu0 %5227
    %5231 = vset.pattern.permute.xlu0 0
    %5232 = vperm.xlu0 %5231, %v5177
    %v5233 = vpop.permute.xlu0 %5232
    %5236 = vset.pattern.permute.xlu0 0
    %5237 = vperm.xlu0 %5236, %v5178
    %v5238 = vpop.permute.xlu0 %5237
    %5241 = vset.pattern.permute.xlu0 0
    %5242 = vperm.xlu0 %5241, %v5179
    %v5243 = vpop.permute.xlu0 %5242
    %5246 = vset.pattern.permute.xlu0 0
    %5247 = vperm.xlu0 %5246, %v5180
    %v5248 = vpop.permute.xlu0 %5247
    %5251 = vset.pattern.permute.xlu0 0
    %5252 = vperm.xlu0 %5251, %v5181
    %v5253 = vpop.permute.xlu0 %5252
    %5256 = vset.pattern.permute.xlu0 0
    %5257 = vperm.xlu0 %5256, %v5182
    %v5258 = vpop.permute.xlu0 %5257
    %5261 = vset.pattern.permute.xlu0 0
    %5262 = vperm.xlu0 %5261, %v5183
    %v5263 = vpop.permute.xlu0 %5262
    %5266 = vset.pattern.permute.xlu0 0
    %5267 = vperm.xlu0 %5266, %v5184
    %v5268 = vpop.permute.xlu0 %5267
    %5271 = vset.pattern.permute.xlu0 0
    %5272 = vperm.xlu0 %5271, %v5185
    %v5273 = vpop.permute.xlu0 %5272
    %5276 = vset.pattern.permute.xlu0 0
    %5277 = vperm.xlu0 %5276, %v5186
    %v5278 = vpop.permute.xlu0 %5277
    %5281 = vset.pattern.permute.xlu0 0
    %5282 = vperm.xlu0 %5281, %v5187
    %v5283 = vpop.permute.xlu0 %5282
    %5286 = vset.pattern.permute.xlu0 0
    %5287 = vperm.xlu0 %5286, %v5188
    %v5288 = vpop.permute.xlu0 %5287
    %5291 = vset.pattern.permute.xlu0 0
    %5292 = vperm.xlu0 %5291, %v5189
    %v5293 = vpop.permute.xlu0 %5292
    %5296 = vset.pattern.permute.xlu0 0
    %5297 = vperm.xlu0 %5296, %v5190
    %v5298 = vpop.permute.xlu0 %5297
    %5301 = vset.pattern.permute.xlu0 0
    %5302 = vperm.xlu0 %5301, %v5191
    %v5303 = vpop.permute.xlu0 %5302
    %5306 = vset.pattern.permute.xlu0 0
    %5307 = vperm.xlu0 %5306, %v5192
    %v5308 = vpop.permute.xlu0 %5307
    %5311 = vset.pattern.permute.xlu0 0
    %5312 = vperm.xlu0 %5311, %v5193
    %v5313 = vpop.permute.xlu0 %5312
    %5316 = vset.pattern.permute.xlu0 0
    %5317 = vperm.xlu0 %5316, %v5194
    %v5318 = vpop.permute.xlu0 %5317
    %5321 = vset.pattern.permute.xlu0 0
    %5322 = vperm.xlu0 %5321, %v5195
    %v5323 = vpop.permute.xlu0 %5322
    %5326 = vset.pattern.permute.xlu0 0
    %5327 = vperm.xlu0 %5326, %v5196
    %v5328 = vpop.permute.xlu0 %5327
    %5331 = vset.pattern.permute.xlu0 0
    %5332 = vperm.xlu0 %5331, %v5197
    %v5333 = vpop.permute.xlu0 %5332
    %5336 = vset.pattern.permute.xlu0 0
    %5337 = vperm.xlu0 %5336, %v5198
    %v5338 = vpop.permute.xlu0 %5337
    %v5340 = vperm.slane %v5199, 0
    %v5341 = vmul.f32 %v5203, %v5340
    %v5342 = vmul.f32 %v5208, %v5340
    %v5343 = vmul.f32 %v5213, %v5340
    %v5344 = vmul.f32 %v5218, %v5340
    %v5345 = vmul.f32 %v5223, %v5340
    %v5346 = vmul.f32 %v5228, %v5340
    %v5347 = vmul.f32 %v5233, %v5340
    %v5348 = vmul.f32 %v5238, %v5340
    %v5349 = vmul.f32 %v5243, %v5340
    %v5350 = vmul.f32 %v5248, %v5340
    %v5351 = vmul.f32 %v5253, %v5340
    %v5352 = vmul.f32 %v5258, %v5340
    %v5353 = vmul.f32 %v5263, %v5340
    %v5354 = vmul.f32 %v5268, %v5340
    %v5355 = vmul.f32 %v5273, %v5340
    %v5356 = vmul.f32 %v5278, %v5340
    %v5357 = vmul.f32 %v5283, %v5340
    %v5358 = vmul.f32 %v5288, %v5340
    %v5359 = vmul.f32 %v5293, %v5340
    %v5360 = vmul.f32 %v5298, %v5340
    %v5361 = vmul.f32 %v5303, %v5340
    %v5362 = vmul.f32 %v5308, %v5340
    %v5363 = vmul.f32 %v5313, %v5340
    %v5364 = vmul.f32 %v5318, %v5340
    %v5365 = vmul.f32 %v5323, %v5340
    %v5366 = vmul.f32 %v5328, %v5340
    %v5367 = vmul.f32 %v5333, %v5340
    %v5368 = vmul.f32 %v5338, %v5340
    %v5369 = vadd.f32 %v5143, %v5341
    %v5370 = vadd.f32 %v5144, %v5342
    %v5371 = vadd.f32 %v5145, %v5343
    %v5372 = vadd.f32 %v5146, %v5344
    %v5373 = vadd.f32 %v5147, %v5345
    %v5374 = vadd.f32 %v5148, %v5346
    %v5375 = vadd.f32 %v5149, %v5347
    %v5376 = vadd.f32 %v5150, %v5348
    %v5377 = vadd.f32 %v5151, %v5349
    %v5378 = vadd.f32 %v5152, %v5350
    %v5379 = vadd.f32 %v5153, %v5351
    %v5380 = vadd.f32 %v5154, %v5352
    %v5381 = vadd.f32 %v5155, %v5353
    %v5382 = vadd.f32 %v5156, %v5354
    %v5383 = vadd.f32 %v5157, %v5355
    %v5384 = vadd.f32 %v5158, %v5356
    %v5385 = vadd.f32 %v5159, %v5357
    %v5386 = vadd.f32 %v5160, %v5358
    %v5387 = vadd.f32 %v5161, %v5359
    %v5388 = vadd.f32 %v5162, %v5360
    %v5389 = vadd.f32 %v5163, %v5361
    %v5390 = vadd.f32 %v5164, %v5362
    %v5391 = vadd.f32 %v5165, %v5363
    %v5392 = vadd.f32 %v5166, %v5364
    %v5393 = vadd.f32 %v5167, %v5365
    %v5394 = vadd.f32 %v5168, %v5366
    %v5395 = vadd.f32 %v5169, %v5367
    %v5396 = vadd.f32 %v5170, %v5368
    %v5397 = vld [vmem:[%s4492 + $0x11] sm:$0xff]
    %v5398 = vld [vmem:[%s4492 + $0x19] sm:$0xff]
    %v5399 = vld [vmem:[%s4492 + $0x21] sm:$0xff]
    %v5400 = vld [vmem:[%s4492 + $0x29] sm:$0xff]
    %v5401 = vld [vmem:[%s4492 + $0x31] sm:$0xff]
    %v5402 = vld [vmem:[%s4492 + $0x39] sm:$0xff]
    %v5403 = vld [vmem:[%s4492 + $0x41] sm:$0xff]
    %v5404 = vld [vmem:[%s4492 + $0x49] sm:$0xff]
    %v5405 = vld [vmem:[%s4492 + $0x51] sm:$0xff]
    %v5406 = vld [vmem:[%s4492 + $0x59] sm:$0xff]
    %v5407 = vld [vmem:[%s4492 + $0x61] sm:$0xff]
    %v5408 = vld [vmem:[%s4492 + $0x69] sm:$0xff]
    %v5409 = vld [vmem:[%s4492 + $0x71] sm:$0xff]
    %v5410 = vld [vmem:[%s4492 + $0x79] sm:$0xff]
    %v5411 = vld [vmem:[%s4492 + $0x81] sm:$0xff]
    %v5412 = vld [vmem:[%s4492 + $0x89] sm:$0xff]
    %v5413 = vld [vmem:[%s4492 + $0x91] sm:$0xff]
    %v5414 = vld [vmem:[%s4492 + $0x99] sm:$0xff]
    %v5415 = vld [vmem:[%s4492 + $0xa1] sm:$0xff]
    %v5416 = vld [vmem:[%s4492 + $0xa9] sm:$0xff]
    %v5417 = vld [vmem:[%s4492 + $0xb1] sm:$0xff]
    %v5418 = vld [vmem:[%s4492 + $0xb9] sm:$0xff]
    %v5419 = vld [vmem:[%s4492 + $0xc1] sm:$0xff]
    %v5420 = vld [vmem:[%s4492 + $0xc9] sm:$0xff]
    %v5421 = vld [vmem:[%s4492 + $0xd1] sm:$0xff]
    %v5422 = vld [vmem:[%s4492 + $0xd9] sm:$0xff]
    %v5423 = vld [vmem:[%s4492 + $0xe1] sm:$0xff]
    %v5424 = vld [vmem:[%s4492 + $0xe9] sm:$0xff]
    %v5425 = vld [vmem:[%s1 + $0x4] sm:$0x1]
    %5427 = vset.pattern.permute.xlu0 0
    %5428 = vperm.xlu0 %5427, %v5397
    %v5429 = vpop.permute.xlu0 %5428
    %5432 = vset.pattern.permute.xlu0 0
    %5433 = vperm.xlu0 %5432, %v5398
    %v5434 = vpop.permute.xlu0 %5433
    %5437 = vset.pattern.permute.xlu0 0
    %5438 = vperm.xlu0 %5437, %v5399
    %v5439 = vpop.permute.xlu0 %5438
    %5442 = vset.pattern.permute.xlu0 0
    %5443 = vperm.xlu0 %5442, %v5400
    %v5444 = vpop.permute.xlu0 %5443
    %5447 = vset.pattern.permute.xlu0 0
    %5448 = vperm.xlu0 %5447, %v5401
    %v5449 = vpop.permute.xlu0 %5448
    %5452 = vset.pattern.permute.xlu0 0
    %5453 = vperm.xlu0 %5452, %v5402
    %v5454 = vpop.permute.xlu0 %5453
    %5457 = vset.pattern.permute.xlu0 0
    %5458 = vperm.xlu0 %5457, %v5403
    %v5459 = vpop.permute.xlu0 %5458
    %5462 = vset.pattern.permute.xlu0 0
    %5463 = vperm.xlu0 %5462, %v5404
    %v5464 = vpop.permute.xlu0 %5463
    %5467 = vset.pattern.permute.xlu0 0
    %5468 = vperm.xlu0 %5467, %v5405
    %v5469 = vpop.permute.xlu0 %5468
    %5472 = vset.pattern.permute.xlu0 0
    %5473 = vperm.xlu0 %5472, %v5406
    %v5474 = vpop.permute.xlu0 %5473
    %5477 = vset.pattern.permute.xlu0 0
    %5478 = vperm.xlu0 %5477, %v5407
    %v5479 = vpop.permute.xlu0 %5478
    %5482 = vset.pattern.permute.xlu0 0
    %5483 = vperm.xlu0 %5482, %v5408
    %v5484 = vpop.permute.xlu0 %5483
    %5487 = vset.pattern.permute.xlu0 0
    %5488 = vperm.xlu0 %5487, %v5409
    %v5489 = vpop.permute.xlu0 %5488
    %5492 = vset.pattern.permute.xlu0 0
    %5493 = vperm.xlu0 %5492, %v5410
    %v5494 = vpop.permute.xlu0 %5493
    %5497 = vset.pattern.permute.xlu0 0
    %5498 = vperm.xlu0 %5497, %v5411
    %v5499 = vpop.permute.xlu0 %5498
    %5502 = vset.pattern.permute.xlu0 0
    %5503 = vperm.xlu0 %5502, %v5412
    %v5504 = vpop.permute.xlu0 %5503
    %5507 = vset.pattern.permute.xlu0 0
    %5508 = vperm.xlu0 %5507, %v5413
    %v5509 = vpop.permute.xlu0 %5508
    %5512 = vset.pattern.permute.xlu0 0
    %5513 = vperm.xlu0 %5512, %v5414
    %v5514 = vpop.permute.xlu0 %5513
    %5517 = vset.pattern.permute.xlu0 0
    %5518 = vperm.xlu0 %5517, %v5415
    %v5519 = vpop.permute.xlu0 %5518
    %5522 = vset.pattern.permute.xlu0 0
    %5523 = vperm.xlu0 %5522, %v5416
    %v5524 = vpop.permute.xlu0 %5523
    %5527 = vset.pattern.permute.xlu0 0
    %5528 = vperm.xlu0 %5527, %v5417
    %v5529 = vpop.permute.xlu0 %5528
    %5532 = vset.pattern.permute.xlu0 0
    %5533 = vperm.xlu0 %5532, %v5418
    %v5534 = vpop.permute.xlu0 %5533
    %5537 = vset.pattern.permute.xlu0 0
    %5538 = vperm.xlu0 %5537, %v5419
    %v5539 = vpop.permute.xlu0 %5538
    %5542 = vset.pattern.permute.xlu0 0
    %5543 = vperm.xlu0 %5542, %v5420
    %v5544 = vpop.permute.xlu0 %5543
    %5547 = vset.pattern.permute.xlu0 0
    %5548 = vperm.xlu0 %5547, %v5421
    %v5549 = vpop.permute.xlu0 %5548
    %5552 = vset.pattern.permute.xlu0 0
    %5553 = vperm.xlu0 %5552, %v5422
    %v5554 = vpop.permute.xlu0 %5553
    %5557 = vset.pattern.permute.xlu0 0
    %5558 = vperm.xlu0 %5557, %v5423
    %v5559 = vpop.permute.xlu0 %5558
    %5562 = vset.pattern.permute.xlu0 0
    %5563 = vperm.xlu0 %5562, %v5424
    %v5564 = vpop.permute.xlu0 %5563
    %v5566 = vperm.slane %v5425, 0
    %v5567 = vmul.f32 %v5429, %v5566
    %v5568 = vmul.f32 %v5434, %v5566
    %v5569 = vmul.f32 %v5439, %v5566
    %v5570 = vmul.f32 %v5444, %v5566
    %v5571 = vmul.f32 %v5449, %v5566
    %v5572 = vmul.f32 %v5454, %v5566
    %v5573 = vmul.f32 %v5459, %v5566
    %v5574 = vmul.f32 %v5464, %v5566
    %v5575 = vmul.f32 %v5469, %v5566
    %v5576 = vmul.f32 %v5474, %v5566
    %v5577 = vmul.f32 %v5479, %v5566
    %v5578 = vmul.f32 %v5484, %v5566
    %v5579 = vmul.f32 %v5489, %v5566
    %v5580 = vmul.f32 %v5494, %v5566
    %v5581 = vmul.f32 %v5499, %v5566
    %v5582 = vmul.f32 %v5504, %v5566
    %v5583 = vmul.f32 %v5509, %v5566
    %v5584 = vmul.f32 %v5514, %v5566
    %v5585 = vmul.f32 %v5519, %v5566
    %v5586 = vmul.f32 %v5524, %v5566
    %v5587 = vmul.f32 %v5529, %v5566
    %v5588 = vmul.f32 %v5534, %v5566
    %v5589 = vmul.f32 %v5539, %v5566
    %v5590 = vmul.f32 %v5544, %v5566
    %v5591 = vmul.f32 %v5549, %v5566
    %v5592 = vmul.f32 %v5554, %v5566
    %v5593 = vmul.f32 %v5559, %v5566
    %v5594 = vmul.f32 %v5564, %v5566
    %v5595 = vadd.f32 %v5369, %v5567
    %v5596 = vadd.f32 %v5370, %v5568
    %v5597 = vadd.f32 %v5371, %v5569
    %v5598 = vadd.f32 %v5372, %v5570
    %v5599 = vadd.f32 %v5373, %v5571
    %v5600 = vadd.f32 %v5374, %v5572
    %v5601 = vadd.f32 %v5375, %v5573
    %v5602 = vadd.f32 %v5376, %v5574
    %v5603 = vadd.f32 %v5377, %v5575
    %v5604 = vadd.f32 %v5378, %v5576
    %v5605 = vadd.f32 %v5379, %v5577
    %v5606 = vadd.f32 %v5380, %v5578
    %v5607 = vadd.f32 %v5381, %v5579
    %v5608 = vadd.f32 %v5382, %v5580
    %v5609 = vadd.f32 %v5383, %v5581
    %v5610 = vadd.f32 %v5384, %v5582
    %v5611 = vadd.f32 %v5385, %v5583
    %v5612 = vadd.f32 %v5386, %v5584
    %v5613 = vadd.f32 %v5387, %v5585
    %v5614 = vadd.f32 %v5388, %v5586
    %v5615 = vadd.f32 %v5389, %v5587
    %v5616 = vadd.f32 %v5390, %v5588
    %v5617 = vadd.f32 %v5391, %v5589
    %v5618 = vadd.f32 %v5392, %v5590
    %v5619 = vadd.f32 %v5393, %v5591
    %v5620 = vadd.f32 %v5394, %v5592
    %v5621 = vadd.f32 %v5395, %v5593
    %v5622 = vadd.f32 %v5396, %v5594
    %v5623 = vld [vmem:[%s4492 + $0x12] sm:$0xff]
    %v5624 = vld [vmem:[%s4492 + $0x1a] sm:$0xff]
    %v5625 = vld [vmem:[%s4492 + $0x22] sm:$0xff]
    %v5626 = vld [vmem:[%s4492 + $0x2a] sm:$0xff]
    %v5627 = vld [vmem:[%s4492 + $0x32] sm:$0xff]
    %v5628 = vld [vmem:[%s4492 + $0x3a] sm:$0xff]
    %v5629 = vld [vmem:[%s4492 + $0x42] sm:$0xff]
    %v5630 = vld [vmem:[%s4492 + $0x4a] sm:$0xff]
    %v5631 = vld [vmem:[%s4492 + $0x52] sm:$0xff]
    %v5632 = vld [vmem:[%s4492 + $0x5a] sm:$0xff]
    %v5633 = vld [vmem:[%s4492 + $0x62] sm:$0xff]
    %v5634 = vld [vmem:[%s4492 + $0x6a] sm:$0xff]
    %v5635 = vld [vmem:[%s4492 + $0x72] sm:$0xff]
    %v5636 = vld [vmem:[%s4492 + $0x7a] sm:$0xff]
    %v5637 = vld [vmem:[%s4492 + $0x82] sm:$0xff]
    %v5638 = vld [vmem:[%s4492 + $0x8a] sm:$0xff]
    %v5639 = vld [vmem:[%s4492 + $0x92] sm:$0xff]
    %v5640 = vld [vmem:[%s4492 + $0x9a] sm:$0xff]
    %v5641 = vld [vmem:[%s4492 + $0xa2] sm:$0xff]
    %v5642 = vld [vmem:[%s4492 + $0xaa] sm:$0xff]
    %v5643 = vld [vmem:[%s4492 + $0xb2] sm:$0xff]
    %v5644 = vld [vmem:[%s4492 + $0xba] sm:$0xff]
    %v5645 = vld [vmem:[%s4492 + $0xc2] sm:$0xff]
    %v5646 = vld [vmem:[%s4492 + $0xca] sm:$0xff]
    %v5647 = vld [vmem:[%s4492 + $0xd2] sm:$0xff]
    %v5648 = vld [vmem:[%s4492 + $0xda] sm:$0xff]
    %v5649 = vld [vmem:[%s4492 + $0xe2] sm:$0xff]
    %v5650 = vld [vmem:[%s4492 + $0xea] sm:$0xff]
    %v5651 = vld [vmem:[%s1 + $0x5] sm:$0x1]
    %5653 = vset.pattern.permute.xlu0 0
    %5654 = vperm.xlu0 %5653, %v5623
    %v5655 = vpop.permute.xlu0 %5654
    %5658 = vset.pattern.permute.xlu0 0
    %5659 = vperm.xlu0 %5658, %v5624
    %v5660 = vpop.permute.xlu0 %5659
    %5663 = vset.pattern.permute.xlu0 0
    %5664 = vperm.xlu0 %5663, %v5625
    %v5665 = vpop.permute.xlu0 %5664
    %5668 = vset.pattern.permute.xlu0 0
    %5669 = vperm.xlu0 %5668, %v5626
    %v5670 = vpop.permute.xlu0 %5669
    %5673 = vset.pattern.permute.xlu0 0
    %5674 = vperm.xlu0 %5673, %v5627
    %v5675 = vpop.permute.xlu0 %5674
    %5678 = vset.pattern.permute.xlu0 0
    %5679 = vperm.xlu0 %5678, %v5628
    %v5680 = vpop.permute.xlu0 %5679
    %5683 = vset.pattern.permute.xlu0 0
    %5684 = vperm.xlu0 %5683, %v5629
    %v5685 = vpop.permute.xlu0 %5684
    %5688 = vset.pattern.permute.xlu0 0
    %5689 = vperm.xlu0 %5688, %v5630
    %v5690 = vpop.permute.xlu0 %5689
    %5693 = vset.pattern.permute.xlu0 0
    %5694 = vperm.xlu0 %5693, %v5631
    %v5695 = vpop.permute.xlu0 %5694
    %5698 = vset.pattern.permute.xlu0 0
    %5699 = vperm.xlu0 %5698, %v5632
    %v5700 = vpop.permute.xlu0 %5699
    %5703 = vset.pattern.permute.xlu0 0
    %5704 = vperm.xlu0 %5703, %v5633
    %v5705 = vpop.permute.xlu0 %5704
    %5708 = vset.pattern.permute.xlu0 0
    %5709 = vperm.xlu0 %5708, %v5634
    %v5710 = vpop.permute.xlu0 %5709
    %5713 = vset.pattern.permute.xlu0 0
    %5714 = vperm.xlu0 %5713, %v5635
    %v5715 = vpop.permute.xlu0 %5714
    %5718 = vset.pattern.permute.xlu0 0
    %5719 = vperm.xlu0 %5718, %v5636
    %v5720 = vpop.permute.xlu0 %5719
    %5723 = vset.pattern.permute.xlu0 0
    %5724 = vperm.xlu0 %5723, %v5637
    %v5725 = vpop.permute.xlu0 %5724
    %5728 = vset.pattern.permute.xlu0 0
    %5729 = vperm.xlu0 %5728, %v5638
    %v5730 = vpop.permute.xlu0 %5729
    %5733 = vset.pattern.permute.xlu0 0
    %5734 = vperm.xlu0 %5733, %v5639
    %v5735 = vpop.permute.xlu0 %5734
    %5738 = vset.pattern.permute.xlu0 0
    %5739 = vperm.xlu0 %5738, %v5640
    %v5740 = vpop.permute.xlu0 %5739
    %5743 = vset.pattern.permute.xlu0 0
    %5744 = vperm.xlu0 %5743, %v5641
    %v5745 = vpop.permute.xlu0 %5744
    %5748 = vset.pattern.permute.xlu0 0
    %5749 = vperm.xlu0 %5748, %v5642
    %v5750 = vpop.permute.xlu0 %5749
    %5753 = vset.pattern.permute.xlu0 0
    %5754 = vperm.xlu0 %5753, %v5643
    %v5755 = vpop.permute.xlu0 %5754
    %5758 = vset.pattern.permute.xlu0 0
    %5759 = vperm.xlu0 %5758, %v5644
    %v5760 = vpop.permute.xlu0 %5759
    %5763 = vset.pattern.permute.xlu0 0
    %5764 = vperm.xlu0 %5763, %v5645
    %v5765 = vpop.permute.xlu0 %5764
    %5768 = vset.pattern.permute.xlu0 0
    %5769 = vperm.xlu0 %5768, %v5646
    %v5770 = vpop.permute.xlu0 %5769
    %5773 = vset.pattern.permute.xlu0 0
    %5774 = vperm.xlu0 %5773, %v5647
    %v5775 = vpop.permute.xlu0 %5774
    %5778 = vset.pattern.permute.xlu0 0
    %5779 = vperm.xlu0 %5778, %v5648
    %v5780 = vpop.permute.xlu0 %5779
    %5783 = vset.pattern.permute.xlu0 0
    %5784 = vperm.xlu0 %5783, %v5649
    %v5785 = vpop.permute.xlu0 %5784
    %5788 = vset.pattern.permute.xlu0 0
    %5789 = vperm.xlu0 %5788, %v5650
    %v5790 = vpop.permute.xlu0 %5789
    %v5792 = vperm.slane %v5651, 0
    %v5793 = vmul.f32 %v5655, %v5792
    %v5794 = vmul.f32 %v5660, %v5792
    %v5795 = vmul.f32 %v5665, %v5792
    %v5796 = vmul.f32 %v5670, %v5792
    %v5797 = vmul.f32 %v5675, %v5792
    %v5798 = vmul.f32 %v5680, %v5792
    %v5799 = vmul.f32 %v5685, %v5792
    %v5800 = vmul.f32 %v5690, %v5792
    %v5801 = vmul.f32 %v5695, %v5792
    %v5802 = vmul.f32 %v5700, %v5792
    %v5803 = vmul.f32 %v5705, %v5792
    %v5804 = vmul.f32 %v5710, %v5792
    %v5805 = vmul.f32 %v5715, %v5792
    %v5806 = vmul.f32 %v5720, %v5792
    %v5807 = vmul.f32 %v5725, %v5792
    %v5808 = vmul.f32 %v5730, %v5792
    %v5809 = vmul.f32 %v5735, %v5792
    %v5810 = vmul.f32 %v5740, %v5792
    %v5811 = vmul.f32 %v5745, %v5792
    %v5812 = vmul.f32 %v5750, %v5792
    %v5813 = vmul.f32 %v5755, %v5792
    %v5814 = vmul.f32 %v5760, %v5792
    %v5815 = vmul.f32 %v5765, %v5792
    %v5816 = vmul.f32 %v5770, %v5792
    %v5817 = vmul.f32 %v5775, %v5792
    %v5818 = vmul.f32 %v5780, %v5792
    %v5819 = vmul.f32 %v5785, %v5792
    %v5820 = vmul.f32 %v5790, %v5792
    %v5821 = vadd.f32 %v5595, %v5793
    %v5822 = vadd.f32 %v5596, %v5794
    %v5823 = vadd.f32 %v5597, %v5795
    %v5824 = vadd.f32 %v5598, %v5796
    %v5825 = vadd.f32 %v5599, %v5797
    %v5826 = vadd.f32 %v5600, %v5798
    %v5827 = vadd.f32 %v5601, %v5799
    %v5828 = vadd.f32 %v5602, %v5800
    %v5829 = vadd.f32 %v5603, %v5801
    %v5830 = vadd.f32 %v5604, %v5802
    %v5831 = vadd.f32 %v5605, %v5803
    %v5832 = vadd.f32 %v5606, %v5804
    %v5833 = vadd.f32 %v5607, %v5805
    %v5834 = vadd.f32 %v5608, %v5806
    %v5835 = vadd.f32 %v5609, %v5807
    %v5836 = vadd.f32 %v5610, %v5808
    %v5837 = vadd.f32 %v5611, %v5809
    %v5838 = vadd.f32 %v5612, %v5810
    %v5839 = vadd.f32 %v5613, %v5811
    %v5840 = vadd.f32 %v5614, %v5812
    %v5841 = vadd.f32 %v5615, %v5813
    %v5842 = vadd.f32 %v5616, %v5814
    %v5843 = vadd.f32 %v5617, %v5815
    %v5844 = vadd.f32 %v5618, %v5816
    %v5845 = vadd.f32 %v5619, %v5817
    %v5846 = vadd.f32 %v5620, %v5818
    %v5847 = vadd.f32 %v5621, %v5819
    %v5848 = vadd.f32 %v5622, %v5820
    %v5849 = vld [vmem:[%s4492 + $0x20] sm:$0xff]
    %v5850 = vld [vmem:[%s4492 + $0x28] sm:$0xff]
    %v5851 = vld [vmem:[%s4492 + $0x30] sm:$0xff]
    %v5852 = vld [vmem:[%s4492 + $0x38] sm:$0xff]
    %v5853 = vld [vmem:[%s4492 + $0x40] sm:$0xff]
    %v5854 = vld [vmem:[%s4492 + $0x48] sm:$0xff]
    %v5855 = vld [vmem:[%s4492 + $0x50] sm:$0xff]
    %v5856 = vld [vmem:[%s4492 + $0x58] sm:$0xff]
    %v5857 = vld [vmem:[%s4492 + $0x60] sm:$0xff]
    %v5858 = vld [vmem:[%s4492 + $0x68] sm:$0xff]
    %v5859 = vld [vmem:[%s4492 + $0x70] sm:$0xff]
    %v5860 = vld [vmem:[%s4492 + $0x78] sm:$0xff]
    %v5861 = vld [vmem:[%s4492 + $0x80] sm:$0xff]
    %v5862 = vld [vmem:[%s4492 + $0x88] sm:$0xff]
    %v5863 = vld [vmem:[%s4492 + $0x90] sm:$0xff]
    %v5864 = vld [vmem:[%s4492 + $0x98] sm:$0xff]
    %v5865 = vld [vmem:[%s4492 + $0xa0] sm:$0xff]
    %v5866 = vld [vmem:[%s4492 + $0xa8] sm:$0xff]
    %v5867 = vld [vmem:[%s4492 + $0xb0] sm:$0xff]
    %v5868 = vld [vmem:[%s4492 + $0xb8] sm:$0xff]
    %v5869 = vld [vmem:[%s4492 + $0xc0] sm:$0xff]
    %v5870 = vld [vmem:[%s4492 + $0xc8] sm:$0xff]
    %v5871 = vld [vmem:[%s4492 + $0xd0] sm:$0xff]
    %v5872 = vld [vmem:[%s4492 + $0xd8] sm:$0xff]
    %v5873 = vld [vmem:[%s4492 + $0xe0] sm:$0xff]
    %v5874 = vld [vmem:[%s4492 + $0xe8] sm:$0xff]
    %v5875 = vld [vmem:[%s4492 + $0xf0] sm:$0xff]
    %v5876 = vld [vmem:[%s4492 + $0xf8] sm:$0xff]
    %v5877 = vld [vmem:[%s1 + $0x6] sm:$0x1]
    %5879 = vset.pattern.permute.xlu0 0
    %5880 = vperm.xlu0 %5879, %v5849
    %v5881 = vpop.permute.xlu0 %5880
    %5884 = vset.pattern.permute.xlu0 0
    %5885 = vperm.xlu0 %5884, %v5850
    %v5886 = vpop.permute.xlu0 %5885
    %5889 = vset.pattern.permute.xlu0 0
    %5890 = vperm.xlu0 %5889, %v5851
    %v5891 = vpop.permute.xlu0 %5890
    %5894 = vset.pattern.permute.xlu0 0
    %5895 = vperm.xlu0 %5894, %v5852
    %v5896 = vpop.permute.xlu0 %5895
    %5899 = vset.pattern.permute.xlu0 0
    %5900 = vperm.xlu0 %5899, %v5853
    %v5901 = vpop.permute.xlu0 %5900
    %5904 = vset.pattern.permute.xlu0 0
    %5905 = vperm.xlu0 %5904, %v5854
    %v5906 = vpop.permute.xlu0 %5905
    %5909 = vset.pattern.permute.xlu0 0
    %5910 = vperm.xlu0 %5909, %v5855
    %v5911 = vpop.permute.xlu0 %5910
    %5914 = vset.pattern.permute.xlu0 0
    %5915 = vperm.xlu0 %5914, %v5856
    %v5916 = vpop.permute.xlu0 %5915
    %5919 = vset.pattern.permute.xlu0 0
    %5920 = vperm.xlu0 %5919, %v5857
    %v5921 = vpop.permute.xlu0 %5920
    %5924 = vset.pattern.permute.xlu0 0
    %5925 = vperm.xlu0 %5924, %v5858
    %v5926 = vpop.permute.xlu0 %5925
    %5929 = vset.pattern.permute.xlu0 0
    %5930 = vperm.xlu0 %5929, %v5859
    %v5931 = vpop.permute.xlu0 %5930
    %5934 = vset.pattern.permute.xlu0 0
    %5935 = vperm.xlu0 %5934, %v5860
    %v5936 = vpop.permute.xlu0 %5935
    %5939 = vset.pattern.permute.xlu0 0
    %5940 = vperm.xlu0 %5939, %v5861
    %v5941 = vpop.permute.xlu0 %5940
    %5944 = vset.pattern.permute.xlu0 0
    %5945 = vperm.xlu0 %5944, %v5862
    %v5946 = vpop.permute.xlu0 %5945
    %5949 = vset.pattern.permute.xlu0 0
    %5950 = vperm.xlu0 %5949, %v5863
    %v5951 = vpop.permute.xlu0 %5950
    %5954 = vset.pattern.permute.xlu0 0
    %5955 = vperm.xlu0 %5954, %v5864
    %v5956 = vpop.permute.xlu0 %5955
    %5959 = vset.pattern.permute.xlu0 0
    %5960 = vperm.xlu0 %5959, %v5865
    %v5961 = vpop.permute.xlu0 %5960
    %5964 = vset.pattern.permute.xlu0 0
    %5965 = vperm.xlu0 %5964, %v5866
    %v5966 = vpop.permute.xlu0 %5965
    %5969 = vset.pattern.permute.xlu0 0
    %5970 = vperm.xlu0 %5969, %v5867
    %v5971 = vpop.permute.xlu0 %5970
    %5974 = vset.pattern.permute.xlu0 0
    %5975 = vperm.xlu0 %5974, %v5868
    %v5976 = vpop.permute.xlu0 %5975
    %5979 = vset.pattern.permute.xlu0 0
    %5980 = vperm.xlu0 %5979, %v5869
    %v5981 = vpop.permute.xlu0 %5980
    %5984 = vset.pattern.permute.xlu0 0
    %5985 = vperm.xlu0 %5984, %v5870
    %v5986 = vpop.permute.xlu0 %5985
    %5989 = vset.pattern.permute.xlu0 0
    %5990 = vperm.xlu0 %5989, %v5871
    %v5991 = vpop.permute.xlu0 %5990
    %5994 = vset.pattern.permute.xlu0 0
    %5995 = vperm.xlu0 %5994, %v5872
    %v5996 = vpop.permute.xlu0 %5995
    %5999 = vset.pattern.permute.xlu0 0
    %6000 = vperm.xlu0 %5999, %v5873
    %v6001 = vpop.permute.xlu0 %6000
    %6004 = vset.pattern.permute.xlu0 0
    %6005 = vperm.xlu0 %6004, %v5874
    %v6006 = vpop.permute.xlu0 %6005
    %6009 = vset.pattern.permute.xlu0 0
    %6010 = vperm.xlu0 %6009, %v5875
    %v6011 = vpop.permute.xlu0 %6010
    %6014 = vset.pattern.permute.xlu0 0
    %6015 = vperm.xlu0 %6014, %v5876
    %v6016 = vpop.permute.xlu0 %6015
    %v6018 = vperm.slane %v5877, 0
    %v6019 = vmul.f32 %v5881, %v6018
    %v6020 = vmul.f32 %v5886, %v6018
    %v6021 = vmul.f32 %v5891, %v6018
    %v6022 = vmul.f32 %v5896, %v6018
    %v6023 = vmul.f32 %v5901, %v6018
    %v6024 = vmul.f32 %v5906, %v6018
    %v6025 = vmul.f32 %v5911, %v6018
    %v6026 = vmul.f32 %v5916, %v6018
    %v6027 = vmul.f32 %v5921, %v6018
    %v6028 = vmul.f32 %v5926, %v6018
    %v6029 = vmul.f32 %v5931, %v6018
    %v6030 = vmul.f32 %v5936, %v6018
    %v6031 = vmul.f32 %v5941, %v6018
    %v6032 = vmul.f32 %v5946, %v6018
    %v6033 = vmul.f32 %v5951, %v6018
    %v6034 = vmul.f32 %v5956, %v6018
    %v6035 = vmul.f32 %v5961, %v6018
    %v6036 = vmul.f32 %v5966, %v6018
    %v6037 = vmul.f32 %v5971, %v6018
    %v6038 = vmul.f32 %v5976, %v6018
    %v6039 = vmul.f32 %v5981, %v6018
    %v6040 = vmul.f32 %v5986, %v6018
    %v6041 = vmul.f32 %v5991, %v6018
    %v6042 = vmul.f32 %v5996, %v6018
    %v6043 = vmul.f32 %v6001, %v6018
    %v6044 = vmul.f32 %v6006, %v6018
    %v6045 = vmul.f32 %v6011, %v6018
    %v6046 = vmul.f32 %v6016, %v6018
    %v6047 = vadd.f32 %v5821, %v6019
    %v6048 = vadd.f32 %v5822, %v6020
    %v6049 = vadd.f32 %v5823, %v6021
    %v6050 = vadd.f32 %v5824, %v6022
    %v6051 = vadd.f32 %v5825, %v6023
    %v6052 = vadd.f32 %v5826, %v6024
    %v6053 = vadd.f32 %v5827, %v6025
    %v6054 = vadd.f32 %v5828, %v6026
    %v6055 = vadd.f32 %v5829, %v6027
    %v6056 = vadd.f32 %v5830, %v6028
    %v6057 = vadd.f32 %v5831, %v6029
    %v6058 = vadd.f32 %v5832, %v6030
    %v6059 = vadd.f32 %v5833, %v6031
    %v6060 = vadd.f32 %v5834, %v6032
    %v6061 = vadd.f32 %v5835, %v6033
    %v6062 = vadd.f32 %v5836, %v6034
    %v6063 = vadd.f32 %v5837, %v6035
    %v6064 = vadd.f32 %v5838, %v6036
    %v6065 = vadd.f32 %v5839, %v6037
    %v6066 = vadd.f32 %v5840, %v6038
    %v6067 = vadd.f32 %v5841, %v6039
    %v6068 = vadd.f32 %v5842, %v6040
    %v6069 = vadd.f32 %v5843, %v6041
    %v6070 = vadd.f32 %v5844, %v6042
    %v6071 = vadd.f32 %v5845, %v6043
    %v6072 = vadd.f32 %v5846, %v6044
    %v6073 = vadd.f32 %v5847, %v6045
    %v6074 = vadd.f32 %v5848, %v6046
    %v6075 = vld [vmem:[%s4492 + $0x21] sm:$0xff]
    %v6076 = vld [vmem:[%s4492 + $0x29] sm:$0xff]
    %v6077 = vld [vmem:[%s4492 + $0x31] sm:$0xff]
    %v6078 = vld [vmem:[%s4492 + $0x39] sm:$0xff]
    %v6079 = vld [vmem:[%s4492 + $0x41] sm:$0xff]
    %v6080 = vld [vmem:[%s4492 + $0x49] sm:$0xff]
    %v6081 = vld [vmem:[%s4492 + $0x51] sm:$0xff]
    %v6082 = vld [vmem:[%s4492 + $0x59] sm:$0xff]
    %v6083 = vld [vmem:[%s4492 + $0x61] sm:$0xff]
    %v6084 = vld [vmem:[%s4492 + $0x69] sm:$0xff]
    %v6085 = vld [vmem:[%s4492 + $0x71] sm:$0xff]
    %v6086 = vld [vmem:[%s4492 + $0x79] sm:$0xff]
    %v6087 = vld [vmem:[%s4492 + $0x81] sm:$0xff]
    %v6088 = vld [vmem:[%s4492 + $0x89] sm:$0xff]
    %v6089 = vld [vmem:[%s4492 + $0x91] sm:$0xff]
    %v6090 = vld [vmem:[%s4492 + $0x99] sm:$0xff]
    %v6091 = vld [vmem:[%s4492 + $0xa1] sm:$0xff]
    %v6092 = vld [vmem:[%s4492 + $0xa9] sm:$0xff]
    %v6093 = vld [vmem:[%s4492 + $0xb1] sm:$0xff]
    %v6094 = vld [vmem:[%s4492 + $0xb9] sm:$0xff]
    %v6095 = vld [vmem:[%s4492 + $0xc1] sm:$0xff]
    %v6096 = vld [vmem:[%s4492 + $0xc9] sm:$0xff]
    %v6097 = vld [vmem:[%s4492 + $0xd1] sm:$0xff]
    %v6098 = vld [vmem:[%s4492 + $0xd9] sm:$0xff]
    %v6099 = vld [vmem:[%s4492 + $0xe1] sm:$0xff]
    %v6100 = vld [vmem:[%s4492 + $0xe9] sm:$0xff]
    %v6101 = vld [vmem:[%s4492 + $0xf1] sm:$0xff]
    %v6102 = vld [vmem:[%s4492 + $0xf9] sm:$0xff]
    %v6103 = vld [vmem:[%s1 + $0x7] sm:$0x1]
    %6105 = vset.pattern.permute.xlu0 0
    %6106 = vperm.xlu0 %6105, %v6075
    %v6107 = vpop.permute.xlu0 %6106
    %6110 = vset.pattern.permute.xlu0 0
    %6111 = vperm.xlu0 %6110, %v6076
    %v6112 = vpop.permute.xlu0 %6111
    %6115 = vset.pattern.permute.xlu0 0
    %6116 = vperm.xlu0 %6115, %v6077
    %v6117 = vpop.permute.xlu0 %6116
    %6120 = vset.pattern.permute.xlu0 0
    %6121 = vperm.xlu0 %6120, %v6078
    %v6122 = vpop.permute.xlu0 %6121
    %6125 = vset.pattern.permute.xlu0 0
    %6126 = vperm.xlu0 %6125, %v6079
    %v6127 = vpop.permute.xlu0 %6126
    %6130 = vset.pattern.permute.xlu0 0
    %6131 = vperm.xlu0 %6130, %v6080
    %v6132 = vpop.permute.xlu0 %6131
    %6135 = vset.pattern.permute.xlu0 0
    %6136 = vperm.xlu0 %6135, %v6081
    %v6137 = vpop.permute.xlu0 %6136
    %6140 = vset.pattern.permute.xlu0 0
    %6141 = vperm.xlu0 %6140, %v6082
    %v6142 = vpop.permute.xlu0 %6141
    %6145 = vset.pattern.permute.xlu0 0
    %6146 = vperm.xlu0 %6145, %v6083
    %v6147 = vpop.permute.xlu0 %6146
    %6150 = vset.pattern.permute.xlu0 0
    %6151 = vperm.xlu0 %6150, %v6084
    %v6152 = vpop.permute.xlu0 %6151
    %6155 = vset.pattern.permute.xlu0 0
    %6156 = vperm.xlu0 %6155, %v6085
    %v6157 = vpop.permute.xlu0 %6156
    %6160 = vset.pattern.permute.xlu0 0
    %6161 = vperm.xlu0 %6160, %v6086
    %v6162 = vpop.permute.xlu0 %6161
    %6165 = vset.pattern.permute.xlu0 0
    %6166 = vperm.xlu0 %6165, %v6087
    %v6167 = vpop.permute.xlu0 %6166
    %6170 = vset.pattern.permute.xlu0 0
    %6171 = vperm.xlu0 %6170, %v6088
    %v6172 = vpop.permute.xlu0 %6171
    %6175 = vset.pattern.permute.xlu0 0
    %6176 = vperm.xlu0 %6175, %v6089
    %v6177 = vpop.permute.xlu0 %6176
    %6180 = vset.pattern.permute.xlu0 0
    %6181 = vperm.xlu0 %6180, %v6090
    %v6182 = vpop.permute.xlu0 %6181
    %6185 = vset.pattern.permute.xlu0 0
    %6186 = vperm.xlu0 %6185, %v6091
    %v6187 = vpop.permute.xlu0 %6186
    %6190 = vset.pattern.permute.xlu0 0
    %6191 = vperm.xlu0 %6190, %v6092
    %v6192 = vpop.permute.xlu0 %6191
    %6195 = vset.pattern.permute.xlu0 0
    %6196 = vperm.xlu0 %6195, %v6093
    %v6197 = vpop.permute.xlu0 %6196
    %6200 = vset.pattern.permute.xlu0 0
    %6201 = vperm.xlu0 %6200, %v6094
    %v6202 = vpop.permute.xlu0 %6201
    %6205 = vset.pattern.permute.xlu0 0
    %6206 = vperm.xlu0 %6205, %v6095
    %v6207 = vpop.permute.xlu0 %6206
    %6210 = vset.pattern.permute.xlu0 0
    %6211 = vperm.xlu0 %6210, %v6096
    %v6212 = vpop.permute.xlu0 %6211
    %6215 = vset.pattern.permute.xlu0 0
    %6216 = vperm.xlu0 %6215, %v6097
    %v6217 = vpop.permute.xlu0 %6216
    %6220 = vset.pattern.permute.xlu0 0
    %6221 = vperm.xlu0 %6220, %v6098
    %v6222 = vpop.permute.xlu0 %6221
    %6225 = vset.pattern.permute.xlu0 0
    %6226 = vperm.xlu0 %6225, %v6099
    %v6227 = vpop.permute.xlu0 %6226
    %6230 = vset.pattern.permute.xlu0 0
    %6231 = vperm.xlu0 %6230, %v6100
    %v6232 = vpop.permute.xlu0 %6231
    %6235 = vset.pattern.permute.xlu0 0
    %6236 = vperm.xlu0 %6235, %v6101
    %v6237 = vpop.permute.xlu0 %6236
    %6240 = vset.pattern.permute.xlu0 0
    %6241 = vperm.xlu0 %6240, %v6102
    %v6242 = vpop.permute.xlu0 %6241
    %v6244 = vperm.slane %v6103, 0
    %v6245 = vmul.f32 %v6107, %v6244
    %v6246 = vmul.f32 %v6112, %v6244
    %v6247 = vmul.f32 %v6117, %v6244
    %v6248 = vmul.f32 %v6122, %v6244
    %v6249 = vmul.f32 %v6127, %v6244
    %v6250 = vmul.f32 %v6132, %v6244
    %v6251 = vmul.f32 %v6137, %v6244
    %v6252 = vmul.f32 %v6142, %v6244
    %v6253 = vmul.f32 %v6147, %v6244
    %v6254 = vmul.f32 %v6152, %v6244
    %v6255 = vmul.f32 %v6157, %v6244
    %v6256 = vmul.f32 %v6162, %v6244
    %v6257 = vmul.f32 %v6167, %v6244
    %v6258 = vmul.f32 %v6172, %v6244
    %v6259 = vmul.f32 %v6177, %v6244
    %v6260 = vmul.f32 %v6182, %v6244
    %v6261 = vmul.f32 %v6187, %v6244
    %v6262 = vmul.f32 %v6192, %v6244
    %v6263 = vmul.f32 %v6197, %v6244
    %v6264 = vmul.f32 %v6202, %v6244
    %v6265 = vmul.f32 %v6207, %v6244
    %v6266 = vmul.f32 %v6212, %v6244
    %v6267 = vmul.f32 %v6217, %v6244
    %v6268 = vmul.f32 %v6222, %v6244
    %v6269 = vmul.f32 %v6227, %v6244
    %v6270 = vmul.f32 %v6232, %v6244
    %v6271 = vmul.f32 %v6237, %v6244
    %v6272 = vmul.f32 %v6242, %v6244
    %v6273 = vadd.f32 %v6047, %v6245
    %v6274 = vadd.f32 %v6048, %v6246
    %v6275 = vadd.f32 %v6049, %v6247
    %v6276 = vadd.f32 %v6050, %v6248
    %v6277 = vadd.f32 %v6051, %v6249
    %v6278 = vadd.f32 %v6052, %v6250
    %v6279 = vadd.f32 %v6053, %v6251
    %v6280 = vadd.f32 %v6054, %v6252
    %v6281 = vadd.f32 %v6055, %v6253
    %v6282 = vadd.f32 %v6056, %v6254
    %v6283 = vadd.f32 %v6057, %v6255
    %v6284 = vadd.f32 %v6058, %v6256
    %v6285 = vadd.f32 %v6059, %v6257
    %v6286 = vadd.f32 %v6060, %v6258
    %v6287 = vadd.f32 %v6061, %v6259
    %v6288 = vadd.f32 %v6062, %v6260
    %v6289 = vadd.f32 %v6063, %v6261
    %v6290 = vadd.f32 %v6064, %v6262
    %v6291 = vadd.f32 %v6065, %v6263
    %v6292 = vadd.f32 %v6066, %v6264
    %v6293 = vadd.f32 %v6067, %v6265
    %v6294 = vadd.f32 %v6068, %v6266
    %v6295 = vadd.f32 %v6069, %v6267
    %v6296 = vadd.f32 %v6070, %v6268
    %v6297 = vadd.f32 %v6071, %v6269
    %v6298 = vadd.f32 %v6072, %v6270
    %v6299 = vadd.f32 %v6073, %v6271
    %v6300 = vadd.f32 %v6074, %v6272
    %v6301 = vld [vmem:[%s4492 + $0x22] sm:$0xff]
    %v6302 = vld [vmem:[%s4492 + $0x2a] sm:$0xff]
    %v6303 = vld [vmem:[%s4492 + $0x32] sm:$0xff]
    %v6304 = vld [vmem:[%s4492 + $0x3a] sm:$0xff]
    %v6305 = vld [vmem:[%s4492 + $0x42] sm:$0xff]
    %v6306 = vld [vmem:[%s4492 + $0x4a] sm:$0xff]
    %v6307 = vld [vmem:[%s4492 + $0x52] sm:$0xff]
    %v6308 = vld [vmem:[%s4492 + $0x5a] sm:$0xff]
    %v6309 = vld [vmem:[%s4492 + $0x62] sm:$0xff]
    %v6310 = vld [vmem:[%s4492 + $0x6a] sm:$0xff]
    %v6311 = vld [vmem:[%s4492 + $0x72] sm:$0xff]
    %v6312 = vld [vmem:[%s4492 + $0x7a] sm:$0xff]
    %v6313 = vld [vmem:[%s4492 + $0x82] sm:$0xff]
    %v6314 = vld [vmem:[%s4492 + $0x8a] sm:$0xff]
    %v6315 = vld [vmem:[%s4492 + $0x92] sm:$0xff]
    %v6316 = vld [vmem:[%s4492 + $0x9a] sm:$0xff]
    %v6317 = vld [vmem:[%s4492 + $0xa2] sm:$0xff]
    %v6318 = vld [vmem:[%s4492 + $0xaa] sm:$0xff]
    %v6319 = vld [vmem:[%s4492 + $0xb2] sm:$0xff]
    %v6320 = vld [vmem:[%s4492 + $0xba] sm:$0xff]
    %v6321 = vld [vmem:[%s4492 + $0xc2] sm:$0xff]
    %v6322 = vld [vmem:[%s4492 + $0xca] sm:$0xff]
    %v6323 = vld [vmem:[%s4492 + $0xd2] sm:$0xff]
    %v6324 = vld [vmem:[%s4492 + $0xda] sm:$0xff]
    %v6325 = vld [vmem:[%s4492 + $0xe2] sm:$0xff]
    %v6326 = vld [vmem:[%s4492 + $0xea] sm:$0xff]
    %v6327 = vld [vmem:[%s4492 + $0xf2] sm:$0xff]
    %v6328 = vld [vmem:[%s4492 + $0xfa] sm:$0xff]
    %v6329 = vld [vmem:[%s1 + $0x8] sm:$0x1]
    %6331 = vset.pattern.permute.xlu0 0
    %6332 = vperm.xlu0 %6331, %v6301
    %v6333 = vpop.permute.xlu0 %6332
    %6336 = vset.pattern.permute.xlu0 0
    %6337 = vperm.xlu0 %6336, %v6302
    %v6338 = vpop.permute.xlu0 %6337
    %6341 = vset.pattern.permute.xlu0 0
    %6342 = vperm.xlu0 %6341, %v6303
    %v6343 = vpop.permute.xlu0 %6342
    %6346 = vset.pattern.permute.xlu0 0
    %6347 = vperm.xlu0 %6346, %v6304
    %v6348 = vpop.permute.xlu0 %6347
    %6351 = vset.pattern.permute.xlu0 0
    %6352 = vperm.xlu0 %6351, %v6305
    %v6353 = vpop.permute.xlu0 %6352
    %6356 = vset.pattern.permute.xlu0 0
    %6357 = vperm.xlu0 %6356, %v6306
    %v6358 = vpop.permute.xlu0 %6357
    %6361 = vset.pattern.permute.xlu0 0
    %6362 = vperm.xlu0 %6361, %v6307
    %v6363 = vpop.permute.xlu0 %6362
    %6366 = vset.pattern.permute.xlu0 0
    %6367 = vperm.xlu0 %6366, %v6308
    %v6368 = vpop.permute.xlu0 %6367
    %6371 = vset.pattern.permute.xlu0 0
    %6372 = vperm.xlu0 %6371, %v6309
    %v6373 = vpop.permute.xlu0 %6372
    %6376 = vset.pattern.permute.xlu0 0
    %6377 = vperm.xlu0 %6376, %v6310
    %v6378 = vpop.permute.xlu0 %6377
    %6381 = vset.pattern.permute.xlu0 0
    %6382 = vperm.xlu0 %6381, %v6311
    %v6383 = vpop.permute.xlu0 %6382
    %6386 = vset.pattern.permute.xlu0 0
    %6387 = vperm.xlu0 %6386, %v6312
    %v6388 = vpop.permute.xlu0 %6387
    %6391 = vset.pattern.permute.xlu0 0
    %6392 = vperm.xlu0 %6391, %v6313
    %v6393 = vpop.permute.xlu0 %6392
    %6396 = vset.pattern.permute.xlu0 0
    %6397 = vperm.xlu0 %6396, %v6314
    %v6398 = vpop.permute.xlu0 %6397
    %6401 = vset.pattern.permute.xlu0 0
    %6402 = vperm.xlu0 %6401, %v6315
    %v6403 = vpop.permute.xlu0 %6402
    %6406 = vset.pattern.permute.xlu0 0
    %6407 = vperm.xlu0 %6406, %v6316
    %v6408 = vpop.permute.xlu0 %6407
    %6411 = vset.pattern.permute.xlu0 0
    %6412 = vperm.xlu0 %6411, %v6317
    %v6413 = vpop.permute.xlu0 %6412
    %6416 = vset.pattern.permute.xlu0 0
    %6417 = vperm.xlu0 %6416, %v6318
    %v6418 = vpop.permute.xlu0 %6417
    %6421 = vset.pattern.permute.xlu0 0
    %6422 = vperm.xlu0 %6421, %v6319
    %v6423 = vpop.permute.xlu0 %6422
    %6426 = vset.pattern.permute.xlu0 0
    %6427 = vperm.xlu0 %6426, %v6320
    %v6428 = vpop.permute.xlu0 %6427
    %6431 = vset.pattern.permute.xlu0 0
    %6432 = vperm.xlu0 %6431, %v6321
    %v6433 = vpop.permute.xlu0 %6432
    %6436 = vset.pattern.permute.xlu0 0
    %6437 = vperm.xlu0 %6436, %v6322
    %v6438 = vpop.permute.xlu0 %6437
    %6441 = vset.pattern.permute.xlu0 0
    %6442 = vperm.xlu0 %6441, %v6323
    %v6443 = vpop.permute.xlu0 %6442
    %6446 = vset.pattern.permute.xlu0 0
    %6447 = vperm.xlu0 %6446, %v6324
    %v6448 = vpop.permute.xlu0 %6447
    %6451 = vset.pattern.permute.xlu0 0
    %6452 = vperm.xlu0 %6451, %v6325
    %v6453 = vpop.permute.xlu0 %6452
    %6456 = vset.pattern.permute.xlu0 0
    %6457 = vperm.xlu0 %6456, %v6326
    %v6458 = vpop.permute.xlu0 %6457
    %6461 = vset.pattern.permute.xlu0 0
    %6462 = vperm.xlu0 %6461, %v6327
    %v6463 = vpop.permute.xlu0 %6462
    %6466 = vset.pattern.permute.xlu0 0
    %6467 = vperm.xlu0 %6466, %v6328
    %v6468 = vpop.permute.xlu0 %6467
    %v6470 = vperm.slane %v6329, 0
    %v6471 = vmul.f32 %v6333, %v6470
    %v6472 = vmul.f32 %v6338, %v6470
    %v6473 = vmul.f32 %v6343, %v6470
    %v6474 = vmul.f32 %v6348, %v6470
    %v6475 = vmul.f32 %v6353, %v6470
    %v6476 = vmul.f32 %v6358, %v6470
    %v6477 = vmul.f32 %v6363, %v6470
    %v6478 = vmul.f32 %v6368, %v6470
    %v6479 = vmul.f32 %v6373, %v6470
    %v6480 = vmul.f32 %v6378, %v6470
    %v6481 = vmul.f32 %v6383, %v6470
    %v6482 = vmul.f32 %v6388, %v6470
    %v6483 = vmul.f32 %v6393, %v6470
    %v6484 = vmul.f32 %v6398, %v6470
    %v6485 = vmul.f32 %v6403, %v6470
    %v6486 = vmul.f32 %v6408, %v6470
    %v6487 = vmul.f32 %v6413, %v6470
    %v6488 = vmul.f32 %v6418, %v6470
    %v6489 = vmul.f32 %v6423, %v6470
    %v6490 = vmul.f32 %v6428, %v6470
    %v6491 = vmul.f32 %v6433, %v6470
    %v6492 = vmul.f32 %v6438, %v6470
    %v6493 = vmul.f32 %v6443, %v6470
    %v6494 = vmul.f32 %v6448, %v6470
    %v6495 = vmul.f32 %v6453, %v6470
    %v6496 = vmul.f32 %v6458, %v6470
    %v6497 = vmul.f32 %v6463, %v6470
    %v6498 = vmul.f32 %v6468, %v6470
    %v6499 = vadd.f32 %v6273, %v6471
    %v6500 = vadd.f32 %v6274, %v6472
    %v6501 = vadd.f32 %v6275, %v6473
    %v6502 = vadd.f32 %v6276, %v6474
    %v6503 = vadd.f32 %v6277, %v6475
    %v6504 = vadd.f32 %v6278, %v6476
    %v6505 = vadd.f32 %v6279, %v6477
    %v6506 = vadd.f32 %v6280, %v6478
    %v6507 = vadd.f32 %v6281, %v6479
    %v6508 = vadd.f32 %v6282, %v6480
    %v6509 = vadd.f32 %v6283, %v6481
    %v6510 = vadd.f32 %v6284, %v6482
    %v6511 = vadd.f32 %v6285, %v6483
    %v6512 = vadd.f32 %v6286, %v6484
    %v6513 = vadd.f32 %v6287, %v6485
    %v6514 = vadd.f32 %v6288, %v6486
    %v6515 = vadd.f32 %v6289, %v6487
    %v6516 = vadd.f32 %v6290, %v6488
    %v6517 = vadd.f32 %v6291, %v6489
    %v6518 = vadd.f32 %v6292, %v6490
    %v6519 = vadd.f32 %v6293, %v6491
    %v6520 = vadd.f32 %v6294, %v6492
    %v6521 = vadd.f32 %v6295, %v6493
    %v6522 = vadd.f32 %v6296, %v6494
    %v6523 = vadd.f32 %v6297, %v6495
    %v6524 = vadd.f32 %v6298, %v6496
    %v6525 = vadd.f32 %v6299, %v6497
    %v6526 = vadd.f32 %v6300, %v6498
    %v6527 = vadd.f32 %v6499, %v2205
    %v6528 = vadd.f32 %v6500, %v2205
    %v6529 = vadd.f32 %v6501, %v2205
    %v6530 = vadd.f32 %v6502, %v2205
    %v6531 = vadd.f32 %v6503, %v2205
    %v6532 = vadd.f32 %v6504, %v2205
    %v6533 = vadd.f32 %v6505, %v2205
    %v6534 = vadd.f32 %v6506, %v2205
    %v6535 = vadd.f32 %v6507, %v2205
    %v6536 = vadd.f32 %v6508, %v2205
    %v6537 = vadd.f32 %v6509, %v2205
    %v6538 = vadd.f32 %v6510, %v2205
    %v6539 = vadd.f32 %v6511, %v2205
    %v6540 = vadd.f32 %v6512, %v2205
    %v6541 = vadd.f32 %v6513, %v2205
    %v6542 = vadd.f32 %v6514, %v2205
    %v6543 = vadd.f32 %v6515, %v2205
    %v6544 = vadd.f32 %v6516, %v2205
    %v6545 = vadd.f32 %v6517, %v2205
    %v6546 = vadd.f32 %v6518, %v2205
    %v6547 = vadd.f32 %v6519, %v2205
    %v6548 = vadd.f32 %v6520, %v2205
    %v6549 = vadd.f32 %v6521, %v2205
    %v6550 = vadd.f32 %v6522, %v2205
    %v6551 = vadd.f32 %v6523, %v2205
    %v6552 = vadd.f32 %v6524, %v2205
    %v6553 = vadd.f32 %v6525, %v2205
    %v6554 = vadd.f32 %v6526, %v2205
    %v6555 = vmax.f32 %v6527, 0.0
    %v6556 = vmax.f32 %v6528, 0.0
    %v6557 = vmax.f32 %v6529, 0.0
    %v6558 = vmax.f32 %v6530, 0.0
    %v6559 = vmax.f32 %v6531, 0.0
    %v6560 = vmax.f32 %v6532, 0.0
    %v6561 = vmax.f32 %v6533, 0.0
    %v6562 = vmax.f32 %v6534, 0.0
    %v6563 = vmax.f32 %v6535, 0.0
    %v6564 = vmax.f32 %v6536, 0.0
    %v6565 = vmax.f32 %v6537, 0.0
    %v6566 = vmax.f32 %v6538, 0.0
    %v6567 = vmax.f32 %v6539, 0.0
    %v6568 = vmax.f32 %v6540, 0.0
    %v6569 = vmax.f32 %v6541, 0.0
    %v6570 = vmax.f32 %v6542, 0.0
    %v6571 = vmax.f32 %v6543, 0.0
    %v6572 = vmax.f32 %v6544, 0.0
    %v6573 = vmax.f32 %v6545, 0.0
    %v6574 = vmax.f32 %v6546, 0.0
    %v6575 = vmax.f32 %v6547, 0.0
    %v6576 = vmax.f32 %v6548, 0.0
    %v6577 = vmax.f32 %v6549, 0.0
    %v6578 = vmax.f32 %v6550, 0.0
    %v6579 = vmax.f32 %v6551, 0.0
    %v6580 = vmax.f32 %v6552, 0.0
    %v6581 = vmax.f32 %v6553, 0.0
    %v6582 = vmax.f32 %v6554, 0.0
    %v6583 = vsel %vm2291, %v6555, 0.0
    %v6584 = vsel %vm2292, %v6556, 0.0
    %v6585 = vsel %vm2293, %v6557, 0.0
    %v6586 = vsel %vm2294, %v6558, 0.0
    %v6587 = vsel %vm2295, %v6559, 0.0
    %v6588 = vsel %vm2296, %v6560, 0.0
    %v6589 = vsel %vm2297, %v6561, 0.0
    %v6590 = vsel %vm2298, %v6562, 0.0
    %v6591 = vsel %vm2299, %v6563, 0.0
    %v6592 = vsel %vm2300, %v6564, 0.0
    %v6593 = vsel %vm2301, %v6565, 0.0
    %v6594 = vsel %vm2302, %v6566, 0.0
    %v6595 = vsel %vm2303, %v6567, 0.0
    %v6596 = vsel %vm2304, %v6568, 0.0
    %v6597 = vsel %vm2305, %v6569, 0.0
    %v6598 = vsel %vm2306, %v6570, 0.0
    %v6599 = vsel %vm2307, %v6571, 0.0
    %v6600 = vsel %vm2308, %v6572, 0.0
    %v6601 = vsel %vm2309, %v6573, 0.0
    %v6602 = vsel %vm2310, %v6574, 0.0
    %v6603 = vsel %vm2311, %v6575, 0.0
    %v6604 = vsel %vm2312, %v6576, 0.0
    %v6605 = vsel %vm2313, %v6577, 0.0
    %v6606 = vsel %vm2314, %v6578, 0.0
    %v6607 = vsel %vm2315, %v6579, 0.0
    %v6608 = vsel %vm2316, %v6580, 0.0
    %v6609 = vsel %vm2317, %v6581, 0.0
    %v6610 = vsel %vm2318, %v6582, 0.0
    %6611 = vst.msk [vmem:[#allocation2 + $0x11] sm:$0xff] %vm49, %v6583
    %6612 = vst.msk [vmem:[#allocation2 + $0x19] sm:$0xff] %vm49, %v6584
    %6613 = vst.msk [vmem:[#allocation2 + $0x21] sm:$0xff] %vm49, %v6585
    %6614 = vst.msk [vmem:[#allocation2 + $0x29] sm:$0xff] %vm49, %v6586
    %6615 = vst.msk [vmem:[#allocation2 + $0x31] sm:$0xff] %vm49, %v6587
    %6616 = vst.msk [vmem:[#allocation2 + $0x39] sm:$0xff] %vm49, %v6588
    %6617 = vst.msk [vmem:[#allocation2 + $0x41] sm:$0xff] %vm49, %v6589
    %6618 = vst.msk [vmem:[#allocation2 + $0x49] sm:$0xff] %vm49, %v6590
    %6619 = vst.msk [vmem:[#allocation2 + $0x51] sm:$0xff] %vm49, %v6591
    %6620 = vst.msk [vmem:[#allocation2 + $0x59] sm:$0xff] %vm49, %v6592
    %6621 = vst.msk [vmem:[#allocation2 + $0x61] sm:$0xff] %vm49, %v6593
    %6622 = vst.msk [vmem:[#allocation2 + $0x69] sm:$0xff] %vm49, %v6594
    %6623 = vst.msk [vmem:[#allocation2 + $0x71] sm:$0xff] %vm49, %v6595
    %6624 = vst.msk [vmem:[#allocation2 + $0x79] sm:$0xff] %vm49, %v6596
    %6625 = vst.msk [vmem:[#allocation2 + $0x81] sm:$0xff] %vm49, %v6597
    %6626 = vst.msk [vmem:[#allocation2 + $0x89] sm:$0xff] %vm49, %v6598
    %6627 = vst.msk [vmem:[#allocation2 + $0x91] sm:$0xff] %vm49, %v6599
    %6628 = vst.msk [vmem:[#allocation2 + $0x99] sm:$0xff] %vm49, %v6600
    %6629 = vst.msk [vmem:[#allocation2 + $0xa1] sm:$0xff] %vm49, %v6601
    %6630 = vst.msk [vmem:[#allocation2 + $0xa9] sm:$0xff] %vm49, %v6602
    %6631 = vst.msk [vmem:[#allocation2 + $0xb1] sm:$0xff] %vm49, %v6603
    %6632 = vst.msk [vmem:[#allocation2 + $0xb9] sm:$0xff] %vm49, %v6604
    %6633 = vst.msk [vmem:[#allocation2 + $0xc1] sm:$0xff] %vm49, %v6605
    %6634 = vst.msk [vmem:[#allocation2 + $0xc9] sm:$0xff] %vm49, %v6606
    %6635 = vst.msk [vmem:[#allocation2 + $0xd1] sm:$0xff] %vm49, %v6607
    %6636 = vst.msk [vmem:[#allocation2 + $0xd9] sm:$0xff] %vm49, %v6608
    %6637 = vst.msk [vmem:[#allocation2 + $0xe1] sm:$0xff] %vm49, %v6609
    %6638 = vst.msk [vmem:[#allocation2 + $0xe9] sm:$0xff] %vm49, %v6610
    %v6639 = vld [vmem:[#allocation2] sm:$0xff]
    %v6640 = vld [vmem:[#allocation2 + $0x8] sm:$0xff]
    %v6641 = vld [vmem:[#allocation2 + $0x10] sm:$0xff]
    %v6642 = vld [vmem:[#allocation2 + $0x18] sm:$0xff]
    %v6643 = vld [vmem:[#allocation2 + $0x20] sm:$0xff]
    %v6644 = vld [vmem:[#allocation2 + $0x28] sm:$0xff]
    %v6645 = vld [vmem:[#allocation2 + $0x30] sm:$0xff]
    %v6646 = vld [vmem:[#allocation2 + $0x38] sm:$0xff]
    %v6647 = vld [vmem:[#allocation2 + $0x40] sm:$0xff]
    %v6648 = vld [vmem:[#allocation2 + $0x48] sm:$0xff]
    %v6649 = vld [vmem:[#allocation2 + $0x50] sm:$0xff]
    %v6650 = vld [vmem:[#allocation2 + $0x58] sm:$0xff]
    %v6651 = vld [vmem:[#allocation2 + $0x60] sm:$0xff]
    %v6652 = vld [vmem:[#allocation2 + $0x68] sm:$0xff]
    %v6653 = vld [vmem:[#allocation2 + $0x70] sm:$0xff]
    %v6654 = vld [vmem:[#allocation2 + $0x78] sm:$0xff]
    %v6655 = vld [vmem:[#allocation2 + $0x80] sm:$0xff]
    %v6656 = vld [vmem:[#allocation2 + $0x88] sm:$0xff]
    %v6657 = vld [vmem:[#allocation2 + $0x90] sm:$0xff]
    %v6658 = vld [vmem:[#allocation2 + $0x98] sm:$0xff]
    %v6659 = vld [vmem:[#allocation2 + $0xa0] sm:$0xff]
    %v6660 = vld [vmem:[#allocation2 + $0xa8] sm:$0xff]
    %v6661 = vld [vmem:[#allocation2 + $0xb0] sm:$0xff]
    %v6662 = vld [vmem:[#allocation2 + $0xb8] sm:$0xff]
    %v6663 = vld [vmem:[#allocation2 + $0xc0] sm:$0xff]
    %v6664 = vld [vmem:[#allocation2 + $0xc8] sm:$0xff]
    %v6665 = vld [vmem:[#allocation2 + $0xd0] sm:$0xff]
    %v6666 = vld [vmem:[#allocation2 + $0xd8] sm:$0xff]
    %6667 = vst.msk [vmem:[#allocation3] sm:$0xff] %vm49, %v6639
    %6668 = vst.msk [vmem:[#allocation3 + $0x10] sm:$0xff] %vm49, %v6640
    %6669 = vst.msk [vmem:[#allocation3 + $0x20] sm:$0xff] %vm49, %v6641
    %6670 = vst.msk [vmem:[#allocation3 + $0x30] sm:$0xff] %vm49, %v6642
    %6671 = vst.msk [vmem:[#allocation3 + $0x40] sm:$0xff] %vm49, %v6643
    %6672 = vst.msk [vmem:[#allocation3 + $0x50] sm:$0xff] %vm49, %v6644
    %6673 = vst.msk [vmem:[#allocation3 + $0x60] sm:$0xff] %vm49, %v6645
    %6674 = vst.msk [vmem:[#allocation3 + $0x70] sm:$0xff] %vm49, %v6646
    %6675 = vst.msk [vmem:[#allocation3 + $0x80] sm:$0xff] %vm49, %v6647
    %6676 = vst.msk [vmem:[#allocation3 + $0x90] sm:$0xff] %vm49, %v6648
    %6677 = vst.msk [vmem:[#allocation3 + $0xa0] sm:$0xff] %vm49, %v6649
    %6678 = vst.msk [vmem:[#allocation3 + $0xb0] sm:$0xff] %vm49, %v6650
    %6679 = vst.msk [vmem:[#allocation3 + $0xc0] sm:$0xff] %vm49, %v6651
    %6680 = vst.msk [vmem:[#allocation3 + $0xd0] sm:$0xff] %vm49, %v6652
    %6681 = vst.msk [vmem:[#allocation3 + $0xe0] sm:$0xff] %vm49, %v6653
    %6682 = vst.msk [vmem:[#allocation3 + $0xf0] sm:$0xff] %vm49, %v6654
    %6683 = vst.msk [vmem:[#allocation3 + $0x100] sm:$0xff] %vm49, %v6655
    %6684 = vst.msk [vmem:[#allocation3 + $0x110] sm:$0xff] %vm49, %v6656
    %6685 = vst.msk [vmem:[#allocation3 + $0x120] sm:$0xff] %vm49, %v6657
    %6686 = vst.msk [vmem:[#allocation3 + $0x130] sm:$0xff] %vm49, %v6658
    %6687 = vst.msk [vmem:[#allocation3 + $0x140] sm:$0xff] %vm49, %v6659
    %6688 = vst.msk [vmem:[#allocation3 + $0x150] sm:$0xff] %vm49, %v6660
    %6689 = vst.msk [vmem:[#allocation3 + $0x160] sm:$0xff] %vm49, %v6661
    %6690 = vst.msk [vmem:[#allocation3 + $0x170] sm:$0xff] %vm49, %v6662
    %6691 = vst.msk [vmem:[#allocation3 + $0x180] sm:$0xff] %vm49, %v6663
    %6692 = vst.msk [vmem:[#allocation3 + $0x190] sm:$0xff] %vm49, %v6664
    %6693 = vst.msk [vmem:[#allocation3 + $0x1a0] sm:$0xff] %vm49, %v6665
    %6694 = vst.msk [vmem:[#allocation3 + $0x1b0] sm:$0xff] %vm49, %v6666
    %v6695 = vld [vmem:[#allocation2 + $0x1] sm:$0xff]
    %v6696 = vld [vmem:[#allocation2 + $0x9] sm:$0xff]
    %v6697 = vld [vmem:[#allocation2 + $0x11] sm:$0xff]
    %v6698 = vld [vmem:[#allocation2 + $0x19] sm:$0xff]
    %v6699 = vld [vmem:[#allocation2 + $0x21] sm:$0xff]
    %v6700 = vld [vmem:[#allocation2 + $0x29] sm:$0xff]
    %v6701 = vld [vmem:[#allocation2 + $0x31] sm:$0xff]
    %v6702 = vld [vmem:[#allocation2 + $0x39] sm:$0xff]
    %v6703 = vld [vmem:[#allocation2 + $0x41] sm:$0xff]
    %v6704 = vld [vmem:[#allocation2 + $0x49] sm:$0xff]
    %v6705 = vld [vmem:[#allocation2 + $0x51] sm:$0xff]
    %v6706 = vld [vmem:[#allocation2 + $0x59] sm:$0xff]
    %v6707 = vld [vmem:[#allocation2 + $0x61] sm:$0xff]
    %v6708 = vld [vmem:[#allocation2 + $0x69] sm:$0xff]
    %v6709 = vld [vmem:[#allocation2 + $0x71] sm:$0xff]
    %v6710 = vld [vmem:[#allocation2 + $0x79] sm:$0xff]
    %v6711 = vld [vmem:[#allocation2 + $0x81] sm:$0xff]
    %v6712 = vld [vmem:[#allocation2 + $0x89] sm:$0xff]
    %v6713 = vld [vmem:[#allocation2 + $0x91] sm:$0xff]
    %v6714 = vld [vmem:[#allocation2 + $0x99] sm:$0xff]
    %v6715 = vld [vmem:[#allocation2 + $0xa1] sm:$0xff]
    %v6716 = vld [vmem:[#allocation2 + $0xa9] sm:$0xff]
    %v6717 = vld [vmem:[#allocation2 + $0xb1] sm:$0xff]
    %v6718 = vld [vmem:[#allocation2 + $0xb9] sm:$0xff]
    %v6719 = vld [vmem:[#allocation2 + $0xc1] sm:$0xff]
    %v6720 = vld [vmem:[#allocation2 + $0xc9] sm:$0xff]
    %v6721 = vld [vmem:[#allocation2 + $0xd1] sm:$0xff]
    %v6722 = vld [vmem:[#allocation2 + $0xd9] sm:$0xff]
    %6751 = vrot.lane.b32.xlu0 %v6695, 16
    %v6752 = vpop.permute.xlu0 %6751
    %6753 = vrot.lane.b32.xlu0 %v6696, 16
    %v6754 = vpop.permute.xlu0 %6753
    %6755 = vrot.lane.b32.xlu0 %v6697, 16
    %v6756 = vpop.permute.xlu0 %6755
    %6757 = vrot.lane.b32.xlu0 %v6698, 16
    %v6758 = vpop.permute.xlu0 %6757
    %6759 = vrot.lane.b32.xlu0 %v6699, 16
    %v6760 = vpop.permute.xlu0 %6759
    %6761 = vrot.lane.b32.xlu0 %v6700, 16
    %v6762 = vpop.permute.xlu0 %6761
    %6763 = vrot.lane.b32.xlu0 %v6701, 16
    %v6764 = vpop.permute.xlu0 %6763
    %6765 = vrot.lane.b32.xlu0 %v6702, 16
    %v6766 = vpop.permute.xlu0 %6765
    %6767 = vrot.lane.b32.xlu0 %v6703, 16
    %v6768 = vpop.permute.xlu0 %6767
    %6769 = vrot.lane.b32.xlu0 %v6704, 16
    %v6770 = vpop.permute.xlu0 %6769
    %6771 = vrot.lane.b32.xlu0 %v6705, 16
    %v6772 = vpop.permute.xlu0 %6771
    %6773 = vrot.lane.b32.xlu0 %v6706, 16
    %v6774 = vpop.permute.xlu0 %6773
    %6775 = vrot.lane.b32.xlu0 %v6707, 16
    %v6776 = vpop.permute.xlu0 %6775
    %6777 = vrot.lane.b32.xlu0 %v6708, 16
    %v6778 = vpop.permute.xlu0 %6777
    %6779 = vrot.lane.b32.xlu0 %v6709, 16
    %v6780 = vpop.permute.xlu0 %6779
    %6781 = vrot.lane.b32.xlu0 %v6710, 16
    %v6782 = vpop.permute.xlu0 %6781
    %6783 = vrot.lane.b32.xlu0 %v6711, 16
    %v6784 = vpop.permute.xlu0 %6783
    %6785 = vrot.lane.b32.xlu0 %v6712, 16
    %v6786 = vpop.permute.xlu0 %6785
    %6787 = vrot.lane.b32.xlu0 %v6713, 16
    %v6788 = vpop.permute.xlu0 %6787
    %6789 = vrot.lane.b32.xlu0 %v6714, 16
    %v6790 = vpop.permute.xlu0 %6789
    %6791 = vrot.lane.b32.xlu0 %v6715, 16
    %v6792 = vpop.permute.xlu0 %6791
    %6793 = vrot.lane.b32.xlu0 %v6716, 16
    %v6794 = vpop.permute.xlu0 %6793
    %6795 = vrot.lane.b32.xlu0 %v6717, 16
    %v6796 = vpop.permute.xlu0 %6795
    %6797 = vrot.lane.b32.xlu0 %v6718, 16
    %v6798 = vpop.permute.xlu0 %6797
    %6799 = vrot.lane.b32.xlu0 %v6719, 16
    %v6800 = vpop.permute.xlu0 %6799
    %6801 = vrot.lane.b32.xlu0 %v6720, 16
    %v6802 = vpop.permute.xlu0 %6801
    %6803 = vrot.lane.b32.xlu0 %v6721, 16
    %v6804 = vpop.permute.xlu0 %6803
    %6805 = vrot.lane.b32.xlu0 %v6722, 16
    %v6806 = vpop.permute.xlu0 %6805
    %6835 = vst.msk [vmem:[#allocation3] sm:$0xff] %vm2571, %v6752
    %6836 = vst.msk [vmem:[#allocation3 + $0x10] sm:$0xff] %vm2571, %v6754
    %6837 = vst.msk [vmem:[#allocation3 + $0x20] sm:$0xff] %vm2571, %v6756
    %6838 = vst.msk [vmem:[#allocation3 + $0x30] sm:$0xff] %vm2571, %v6758
    %6839 = vst.msk [vmem:[#allocation3 + $0x40] sm:$0xff] %vm2571, %v6760
    %6840 = vst.msk [vmem:[#allocation3 + $0x50] sm:$0xff] %vm2571, %v6762
    %6841 = vst.msk [vmem:[#allocation3 + $0x60] sm:$0xff] %vm2571, %v6764
    %6842 = vst.msk [vmem:[#allocation3 + $0x70] sm:$0xff] %vm2571, %v6766
    %6843 = vst.msk [vmem:[#allocation3 + $0x80] sm:$0xff] %vm2571, %v6768
    %6844 = vst.msk [vmem:[#allocation3 + $0x90] sm:$0xff] %vm2571, %v6770
    %6845 = vst.msk [vmem:[#allocation3 + $0xa0] sm:$0xff] %vm2571, %v6772
    %6846 = vst.msk [vmem:[#allocation3 + $0xb0] sm:$0xff] %vm2571, %v6774
    %6847 = vst.msk [vmem:[#allocation3 + $0xc0] sm:$0xff] %vm2571, %v6776
    %6848 = vst.msk [vmem:[#allocation3 + $0xd0] sm:$0xff] %vm2571, %v6778
    %6849 = vst.msk [vmem:[#allocation3 + $0xe0] sm:$0xff] %vm2571, %v6780
    %6850 = vst.msk [vmem:[#allocation3 + $0xf0] sm:$0xff] %vm2571, %v6782
    %6851 = vst.msk [vmem:[#allocation3 + $0x100] sm:$0xff] %vm2571, %v6784
    %6852 = vst.msk [vmem:[#allocation3 + $0x110] sm:$0xff] %vm2571, %v6786
    %6853 = vst.msk [vmem:[#allocation3 + $0x120] sm:$0xff] %vm2571, %v6788
    %6854 = vst.msk [vmem:[#allocation3 + $0x130] sm:$0xff] %vm2571, %v6790
    %6855 = vst.msk [vmem:[#allocation3 + $0x140] sm:$0xff] %vm2571, %v6792
    %6856 = vst.msk [vmem:[#allocation3 + $0x150] sm:$0xff] %vm2571, %v6794
    %6857 = vst.msk [vmem:[#allocation3 + $0x160] sm:$0xff] %vm2571, %v6796
    %6858 = vst.msk [vmem:[#allocation3 + $0x170] sm:$0xff] %vm2571, %v6798
    %6859 = vst.msk [vmem:[#allocation3 + $0x180] sm:$0xff] %vm2571, %v6800
    %6860 = vst.msk [vmem:[#allocation3 + $0x190] sm:$0xff] %vm2571, %v6802
    %6861 = vst.msk [vmem:[#allocation3 + $0x1a0] sm:$0xff] %vm2571, %v6804
    %6862 = vst.msk [vmem:[#allocation3 + $0x1b0] sm:$0xff] %vm2571, %v6806
    %v6863 = vld [vmem:[#allocation2 + $0x2] sm:$0xff]
    %v6864 = vld [vmem:[#allocation2 + $0xa] sm:$0xff]
    %v6865 = vld [vmem:[#allocation2 + $0x12] sm:$0xff]
    %v6866 = vld [vmem:[#allocation2 + $0x1a] sm:$0xff]
    %v6867 = vld [vmem:[#allocation2 + $0x22] sm:$0xff]
    %v6868 = vld [vmem:[#allocation2 + $0x2a] sm:$0xff]
    %v6869 = vld [vmem:[#allocation2 + $0x32] sm:$0xff]
    %v6870 = vld [vmem:[#allocation2 + $0x3a] sm:$0xff]
    %v6871 = vld [vmem:[#allocation2 + $0x42] sm:$0xff]
    %v6872 = vld [vmem:[#allocation2 + $0x4a] sm:$0xff]
    %v6873 = vld [vmem:[#allocation2 + $0x52] sm:$0xff]
    %v6874 = vld [vmem:[#allocation2 + $0x5a] sm:$0xff]
    %v6875 = vld [vmem:[#allocation2 + $0x62] sm:$0xff]
    %v6876 = vld [vmem:[#allocation2 + $0x6a] sm:$0xff]
    %v6877 = vld [vmem:[#allocation2 + $0x72] sm:$0xff]
    %v6878 = vld [vmem:[#allocation2 + $0x7a] sm:$0xff]
    %v6879 = vld [vmem:[#allocation2 + $0x82] sm:$0xff]
    %v6880 = vld [vmem:[#allocation2 + $0x8a] sm:$0xff]
    %v6881 = vld [vmem:[#allocation2 + $0x92] sm:$0xff]
    %v6882 = vld [vmem:[#allocation2 + $0x9a] sm:$0xff]
    %v6883 = vld [vmem:[#allocation2 + $0xa2] sm:$0xff]
    %v6884 = vld [vmem:[#allocation2 + $0xaa] sm:$0xff]
    %v6885 = vld [vmem:[#allocation2 + $0xb2] sm:$0xff]
    %v6886 = vld [vmem:[#allocation2 + $0xba] sm:$0xff]
    %v6887 = vld [vmem:[#allocation2 + $0xc2] sm:$0xff]
    %v6888 = vld [vmem:[#allocation2 + $0xca] sm:$0xff]
    %v6889 = vld [vmem:[#allocation2 + $0xd2] sm:$0xff]
    %v6890 = vld [vmem:[#allocation2 + $0xda] sm:$0xff]
    %6919 = vrot.lane.b32.xlu0 %v6863, 32
    %v6920 = vpop.permute.xlu0 %6919
    %6921 = vrot.lane.b32.xlu0 %v6864, 32
    %v6922 = vpop.permute.xlu0 %6921
    %6923 = vrot.lane.b32.xlu0 %v6865, 32
    %v6924 = vpop.permute.xlu0 %6923
    %6925 = vrot.lane.b32.xlu0 %v6866, 32
    %v6926 = vpop.permute.xlu0 %6925
    %6927 = vrot.lane.b32.xlu0 %v6867, 32
    %v6928 = vpop.permute.xlu0 %6927
    %6929 = vrot.lane.b32.xlu0 %v6868, 32
    %v6930 = vpop.permute.xlu0 %6929
    %6931 = vrot.lane.b32.xlu0 %v6869, 32
    %v6932 = vpop.permute.xlu0 %6931
    %6933 = vrot.lane.b32.xlu0 %v6870, 32
    %v6934 = vpop.permute.xlu0 %6933
    %6935 = vrot.lane.b32.xlu0 %v6871, 32
    %v6936 = vpop.permute.xlu0 %6935
    %6937 = vrot.lane.b32.xlu0 %v6872, 32
    %v6938 = vpop.permute.xlu0 %6937
    %6939 = vrot.lane.b32.xlu0 %v6873, 32
    %v6940 = vpop.permute.xlu0 %6939
    %6941 = vrot.lane.b32.xlu0 %v6874, 32
    %v6942 = vpop.permute.xlu0 %6941
    %6943 = vrot.lane.b32.xlu0 %v6875, 32
    %v6944 = vpop.permute.xlu0 %6943
    %6945 = vrot.lane.b32.xlu0 %v6876, 32
    %v6946 = vpop.permute.xlu0 %6945
    %6947 = vrot.lane.b32.xlu0 %v6877, 32
    %v6948 = vpop.permute.xlu0 %6947
    %6949 = vrot.lane.b32.xlu0 %v6878, 32
    %v6950 = vpop.permute.xlu0 %6949
    %6951 = vrot.lane.b32.xlu0 %v6879, 32
    %v6952 = vpop.permute.xlu0 %6951
    %6953 = vrot.lane.b32.xlu0 %v6880, 32
    %v6954 = vpop.permute.xlu0 %6953
    %6955 = vrot.lane.b32.xlu0 %v6881, 32
    %v6956 = vpop.permute.xlu0 %6955
    %6957 = vrot.lane.b32.xlu0 %v6882, 32
    %v6958 = vpop.permute.xlu0 %6957
    %6959 = vrot.lane.b32.xlu0 %v6883, 32
    %v6960 = vpop.permute.xlu0 %6959
    %6961 = vrot.lane.b32.xlu0 %v6884, 32
    %v6962 = vpop.permute.xlu0 %6961
    %6963 = vrot.lane.b32.xlu0 %v6885, 32
    %v6964 = vpop.permute.xlu0 %6963
    %6965 = vrot.lane.b32.xlu0 %v6886, 32
    %v6966 = vpop.permute.xlu0 %6965
    %6967 = vrot.lane.b32.xlu0 %v6887, 32
    %v6968 = vpop.permute.xlu0 %6967
    %6969 = vrot.lane.b32.xlu0 %v6888, 32
    %v6970 = vpop.permute.xlu0 %6969
    %6971 = vrot.lane.b32.xlu0 %v6889, 32
    %v6972 = vpop.permute.xlu0 %6971
    %6973 = vrot.lane.b32.xlu0 %v6890, 32
    %v6974 = vpop.permute.xlu0 %6973
    %7003 = vst.msk [vmem:[#allocation3] sm:$0xff] %vm2740, %v6920
    %7004 = vst.msk [vmem:[#allocation3 + $0x10] sm:$0xff] %vm2740, %v6922
    %7005 = vst.msk [vmem:[#allocation3 + $0x20] sm:$0xff] %vm2740, %v6924
    %7006 = vst.msk [vmem:[#allocation3 + $0x30] sm:$0xff] %vm2740, %v6926
    %7007 = vst.msk [vmem:[#allocation3 + $0x40] sm:$0xff] %vm2740, %v6928
    %7008 = vst.msk [vmem:[#allocation3 + $0x50] sm:$0xff] %vm2740, %v6930
    %7009 = vst.msk [vmem:[#allocation3 + $0x60] sm:$0xff] %vm2740, %v6932
    %7010 = vst.msk [vmem:[#allocation3 + $0x70] sm:$0xff] %vm2740, %v6934
    %7011 = vst.msk [vmem:[#allocation3 + $0x80] sm:$0xff] %vm2740, %v6936
    %7012 = vst.msk [vmem:[#allocation3 + $0x90] sm:$0xff] %vm2740, %v6938
    %7013 = vst.msk [vmem:[#allocation3 + $0xa0] sm:$0xff] %vm2740, %v6940
    %7014 = vst.msk [vmem:[#allocation3 + $0xb0] sm:$0xff] %vm2740, %v6942
    %7015 = vst.msk [vmem:[#allocation3 + $0xc0] sm:$0xff] %vm2740, %v6944
    %7016 = vst.msk [vmem:[#allocation3 + $0xd0] sm:$0xff] %vm2740, %v6946
    %7017 = vst.msk [vmem:[#allocation3 + $0xe0] sm:$0xff] %vm2740, %v6948
    %7018 = vst.msk [vmem:[#allocation3 + $0xf0] sm:$0xff] %vm2740, %v6950
    %7019 = vst.msk [vmem:[#allocation3 + $0x100] sm:$0xff] %vm2740, %v6952
    %7020 = vst.msk [vmem:[#allocation3 + $0x110] sm:$0xff] %vm2740, %v6954
    %7021 = vst.msk [vmem:[#allocation3 + $0x120] sm:$0xff] %vm2740, %v6956
    %7022 = vst.msk [vmem:[#allocation3 + $0x130] sm:$0xff] %vm2740, %v6958
    %7023 = vst.msk [vmem:[#allocation3 + $0x140] sm:$0xff] %vm2740, %v6960
    %7024 = vst.msk [vmem:[#allocation3 + $0x150] sm:$0xff] %vm2740, %v6962
    %7025 = vst.msk [vmem:[#allocation3 + $0x160] sm:$0xff] %vm2740, %v6964
    %7026 = vst.msk [vmem:[#allocation3 + $0x170] sm:$0xff] %vm2740, %v6966
    %7027 = vst.msk [vmem:[#allocation3 + $0x180] sm:$0xff] %vm2740, %v6968
    %7028 = vst.msk [vmem:[#allocation3 + $0x190] sm:$0xff] %vm2740, %v6970
    %7029 = vst.msk [vmem:[#allocation3 + $0x1a0] sm:$0xff] %vm2740, %v6972
    %7030 = vst.msk [vmem:[#allocation3 + $0x1b0] sm:$0xff] %vm2740, %v6974
    %v7031 = vld [vmem:[#allocation2 + $0x10] sm:$0xff]
    %v7032 = vld [vmem:[#allocation2 + $0x18] sm:$0xff]
    %v7033 = vld [vmem:[#allocation2 + $0x20] sm:$0xff]
    %v7034 = vld [vmem:[#allocation2 + $0x28] sm:$0xff]
    %v7035 = vld [vmem:[#allocation2 + $0x30] sm:$0xff]
    %v7036 = vld [vmem:[#allocation2 + $0x38] sm:$0xff]
    %v7037 = vld [vmem:[#allocation2 + $0x40] sm:$0xff]
    %v7038 = vld [vmem:[#allocation2 + $0x48] sm:$0xff]
    %v7039 = vld [vmem:[#allocation2 + $0x50] sm:$0xff]
    %v7040 = vld [vmem:[#allocation2 + $0x58] sm:$0xff]
    %v7041 = vld [vmem:[#allocation2 + $0x60] sm:$0xff]
    %v7042 = vld [vmem:[#allocation2 + $0x68] sm:$0xff]
    %v7043 = vld [vmem:[#allocation2 + $0x70] sm:$0xff]
    %v7044 = vld [vmem:[#allocation2 + $0x78] sm:$0xff]
    %v7045 = vld [vmem:[#allocation2 + $0x80] sm:$0xff]
    %v7046 = vld [vmem:[#allocation2 + $0x88] sm:$0xff]
    %v7047 = vld [vmem:[#allocation2 + $0x90] sm:$0xff]
    %v7048 = vld [vmem:[#allocation2 + $0x98] sm:$0xff]
    %v7049 = vld [vmem:[#allocation2 + $0xa0] sm:$0xff]
    %v7050 = vld [vmem:[#allocation2 + $0xa8] sm:$0xff]
    %v7051 = vld [vmem:[#allocation2 + $0xb0] sm:$0xff]
    %v7052 = vld [vmem:[#allocation2 + $0xb8] sm:$0xff]
    %v7053 = vld [vmem:[#allocation2 + $0xc0] sm:$0xff]
    %v7054 = vld [vmem:[#allocation2 + $0xc8] sm:$0xff]
    %v7055 = vld [vmem:[#allocation2 + $0xd0] sm:$0xff]
    %v7056 = vld [vmem:[#allocation2 + $0xd8] sm:$0xff]
    %v7057 = vld [vmem:[#allocation2 + $0xe0] sm:$0xff]
    %v7058 = vld [vmem:[#allocation2 + $0xe8] sm:$0xff]
    %7087 = vrot.lane.b32.xlu0 %v7031, 48
    %v7088 = vpop.permute.xlu0 %7087
    %7089 = vrot.lane.b32.xlu0 %v7032, 48
    %v7090 = vpop.permute.xlu0 %7089
    %7091 = vrot.lane.b32.xlu0 %v7033, 48
    %v7092 = vpop.permute.xlu0 %7091
    %7093 = vrot.lane.b32.xlu0 %v7034, 48
    %v7094 = vpop.permute.xlu0 %7093
    %7095 = vrot.lane.b32.xlu0 %v7035, 48
    %v7096 = vpop.permute.xlu0 %7095
    %7097 = vrot.lane.b32.xlu0 %v7036, 48
    %v7098 = vpop.permute.xlu0 %7097
    %7099 = vrot.lane.b32.xlu0 %v7037, 48
    %v7100 = vpop.permute.xlu0 %7099
    %7101 = vrot.lane.b32.xlu0 %v7038, 48
    %v7102 = vpop.permute.xlu0 %7101
    %7103 = vrot.lane.b32.xlu0 %v7039, 48
    %v7104 = vpop.permute.xlu0 %7103
    %7105 = vrot.lane.b32.xlu0 %v7040, 48
    %v7106 = vpop.permute.xlu0 %7105
    %7107 = vrot.lane.b32.xlu0 %v7041, 48
    %v7108 = vpop.permute.xlu0 %7107
    %7109 = vrot.lane.b32.xlu0 %v7042, 48
    %v7110 = vpop.permute.xlu0 %7109
    %7111 = vrot.lane.b32.xlu0 %v7043, 48
    %v7112 = vpop.permute.xlu0 %7111
    %7113 = vrot.lane.b32.xlu0 %v7044, 48
    %v7114 = vpop.permute.xlu0 %7113
    %7115 = vrot.lane.b32.xlu0 %v7045, 48
    %v7116 = vpop.permute.xlu0 %7115
    %7117 = vrot.lane.b32.xlu0 %v7046, 48
    %v7118 = vpop.permute.xlu0 %7117
    %7119 = vrot.lane.b32.xlu0 %v7047, 48
    %v7120 = vpop.permute.xlu0 %7119
    %7121 = vrot.lane.b32.xlu0 %v7048, 48
    %v7122 = vpop.permute.xlu0 %7121
    %7123 = vrot.lane.b32.xlu0 %v7049, 48
    %v7124 = vpop.permute.xlu0 %7123
    %7125 = vrot.lane.b32.xlu0 %v7050, 48
    %v7126 = vpop.permute.xlu0 %7125
    %7127 = vrot.lane.b32.xlu0 %v7051, 48
    %v7128 = vpop.permute.xlu0 %7127
    %7129 = vrot.lane.b32.xlu0 %v7052, 48
    %v7130 = vpop.permute.xlu0 %7129
    %7131 = vrot.lane.b32.xlu0 %v7053, 48
    %v7132 = vpop.permute.xlu0 %7131
    %7133 = vrot.lane.b32.xlu0 %v7054, 48
    %v7134 = vpop.permute.xlu0 %7133
    %7135 = vrot.lane.b32.xlu0 %v7055, 48
    %v7136 = vpop.permute.xlu0 %7135
    %7137 = vrot.lane.b32.xlu0 %v7056, 48
    %v7138 = vpop.permute.xlu0 %7137
    %7139 = vrot.lane.b32.xlu0 %v7057, 48
    %v7140 = vpop.permute.xlu0 %7139
    %7141 = vrot.lane.b32.xlu0 %v7058, 48
    %v7142 = vpop.permute.xlu0 %7141
    %7171 = vst.msk [vmem:[#allocation3] sm:$0xff] %vm2909, %v7088
    %7172 = vst.msk [vmem:[#allocation3 + $0x10] sm:$0xff] %vm2909, %v7090
    %7173 = vst.msk [vmem:[#allocation3 + $0x20] sm:$0xff] %vm2909, %v7092
    %7174 = vst.msk [vmem:[#allocation3 + $0x30] sm:$0xff] %vm2909, %v7094
    %7175 = vst.msk [vmem:[#allocation3 + $0x40] sm:$0xff] %vm2909, %v7096
    %7176 = vst.msk [vmem:[#allocation3 + $0x50] sm:$0xff] %vm2909, %v7098
    %7177 = vst.msk [vmem:[#allocation3 + $0x60] sm:$0xff] %vm2909, %v7100
    %7178 = vst.msk [vmem:[#allocation3 + $0x70] sm:$0xff] %vm2909, %v7102
    %7179 = vst.msk [vmem:[#allocation3 + $0x80] sm:$0xff] %vm2909, %v7104
    %7180 = vst.msk [vmem:[#allocation3 + $0x90] sm:$0xff] %vm2909, %v7106
    %7181 = vst.msk [vmem:[#allocation3 + $0xa0] sm:$0xff] %vm2909, %v7108
    %7182 = vst.msk [vmem:[#allocation3 + $0xb0] sm:$0xff] %vm2909, %v7110
    %7183 = vst.msk [vmem:[#allocation3 + $0xc0] sm:$0xff] %vm2909, %v7112
    %7184 = vst.msk [vmem:[#allocation3 + $0xd0] sm:$0xff] %vm2909, %v7114
    %7185 = vst.msk [vmem:[#allocation3 + $0xe0] sm:$0xff] %vm2909, %v7116
    %7186 = vst.msk [vmem:[#allocation3 + $0xf0] sm:$0xff] %vm2909, %v7118
    %7187 = vst.msk [vmem:[#allocation3 + $0x100] sm:$0xff] %vm2909, %v7120
    %7188 = vst.msk [vmem:[#allocation3 + $0x110] sm:$0xff] %vm2909, %v7122
    %7189 = vst.msk [vmem:[#allocation3 + $0x120] sm:$0xff] %vm2909, %v7124
    %7190 = vst.msk [vmem:[#allocation3 + $0x130] sm:$0xff] %vm2909, %v7126
    %7191 = vst.msk [vmem:[#allocation3 + $0x140] sm:$0xff] %vm2909, %v7128
    %7192 = vst.msk [vmem:[#allocation3 + $0x150] sm:$0xff] %vm2909, %v7130
    %7193 = vst.msk [vmem:[#allocation3 + $0x160] sm:$0xff] %vm2909, %v7132
    %7194 = vst.msk [vmem:[#allocation3 + $0x170] sm:$0xff] %vm2909, %v7134
    %7195 = vst.msk [vmem:[#allocation3 + $0x180] sm:$0xff] %vm2909, %v7136
    %7196 = vst.msk [vmem:[#allocation3 + $0x190] sm:$0xff] %vm2909, %v7138
    %7197 = vst.msk [vmem:[#allocation3 + $0x1a0] sm:$0xff] %vm2909, %v7140
    %7198 = vst.msk [vmem:[#allocation3 + $0x1b0] sm:$0xff] %vm2909, %v7142
    %v7199 = vld [vmem:[#allocation2 + $0x11] sm:$0xff]
    %v7200 = vld [vmem:[#allocation2 + $0x19] sm:$0xff]
    %v7201 = vld [vmem:[#allocation2 + $0x21] sm:$0xff]
    %v7202 = vld [vmem:[#allocation2 + $0x29] sm:$0xff]
    %v7203 = vld [vmem:[#allocation2 + $0x31] sm:$0xff]
    %v7204 = vld [vmem:[#allocation2 + $0x39] sm:$0xff]
    %v7205 = vld [vmem:[#allocation2 + $0x41] sm:$0xff]
    %v7206 = vld [vmem:[#allocation2 + $0x49] sm:$0xff]
    %v7207 = vld [vmem:[#allocation2 + $0x51] sm:$0xff]
    %v7208 = vld [vmem:[#allocation2 + $0x59] sm:$0xff]
    %v7209 = vld [vmem:[#allocation2 + $0x61] sm:$0xff]
    %v7210 = vld [vmem:[#allocation2 + $0x69] sm:$0xff]
    %v7211 = vld [vmem:[#allocation2 + $0x71] sm:$0xff]
    %v7212 = vld [vmem:[#allocation2 + $0x79] sm:$0xff]
    %v7213 = vld [vmem:[#allocation2 + $0x81] sm:$0xff]
    %v7214 = vld [vmem:[#allocation2 + $0x89] sm:$0xff]
    %v7215 = vld [vmem:[#allocation2 + $0x91] sm:$0xff]
    %v7216 = vld [vmem:[#allocation2 + $0x99] sm:$0xff]
    %v7217 = vld [vmem:[#allocation2 + $0xa1] sm:$0xff]
    %v7218 = vld [vmem:[#allocation2 + $0xa9] sm:$0xff]
    %v7219 = vld [vmem:[#allocation2 + $0xb1] sm:$0xff]
    %v7220 = vld [vmem:[#allocation2 + $0xb9] sm:$0xff]
    %v7221 = vld [vmem:[#allocation2 + $0xc1] sm:$0xff]
    %v7222 = vld [vmem:[#allocation2 + $0xc9] sm:$0xff]
    %v7223 = vld [vmem:[#allocation2 + $0xd1] sm:$0xff]
    %v7224 = vld [vmem:[#allocation2 + $0xd9] sm:$0xff]
    %v7225 = vld [vmem:[#allocation2 + $0xe1] sm:$0xff]
    %v7226 = vld [vmem:[#allocation2 + $0xe9] sm:$0xff]
    %7255 = vrot.lane.b32.xlu0 %v7199, 64
    %v7256 = vpop.permute.xlu0 %7255
    %7257 = vrot.lane.b32.xlu0 %v7200, 64
    %v7258 = vpop.permute.xlu0 %7257
    %7259 = vrot.lane.b32.xlu0 %v7201, 64
    %v7260 = vpop.permute.xlu0 %7259
    %7261 = vrot.lane.b32.xlu0 %v7202, 64
    %v7262 = vpop.permute.xlu0 %7261
    %7263 = vrot.lane.b32.xlu0 %v7203, 64
    %v7264 = vpop.permute.xlu0 %7263
    %7265 = vrot.lane.b32.xlu0 %v7204, 64
    %v7266 = vpop.permute.xlu0 %7265
    %7267 = vrot.lane.b32.xlu0 %v7205, 64
    %v7268 = vpop.permute.xlu0 %7267
    %7269 = vrot.lane.b32.xlu0 %v7206, 64
    %v7270 = vpop.permute.xlu0 %7269
    %7271 = vrot.lane.b32.xlu0 %v7207, 64
    %v7272 = vpop.permute.xlu0 %7271
    %7273 = vrot.lane.b32.xlu0 %v7208, 64
    %v7274 = vpop.permute.xlu0 %7273
    %7275 = vrot.lane.b32.xlu0 %v7209, 64
    %v7276 = vpop.permute.xlu0 %7275
    %7277 = vrot.lane.b32.xlu0 %v7210, 64
    %v7278 = vpop.permute.xlu0 %7277
    %7279 = vrot.lane.b32.xlu0 %v7211, 64
    %v7280 = vpop.permute.xlu0 %7279
    %7281 = vrot.lane.b32.xlu0 %v7212, 64
    %v7282 = vpop.permute.xlu0 %7281
    %7283 = vrot.lane.b32.xlu0 %v7213, 64
    %v7284 = vpop.permute.xlu0 %7283
    %7285 = vrot.lane.b32.xlu0 %v7214, 64
    %v7286 = vpop.permute.xlu0 %7285
    %7287 = vrot.lane.b32.xlu0 %v7215, 64
    %v7288 = vpop.permute.xlu0 %7287
    %7289 = vrot.lane.b32.xlu0 %v7216, 64
    %v7290 = vpop.permute.xlu0 %7289
    %7291 = vrot.lane.b32.xlu0 %v7217, 64
    %v7292 = vpop.permute.xlu0 %7291
    %7293 = vrot.lane.b32.xlu0 %v7218, 64
    %v7294 = vpop.permute.xlu0 %7293
    %7295 = vrot.lane.b32.xlu0 %v7219, 64
    %v7296 = vpop.permute.xlu0 %7295
    %7297 = vrot.lane.b32.xlu0 %v7220, 64
    %v7298 = vpop.permute.xlu0 %7297
    %7299 = vrot.lane.b32.xlu0 %v7221, 64
    %v7300 = vpop.permute.xlu0 %7299
    %7301 = vrot.lane.b32.xlu0 %v7222, 64
    %v7302 = vpop.permute.xlu0 %7301
    %7303 = vrot.lane.b32.xlu0 %v7223, 64
    %v7304 = vpop.permute.xlu0 %7303
    %7305 = vrot.lane.b32.xlu0 %v7224, 64
    %v7306 = vpop.permute.xlu0 %7305
    %7307 = vrot.lane.b32.xlu0 %v7225, 64
    %v7308 = vpop.permute.xlu0 %7307
    %7309 = vrot.lane.b32.xlu0 %v7226, 64
    %v7310 = vpop.permute.xlu0 %7309
    %7339 = vst.msk [vmem:[#allocation3] sm:$0xff] %vm3078, %v7256
    %7340 = vst.msk [vmem:[#allocation3 + $0x10] sm:$0xff] %vm3078, %v7258
    %7341 = vst.msk [vmem:[#allocation3 + $0x20] sm:$0xff] %vm3078, %v7260
    %7342 = vst.msk [vmem:[#allocation3 + $0x30] sm:$0xff] %vm3078, %v7262
    %7343 = vst.msk [vmem:[#allocation3 + $0x40] sm:$0xff] %vm3078, %v7264
    %7344 = vst.msk [vmem:[#allocation3 + $0x50] sm:$0xff] %vm3078, %v7266
    %7345 = vst.msk [vmem:[#allocation3 + $0x60] sm:$0xff] %vm3078, %v7268
    %7346 = vst.msk [vmem:[#allocation3 + $0x70] sm:$0xff] %vm3078, %v7270
    %7347 = vst.msk [vmem:[#allocation3 + $0x80] sm:$0xff] %vm3078, %v7272
    %7348 = vst.msk [vmem:[#allocation3 + $0x90] sm:$0xff] %vm3078, %v7274
    %7349 = vst.msk [vmem:[#allocation3 + $0xa0] sm:$0xff] %vm3078, %v7276
    %7350 = vst.msk [vmem:[#allocation3 + $0xb0] sm:$0xff] %vm3078, %v7278
    %7351 = vst.msk [vmem:[#allocation3 + $0xc0] sm:$0xff] %vm3078, %v7280
    %7352 = vst.msk [vmem:[#allocation3 + $0xd0] sm:$0xff] %vm3078, %v7282
    %7353 = vst.msk [vmem:[#allocation3 + $0xe0] sm:$0xff] %vm3078, %v7284
    %7354 = vst.msk [vmem:[#allocation3 + $0xf0] sm:$0xff] %vm3078, %v7286
    %7355 = vst.msk [vmem:[#allocation3 + $0x100] sm:$0xff] %vm3078, %v7288
    %7356 = vst.msk [vmem:[#allocation3 + $0x110] sm:$0xff] %vm3078, %v7290
    %7357 = vst.msk [vmem:[#allocation3 + $0x120] sm:$0xff] %vm3078, %v7292
    %7358 = vst.msk [vmem:[#allocation3 + $0x130] sm:$0xff] %vm3078, %v7294
    %7359 = vst.msk [vmem:[#allocation3 + $0x140] sm:$0xff] %vm3078, %v7296
    %7360 = vst.msk [vmem:[#allocation3 + $0x150] sm:$0xff] %vm3078, %v7298
    %7361 = vst.msk [vmem:[#allocation3 + $0x160] sm:$0xff] %vm3078, %v7300
    %7362 = vst.msk [vmem:[#allocation3 + $0x170] sm:$0xff] %vm3078, %v7302
    %7363 = vst.msk [vmem:[#allocation3 + $0x180] sm:$0xff] %vm3078, %v7304
    %7364 = vst.msk [vmem:[#allocation3 + $0x190] sm:$0xff] %vm3078, %v7306
    %7365 = vst.msk [vmem:[#allocation3 + $0x1a0] sm:$0xff] %vm3078, %v7308
    %7366 = vst.msk [vmem:[#allocation3 + $0x1b0] sm:$0xff] %vm3078, %v7310
    %v7367 = vld [vmem:[#allocation2 + $0x12] sm:$0xff]
    %v7368 = vld [vmem:[#allocation2 + $0x1a] sm:$0xff]
    %v7369 = vld [vmem:[#allocation2 + $0x22] sm:$0xff]
    %v7370 = vld [vmem:[#allocation2 + $0x2a] sm:$0xff]
    %v7371 = vld [vmem:[#allocation2 + $0x32] sm:$0xff]
    %v7372 = vld [vmem:[#allocation2 + $0x3a] sm:$0xff]
    %v7373 = vld [vmem:[#allocation2 + $0x42] sm:$0xff]
    %v7374 = vld [vmem:[#allocation2 + $0x4a] sm:$0xff]
    %v7375 = vld [vmem:[#allocation2 + $0x52] sm:$0xff]
    %v7376 = vld [vmem:[#allocation2 + $0x5a] sm:$0xff]
    %v7377 = vld [vmem:[#allocation2 + $0x62] sm:$0xff]
    %v7378 = vld [vmem:[#allocation2 + $0x6a] sm:$0xff]
    %v7379 = vld [vmem:[#allocation2 + $0x72] sm:$0xff]
    %v7380 = vld [vmem:[#allocation2 + $0x7a] sm:$0xff]
    %v7381 = vld [vmem:[#allocation2 + $0x82] sm:$0xff]
    %v7382 = vld [vmem:[#allocation2 + $0x8a] sm:$0xff]
    %v7383 = vld [vmem:[#allocation2 + $0x92] sm:$0xff]
    %v7384 = vld [vmem:[#allocation2 + $0x9a] sm:$0xff]
    %v7385 = vld [vmem:[#allocation2 + $0xa2] sm:$0xff]
    %v7386 = vld [vmem:[#allocation2 + $0xaa] sm:$0xff]
    %v7387 = vld [vmem:[#allocation2 + $0xb2] sm:$0xff]
    %v7388 = vld [vmem:[#allocation2 + $0xba] sm:$0xff]
    %v7389 = vld [vmem:[#allocation2 + $0xc2] sm:$0xff]
    %v7390 = vld [vmem:[#allocation2 + $0xca] sm:$0xff]
    %v7391 = vld [vmem:[#allocation2 + $0xd2] sm:$0xff]
    %v7392 = vld [vmem:[#allocation2 + $0xda] sm:$0xff]
    %v7393 = vld [vmem:[#allocation2 + $0xe2] sm:$0xff]
    %v7394 = vld [vmem:[#allocation2 + $0xea] sm:$0xff]
    %7423 = vrot.lane.b32.xlu0 %v7367, 80
    %v7424 = vpop.permute.xlu0 %7423
    %7425 = vrot.lane.b32.xlu0 %v7368, 80
    %v7426 = vpop.permute.xlu0 %7425
    %7427 = vrot.lane.b32.xlu0 %v7369, 80
    %v7428 = vpop.permute.xlu0 %7427
    %7429 = vrot.lane.b32.xlu0 %v7370, 80
    %v7430 = vpop.permute.xlu0 %7429
    %7431 = vrot.lane.b32.xlu0 %v7371, 80
    %v7432 = vpop.permute.xlu0 %7431
    %7433 = vrot.lane.b32.xlu0 %v7372, 80
    %v7434 = vpop.permute.xlu0 %7433
    %7435 = vrot.lane.b32.xlu0 %v7373, 80
    %v7436 = vpop.permute.xlu0 %7435
    %7437 = vrot.lane.b32.xlu0 %v7374, 80
    %v7438 = vpop.permute.xlu0 %7437
    %7439 = vrot.lane.b32.xlu0 %v7375, 80
    %v7440 = vpop.permute.xlu0 %7439
    %7441 = vrot.lane.b32.xlu0 %v7376, 80
    %v7442 = vpop.permute.xlu0 %7441
    %7443 = vrot.lane.b32.xlu0 %v7377, 80
    %v7444 = vpop.permute.xlu0 %7443
    %7445 = vrot.lane.b32.xlu0 %v7378, 80
    %v7446 = vpop.permute.xlu0 %7445
    %7447 = vrot.lane.b32.xlu0 %v7379, 80
    %v7448 = vpop.permute.xlu0 %7447
    %7449 = vrot.lane.b32.xlu0 %v7380, 80
    %v7450 = vpop.permute.xlu0 %7449
    %7451 = vrot.lane.b32.xlu0 %v7381, 80
    %v7452 = vpop.permute.xlu0 %7451
    %7453 = vrot.lane.b32.xlu0 %v7382, 80
    %v7454 = vpop.permute.xlu0 %7453
    %7455 = vrot.lane.b32.xlu0 %v7383, 80
    %v7456 = vpop.permute.xlu0 %7455
    %7457 = vrot.lane.b32.xlu0 %v7384, 80
    %v7458 = vpop.permute.xlu0 %7457
    %7459 = vrot.lane.b32.xlu0 %v7385, 80
    %v7460 = vpop.permute.xlu0 %7459
    %7461 = vrot.lane.b32.xlu0 %v7386, 80
    %v7462 = vpop.permute.xlu0 %7461
    %7463 = vrot.lane.b32.xlu0 %v7387, 80
    %v7464 = vpop.permute.xlu0 %7463
    %7465 = vrot.lane.b32.xlu0 %v7388, 80
    %v7466 = vpop.permute.xlu0 %7465
    %7467 = vrot.lane.b32.xlu0 %v7389, 80
    %v7468 = vpop.permute.xlu0 %7467
    %7469 = vrot.lane.b32.xlu0 %v7390, 80
    %v7470 = vpop.permute.xlu0 %7469
    %7471 = vrot.lane.b32.xlu0 %v7391, 80
    %v7472 = vpop.permute.xlu0 %7471
    %7473 = vrot.lane.b32.xlu0 %v7392, 80
    %v7474 = vpop.permute.xlu0 %7473
    %7475 = vrot.lane.b32.xlu0 %v7393, 80
    %v7476 = vpop.permute.xlu0 %7475
    %7477 = vrot.lane.b32.xlu0 %v7394, 80
    %v7478 = vpop.permute.xlu0 %7477
    %7507 = vst.msk [vmem:[#allocation3] sm:$0xff] %vm3247, %v7424
    %7508 = vst.msk [vmem:[#allocation3 + $0x10] sm:$0xff] %vm3247, %v7426
    %7509 = vst.msk [vmem:[#allocation3 + $0x20] sm:$0xff] %vm3247, %v7428
    %7510 = vst.msk [vmem:[#allocation3 + $0x30] sm:$0xff] %vm3247, %v7430
    %7511 = vst.msk [vmem:[#allocation3 + $0x40] sm:$0xff] %vm3247, %v7432
    %7512 = vst.msk [vmem:[#allocation3 + $0x50] sm:$0xff] %vm3247, %v7434
    %7513 = vst.msk [vmem:[#allocation3 + $0x60] sm:$0xff] %vm3247, %v7436
    %7514 = vst.msk [vmem:[#allocation3 + $0x70] sm:$0xff] %vm3247, %v7438
    %7515 = vst.msk [vmem:[#allocation3 + $0x80] sm:$0xff] %vm3247, %v7440
    %7516 = vst.msk [vmem:[#allocation3 + $0x90] sm:$0xff] %vm3247, %v7442
    %7517 = vst.msk [vmem:[#allocation3 + $0xa0] sm:$0xff] %vm3247, %v7444
    %7518 = vst.msk [vmem:[#allocation3 + $0xb0] sm:$0xff] %vm3247, %v7446
    %7519 = vst.msk [vmem:[#allocation3 + $0xc0] sm:$0xff] %vm3247, %v7448
    %7520 = vst.msk [vmem:[#allocation3 + $0xd0] sm:$0xff] %vm3247, %v7450
    %7521 = vst.msk [vmem:[#allocation3 + $0xe0] sm:$0xff] %vm3247, %v7452
    %7522 = vst.msk [vmem:[#allocation3 + $0xf0] sm:$0xff] %vm3247, %v7454
    %7523 = vst.msk [vmem:[#allocation3 + $0x100] sm:$0xff] %vm3247, %v7456
    %7524 = vst.msk [vmem:[#allocation3 + $0x110] sm:$0xff] %vm3247, %v7458
    %7525 = vst.msk [vmem:[#allocation3 + $0x120] sm:$0xff] %vm3247, %v7460
    %7526 = vst.msk [vmem:[#allocation3 + $0x130] sm:$0xff] %vm3247, %v7462
    %7527 = vst.msk [vmem:[#allocation3 + $0x140] sm:$0xff] %vm3247, %v7464
    %7528 = vst.msk [vmem:[#allocation3 + $0x150] sm:$0xff] %vm3247, %v7466
    %7529 = vst.msk [vmem:[#allocation3 + $0x160] sm:$0xff] %vm3247, %v7468
    %7530 = vst.msk [vmem:[#allocation3 + $0x170] sm:$0xff] %vm3247, %v7470
    %7531 = vst.msk [vmem:[#allocation3 + $0x180] sm:$0xff] %vm3247, %v7472
    %7532 = vst.msk [vmem:[#allocation3 + $0x190] sm:$0xff] %vm3247, %v7474
    %7533 = vst.msk [vmem:[#allocation3 + $0x1a0] sm:$0xff] %vm3247, %v7476
    %7534 = vst.msk [vmem:[#allocation3 + $0x1b0] sm:$0xff] %vm3247, %v7478
    %v7535 = vld [vmem:[#allocation2 + $0x20] sm:$0xff]
    %v7536 = vld [vmem:[#allocation2 + $0x28] sm:$0xff]
    %v7537 = vld [vmem:[#allocation2 + $0x30] sm:$0xff]
    %v7538 = vld [vmem:[#allocation2 + $0x38] sm:$0xff]
    %v7539 = vld [vmem:[#allocation2 + $0x40] sm:$0xff]
    %v7540 = vld [vmem:[#allocation2 + $0x48] sm:$0xff]
    %v7541 = vld [vmem:[#allocation2 + $0x50] sm:$0xff]
    %v7542 = vld [vmem:[#allocation2 + $0x58] sm:$0xff]
    %v7543 = vld [vmem:[#allocation2 + $0x60] sm:$0xff]
    %v7544 = vld [vmem:[#allocation2 + $0x68] sm:$0xff]
    %v7545 = vld [vmem:[#allocation2 + $0x70] sm:$0xff]
    %v7546 = vld [vmem:[#allocation2 + $0x78] sm:$0xff]
    %v7547 = vld [vmem:[#allocation2 + $0x80] sm:$0xff]
    %v7548 = vld [vmem:[#allocation2 + $0x88] sm:$0xff]
    %v7549 = vld [vmem:[#allocation2 + $0x90] sm:$0xff]
    %v7550 = vld [vmem:[#allocation2 + $0x98] sm:$0xff]
    %v7551 = vld [vmem:[#allocation2 + $0xa0] sm:$0xff]
    %v7552 = vld [vmem:[#allocation2 + $0xa8] sm:$0xff]
    %v7553 = vld [vmem:[#allocation2 + $0xb0] sm:$0xff]
    %v7554 = vld [vmem:[#allocation2 + $0xb8] sm:$0xff]
    %v7555 = vld [vmem:[#allocation2 + $0xc0] sm:$0xff]
    %v7556 = vld [vmem:[#allocation2 + $0xc8] sm:$0xff]
    %v7557 = vld [vmem:[#allocation2 + $0xd0] sm:$0xff]
    %v7558 = vld [vmem:[#allocation2 + $0xd8] sm:$0xff]
    %v7559 = vld [vmem:[#allocation2 + $0xe0] sm:$0xff]
    %v7560 = vld [vmem:[#allocation2 + $0xe8] sm:$0xff]
    %v7561 = vld [vmem:[#allocation2 + $0xf0] sm:$0xff]
    %v7562 = vld [vmem:[#allocation2 + $0xf8] sm:$0xff]
    %7591 = vrot.lane.b32.xlu0 %v7535, 96
    %v7592 = vpop.permute.xlu0 %7591
    %7593 = vrot.lane.b32.xlu0 %v7536, 96
    %v7594 = vpop.permute.xlu0 %7593
    %7595 = vrot.lane.b32.xlu0 %v7537, 96
    %v7596 = vpop.permute.xlu0 %7595
    %7597 = vrot.lane.b32.xlu0 %v7538, 96
    %v7598 = vpop.permute.xlu0 %7597
    %7599 = vrot.lane.b32.xlu0 %v7539, 96
    %v7600 = vpop.permute.xlu0 %7599
    %7601 = vrot.lane.b32.xlu0 %v7540, 96
    %v7602 = vpop.permute.xlu0 %7601
    %7603 = vrot.lane.b32.xlu0 %v7541, 96
    %v7604 = vpop.permute.xlu0 %7603
    %7605 = vrot.lane.b32.xlu0 %v7542, 96
    %v7606 = vpop.permute.xlu0 %7605
    %7607 = vrot.lane.b32.xlu0 %v7543, 96
    %v7608 = vpop.permute.xlu0 %7607
    %7609 = vrot.lane.b32.xlu0 %v7544, 96
    %v7610 = vpop.permute.xlu0 %7609
    %7611 = vrot.lane.b32.xlu0 %v7545, 96
    %v7612 = vpop.permute.xlu0 %7611
    %7613 = vrot.lane.b32.xlu0 %v7546, 96
    %v7614 = vpop.permute.xlu0 %7613
    %7615 = vrot.lane.b32.xlu0 %v7547, 96
    %v7616 = vpop.permute.xlu0 %7615
    %7617 = vrot.lane.b32.xlu0 %v7548, 96
    %v7618 = vpop.permute.xlu0 %7617
    %7619 = vrot.lane.b32.xlu0 %v7549, 96
    %v7620 = vpop.permute.xlu0 %7619
    %7621 = vrot.lane.b32.xlu0 %v7550, 96
    %v7622 = vpop.permute.xlu0 %7621
    %7623 = vrot.lane.b32.xlu0 %v7551, 96
    %v7624 = vpop.permute.xlu0 %7623
    %7625 = vrot.lane.b32.xlu0 %v7552, 96
    %v7626 = vpop.permute.xlu0 %7625
    %7627 = vrot.lane.b32.xlu0 %v7553, 96
    %v7628 = vpop.permute.xlu0 %7627
    %7629 = vrot.lane.b32.xlu0 %v7554, 96
    %v7630 = vpop.permute.xlu0 %7629
    %7631 = vrot.lane.b32.xlu0 %v7555, 96
    %v7632 = vpop.permute.xlu0 %7631
    %7633 = vrot.lane.b32.xlu0 %v7556, 96
    %v7634 = vpop.permute.xlu0 %7633
    %7635 = vrot.lane.b32.xlu0 %v7557, 96
    %v7636 = vpop.permute.xlu0 %7635
    %7637 = vrot.lane.b32.xlu0 %v7558, 96
    %v7638 = vpop.permute.xlu0 %7637
    %7639 = vrot.lane.b32.xlu0 %v7559, 96
    %v7640 = vpop.permute.xlu0 %7639
    %7641 = vrot.lane.b32.xlu0 %v7560, 96
    %v7642 = vpop.permute.xlu0 %7641
    %7643 = vrot.lane.b32.xlu0 %v7561, 96
    %v7644 = vpop.permute.xlu0 %7643
    %7645 = vrot.lane.b32.xlu0 %v7562, 96
    %v7646 = vpop.permute.xlu0 %7645
    %7675 = vst.msk [vmem:[#allocation3] sm:$0xff] %vm3416, %v7592
    %7676 = vst.msk [vmem:[#allocation3 + $0x10] sm:$0xff] %vm3416, %v7594
    %7677 = vst.msk [vmem:[#allocation3 + $0x20] sm:$0xff] %vm3416, %v7596
    %7678 = vst.msk [vmem:[#allocation3 + $0x30] sm:$0xff] %vm3416, %v7598
    %7679 = vst.msk [vmem:[#allocation3 + $0x40] sm:$0xff] %vm3416, %v7600
    %7680 = vst.msk [vmem:[#allocation3 + $0x50] sm:$0xff] %vm3416, %v7602
    %7681 = vst.msk [vmem:[#allocation3 + $0x60] sm:$0xff] %vm3416, %v7604
    %7682 = vst.msk [vmem:[#allocation3 + $0x70] sm:$0xff] %vm3416, %v7606
    %7683 = vst.msk [vmem:[#allocation3 + $0x80] sm:$0xff] %vm3416, %v7608
    %7684 = vst.msk [vmem:[#allocation3 + $0x90] sm:$0xff] %vm3416, %v7610
    %7685 = vst.msk [vmem:[#allocation3 + $0xa0] sm:$0xff] %vm3416, %v7612
    %7686 = vst.msk [vmem:[#allocation3 + $0xb0] sm:$0xff] %vm3416, %v7614
    %7687 = vst.msk [vmem:[#allocation3 + $0xc0] sm:$0xff] %vm3416, %v7616
    %7688 = vst.msk [vmem:[#allocation3 + $0xd0] sm:$0xff] %vm3416, %v7618
    %7689 = vst.msk [vmem:[#allocation3 + $0xe0] sm:$0xff] %vm3416, %v7620
    %7690 = vst.msk [vmem:[#allocation3 + $0xf0] sm:$0xff] %vm3416, %v7622
    %7691 = vst.msk [vmem:[#allocation3 + $0x100] sm:$0xff] %vm3416, %v7624
    %7692 = vst.msk [vmem:[#allocation3 + $0x110] sm:$0xff] %vm3416, %v7626
    %7693 = vst.msk [vmem:[#allocation3 + $0x120] sm:$0xff] %vm3416, %v7628
    %7694 = vst.msk [vmem:[#allocation3 + $0x130] sm:$0xff] %vm3416, %v7630
    %7695 = vst.msk [vmem:[#allocation3 + $0x140] sm:$0xff] %vm3416, %v7632
    %7696 = vst.msk [vmem:[#allocation3 + $0x150] sm:$0xff] %vm3416, %v7634
    %7697 = vst.msk [vmem:[#allocation3 + $0x160] sm:$0xff] %vm3416, %v7636
    %7698 = vst.msk [vmem:[#allocation3 + $0x170] sm:$0xff] %vm3416, %v7638
    %7699 = vst.msk [vmem:[#allocation3 + $0x180] sm:$0xff] %vm3416, %v7640
    %7700 = vst.msk [vmem:[#allocation3 + $0x190] sm:$0xff] %vm3416, %v7642
    %7701 = vst.msk [vmem:[#allocation3 + $0x1a0] sm:$0xff] %vm3416, %v7644
    %7702 = vst.msk [vmem:[#allocation3 + $0x1b0] sm:$0xff] %vm3416, %v7646
    %v7703 = vld [vmem:[#allocation2 + $0x21] sm:$0xff]
    %v7704 = vld [vmem:[#allocation2 + $0x29] sm:$0xff]
    %v7705 = vld [vmem:[#allocation2 + $0x31] sm:$0xff]
    %v7706 = vld [vmem:[#allocation2 + $0x39] sm:$0xff]
    %v7707 = vld [vmem:[#allocation2 + $0x41] sm:$0xff]
    %v7708 = vld [vmem:[#allocation2 + $0x49] sm:$0xff]
    %v7709 = vld [vmem:[#allocation2 + $0x51] sm:$0xff]
    %v7710 = vld [vmem:[#allocation2 + $0x59] sm:$0xff]
    %v7711 = vld [vmem:[#allocation2 + $0x61] sm:$0xff]
    %v7712 = vld [vmem:[#allocation2 + $0x69] sm:$0xff]
    %v7713 = vld [vmem:[#allocation2 + $0x71] sm:$0xff]
    %v7714 = vld [vmem:[#allocation2 + $0x79] sm:$0xff]
    %v7715 = vld [vmem:[#allocation2 + $0x81] sm:$0xff]
    %v7716 = vld [vmem:[#allocation2 + $0x89] sm:$0xff]
    %v7717 = vld [vmem:[#allocation2 + $0x91] sm:$0xff]
    %v7718 = vld [vmem:[#allocation2 + $0x99] sm:$0xff]
    %v7719 = vld [vmem:[#allocation2 + $0xa1] sm:$0xff]
    %v7720 = vld [vmem:[#allocation2 + $0xa9] sm:$0xff]
    %v7721 = vld [vmem:[#allocation2 + $0xb1] sm:$0xff]
    %v7722 = vld [vmem:[#allocation2 + $0xb9] sm:$0xff]
    %v7723 = vld [vmem:[#allocation2 + $0xc1] sm:$0xff]
    %v7724 = vld [vmem:[#allocation2 + $0xc9] sm:$0xff]
    %v7725 = vld [vmem:[#allocation2 + $0xd1] sm:$0xff]
    %v7726 = vld [vmem:[#allocation2 + $0xd9] sm:$0xff]
    %v7727 = vld [vmem:[#allocation2 + $0xe1] sm:$0xff]
    %v7728 = vld [vmem:[#allocation2 + $0xe9] sm:$0xff]
    %v7729 = vld [vmem:[#allocation2 + $0xf1] sm:$0xff]
    %v7730 = vld [vmem:[#allocation2 + $0xf9] sm:$0xff]
    %7759 = vrot.lane.b32.xlu0 %v7703, 112
    %v7760 = vpop.permute.xlu0 %7759
    %7761 = vrot.lane.b32.xlu0 %v7704, 112
    %v7762 = vpop.permute.xlu0 %7761
    %7763 = vrot.lane.b32.xlu0 %v7705, 112
    %v7764 = vpop.permute.xlu0 %7763
    %7765 = vrot.lane.b32.xlu0 %v7706, 112
    %v7766 = vpop.permute.xlu0 %7765
    %7767 = vrot.lane.b32.xlu0 %v7707, 112
    %v7768 = vpop.permute.xlu0 %7767
    %7769 = vrot.lane.b32.xlu0 %v7708, 112
    %v7770 = vpop.permute.xlu0 %7769
    %7771 = vrot.lane.b32.xlu0 %v7709, 112
    %v7772 = vpop.permute.xlu0 %7771
    %7773 = vrot.lane.b32.xlu0 %v7710, 112
    %v7774 = vpop.permute.xlu0 %7773
    %7775 = vrot.lane.b32.xlu0 %v7711, 112
    %v7776 = vpop.permute.xlu0 %7775
    %7777 = vrot.lane.b32.xlu0 %v7712, 112
    %v7778 = vpop.permute.xlu0 %7777
    %7779 = vrot.lane.b32.xlu0 %v7713, 112
    %v7780 = vpop.permute.xlu0 %7779
    %7781 = vrot.lane.b32.xlu0 %v7714, 112
    %v7782 = vpop.permute.xlu0 %7781
    %7783 = vrot.lane.b32.xlu0 %v7715, 112
    %v7784 = vpop.permute.xlu0 %7783
    %7785 = vrot.lane.b32.xlu0 %v7716, 112
    %v7786 = vpop.permute.xlu0 %7785
    %7787 = vrot.lane.b32.xlu0 %v7717, 112
    %v7788 = vpop.permute.xlu0 %7787
    %7789 = vrot.lane.b32.xlu0 %v7718, 112
    %v7790 = vpop.permute.xlu0 %7789
    %7791 = vrot.lane.b32.xlu0 %v7719, 112
    %v7792 = vpop.permute.xlu0 %7791
    %7793 = vrot.lane.b32.xlu0 %v7720, 112
    %v7794 = vpop.permute.xlu0 %7793
    %7795 = vrot.lane.b32.xlu0 %v7721, 112
    %v7796 = vpop.permute.xlu0 %7795
    %7797 = vrot.lane.b32.xlu0 %v7722, 112
    %v7798 = vpop.permute.xlu0 %7797
    %7799 = vrot.lane.b32.xlu0 %v7723, 112
    %v7800 = vpop.permute.xlu0 %7799
    %7801 = vrot.lane.b32.xlu0 %v7724, 112
    %v7802 = vpop.permute.xlu0 %7801
    %7803 = vrot.lane.b32.xlu0 %v7725, 112
    %v7804 = vpop.permute.xlu0 %7803
    %7805 = vrot.lane.b32.xlu0 %v7726, 112
    %v7806 = vpop.permute.xlu0 %7805
    %7807 = vrot.lane.b32.xlu0 %v7727, 112
    %v7808 = vpop.permute.xlu0 %7807
    %7809 = vrot.lane.b32.xlu0 %v7728, 112
    %v7810 = vpop.permute.xlu0 %7809
    %7811 = vrot.lane.b32.xlu0 %v7729, 112
    %v7812 = vpop.permute.xlu0 %7811
    %7813 = vrot.lane.b32.xlu0 %v7730, 112
    %v7814 = vpop.permute.xlu0 %7813
    %7843 = vst.msk [vmem:[#allocation3] sm:$0xff] %vm3585, %v7760
    %7844 = vst.msk [vmem:[#allocation3 + $0x10] sm:$0xff] %vm3585, %v7762
    %7845 = vst.msk [vmem:[#allocation3 + $0x20] sm:$0xff] %vm3585, %v7764
    %7846 = vst.msk [vmem:[#allocation3 + $0x30] sm:$0xff] %vm3585, %v7766
    %7847 = vst.msk [vmem:[#allocation3 + $0x40] sm:$0xff] %vm3585, %v7768
    %7848 = vst.msk [vmem:[#allocation3 + $0x50] sm:$0xff] %vm3585, %v7770
    %7849 = vst.msk [vmem:[#allocation3 + $0x60] sm:$0xff] %vm3585, %v7772
    %7850 = vst.msk [vmem:[#allocation3 + $0x70] sm:$0xff] %vm3585, %v7774
    %7851 = vst.msk [vmem:[#allocation3 + $0x80] sm:$0xff] %vm3585, %v7776
    %7852 = vst.msk [vmem:[#allocation3 + $0x90] sm:$0xff] %vm3585, %v7778
    %7853 = vst.msk [vmem:[#allocation3 + $0xa0] sm:$0xff] %vm3585, %v7780
    %7854 = vst.msk [vmem:[#allocation3 + $0xb0] sm:$0xff] %vm3585, %v7782
    %7855 = vst.msk [vmem:[#allocation3 + $0xc0] sm:$0xff] %vm3585, %v7784
    %7856 = vst.msk [vmem:[#allocation3 + $0xd0] sm:$0xff] %vm3585, %v7786
    %7857 = vst.msk [vmem:[#allocation3 + $0xe0] sm:$0xff] %vm3585, %v7788
    %7858 = vst.msk [vmem:[#allocation3 + $0xf0] sm:$0xff] %vm3585, %v7790
    %7859 = vst.msk [vmem:[#allocation3 + $0x100] sm:$0xff] %vm3585, %v7792
    %7860 = vst.msk [vmem:[#allocation3 + $0x110] sm:$0xff] %vm3585, %v7794
    %7861 = vst.msk [vmem:[#allocation3 + $0x120] sm:$0xff] %vm3585, %v7796
    %7862 = vst.msk [vmem:[#allocation3 + $0x130] sm:$0xff] %vm3585, %v7798
    %7863 = vst.msk [vmem:[#allocation3 + $0x140] sm:$0xff] %vm3585, %v7800
    %7864 = vst.msk [vmem:[#allocation3 + $0x150] sm:$0xff] %vm3585, %v7802
    %7865 = vst.msk [vmem:[#allocation3 + $0x160] sm:$0xff] %vm3585, %v7804
    %7866 = vst.msk [vmem:[#allocation3 + $0x170] sm:$0xff] %vm3585, %v7806
    %7867 = vst.msk [vmem:[#allocation3 + $0x180] sm:$0xff] %vm3585, %v7808
    %7868 = vst.msk [vmem:[#allocation3 + $0x190] sm:$0xff] %vm3585, %v7810
    %7869 = vst.msk [vmem:[#allocation3 + $0x1a0] sm:$0xff] %vm3585, %v7812
    %7870 = vst.msk [vmem:[#allocation3 + $0x1b0] sm:$0xff] %vm3585, %v7814
    %v7871 = vld [vmem:[#allocation2 + $0x22] sm:$0xff]
    %v7872 = vld [vmem:[#allocation2 + $0x2a] sm:$0xff]
    %v7873 = vld [vmem:[#allocation2 + $0x32] sm:$0xff]
    %v7874 = vld [vmem:[#allocation2 + $0x3a] sm:$0xff]
    %v7875 = vld [vmem:[#allocation2 + $0x42] sm:$0xff]
    %v7876 = vld [vmem:[#allocation2 + $0x4a] sm:$0xff]
    %v7877 = vld [vmem:[#allocation2 + $0x52] sm:$0xff]
    %v7878 = vld [vmem:[#allocation2 + $0x5a] sm:$0xff]
    %v7879 = vld [vmem:[#allocation2 + $0x62] sm:$0xff]
    %v7880 = vld [vmem:[#allocation2 + $0x6a] sm:$0xff]
    %v7881 = vld [vmem:[#allocation2 + $0x72] sm:$0xff]
    %v7882 = vld [vmem:[#allocation2 + $0x7a] sm:$0xff]
    %v7883 = vld [vmem:[#allocation2 + $0x82] sm:$0xff]
    %v7884 = vld [vmem:[#allocation2 + $0x8a] sm:$0xff]
    %v7885 = vld [vmem:[#allocation2 + $0x92] sm:$0xff]
    %v7886 = vld [vmem:[#allocation2 + $0x9a] sm:$0xff]
    %v7887 = vld [vmem:[#allocation2 + $0xa2] sm:$0xff]
    %v7888 = vld [vmem:[#allocation2 + $0xaa] sm:$0xff]
    %v7889 = vld [vmem:[#allocation2 + $0xb2] sm:$0xff]
    %v7890 = vld [vmem:[#allocation2 + $0xba] sm:$0xff]
    %v7891 = vld [vmem:[#allocation2 + $0xc2] sm:$0xff]
    %v7892 = vld [vmem:[#allocation2 + $0xca] sm:$0xff]
    %v7893 = vld [vmem:[#allocation2 + $0xd2] sm:$0xff]
    %v7894 = vld [vmem:[#allocation2 + $0xda] sm:$0xff]
    %v7895 = vld [vmem:[#allocation2 + $0xe2] sm:$0xff]
    %v7896 = vld [vmem:[#allocation2 + $0xea] sm:$0xff]
    %v7897 = vld [vmem:[#allocation2 + $0xf2] sm:$0xff]
    %v7898 = vld [vmem:[#allocation2 + $0xfa] sm:$0xff]
    %7899 = vst.msk [vmem:[#allocation3 + $0x8] sm:$0xff] %vm49, %v7871
    %7900 = vst.msk [vmem:[#allocation3 + $0x18] sm:$0xff] %vm49, %v7872
    %7901 = vst.msk [vmem:[#allocation3 + $0x28] sm:$0xff] %vm49, %v7873
    %7902 = vst.msk [vmem:[#allocation3 + $0x38] sm:$0xff] %vm49, %v7874
    %7903 = vst.msk [vmem:[#allocation3 + $0x48] sm:$0xff] %vm49, %v7875
    %7904 = vst.msk [vmem:[#allocation3 + $0x58] sm:$0xff] %vm49, %v7876
    %7905 = vst.msk [vmem:[#allocation3 + $0x68] sm:$0xff] %vm49, %v7877
    %7906 = vst.msk [vmem:[#allocation3 + $0x78] sm:$0xff] %vm49, %v7878
    %7907 = vst.msk [vmem:[#allocation3 + $0x88] sm:$0xff] %vm49, %v7879
    %7908 = vst.msk [vmem:[#allocation3 + $0x98] sm:$0xff] %vm49, %v7880
    %7909 = vst.msk [vmem:[#allocation3 + $0xa8] sm:$0xff] %vm49, %v7881
    %7910 = vst.msk [vmem:[#allocation3 + $0xb8] sm:$0xff] %vm49, %v7882
    %7911 = vst.msk [vmem:[#allocation3 + $0xc8] sm:$0xff] %vm49, %v7883
    %7912 = vst.msk [vmem:[#allocation3 + $0xd8] sm:$0xff] %vm49, %v7884
    %7913 = vst.msk [vmem:[#allocation3 + $0xe8] sm:$0xff] %vm49, %v7885
    %7914 = vst.msk [vmem:[#allocation3 + $0xf8] sm:$0xff] %vm49, %v7886
    %7915 = vst.msk [vmem:[#allocation3 + $0x108] sm:$0xff] %vm49, %v7887
    %7916 = vst.msk [vmem:[#allocation3 + $0x118] sm:$0xff] %vm49, %v7888
    %7917 = vst.msk [vmem:[#allocation3 + $0x128] sm:$0xff] %vm49, %v7889
    %7918 = vst.msk [vmem:[#allocation3 + $0x138] sm:$0xff] %vm49, %v7890
    %7919 = vst.msk [vmem:[#allocation3 + $0x148] sm:$0xff] %vm49, %v7891
    %7920 = vst.msk [vmem:[#allocation3 + $0x158] sm:$0xff] %vm49, %v7892
    %7921 = vst.msk [vmem:[#allocation3 + $0x168] sm:$0xff] %vm49, %v7893
    %7922 = vst.msk [vmem:[#allocation3 + $0x178] sm:$0xff] %vm49, %v7894
    %7923 = vst.msk [vmem:[#allocation3 + $0x188] sm:$0xff] %vm49, %v7895
    %7924 = vst.msk [vmem:[#allocation3 + $0x198] sm:$0xff] %vm49, %v7896
    %7925 = vst.msk [vmem:[#allocation3 + $0x1a8] sm:$0xff] %vm49, %v7897
    %7926 = vst.msk [vmem:[#allocation3 + $0x1b8] sm:$0xff] %vm49, %v7898
    %v7927 = vld [vmem:[#allocation3] sm:$0xff]
    %v7928 = vld [vmem:[#allocation3 + $0x8] sm:$0xff]
    %v7929 = vld [vmem:[#allocation3 + $0x10] sm:$0xff]
    %v7930 = vld [vmem:[#allocation3 + $0x18] sm:$0xff]
    %v7931 = vld [vmem:[#allocation3 + $0x20] sm:$0xff]
    %v7932 = vld [vmem:[#allocation3 + $0x28] sm:$0xff]
    %v7933 = vld [vmem:[#allocation3 + $0x30] sm:$0xff]
    %v7934 = vld [vmem:[#allocation3 + $0x38] sm:$0xff]
    %v7935 = vld [vmem:[#allocation3 + $0x40] sm:$0xff]
    %v7936 = vld [vmem:[#allocation3 + $0x48] sm:$0xff]
    %v7937 = vld [vmem:[#allocation3 + $0x50] sm:$0xff]
    %v7938 = vld [vmem:[#allocation3 + $0x58] sm:$0xff]
    %v7939 = vld [vmem:[#allocation3 + $0x60] sm:$0xff]
    %v7940 = vld [vmem:[#allocation3 + $0x68] sm:$0xff]
    %v7941 = vld [vmem:[#allocation3 + $0x70] sm:$0xff]
    %v7942 = vld [vmem:[#allocation3 + $0x78] sm:$0xff]
    %v7943 = vld [vmem:[#allocation3 + $0x80] sm:$0xff]
    %v7944 = vld [vmem:[#allocation3 + $0x88] sm:$0xff]
    %v7945 = vld [vmem:[#allocation3 + $0x90] sm:$0xff]
    %v7946 = vld [vmem:[#allocation3 + $0x98] sm:$0xff]
    %v7947 = vld [vmem:[#allocation3 + $0xa0] sm:$0xff]
    %v7948 = vld [vmem:[#allocation3 + $0xa8] sm:$0xff]
    %v7949 = vld [vmem:[#allocation3 + $0xb0] sm:$0xff]
    %v7950 = vld [vmem:[#allocation3 + $0xb8] sm:$0xff]
    %v7951 = vld [vmem:[#allocation3 + $0xc0] sm:$0xff]
    %v7952 = vld [vmem:[#allocation3 + $0xc8] sm:$0xff]
    %v7953 = vld [vmem:[#allocation3 + $0xd0] sm:$0xff]
    %v7954 = vld [vmem:[#allocation3 + $0xd8] sm:$0xff]
    %v7955 = vld [vmem:[#allocation3 + $0xe0] sm:$0xff]
    %v7956 = vld [vmem:[#allocation3 + $0xe8] sm:$0xff]
    %v7957 = vld [vmem:[#allocation3 + $0xf0] sm:$0xff]
    %v7958 = vld [vmem:[#allocation3 + $0xf8] sm:$0xff]
    %v7959 = vld [vmem:[#allocation3 + $0x100] sm:$0xff]
    %v7960 = vld [vmem:[#allocation3 + $0x108] sm:$0xff]
    %v7961 = vld [vmem:[#allocation3 + $0x110] sm:$0xff]
    %v7962 = vld [vmem:[#allocation3 + $0x118] sm:$0xff]
    %v7963 = vld [vmem:[#allocation3 + $0x120] sm:$0xff]
    %v7964 = vld [vmem:[#allocation3 + $0x128] sm:$0xff]
    %v7965 = vld [vmem:[#allocation3 + $0x130] sm:$0xff]
    %v7966 = vld [vmem:[#allocation3 + $0x138] sm:$0xff]
    %v7967 = vld [vmem:[#allocation3 + $0x140] sm:$0xff]
    %v7968 = vld [vmem:[#allocation3 + $0x148] sm:$0xff]
    %v7969 = vld [vmem:[#allocation3 + $0x150] sm:$0xff]
    %v7970 = vld [vmem:[#allocation3 + $0x158] sm:$0xff]
    %v7971 = vld [vmem:[#allocation3 + $0x160] sm:$0xff]
    %v7972 = vld [vmem:[#allocation3 + $0x168] sm:$0xff]
    %v7973 = vld [vmem:[#allocation3 + $0x170] sm:$0xff]
    %v7974 = vld [vmem:[#allocation3 + $0x178] sm:$0xff]
    %v7975 = vld [vmem:[#allocation3 + $0x180] sm:$0xff]
    %v7976 = vld [vmem:[#allocation3 + $0x188] sm:$0xff]
    %v7977 = vld [vmem:[#allocation3 + $0x190] sm:$0xff]
    %v7978 = vld [vmem:[#allocation3 + $0x198] sm:$0xff]
    %v7979 = vld [vmem:[#allocation3 + $0x1a0] sm:$0xff]
    %v7980 = vld [vmem:[#allocation3 + $0x1a8] sm:$0xff]
    %v7981 = vld [vmem:[#allocation3 + $0x1b0] sm:$0xff]
    %v7982 = vld [vmem:[#allocation3 + $0x1b8] sm:$0xff]
    %v7983 = vld [vmem:[%s3] sm:$0xff]
    %v7984 = vld [vmem:[%s3 + $0x8] sm:$0xff]
    %v7985 = vld [vmem:[%s3 + $0x10] sm:$0xff]
    %v7986 = vld [vmem:[%s3 + $0x18] sm:$0xff]
    %v7987 = vld [vmem:[%s3 + $0x20] sm:$0xff]
    %v7988 = vld [vmem:[%s3 + $0x28] sm:$0xff]
    %v7989 = vld [vmem:[%s3 + $0x30] sm:$0xff]
    %v7990 = vld [vmem:[%s3 + $0x38] sm:$0xff]
    %v7991 = vld [vmem:[%s3 + $0x40] sm:$0xff]
    %v7992 = vld [vmem:[%s3 + $0x48] sm:$0xff]
    %v7993 = vld [vmem:[%s3 + $0x50] sm:$0xff]
    %v7994 = vld [vmem:[%s3 + $0x58] sm:$0xff]
    %v7995 = vld [vmem:[%s3 + $0x60] sm:$0xff]
    %v7996 = vld [vmem:[%s3 + $0x68] sm:$0xff]
    %v7997 = vld [vmem:[%s3 + $0x70] sm:$0xff]
    %v7998 = vld [vmem:[%s3 + $0x78] sm:$0xff]
    %v7999 = vld [vmem:[%s3 + $0x80] sm:$0xff]
    %v8000 = vld [vmem:[%s3 + $0x88] sm:$0xff]
    %v8002 = vsel %vm49, %v7928, 0
    %v8005 = vsel %vm49, %v7930, 0
    %v8008 = vsel %vm49, %v7932, 0
    %v8011 = vsel %vm49, %v7934, 0
    %v8014 = vsel %vm49, %v7936, 0
    %v8017 = vsel %vm49, %v7938, 0
    %v8020 = vsel %vm49, %v7940, 0
    %v8023 = vsel %vm49, %v7942, 0
    %v8026 = vsel %vm49, %v7944, 0
    %v8029 = vsel %vm49, %v7946, 0
    %v8032 = vsel %vm49, %v7948, 0
    %v8035 = vsel %vm49, %v7950, 0
    %v8038 = vsel %vm49, %v7952, 0
    %v8041 = vsel %vm49, %v7954, 0
    %v8044 = vsel %vm49, %v7956, 0
    %v8047 = vsel %vm49, %v7958, 0
    %v8050 = vsel %vm49, %v7960, 0
    %v8053 = vsel %vm49, %v7962, 0
    %v8056 = vsel %vm49, %v7964, 0
    %v8059 = vsel %vm49, %v7966, 0
    %v8062 = vsel %vm49, %v7968, 0
    %v8065 = vsel %vm49, %v7970, 0
    %v8068 = vsel %vm49, %v7972, 0
    %v8071 = vsel %vm49, %v7974, 0
    %v8074 = vsel %vm49, %v7976, 0
    %v8077 = vsel %vm49, %v7978, 0
    %v8080 = vsel %vm49, %v7980, 0
    %v8083 = vsel %vm49, %v7982, 0
    %8085 = vmatpush.msra.mxu0 %v7998
    %8086 = vmatpush.msra.mxu0 %v7997
    %8087 = vmatpush.msra.mxu0 %v7996
    %8088 = vmatpush.msra.mxu0 %v7995
    %8089 = vmatpush.msra.mxu0 %v7994
    %8090 = vmatpush.msra.mxu0 %v7993
    %8091 = vmatpush.msra.mxu0 %v7992
    %8092 = vmatpush.msra.mxu0 %v7991
    %8093 = vmatpush.msra.mxu0 %v7990
    %8094 = vmatpush.msra.mxu0 %v7989
    %8095 = vmatpush.msra.mxu0 %v7988
    %8096 = vmatpush.msra.mxu0 %v7987
    %8097 = vmatpush.msra.mxu0 %v7986
    %8098 = vmatpush.msra.mxu0 %v7985
    %8099 = vmatpush.msra.mxu0 %v7984
    %8100 = vmatpush.msra.mxu0 %v7983
    %8101 = vmatmul.f32.gmra.mxu0 %v7927
    %v8102 = vpop.f32.mrf.mxu0
    %v8103 = vadd.f32 %v3745, %v8102
    %8104 = vmatmul.f32.gmra.mxu0 %v7929
    %v8105 = vpop.f32.mrf.mxu0
    %v8106 = vadd.f32 %v3745, %v8105
    %8107 = vmatmul.f32.gmra.mxu0 %v7931
    %v8108 = vpop.f32.mrf.mxu0
    %v8109 = vadd.f32 %v3745, %v8108
    %8110 = vmatmul.f32.gmra.mxu0 %v7933
    %v8111 = vpop.f32.mrf.mxu0
    %v8112 = vadd.f32 %v3745, %v8111
    %8113 = vmatmul.f32.gmra.mxu0 %v7935
    %v8114 = vpop.f32.mrf.mxu0
    %v8115 = vadd.f32 %v3745, %v8114
    %8116 = vmatmul.f32.gmra.mxu0 %v7937
    %v8117 = vpop.f32.mrf.mxu0
    %v8118 = vadd.f32 %v3745, %v8117
    %8119 = vmatmul.f32.gmra.mxu0 %v7939
    %v8120 = vpop.f32.mrf.mxu0
    %v8121 = vadd.f32 %v3745, %v8120
    %8122 = vmatmul.f32.gmra.mxu0 %v7941
    %v8123 = vpop.f32.mrf.mxu0
    %v8124 = vadd.f32 %v3745, %v8123
    %8125 = vmatmul.f32.gmra.mxu0 %v7943
    %v8126 = vpop.f32.mrf.mxu0
    %v8127 = vadd.f32 %v3745, %v8126
    %8128 = vmatmul.f32.gmra.mxu0 %v7945
    %v8129 = vpop.f32.mrf.mxu0
    %v8130 = vadd.f32 %v3745, %v8129
    %8131 = vmatmul.f32.gmra.mxu0 %v7947
    %v8132 = vpop.f32.mrf.mxu0
    %v8133 = vadd.f32 %v3745, %v8132
    %8134 = vmatmul.f32.gmra.mxu0 %v7949
    %v8135 = vpop.f32.mrf.mxu0
    %v8136 = vadd.f32 %v3745, %v8135
    %8137 = vmatmul.f32.gmra.mxu0 %v7951
    %v8138 = vpop.f32.mrf.mxu0
    %v8139 = vadd.f32 %v3745, %v8138
    %8140 = vmatmul.f32.gmra.mxu0 %v7953
    %v8141 = vpop.f32.mrf.mxu0
    %v8142 = vadd.f32 %v3745, %v8141
    %8143 = vmatmul.f32.gmra.mxu0 %v7955
    %v8144 = vpop.f32.mrf.mxu0
    %v8145 = vadd.f32 %v3745, %v8144
    %8146 = vmatmul.f32.gmra.mxu0 %v7957
    %v8147 = vpop.f32.mrf.mxu0
    %v8148 = vadd.f32 %v3745, %v8147
    %8149 = vmatmul.f32.gmra.mxu0 %v7959
    %v8150 = vpop.f32.mrf.mxu0
    %v8151 = vadd.f32 %v3745, %v8150
    %8152 = vmatmul.f32.gmra.mxu0 %v7961
    %v8153 = vpop.f32.mrf.mxu0
    %v8154 = vadd.f32 %v3745, %v8153
    %8155 = vmatmul.f32.gmra.mxu0 %v7963
    %v8156 = vpop.f32.mrf.mxu0
    %v8157 = vadd.f32 %v3745, %v8156
    %8158 = vmatmul.f32.gmra.mxu0 %v7965
    %v8159 = vpop.f32.mrf.mxu0
    %v8160 = vadd.f32 %v3745, %v8159
    %8161 = vmatmul.f32.gmra.mxu0 %v7967
    %v8162 = vpop.f32.mrf.mxu0
    %v8163 = vadd.f32 %v3745, %v8162
    %8164 = vmatmul.f32.gmra.mxu0 %v7969
    %v8165 = vpop.f32.mrf.mxu0
    %v8166 = vadd.f32 %v3745, %v8165
    %8167 = vmatmul.f32.gmra.mxu0 %v7971
    %v8168 = vpop.f32.mrf.mxu0
    %v8169 = vadd.f32 %v3745, %v8168
    %8170 = vmatmul.f32.gmra.mxu0 %v7973
    %v8171 = vpop.f32.mrf.mxu0
    %v8172 = vadd.f32 %v3745, %v8171
    %8173 = vmatmul.f32.gmra.mxu0 %v7975
    %v8174 = vpop.f32.mrf.mxu0
    %v8175 = vadd.f32 %v3745, %v8174
    %8176 = vmatmul.f32.gmra.mxu0 %v7977
    %v8177 = vpop.f32.mrf.mxu0
    %v8178 = vadd.f32 %v3745, %v8177
    %8179 = vmatmul.f32.gmra.mxu0 %v7979
    %v8180 = vpop.f32.mrf.mxu0
    %v8181 = vadd.f32 %v3745, %v8180
    %8182 = vmatmul.f32.gmra.mxu0 %v7981
    %v8183 = vpop.f32.mrf.mxu0
    %v8184 = vadd.f32 %v3745, %v8183
    %8185 = vdwg.mxu0
    %8186 = vmatpush.msra.mxu0 0.0
    %8187 = vmatpush.msra.mxu0 0.0
    %8188 = vmatpush.msra.mxu0 0.0
    %8189 = vmatpush.msra.mxu0 0.0
    %8190 = vmatpush.msra.mxu0 0.0
    %8191 = vmatpush.msra.mxu0 0.0
    %8192 = vmatpush.msra.mxu0 0.0
    %8193 = vmatpush.msra.mxu0 0.0
    %8194 = vmatpush.msra.mxu0 0.0
    %8195 = vmatpush.msra.mxu0 0.0
    %8196 = vmatpush.msra.mxu0 0.0
    %8197 = vmatpush.msra.mxu0 0.0
    %8198 = vmatpush.msra.mxu0 0.0
    %8199 = vmatpush.msra.mxu0 0.0
    %8200 = vmatpush.msra.mxu0 %v8000
    %8201 = vmatpush.msra.mxu0 %v7999
    %8202 = vmatmul.f32.gmra.mxu0 %v8002
    %v8203 = vpop.f32.mrf.mxu0
    %v8204 = vadd.f32 %v8103, %v8203
    %8205 = vmatmul.f32.gmra.mxu0 %v8005
    %v8206 = vpop.f32.mrf.mxu0
    %v8207 = vadd.f32 %v8106, %v8206
    %8208 = vmatmul.f32.gmra.mxu0 %v8008
    %v8209 = vpop.f32.mrf.mxu0
    %v8210 = vadd.f32 %v8109, %v8209
    %8211 = vmatmul.f32.gmra.mxu0 %v8011
    %v8212 = vpop.f32.mrf.mxu0
    %v8213 = vadd.f32 %v8112, %v8212
    %8214 = vmatmul.f32.gmra.mxu0 %v8014
    %v8215 = vpop.f32.mrf.mxu0
    %v8216 = vadd.f32 %v8115, %v8215
    %8217 = vmatmul.f32.gmra.mxu0 %v8017
    %v8218 = vpop.f32.mrf.mxu0
    %v8219 = vadd.f32 %v8118, %v8218
    %8220 = vmatmul.f32.gmra.mxu0 %v8020
    %v8221 = vpop.f32.mrf.mxu0
    %v8222 = vadd.f32 %v8121, %v8221
    %8223 = vmatmul.f32.gmra.mxu0 %v8023
    %v8224 = vpop.f32.mrf.mxu0
    %v8225 = vadd.f32 %v8124, %v8224
    %8226 = vmatmul.f32.gmra.mxu0 %v8026
    %v8227 = vpop.f32.mrf.mxu0
    %v8228 = vadd.f32 %v8127, %v8227
    %8229 = vmatmul.f32.gmra.mxu0 %v8029
    %v8230 = vpop.f32.mrf.mxu0
    %v8231 = vadd.f32 %v8130, %v8230
    %8232 = vmatmul.f32.gmra.mxu0 %v8032
    %v8233 = vpop.f32.mrf.mxu0
    %v8234 = vadd.f32 %v8133, %v8233
    %8235 = vmatmul.f32.gmra.mxu0 %v8035
    %v8236 = vpop.f32.mrf.mxu0
    %v8237 = vadd.f32 %v8136, %v8236
    %8238 = vmatmul.f32.gmra.mxu0 %v8038
    %v8239 = vpop.f32.mrf.mxu0
    %v8240 = vadd.f32 %v8139, %v8239
    %8241 = vmatmul.f32.gmra.mxu0 %v8041
    %v8242 = vpop.f32.mrf.mxu0
    %v8243 = vadd.f32 %v8142, %v8242
    %8244 = vmatmul.f32.gmra.mxu0 %v8044
    %v8245 = vpop.f32.mrf.mxu0
    %v8246 = vadd.f32 %v8145, %v8245
    %8247 = vmatmul.f32.gmra.mxu0 %v8047
    %v8248 = vpop.f32.mrf.mxu0
    %v8249 = vadd.f32 %v8148, %v8248
    %8250 = vmatmul.f32.gmra.mxu0 %v8050
    %v8251 = vpop.f32.mrf.mxu0
    %v8252 = vadd.f32 %v8151, %v8251
    %8253 = vmatmul.f32.gmra.mxu0 %v8053
    %v8254 = vpop.f32.mrf.mxu0
    %v8255 = vadd.f32 %v8154, %v8254
    %8256 = vmatmul.f32.gmra.mxu0 %v8056
    %v8257 = vpop.f32.mrf.mxu0
    %v8258 = vadd.f32 %v8157, %v8257
    %8259 = vmatmul.f32.gmra.mxu0 %v8059
    %v8260 = vpop.f32.mrf.mxu0
    %v8261 = vadd.f32 %v8160, %v8260
    %8262 = vmatmul.f32.gmra.mxu0 %v8062
    %v8263 = vpop.f32.mrf.mxu0
    %v8264 = vadd.f32 %v8163, %v8263
    %8265 = vmatmul.f32.gmra.mxu0 %v8065
    %v8266 = vpop.f32.mrf.mxu0
    %v8267 = vadd.f32 %v8166, %v8266
    %8268 = vmatmul.f32.gmra.mxu0 %v8068
    %v8269 = vpop.f32.mrf.mxu0
    %v8270 = vadd.f32 %v8169, %v8269
    %8271 = vmatmul.f32.gmra.mxu0 %v8071
    %v8272 = vpop.f32.mrf.mxu0
    %v8273 = vadd.f32 %v8172, %v8272
    %8274 = vmatmul.f32.gmra.mxu0 %v8074
    %v8275 = vpop.f32.mrf.mxu0
    %v8276 = vadd.f32 %v8175, %v8275
    %8277 = vmatmul.f32.gmra.mxu0 %v8077
    %v8278 = vpop.f32.mrf.mxu0
    %v8279 = vadd.f32 %v8178, %v8278
    %8280 = vmatmul.f32.gmra.mxu0 %v8080
    %v8281 = vpop.f32.mrf.mxu0
    %v8282 = vadd.f32 %v8181, %v8281
    %8283 = vmatmul.f32.gmra.mxu0 %v8083
    %v8284 = vpop.f32.mrf.mxu0
    %v8285 = vadd.f32 %v8184, %v8284
    %8286 = vdwg.mxu0
    %v8287 = vmax.f32 %v8204, 0.0
    %v8288 = vmax.f32 %v8207, 0.0
    %v8289 = vmax.f32 %v8210, 0.0
    %v8290 = vmax.f32 %v8213, 0.0
    %v8291 = vmax.f32 %v8216, 0.0
    %v8292 = vmax.f32 %v8219, 0.0
    %v8293 = vmax.f32 %v8222, 0.0
    %v8294 = vmax.f32 %v8225, 0.0
    %v8295 = vmax.f32 %v8228, 0.0
    %v8296 = vmax.f32 %v8231, 0.0
    %v8297 = vmax.f32 %v8234, 0.0
    %v8298 = vmax.f32 %v8237, 0.0
    %v8299 = vmax.f32 %v8240, 0.0
    %v8300 = vmax.f32 %v8243, 0.0
    %v8301 = vmax.f32 %v8246, 0.0
    %v8302 = vmax.f32 %v8249, 0.0
    %v8303 = vmax.f32 %v8252, 0.0
    %v8304 = vmax.f32 %v8255, 0.0
    %v8305 = vmax.f32 %v8258, 0.0
    %v8306 = vmax.f32 %v8261, 0.0
    %v8307 = vmax.f32 %v8264, 0.0
    %v8308 = vmax.f32 %v8267, 0.0
    %v8309 = vmax.f32 %v8270, 0.0
    %v8310 = vmax.f32 %v8273, 0.0
    %v8311 = vmax.f32 %v8276, 0.0
    %v8312 = vmax.f32 %v8279, 0.0
    %v8313 = vmax.f32 %v8282, 0.0
    %v8314 = vmax.f32 %v8285, 0.0
    %8315 = vst.msk [vmem:[#allocation4] sm:$0xff] %vm4061, %v8287
    %8316 = vst.msk [vmem:[#allocation4 + $0x8] sm:$0xff] %vm4061, %v8288
    %8317 = vst.msk [vmem:[#allocation4 + $0x10] sm:$0xff] %vm4061, %v8289
    %8318 = vst.msk [vmem:[#allocation4 + $0x18] sm:$0xff] %vm4061, %v8290
    %8319 = vst.msk [vmem:[#allocation4 + $0x20] sm:$0xff] %vm4061, %v8291
    %8320 = vst.msk [vmem:[#allocation4 + $0x28] sm:$0xff] %vm4061, %v8292
    %8321 = vst.msk [vmem:[#allocation4 + $0x30] sm:$0xff] %vm4061, %v8293
    %8322 = vst.msk [vmem:[#allocation4 + $0x38] sm:$0xff] %vm4061, %v8294
    %8323 = vst.msk [vmem:[#allocation4 + $0x40] sm:$0xff] %vm4061, %v8295
    %8324 = vst.msk [vmem:[#allocation4 + $0x48] sm:$0xff] %vm4061, %v8296
    %8325 = vst.msk [vmem:[#allocation4 + $0x50] sm:$0xff] %vm4061, %v8297
    %8326 = vst.msk [vmem:[#allocation4 + $0x58] sm:$0xff] %vm4061, %v8298
    %8327 = vst.msk [vmem:[#allocation4 + $0x60] sm:$0xff] %vm4061, %v8299
    %8328 = vst.msk [vmem:[#allocation4 + $0x68] sm:$0xff] %vm4061, %v8300
    %8329 = vst.msk [vmem:[#allocation4 + $0x70] sm:$0xff] %vm4061, %v8301
    %8330 = vst.msk [vmem:[#allocation4 + $0x78] sm:$0xff] %vm4061, %v8302
    %8331 = vst.msk [vmem:[#allocation4 + $0x80] sm:$0xff] %vm4061, %v8303
    %8332 = vst.msk [vmem:[#allocation4 + $0x88] sm:$0xff] %vm4061, %v8304
    %8333 = vst.msk [vmem:[#allocation4 + $0x90] sm:$0xff] %vm4061, %v8305
    %8334 = vst.msk [vmem:[#allocation4 + $0x98] sm:$0xff] %vm4061, %v8306
    %8335 = vst.msk [vmem:[#allocation4 + $0xa0] sm:$0xff] %vm4061, %v8307
    %8336 = vst.msk [vmem:[#allocation4 + $0xa8] sm:$0xff] %vm4061, %v8308
    %8337 = vst.msk [vmem:[#allocation4 + $0xb0] sm:$0xff] %vm4061, %v8309
    %8338 = vst.msk [vmem:[#allocation4 + $0xb8] sm:$0xff] %vm4061, %v8310
    %8339 = vst.msk [vmem:[#allocation4 + $0xc0] sm:$0xff] %vm4061, %v8311
    %8340 = vst.msk [vmem:[#allocation4 + $0xc8] sm:$0xff] %vm4061, %v8312
    %8341 = vst.msk [vmem:[#allocation4 + $0xd0] sm:$0xff] %vm4061, %v8313
    %8342 = vst.msk [vmem:[#allocation4 + $0xd8] sm:$0xff] %vm4061, %v8314
    %v8343 = vld [vmem:[#allocation4] ss:$2 sm:$0xff]
    %v8344 = vld [vmem:[%s4091] ss:$2 sm:$0xff]
    %v8345 = vld [vmem:[%s4093] ss:$2 sm:$0xff]
    %v8346 = vld [vmem:[%s4095] ss:$2 sm:$0xff]
    %v8347 = vld [vmem:[%s4097] ss:$2 sm:$0xff]
    %v8348 = vld [vmem:[%s4099] ss:$2 sm:$0xff]
    %v8349 = vld [vmem:[%s4101] ss:$2 sm:$0xff]
    %v8350 = vld [vmem:[%s4103] ss:$2 sm:$0xff]
    %v8351 = vld [vmem:[%s4105] ss:$2 sm:$0xff]
    %v8352 = vld [vmem:[%s4107] ss:$2 sm:$0xff]
    %v8353 = vld [vmem:[%s4109] ss:$2 sm:$0xff]
    %v8354 = vld [vmem:[%s4111] ss:$2 sm:$0xff]
    %v8355 = vld [vmem:[%s4113] ss:$2 sm:$0xff]
    %v8356 = vld [vmem:[%s4115] ss:$2 sm:$0xff]
    %v8357 = vld [vmem:[%s4117] ss:$2 sm:$0xff]
    %v8358 = vld [vmem:[%s4119] ss:$2 sm:$0xff]
    %v8359 = vld [vmem:[%s4121] ss:$2 sm:$0xff]
    %v8360 = vld [vmem:[%s4123] ss:$2 sm:$0xff]
    %v8361 = vld [vmem:[%s4125] ss:$2 sm:$0xff]
    %v8362 = vld [vmem:[%s4127] ss:$2 sm:$0xff]
    %v8363 = vld [vmem:[%s4129] ss:$2 sm:$0xff]
    %v8364 = vld [vmem:[%s4131] ss:$2 sm:$0xff]
    %v8365 = vld [vmem:[%s4133] ss:$2 sm:$0xff]
    %v8366 = vld [vmem:[%s4135] ss:$2 sm:$0xff]
    %v8367 = vld [vmem:[%s4137] ss:$2 sm:$0xff]
    %v8368 = vld [vmem:[%s4139] ss:$2 sm:$0xff]
    %v8369 = vld [vmem:[%s4141] ss:$2 sm:$0xff]
    %v8370 = vld [vmem:[%s4143] ss:$2 sm:$0xff]
    %v8371 = vmax.f32 %v8343, %v8357
    %v8372 = vmax.f32 %v8344, %v8358
    %v8373 = vmax.f32 %v8345, %v8359
    %v8374 = vmax.f32 %v8346, %v8360
    %v8375 = vmax.f32 %v8347, %v8361
    %v8376 = vmax.f32 %v8348, %v8362
    %v8377 = vmax.f32 %v8349, %v8363
    %v8378 = vmax.f32 %v8350, %v8364
    %v8379 = vmax.f32 %v8351, %v8365
    %v8380 = vmax.f32 %v8352, %v8366
    %v8381 = vmax.f32 %v8353, %v8367
    %v8382 = vmax.f32 %v8354, %v8368
    %v8383 = vmax.f32 %v8355, %v8369
    %v8384 = vmax.f32 %v8356, %v8370
    %v8385 = vmax.f32 %v8371, %v8372
    %8386 = vst.msk [vmem:[#allocation5 + $0x1] sm:$0x1] %vm4160, %v8385
    %v8388 = vrot.slane %v8385, 7
    %v8389 = vrot.slane %v8388, 2
    %8390 = vrot.lane.b32.xlu0 %v8389, 32
    %v8391 = vpop.permute.xlu0 %8390
    %8393 = vst.msk [vmem:[#allocation5 + $0x1] sm:$0x1] %vm4168, %v8391
    %8394 = vst.sshfl [vmem:[#allocation1] sm:$0xff pattern:$0x73625140] %v8385
    %s8395 = scalar_lea.vmem [#allocation1], 1
    %v8396 = vld [vmem:[%s8395] ss:$4 sm:$0xff]
    %8397 = vrot.lane.b32.xlu0 %v8396, 64
    %v8398 = vpop.permute.xlu0 %8397
    %8400 = vst.msk [vmem:[#allocation5 + $0x1] sm:$0x1] %vm4176, %v8398
    %8401 = vst.sshfl [vmem:[#allocation1] sm:$0xff pattern:$0x73625140] %v8385
    %s8402 = scalar_lea.vmem [#allocation1], 1
    %v8403 = vld [vmem:[%s8402] ss:$4 sm:$0xff]
    %v8404 = vrot.slane %v8403, 7
    %v8405 = vrot.slane %v8404, 2
    %8406 = vrot.lane.b32.xlu0 %v8405, 96
    %v8407 = vpop.permute.xlu0 %8406
    %8409 = vst.msk [vmem:[#allocation5 + $0x1] sm:$0x1] %vm4186, %v8407
    %8410 = vst.sshfl [vmem:[#allocation1] sm:$0xff pattern:$0x73625140] %v8385
    %s8411 = scalar_lea.vmem [#allocation1], 2
    %v8412 = vld [vmem:[%s8411] ss:$4 sm:$0xff]
    %8414 = vst.msk [vmem:[#allocation5 + $0x3] sm:$0x1] %vm4160, %v8412
    %8415 = vst.sshfl [vmem:[#allocation1] sm:$0xff pattern:$0x73625140] %v8385
    %s8416 = scalar_lea.vmem [#allocation1], 2
    %v8417 = vld [vmem:[%s8416] ss:$4 sm:$0xff]
    %v8418 = vrot.slane %v8417, 7
    %v8419 = vrot.slane %v8418, 2
    %8420 = vrot.lane.b32.xlu0 %v8419, 32
    %v8421 = vpop.permute.xlu0 %8420
    %8423 = vst.msk [vmem:[#allocation5 + $0x3] sm:$0x1] %vm4168, %v8421
    %8424 = vst.sshfl [vmem:[#allocation1] sm:$0xff pattern:$0x73625140] %v8385
    %s8425 = scalar_lea.vmem [#allocation1], 3
    %v8426 = vld [vmem:[%s8425] ss:$4 sm:$0xff]
    %8427 = vrot.lane.b32.xlu0 %v8426, 64
    %v8428 = vpop.permute.xlu0 %8427
    %8430 = vst.msk [vmem:[#allocation5 + $0x3] sm:$0x1] %vm4176, %v8428
    %v8431 = vmax.f32 %v8373, %v8374
    %8433 = vrot.lane.b32.xlu0 %v8431, 96
    %v8434 = vpop.permute.xlu0 %8433
    %8436 = vst.msk [vmem:[#allocation5 + $0x3] sm:$0x1] %vm4186, %v8434
    %v8437 = vrot.slane %v8431, 7
    %v8438 = vrot.slane %v8437, 2
    %8440 = vst.msk [vmem:[#allocation5 + $0x5] sm:$0x1] %vm4160, %v8438
    %8441 = vst.sshfl [vmem:[#allocation1] sm:$0xff pattern:$0x73625140] %v8431
    %s8442 = scalar_lea.vmem [#allocation1], 1
    %v8443 = vld [vmem:[%s8442] ss:$4 sm:$0xff]
    %8444 = vrot.lane.b32.xlu0 %v8443, 32
    %v8445 = vpop.permute.xlu0 %8444
    %8447 = vst.msk [vmem:[#allocation5 + $0x5] sm:$0x1] %vm4168, %v8445
    %8448 = vst.sshfl [vmem:[#allocation1] sm:$0xff pattern:$0x73625140] %v8431
    %s8449 = scalar_lea.vmem [#allocation1], 1
    %v8450 = vld [vmem:[%s8449] ss:$4 sm:$0xff]
    %v8451 = vrot.slane %v8450, 7
    %v8452 = vrot.slane %v8451, 2
    %8453 = vrot.lane.b32.xlu0 %v8452, 64
    %v8454 = vpop.permute.xlu0 %8453
    %8456 = vst.msk [vmem:[#allocation5 + $0x5] sm:$0x1] %vm4176, %v8454
    %8457 = vst.sshfl [vmem:[#allocation1] sm:$0xff pattern:$0x73625140] %v8431
    %s8458 = scalar_lea.vmem [#allocation1], 2
    %v8459 = vld [vmem:[%s8458] ss:$4 sm:$0xff]
    %8460 = vrot.lane.b32.xlu0 %v8459, 96
    %v8461 = vpop.permute.xlu0 %8460
    %8463 = vst.msk [vmem:[#allocation5 + $0x5] sm:$0x1] %vm4186, %v8461
    %8464 = vst.sshfl [vmem:[#allocation1] sm:$0xff pattern:$0x73625140] %v8431
    %s8465 = scalar_lea.vmem [#allocation1], 2
    %v8466 = vld [vmem:[%s8465] ss:$4 sm:$0xff]
    %v8467 = vrot.slane %v8466, 7
    %v8468 = vrot.slane %v8467, 2
    %8470 = vst.msk [vmem:[#allocation5 + $0x7] sm:$0x1] %vm4160, %v8468
    %8471 = vst.sshfl [vmem:[#allocation1] sm:$0xff pattern:$0x73625140] %v8431
    %s8472 = scalar_lea.vmem [#allocation1], 3
    %v8473 = vld [vmem:[%s8472] ss:$4 sm:$0xff]
    %8474 = vrot.lane.b32.xlu0 %v8473, 32
    %v8475 = vpop.permute.xlu0 %8474
    %8477 = vst.msk [vmem:[#allocation5 + $0x7] sm:$0x1] %vm4168, %v8475
    %v8478 = vmax.f32 %v8375, %v8376
    %8480 = vrot.lane.b32.xlu0 %v8478, 64
    %v8481 = vpop.permute.xlu0 %8480
    %8483 = vst.msk [vmem:[#allocation5 + $0x7] sm:$0x1] %vm4176, %v8481
    %v8484 = vrot.slane %v8478, 7
    %v8485 = vrot.slane %v8484, 2
    %8486 = vrot.lane.b32.xlu0 %v8485, 96
    %v8487 = vpop.permute.xlu0 %8486
    %8489 = vst.msk [vmem:[#allocation5 + $0x7] sm:$0x1] %vm4186, %v8487
    %8490 = vst.sshfl [vmem:[#allocation1] sm:$0xff pattern:$0x73625140] %v8478
    %s8491 = scalar_lea.vmem [#allocation1], 1
    %v8492 = vld [vmem:[%s8491] ss:$4 sm:$0xff]
    %8494 = vst.msk [vmem:[#allocation5 + $0x9] sm:$0x1] %vm4160, %v8492
    %8495 = vst.sshfl [vmem:[#allocation1] sm:$0xff pattern:$0x73625140] %v8478
    %s8496 = scalar_lea.vmem [#allocation1], 1
    %v8497 = vld [vmem:[%s8496] ss:$4 sm:$0xff]
    %v8498 = vrot.slane %v8497, 7
    %v8499 = vrot.slane %v8498, 2
    %8500 = vrot.lane.b32.xlu0 %v8499, 32
    %v8501 = vpop.permute.xlu0 %8500
    %8503 = vst.msk [vmem:[#allocation5 + $0x9] sm:$0x1] %vm4168, %v8501
    %8504 = vst.sshfl [vmem:[#allocation1] sm:$0xff pattern:$0x73625140] %v8478
    %s8505 = scalar_lea.vmem [#allocation1], 2
    %v8506 = vld [vmem:[%s8505] ss:$4 sm:$0xff]
    %8507 = vrot.lane.b32.xlu0 %v8506, 64
    %v8508 = vpop.permute.xlu0 %8507
    %8510 = vst.msk [vmem:[#allocation5 + $0x9] sm:$0x1] %vm4176, %v8508
    %8511 = vst.sshfl [vmem:[#allocation1] sm:$0xff pattern:$0x73625140] %v8478
    %s8512 = scalar_lea.vmem [#allocation1], 2
    %v8513 = vld [vmem:[%s8512] ss:$4 sm:$0xff]
    %v8514 = vrot.slane %v8513, 7
    %v8515 = vrot.slane %v8514, 2
    %8516 = vrot.lane.b32.xlu0 %v8515, 96
    %v8517 = vpop.permute.xlu0 %8516
    %8519 = vst.msk [vmem:[#allocation5 + $0x9] sm:$0x1] %vm4186, %v8517
    %8520 = vst.sshfl [vmem:[#allocation1] sm:$0xff pattern:$0x73625140] %v8478
    %s8521 = scalar_lea.vmem [#allocation1], 3
    %v8522 = vld [vmem:[%s8521] ss:$4 sm:$0xff]
    %8524 = vst.msk [vmem:[#allocation5 + $0xb] sm:$0x1] %vm4160, %v8522
    %v8525 = vmax.f32 %v8377, %v8378
    %8527 = vrot.lane.b32.xlu0 %v8525, 32
    %v8528 = vpop.permute.xlu0 %8527
    %8530 = vst.msk [vmem:[#allocation5 + $0xb] sm:$0x1] %vm4168, %v8528
    %v8531 = vrot.slane %v8525, 7
    %v8532 = vrot.slane %v8531, 2
    %8533 = vrot.lane.b32.xlu0 %v8532, 64
    %v8534 = vpop.permute.xlu0 %8533
    %8536 = vst.msk [vmem:[#allocation5 + $0xb] sm:$0x1] %vm4176, %v8534
    %8537 = vst.sshfl [vmem:[#allocation1] sm:$0xff pattern:$0x73625140] %v8525
    %s8538 = scalar_lea.vmem [#allocation1], 1
    %v8539 = vld [vmem:[%s8538] ss:$4 sm:$0xff]
    %8540 = vrot.lane.b32.xlu0 %v8539, 96
    %v8541 = vpop.permute.xlu0 %8540
    %8543 = vst.msk [vmem:[#allocation5 + $0xb] sm:$0x1] %vm4186, %v8541
    %8544 = vst.sshfl [vmem:[#allocation1] sm:$0xff pattern:$0x73625140] %v8525
    %s8545 = scalar_lea.vmem [#allocation1], 1
    %v8546 = vld [vmem:[%s8545] ss:$4 sm:$0xff]
    %v8547 = vrot.slane %v8546, 7
    %v8548 = vrot.slane %v8547, 2
    %8550 = vst.msk [vmem:[#allocation5 + $0xd] sm:$0x1] %vm4160, %v8548
    %8551 = vst.sshfl [vmem:[#allocation1] sm:$0xff pattern:$0x73625140] %v8525
    %s8552 = scalar_lea.vmem [#allocation1], 2
    %v8553 = vld [vmem:[%s8552] ss:$4 sm:$0xff]
    %8554 = vrot.lane.b32.xlu0 %v8553, 32
    %v8555 = vpop.permute.xlu0 %8554
    %8557 = vst.msk [vmem:[#allocation5 + $0xd] sm:$0x1] %vm4168, %v8555
    %8558 = vst.sshfl [vmem:[#allocation1] sm:$0xff pattern:$0x73625140] %v8525
    %s8559 = scalar_lea.vmem [#allocation1], 2
    %v8560 = vld [vmem:[%s8559] ss:$4 sm:$0xff]
    %v8561 = vrot.slane %v8560, 7
    %v8562 = vrot.slane %v8561, 2
    %8563 = vrot.lane.b32.xlu0 %v8562, 64
    %v8564 = vpop.permute.xlu0 %8563
    %8566 = vst.msk [vmem:[#allocation5 + $0xd] sm:$0x1] %vm4176, %v8564
    %8567 = vst.sshfl [vmem:[#allocation1] sm:$0xff pattern:$0x73625140] %v8525
    %s8568 = scalar_lea.vmem [#allocation1], 3
    %v8569 = vld [vmem:[%s8568] ss:$4 sm:$0xff]
    %8570 = vrot.lane.b32.xlu0 %v8569, 96
    %v8571 = vpop.permute.xlu0 %8570
    %8573 = vst.msk [vmem:[#allocation5 + $0xd] sm:$0x1] %vm4186, %v8571
    %v8574 = vmax.f32 %v8379, %v8380
    %8575 = vst.msk [vmem:[#allocation5 + $0xf] sm:$0x1] %vm4160, %v8574
    %v8577 = vrot.slane %v8574, 7
    %v8578 = vrot.slane %v8577, 2
    %8579 = vrot.lane.b32.xlu0 %v8578, 32
    %v8580 = vpop.permute.xlu0 %8579
    %8582 = vst.msk [vmem:[#allocation5 + $0xf] sm:$0x1] %vm4168, %v8580
    %8583 = vst.sshfl [vmem:[#allocation1] sm:$0xff pattern:$0x73625140] %v8574
    %s8584 = scalar_lea.vmem [#allocation1], 1
    %v8585 = vld [vmem:[%s8584] ss:$4 sm:$0xff]
    %8586 = vrot.lane.b32.xlu0 %v8585, 64
    %v8587 = vpop.permute.xlu0 %8586
    %8589 = vst.msk [vmem:[#allocation5 + $0xf] sm:$0x1] %vm4176, %v8587
    %8590 = vst.sshfl [vmem:[#allocation1] sm:$0xff pattern:$0x73625140] %v8574
    %s8591 = scalar_lea.vmem [#allocation1], 1
    %v8592 = vld [vmem:[%s8591] ss:$4 sm:$0xff]
    %v8593 = vrot.slane %v8592, 7
    %v8594 = vrot.slane %v8593, 2
    %8595 = vrot.lane.b32.xlu0 %v8594, 96
    %v8596 = vpop.permute.xlu0 %8595
    %8598 = vst.msk [vmem:[#allocation5 + $0xf] sm:$0x1] %vm4186, %v8596
    %8599 = vst.sshfl [vmem:[#allocation1] sm:$0xff pattern:$0x73625140] %v8574
    %s8600 = scalar_lea.vmem [#allocation1], 2
    %v8601 = vld [vmem:[%s8600] ss:$4 sm:$0xff]
    %8603 = vst.msk [vmem:[#allocation5 + $0x11] sm:$0x1] %vm4160, %v8601
    %8604 = vst.sshfl [vmem:[#allocation1] sm:$0xff pattern:$0x73625140] %v8574
    %s8605 = scalar_lea.vmem [#allocation1], 2
    %v8606 = vld [vmem:[%s8605] ss:$4 sm:$0xff]
    %v8607 = vrot.slane %v8606, 7
    %v8608 = vrot.slane %v8607, 2
    %8609 = vrot.lane.b32.xlu0 %v8608, 32
    %v8610 = vpop.permute.xlu0 %8609
    %8612 = vst.msk [vmem:[#allocation5 + $0x11] sm:$0x1] %vm4168, %v8610
    %8613 = vst.sshfl [vmem:[#allocation1] sm:$0xff pattern:$0x73625140] %v8574
    %s8614 = scalar_lea.vmem [#allocation1], 3
    %v8615 = vld [vmem:[%s8614] ss:$4 sm:$0xff]
    %8616 = vrot.lane.b32.xlu0 %v8615, 64
    %v8617 = vpop.permute.xlu0 %8616
    %8619 = vst.msk [vmem:[#allocation5 + $0x11] sm:$0x1] %vm4176, %v8617
    %v8620 = vmax.f32 %v8381, %v8382
    %8622 = vrot.lane.b32.xlu0 %v8620, 96
    %v8623 = vpop.permute.xlu0 %8622
    %8625 = vst.msk [vmem:[#allocation5 + $0x11] sm:$0x1] %vm4186, %v8623
    %v8626 = vrot.slane %v8620, 7
    %v8627 = vrot.slane %v8626, 2
    %8629 = vst.msk [vmem:[#allocation5 + $0x13] sm:$0x1] %vm4160, %v8627
    %8630 = vst.sshfl [vmem:[#allocation1] sm:$0xff pattern:$0x73625140] %v8620
    %s8631 = scalar_lea.vmem [#allocation1], 1
    %v8632 = vld [vmem:[%s8631] ss:$4 sm:$0xff]
    %8633 = vrot.lane.b32.xlu0 %v8632, 32
    %v8634 = vpop.permute.xlu0 %8633
    %8636 = vst.msk [vmem:[#allocation5 + $0x13] sm:$0x1] %vm4168, %v8634
    %8637 = vst.sshfl [vmem:[#allocation1] sm:$0xff pattern:$0x73625140] %v8620
    %s8638 = scalar_lea.vmem [#allocation1], 1
    %v8639 = vld [vmem:[%s8638] ss:$4 sm:$0xff]
    %v8640 = vrot.slane %v8639, 7
    %v8641 = vrot.slane %v8640, 2
    %8642 = vrot.lane.b32.xlu0 %v8641, 64
    %v8643 = vpop.permute.xlu0 %8642
    %8645 = vst.msk [vmem:[#allocation5 + $0x13] sm:$0x1] %vm4176, %v8643
    %8646 = vst.sshfl [vmem:[#allocation1] sm:$0xff pattern:$0x73625140] %v8620
    %s8647 = scalar_lea.vmem [#allocation1], 2
    %v8648 = vld [vmem:[%s8647] ss:$4 sm:$0xff]
    %8649 = vrot.lane.b32.xlu0 %v8648, 96
    %v8650 = vpop.permute.xlu0 %8649
    %8652 = vst.msk [vmem:[#allocation5 + $0x13] sm:$0x1] %vm4186, %v8650
    %8653 = vst.sshfl [vmem:[#allocation1] sm:$0xff pattern:$0x73625140] %v8620
    %s8654 = scalar_lea.vmem [#allocation1], 2
    %v8655 = vld [vmem:[%s8654] ss:$4 sm:$0xff]
    %v8656 = vrot.slane %v8655, 7
    %v8657 = vrot.slane %v8656, 2
    %8659 = vst.msk [vmem:[#allocation5 + $0x15] sm:$0x1] %vm4160, %v8657
    %8660 = vst.sshfl [vmem:[#allocation1] sm:$0xff pattern:$0x73625140] %v8620
    %s8661 = scalar_lea.vmem [#allocation1], 3
    %v8662 = vld [vmem:[%s8661] ss:$4 sm:$0xff]
    %8663 = vrot.lane.b32.xlu0 %v8662, 32
    %v8664 = vpop.permute.xlu0 %8663
    %8666 = vst.msk [vmem:[#allocation5 + $0x15] sm:$0x1] %vm4168, %v8664
    %v8667 = vmax.f32 %v8383, %v8384
    %8669 = vrot.lane.b32.xlu0 %v8667, 64
    %v8670 = vpop.permute.xlu0 %8669
    %8672 = vst.msk [vmem:[#allocation5 + $0x15] sm:$0x1] %vm4176, %v8670
    %v8673 = vrot.slane %v8667, 7
    %v8674 = vrot.slane %v8673, 2
    %8675 = vrot.lane.b32.xlu0 %v8674, 96
    %v8676 = vpop.permute.xlu0 %8675
    %8678 = vst.msk [vmem:[#allocation5 + $0x15] sm:$0x1] %vm4186, %v8676
    %8679 = vst.sshfl [vmem:[#allocation1] sm:$0xff pattern:$0x73625140] %v8667
    %s8680 = scalar_lea.vmem [#allocation1], 1
    %v8681 = vld [vmem:[%s8680] ss:$4 sm:$0xff]
    %8683 = vst.msk [vmem:[#allocation5 + $0x17] sm:$0x1] %vm4160, %v8681
    %8684 = vst.sshfl [vmem:[#allocation1] sm:$0xff pattern:$0x73625140] %v8667
    %s8685 = scalar_lea.vmem [#allocation1], 1
    %v8686 = vld [vmem:[%s8685] ss:$4 sm:$0xff]
    %v8687 = vrot.slane %v8686, 7
    %v8688 = vrot.slane %v8687, 2
    %8689 = vrot.lane.b32.xlu0 %v8688, 32
    %v8690 = vpop.permute.xlu0 %8689
    %8692 = vst.msk [vmem:[#allocation5 + $0x17] sm:$0x1] %vm4168, %v8690
    %8693 = vst.sshfl [vmem:[#allocation1] sm:$0xff pattern:$0x73625140] %v8667
    %s8694 = scalar_lea.vmem [#allocation1], 2
    %v8695 = vld [vmem:[%s8694] ss:$4 sm:$0xff]
    %8696 = vrot.lane.b32.xlu0 %v8695, 64
    %v8697 = vpop.permute.xlu0 %8696
    %8699 = vst.msk [vmem:[#allocation5 + $0x17] sm:$0x1] %vm4176, %v8697
    %8700 = vst.sshfl [vmem:[#allocation1] sm:$0xff pattern:$0x73625140] %v8667
    %s8701 = scalar_lea.vmem [#allocation1], 2
    %v8702 = vld [vmem:[%s8701] ss:$4 sm:$0xff]
    %v8703 = vrot.slane %v8702, 7
    %v8704 = vrot.slane %v8703, 2
    %8705 = vrot.lane.b32.xlu0 %v8704, 96
    %v8706 = vpop.permute.xlu0 %8705
    %8708 = vst.msk [vmem:[#allocation5 + $0x17] sm:$0x1] %vm4186, %v8706
    %8709 = vst.sshfl [vmem:[#allocation1] sm:$0xff pattern:$0x73625140] %v8667
    %s8710 = scalar_lea.vmem [#allocation1], 3
    %v8711 = vld [vmem:[%s8710] ss:$4 sm:$0xff]
    %8713 = vst.msk [vmem:[#allocation5 + $0x19] sm:$0x1] %vm4160, %v8711
    %v8714 = vld [vmem:[#allocation5] sm:$0xff]
    %v8715 = vld [vmem:[#allocation5 + $0x8] sm:$0xff]
    %v8716 = vld [vmem:[#allocation5 + $0x10] sm:$0xff]
    %v8717 = vld [vmem:[#allocation5 + $0x18] sm:$0x3]
    %v8718 = vld [vmem:[#allocation6] sm:$0xff]
    %v8719 = vld [vmem:[#allocation6 + $0x8] sm:$0xff]
    %v8720 = vld [vmem:[#allocation6 + $0x10] sm:$0xff]
    %v8721 = vld [vmem:[#allocation6 + $0x18] sm:$0xff]
    %v8722 = vld [vmem:[#allocation6 + $0x20] sm:$0xff]
    %v8723 = vld [vmem:[#allocation6 + $0x28] sm:$0xff]
    %v8724 = vld [vmem:[#allocation6 + $0x30] sm:$0xff]
    %v8725 = vld [vmem:[#allocation6 + $0x38] sm:$0xff]
    %v8726 = vld [vmem:[#allocation6 + $0x40] sm:$0xff]
    %v8727 = vld [vmem:[#allocation6 + $0x48] sm:$0xff]
    %v8728 = vld [vmem:[#allocation6 + $0x50] sm:$0xff]
    %v8729 = vld [vmem:[#allocation6 + $0x58] sm:$0xff]
    %v8730 = vld [vmem:[#allocation6 + $0x60] sm:$0xff]
    %v8731 = vld [vmem:[#allocation6 + $0x68] sm:$0xff]
    %v8732 = vld [vmem:[#allocation6 + $0x70] sm:$0xff]
    %v8733 = vld [vmem:[#allocation6 + $0x78] sm:$0xff]
    %v8734 = vld [vmem:[#allocation6 + $0x80] sm:$0xff]
    %v8735 = vld [vmem:[#allocation6 + $0x88] sm:$0xff]
    %v8736 = vld [vmem:[#allocation6 + $0x90] sm:$0xff]
    %v8737 = vld [vmem:[#allocation6 + $0x98] sm:$0xff]
    %v8738 = vld [vmem:[#allocation6 + $0xa0] sm:$0xff]
    %v8739 = vld [vmem:[#allocation6 + $0xa8] sm:$0xff]
    %v8740 = vld [vmem:[#allocation6 + $0xb0] sm:$0xff]
    %v8741 = vld [vmem:[#allocation6 + $0xb8] sm:$0xff]
    %v8742 = vld [vmem:[#allocation6 + $0xc0] sm:$0xff]
    %v8743 = vld [vmem:[#allocation6 + $0xc8] sm:$0xff]
    %v8744 = vld [vmem:[#allocation6 + $0xd0] sm:$0xff]
    %v8745 = vld [vmem:[#allocation6 + $0xd8] sm:$0xff]
    %v8746 = vld [vmem:[#allocation6 + $0xe0] sm:$0xff]
    %v8747 = vld [vmem:[#allocation6 + $0xe8] sm:$0xff]
    %v8748 = vld [vmem:[#allocation6 + $0xf0] sm:$0xff]
    %v8749 = vld [vmem:[#allocation6 + $0xf8] sm:$0xff]
    %v8750 = vld [vmem:[#allocation6 + $0x100] sm:$0xff]
    %v8751 = vld [vmem:[#allocation6 + $0x108] sm:$0xff]
    %v8752 = vld [vmem:[#allocation6 + $0x110] sm:$0xff]
    %v8753 = vld [vmem:[#allocation6 + $0x118] sm:$0xff]
    %v8754 = vld [vmem:[#allocation6 + $0x120] sm:$0xff]
    %v8755 = vld [vmem:[#allocation6 + $0x128] sm:$0xff]
    %v8756 = vld [vmem:[#allocation6 + $0x130] sm:$0xff]
    %v8757 = vld [vmem:[#allocation6 + $0x138] sm:$0xff]
    %v8758 = vld [vmem:[#allocation6 + $0x140] sm:$0xff]
    %v8759 = vld [vmem:[#allocation6 + $0x148] sm:$0xff]
    %v8760 = vld [vmem:[#allocation6 + $0x150] sm:$0xff]
    %v8761 = vld [vmem:[#allocation6 + $0x158] sm:$0xff]
    %v8762 = vld [vmem:[#allocation6 + $0x160] sm:$0xff]
    %v8763 = vld [vmem:[#allocation6 + $0x168] sm:$0xff]
    %v8764 = vld [vmem:[#allocation6 + $0x170] sm:$0xff]
    %v8765 = vld [vmem:[#allocation6 + $0x178] sm:$0xff]
    %v8766 = vld [vmem:[#allocation6 + $0x180] sm:$0xff]
    %v8767 = vld [vmem:[#allocation6 + $0x188] sm:$0xff]
    %v8768 = vld [vmem:[#allocation6 + $0x190] sm:$0xff]
    %v8769 = vld [vmem:[#allocation6 + $0x198] sm:$0xff]
    %v8770 = vld [vmem:[#allocation6 + $0x1a0] sm:$0xff]
    %v8771 = vld [vmem:[#allocation6 + $0x1a8] sm:$0xff]
    %v8772 = vld [vmem:[#allocation6 + $0x1b0] sm:$0xff]
    %v8773 = vld [vmem:[#allocation6 + $0x1b8] sm:$0xff]
    %v8774 = vld [vmem:[#allocation6 + $0x1c0] sm:$0xff]
    %v8775 = vld [vmem:[#allocation6 + $0x1c8] sm:$0xff]
    %v8776 = vld [vmem:[#allocation6 + $0x1d0] sm:$0xff]
    %v8777 = vld [vmem:[#allocation6 + $0x1d8] sm:$0xff]
    %v8778 = vld [vmem:[#allocation6 + $0x1e0] sm:$0xff]
    %v8779 = vld [vmem:[#allocation6 + $0x1e8] sm:$0xff]
    %v8780 = vld [vmem:[#allocation6 + $0x1f0] sm:$0xff]
    %v8781 = vld [vmem:[#allocation6 + $0x1f8] sm:$0xff]
    %v8782 = vld [vmem:[#allocation6 + $0x200] sm:$0xff]
    %v8783 = vld [vmem:[#allocation6 + $0x208] sm:$0xff]
    %v8784 = vld [vmem:[#allocation6 + $0x210] sm:$0xff]
    %v8785 = vld [vmem:[#allocation6 + $0x218] sm:$0xff]
    %v8786 = vld [vmem:[#allocation6 + $0x220] sm:$0xff]
    %v8787 = vld [vmem:[#allocation6 + $0x228] sm:$0xff]
    %v8788 = vld [vmem:[#allocation6 + $0x230] sm:$0xff]
    %v8789 = vld [vmem:[#allocation6 + $0x238] sm:$0xff]
    %v8790 = vld [vmem:[#allocation6 + $0x240] sm:$0xff]
    %v8791 = vld [vmem:[#allocation6 + $0x248] sm:$0xff]
    %v8792 = vld [vmem:[#allocation6 + $0x250] sm:$0xff]
    %v8793 = vld [vmem:[#allocation6 + $0x258] sm:$0xff]
    %v8794 = vld [vmem:[#allocation6 + $0x260] sm:$0xff]
    %v8795 = vld [vmem:[#allocation6 + $0x268] sm:$0xff]
    %v8796 = vld [vmem:[#allocation6 + $0x270] sm:$0xff]
    %v8797 = vld [vmem:[#allocation6 + $0x278] sm:$0xff]
    %v8798 = vld [vmem:[#allocation6 + $0x280] sm:$0xff]
    %v8799 = vld [vmem:[#allocation6 + $0x288] sm:$0xff]
    %v8800 = vld [vmem:[#allocation6 + $0x290] sm:$0xff]
    %v8801 = vld [vmem:[#allocation6 + $0x298] sm:$0xff]
    %v8802 = vld [vmem:[#allocation6 + $0x2a0] sm:$0xff]
    %v8803 = vld [vmem:[#allocation6 + $0x2a8] sm:$0xff]
    %v8804 = vld [vmem:[#allocation6 + $0x2b0] sm:$0xff]
    %v8805 = vld [vmem:[#allocation6 + $0x2b8] sm:$0xff]
    %v8806 = vld [vmem:[#allocation6 + $0x2c0] sm:$0xff]
    %v8807 = vld [vmem:[#allocation6 + $0x2c8] sm:$0xff]
    %v8808 = vld [vmem:[#allocation6 + $0x2d0] sm:$0xff]
    %v8809 = vld [vmem:[#allocation6 + $0x2d8] sm:$0xff]
    %v8810 = vld [vmem:[#allocation6 + $0x2e0] sm:$0xff]
    %v8811 = vld [vmem:[#allocation6 + $0x2e8] sm:$0xff]
    %v8812 = vld [vmem:[#allocation6 + $0x2f0] sm:$0xff]
    %v8813 = vld [vmem:[#allocation6 + $0x2f8] sm:$0xff]
    %v8814 = vld [vmem:[#allocation6 + $0x300] sm:$0xff]
    %v8815 = vld [vmem:[#allocation6 + $0x308] sm:$0xff]
    %v8816 = vld [vmem:[#allocation6 + $0x310] sm:$0xff]
    %v8817 = vld [vmem:[#allocation6 + $0x318] sm:$0xff]
    %v8818 = vld [vmem:[#allocation6 + $0x320] sm:$0xff]
    %v8819 = vld [vmem:[#allocation6 + $0x328] sm:$0xff]
    %v8820 = vld [vmem:[#allocation6 + $0x330] sm:$0xff]
    %v8821 = vld [vmem:[#allocation6 + $0x338] sm:$0xff]
    %v8822 = vld [vmem:[#allocation6 + $0x340] sm:$0xff]
    %v8823 = vld [vmem:[#allocation6 + $0x348] sm:$0xff]
    %v8824 = vld [vmem:[#allocation6 + $0x350] sm:$0xff]
    %v8825 = vld [vmem:[#allocation6 + $0x358] sm:$0xff]
    %v8826 = vld [vmem:[#allocation6 + $0x360] sm:$0xff]
    %v8827 = vld [vmem:[#allocation6 + $0x368] sm:$0xff]
    %v8828 = vld [vmem:[#allocation6 + $0x370] sm:$0xff]
    %v8829 = vld [vmem:[#allocation6 + $0x378] sm:$0xff]
    %v8830 = vld [vmem:[#allocation6 + $0x380] sm:$0xff]
    %v8831 = vld [vmem:[#allocation6 + $0x388] sm:$0xff]
    %v8832 = vld [vmem:[#allocation6 + $0x390] sm:$0xff]
    %v8833 = vld [vmem:[#allocation6 + $0x398] sm:$0xff]
    %v8834 = vld [vmem:[#allocation6 + $0x3a0] sm:$0xff]
    %v8835 = vld [vmem:[#allocation6 + $0x3a8] sm:$0xff]
    %v8836 = vld [vmem:[#allocation6 + $0x3b0] sm:$0xff]
    %v8837 = vld [vmem:[#allocation6 + $0x3b8] sm:$0xff]
    %v8838 = vld [vmem:[#allocation6 + $0x3c0] sm:$0xff]
    %v8839 = vld [vmem:[#allocation6 + $0x3c8] sm:$0xff]
    %v8840 = vld [vmem:[#allocation6 + $0x3d0] sm:$0xff]
    %v8841 = vld [vmem:[#allocation6 + $0x3d8] sm:$0xff]
    %v8842 = vld [vmem:[#allocation6 + $0x3e0] sm:$0xff]
    %v8843 = vld [vmem:[#allocation6 + $0x3e8] sm:$0xff]
    %v8844 = vld [vmem:[#allocation6 + $0x3f0] sm:$0xff]
    %v8845 = vld [vmem:[#allocation6 + $0x3f8] sm:$0xff]
    %v8846 = vld [vmem:[#allocation6 + $0x400] sm:$0xff]
    %v8847 = vld [vmem:[#allocation6 + $0x408] sm:$0xff]
    %v8848 = vld [vmem:[#allocation6 + $0x410] sm:$0xff]
    %v8849 = vld [vmem:[#allocation6 + $0x418] sm:$0xff]
    %v8850 = vld [vmem:[#allocation6 + $0x420] sm:$0xff]
    %v8851 = vld [vmem:[#allocation6 + $0x428] sm:$0xff]
    %v8852 = vld [vmem:[#allocation6 + $0x430] sm:$0xff]
    %v8853 = vld [vmem:[#allocation6 + $0x438] sm:$0xff]
    %v8854 = vld [vmem:[#allocation6 + $0x440] sm:$0xff]
    %v8855 = vld [vmem:[#allocation6 + $0x448] sm:$0xff]
    %v8856 = vld [vmem:[#allocation6 + $0x450] sm:$0xff]
    %v8857 = vld [vmem:[#allocation6 + $0x458] sm:$0xff]
    %v8858 = vld [vmem:[#allocation6 + $0x460] sm:$0xff]
    %v8859 = vld [vmem:[#allocation6 + $0x468] sm:$0xff]
    %v8860 = vld [vmem:[#allocation6 + $0x470] sm:$0xff]
    %v8861 = vld [vmem:[#allocation6 + $0x478] sm:$0xff]
    %v8862 = vld [vmem:[#allocation6 + $0x480] sm:$0xff]
    %v8863 = vld [vmem:[#allocation6 + $0x488] sm:$0xff]
    %v8864 = vld [vmem:[#allocation6 + $0x490] sm:$0xff]
    %v8865 = vld [vmem:[#allocation6 + $0x498] sm:$0xff]
    %v8866 = vld [vmem:[#allocation6 + $0x4a0] sm:$0xff]
    %v8867 = vld [vmem:[#allocation6 + $0x4a8] sm:$0xff]
    %v8868 = vld [vmem:[#allocation6 + $0x4b0] sm:$0xff]
    %v8869 = vld [vmem:[#allocation6 + $0x4b8] sm:$0xff]
    %v8870 = vld [vmem:[#allocation6 + $0x4c0] sm:$0xff]
    %v8871 = vld [vmem:[#allocation6 + $0x4c8] sm:$0xff]
    %v8872 = vld [vmem:[#allocation6 + $0x4d0] sm:$0xff]
    %v8873 = vld [vmem:[#allocation6 + $0x4d8] sm:$0xff]
    %v8874 = vld [vmem:[#allocation6 + $0x4e0] sm:$0xff]
    %v8875 = vld [vmem:[#allocation6 + $0x4e8] sm:$0xff]
    %v8876 = vld [vmem:[#allocation6 + $0x4f0] sm:$0xff]
    %v8877 = vld [vmem:[#allocation6 + $0x4f8] sm:$0xff]
    %v8878 = vld [vmem:[#allocation6 + $0x500] sm:$0xff]
    %v8879 = vld [vmem:[#allocation6 + $0x508] sm:$0xff]
    %v8880 = vld [vmem:[#allocation6 + $0x510] sm:$0xff]
    %v8881 = vld [vmem:[#allocation6 + $0x518] sm:$0xff]
    %v8882 = vld [vmem:[#allocation6 + $0x520] sm:$0xff]
    %v8883 = vld [vmem:[#allocation6 + $0x528] sm:$0xff]
    %v8884 = vld [vmem:[#allocation6 + $0x530] sm:$0xff]
    %v8885 = vld [vmem:[#allocation6 + $0x538] sm:$0xff]
    %v8886 = vld [vmem:[#allocation6 + $0x540] sm:$0xff]
    %v8887 = vld [vmem:[#allocation6 + $0x548] sm:$0xff]
    %v8888 = vld [vmem:[#allocation6 + $0x550] sm:$0xff]
    %v8889 = vld [vmem:[#allocation6 + $0x558] sm:$0xff]
    %v8890 = vld [vmem:[#allocation6 + $0x560] sm:$0xff]
    %v8891 = vld [vmem:[#allocation6 + $0x568] sm:$0xff]
    %v8892 = vld [vmem:[#allocation6 + $0x570] sm:$0xff]
    %v8893 = vld [vmem:[#allocation6 + $0x578] sm:$0xff]
    %v8894 = vld [vmem:[#allocation6 + $0x580] sm:$0xff]
    %v8895 = vld [vmem:[#allocation6 + $0x588] sm:$0xff]
    %v8896 = vld [vmem:[#allocation6 + $0x590] sm:$0xff]
    %v8897 = vld [vmem:[#allocation6 + $0x598] sm:$0xff]
    %v8898 = vld [vmem:[#allocation6 + $0x5a0] sm:$0xff]
    %v8899 = vld [vmem:[#allocation6 + $0x5a8] sm:$0xff]
    %v8900 = vld [vmem:[#allocation6 + $0x5b0] sm:$0xff]
    %v8901 = vld [vmem:[#allocation6 + $0x5b8] sm:$0xff]
    %v8902 = vld [vmem:[#allocation6 + $0x5c0] sm:$0xff]
    %v8903 = vld [vmem:[#allocation6 + $0x5c8] sm:$0xff]
    %v8904 = vld [vmem:[#allocation6 + $0x5d0] sm:$0xff]
    %v8905 = vld [vmem:[#allocation6 + $0x5d8] sm:$0xff]
    %v8906 = vld [vmem:[#allocation6 + $0x5e0] sm:$0xff]
    %v8907 = vld [vmem:[#allocation6 + $0x5e8] sm:$0xff]
    %v8908 = vld [vmem:[#allocation6 + $0x5f0] sm:$0xff]
    %v8909 = vld [vmem:[#allocation6 + $0x5f8] sm:$0xff]
    %v8910 = vld [vmem:[#allocation6 + $0x600] sm:$0xff]
    %v8911 = vld [vmem:[#allocation6 + $0x608] sm:$0xff]
    %v8912 = vld [vmem:[#allocation6 + $0x610] sm:$0xff]
    %v8913 = vld [vmem:[#allocation6 + $0x618] sm:$0xff]
    %v8914 = vld [vmem:[%s6] sm:$0x1]
    %v8916 = vperm.slane %v8914, 0
    %8922 = vst [vmem:[#allocation1] ss:$4 sm:$0xff] %v8714
    %s8923 = scalar_lea.vmem [#allocation1], 32
    %8924 = vst [vmem:[%s8923] ss:$4 sm:$0xff] %v8715
    %v8925 = vld.sshfl [vmem:[#allocation1] sm:$0xff pattern:$0x73625140]
    %v8926 = vld.sshfl [vmem:[#allocation1 + $0x8] sm:$0xff pattern:$0x73625140]
    %v8927 = vld.sshfl [vmem:[#allocation1 + $0x10] sm:$0xff pattern:$0x73625140]
    %v8928 = vld.sshfl [vmem:[#allocation1 + $0x18] sm:$0xff pattern:$0x73625140]
    %v8929 = vld.sshfl [vmem:[#allocation1 + $0x20] sm:$0xff pattern:$0x73625140]
    %v8930 = vld.sshfl [vmem:[#allocation1 + $0x28] sm:$0xff pattern:$0x73625140]
    %v8931 = vld.sshfl [vmem:[#allocation1 + $0x30] sm:$0xff pattern:$0x73625140]
    %v8932 = vld.sshfl [vmem:[#allocation1 + $0x38] sm:$0xff pattern:$0x73625140]
    %8933 = vst [vmem:[#allocation1] ss:$4 sm:$0xff] %v8716
    %8934 = vst [vmem:[%s8923] ss:$4 sm:$0xff] %v8717
    %v8935 = vld.sshfl [vmem:[#allocation1] sm:$0xff pattern:$0x73625140]
    %v8936 = vld.sshfl [vmem:[#allocation1 + $0x8] sm:$0xff pattern:$0x73625140]
    %v8937 = vld.sshfl [vmem:[#allocation1 + $0x10] sm:$0xff pattern:$0x73625140]
    %v8938 = vld.sshfl [vmem:[#allocation1 + $0x18] sm:$0xff pattern:$0x73625140]
    %v8939 = vld.sshfl [vmem:[#allocation1 + $0x20] sm:$0xff pattern:$0x73625140]
    %v8952 = vsel %vm4061, %v8939, 0
    %8954 = vmatpush.msra.mxu0 %v8733
    %8955 = vmatpush.msra.mxu0 %v8732
    %8956 = vmatpush.msra.mxu0 %v8731
    %8957 = vmatpush.msra.mxu0 %v8730
    %8958 = vmatpush.msra.mxu0 %v8729
    %8959 = vmatpush.msra.mxu0 %v8728
    %8960 = vmatpush.msra.mxu0 %v8727
    %8961 = vmatpush.msra.mxu0 %v8726
    %8962 = vmatpush.msra.mxu0 %v8725
    %8963 = vmatpush.msra.mxu0 %v8724
    %8964 = vmatpush.msra.mxu0 %v8723
    %8965 = vmatpush.msra.mxu0 %v8722
    %8966 = vmatpush.msra.mxu0 %v8721
    %8967 = vmatpush.msra.mxu0 %v8720
    %8968 = vmatpush.msra.mxu0 %v8719
    %8969 = vmatpush.msra.mxu0 %v8718
    %8970 = vmatmul.f32.gmra.mxu0 %v8925
    %v8971 = vpop.f32.mrf.mxu0
    %v8972 = vadd.f32 %v8916, %v8971
    %8973 = vdwg.mxu0
    %8974 = vmatpush.msra.mxu0 %v8749
    %8975 = vmatpush.msra.mxu0 %v8748
    %8976 = vmatpush.msra.mxu0 %v8747
    %8977 = vmatpush.msra.mxu0 %v8746
    %8978 = vmatpush.msra.mxu0 %v8745
    %8979 = vmatpush.msra.mxu0 %v8744
    %8980 = vmatpush.msra.mxu0 %v8743
    %8981 = vmatpush.msra.mxu0 %v8742
    %8982 = vmatpush.msra.mxu0 %v8741
    %8983 = vmatpush.msra.mxu0 %v8740
    %8984 = vmatpush.msra.mxu0 %v8739
    %8985 = vmatpush.msra.mxu0 %v8738
    %8986 = vmatpush.msra.mxu0 %v8737
    %8987 = vmatpush.msra.mxu0 %v8736
    %8988 = vmatpush.msra.mxu0 %v8735
    %8989 = vmatpush.msra.mxu0 %v8734
    %8990 = vmatmul.f32.gmra.mxu0 %v8926
    %v8991 = vpop.f32.mrf.mxu0
    %v8992 = vadd.f32 %v8972, %v8991
    %8993 = vdwg.mxu0
    %8994 = vmatpush.msra.mxu0 %v8765
    %8995 = vmatpush.msra.mxu0 %v8764
    %8996 = vmatpush.msra.mxu0 %v8763
    %8997 = vmatpush.msra.mxu0 %v8762
    %8998 = vmatpush.msra.mxu0 %v8761
    %8999 = vmatpush.msra.mxu0 %v8760
    %9000 = vmatpush.msra.mxu0 %v8759
    %9001 = vmatpush.msra.mxu0 %v8758
    %9002 = vmatpush.msra.mxu0 %v8757
    %9003 = vmatpush.msra.mxu0 %v8756
    %9004 = vmatpush.msra.mxu0 %v8755
    %9005 = vmatpush.msra.mxu0 %v8754
    %9006 = vmatpush.msra.mxu0 %v8753
    %9007 = vmatpush.msra.mxu0 %v8752
    %9008 = vmatpush.msra.mxu0 %v8751
    %9009 = vmatpush.msra.mxu0 %v8750
    %9010 = vmatmul.f32.gmra.mxu0 %v8927
    %v9011 = vpop.f32.mrf.mxu0
    %v9012 = vadd.f32 %v8992, %v9011
    %9013 = vdwg.mxu0
    %9014 = vmatpush.msra.mxu0 %v8781
    %9015 = vmatpush.msra.mxu0 %v8780
    %9016 = vmatpush.msra.mxu0 %v8779
    %9017 = vmatpush.msra.mxu0 %v8778
    %9018 = vmatpush.msra.mxu0 %v8777
    %9019 = vmatpush.msra.mxu0 %v8776
    %9020 = vmatpush.msra.mxu0 %v8775
    %9021 = vmatpush.msra.mxu0 %v8774
    %9022 = vmatpush.msra.mxu0 %v8773
    %9023 = vmatpush.msra.mxu0 %v8772
    %9024 = vmatpush.msra.mxu0 %v8771
    %9025 = vmatpush.msra.mxu0 %v8770
    %9026 = vmatpush.msra.mxu0 %v8769
    %9027 = vmatpush.msra.mxu0 %v8768
    %9028 = vmatpush.msra.mxu0 %v8767
    %9029 = vmatpush.msra.mxu0 %v8766
    %9030 = vmatmul.f32.gmra.mxu0 %v8928
    %v9031 = vpop.f32.mrf.mxu0
    %v9032 = vadd.f32 %v9012, %v9031
    %9033 = vdwg.mxu0
    %9034 = vmatpush.msra.mxu0 %v8797
    %9035 = vmatpush.msra.mxu0 %v8796
    %9036 = vmatpush.msra.mxu0 %v8795
    %9037 = vmatpush.msra.mxu0 %v8794
    %9038 = vmatpush.msra.mxu0 %v8793
    %9039 = vmatpush.msra.mxu0 %v8792
    %9040 = vmatpush.msra.mxu0 %v8791
    %9041 = vmatpush.msra.mxu0 %v8790
    %9042 = vmatpush.msra.mxu0 %v8789
    %9043 = vmatpush.msra.mxu0 %v8788
    %9044 = vmatpush.msra.mxu0 %v8787
    %9045 = vmatpush.msra.mxu0 %v8786
    %9046 = vmatpush.msra.mxu0 %v8785
    %9047 = vmatpush.msra.mxu0 %v8784
    %9048 = vmatpush.msra.mxu0 %v8783
    %9049 = vmatpush.msra.mxu0 %v8782
    %9050 = vmatmul.f32.gmra.mxu0 %v8929
    %v9051 = vpop.f32.mrf.mxu0
    %v9052 = vadd.f32 %v9032, %v9051
    %9053 = vdwg.mxu0
    %9054 = vmatpush.msra.mxu0 %v8813
    %9055 = vmatpush.msra.mxu0 %v8812
    %9056 = vmatpush.msra.mxu0 %v8811
    %9057 = vmatpush.msra.mxu0 %v8810
    %9058 = vmatpush.msra.mxu0 %v8809
    %9059 = vmatpush.msra.mxu0 %v8808
    %9060 = vmatpush.msra.mxu0 %v8807
    %9061 = vmatpush.msra.mxu0 %v8806
    %9062 = vmatpush.msra.mxu0 %v8805
    %9063 = vmatpush.msra.mxu0 %v8804
    %9064 = vmatpush.msra.mxu0 %v8803
    %9065 = vmatpush.msra.mxu0 %v8802
    %9066 = vmatpush.msra.mxu0 %v8801
    %9067 = vmatpush.msra.mxu0 %v8800
    %9068 = vmatpush.msra.mxu0 %v8799
    %9069 = vmatpush.msra.mxu0 %v8798
    %9070 = vmatmul.f32.gmra.mxu0 %v8930
    %v9071 = vpop.f32.mrf.mxu0
    %v9072 = vadd.f32 %v9052, %v9071
    %9073 = vdwg.mxu0
    %9074 = vmatpush.msra.mxu0 %v8829
    %9075 = vmatpush.msra.mxu0 %v8828
    %9076 = vmatpush.msra.mxu0 %v8827
    %9077 = vmatpush.msra.mxu0 %v8826
    %9078 = vmatpush.msra.mxu0 %v8825
    %9079 = vmatpush.msra.mxu0 %v8824
    %9080 = vmatpush.msra.mxu0 %v8823
    %9081 = vmatpush.msra.mxu0 %v8822
    %9082 = vmatpush.msra.mxu0 %v8821
    %9083 = vmatpush.msra.mxu0 %v8820
    %9084 = vmatpush.msra.mxu0 %v8819
    %9085 = vmatpush.msra.mxu0 %v8818
    %9086 = vmatpush.msra.mxu0 %v8817
    %9087 = vmatpush.msra.mxu0 %v8816
    %9088 = vmatpush.msra.mxu0 %v8815
    %9089 = vmatpush.msra.mxu0 %v8814
    %9090 = vmatmul.f32.gmra.mxu0 %v8931
    %v9091 = vpop.f32.mrf.mxu0
    %v9092 = vadd.f32 %v9072, %v9091
    %9093 = vdwg.mxu0
    %9094 = vmatpush.msra.mxu0 %v8845
    %9095 = vmatpush.msra.mxu0 %v8844
    %9096 = vmatpush.msra.mxu0 %v8843
    %9097 = vmatpush.msra.mxu0 %v8842
    %9098 = vmatpush.msra.mxu0 %v8841
    %9099 = vmatpush.msra.mxu0 %v8840
    %9100 = vmatpush.msra.mxu0 %v8839
    %9101 = vmatpush.msra.mxu0 %v8838
    %9102 = vmatpush.msra.mxu0 %v8837
    %9103 = vmatpush.msra.mxu0 %v8836
    %9104 = vmatpush.msra.mxu0 %v8835
    %9105 = vmatpush.msra.mxu0 %v8834
    %9106 = vmatpush.msra.mxu0 %v8833
    %9107 = vmatpush.msra.mxu0 %v8832
    %9108 = vmatpush.msra.mxu0 %v8831
    %9109 = vmatpush.msra.mxu0 %v8830
    %9110 = vmatmul.f32.gmra.mxu0 %v8932
    %v9111 = vpop.f32.mrf.mxu0
    %v9112 = vadd.f32 %v9092, %v9111
    %9113 = vdwg.mxu0
    %9114 = vmatpush.msra.mxu0 %v8861
    %9115 = vmatpush.msra.mxu0 %v8860
    %9116 = vmatpush.msra.mxu0 %v8859
    %9117 = vmatpush.msra.mxu0 %v8858
    %9118 = vmatpush.msra.mxu0 %v8857
    %9119 = vmatpush.msra.mxu0 %v8856
    %9120 = vmatpush.msra.mxu0 %v8855
    %9121 = vmatpush.msra.mxu0 %v8854
    %9122 = vmatpush.msra.mxu0 %v8853
    %9123 = vmatpush.msra.mxu0 %v8852
    %9124 = vmatpush.msra.mxu0 %v8851
    %9125 = vmatpush.msra.mxu0 %v8850
    %9126 = vmatpush.msra.mxu0 %v8849
    %9127 = vmatpush.msra.mxu0 %v8848
    %9128 = vmatpush.msra.mxu0 %v8847
    %9129 = vmatpush.msra.mxu0 %v8846
    %9130 = vmatmul.f32.gmra.mxu0 %v8935
    %v9131 = vpop.f32.mrf.mxu0
    %v9132 = vadd.f32 %v9112, %v9131
    %9133 = vdwg.mxu0
    %9134 = vmatpush.msra.mxu0 %v8877
    %9135 = vmatpush.msra.mxu0 %v8876
    %9136 = vmatpush.msra.mxu0 %v8875
    %9137 = vmatpush.msra.mxu0 %v8874
    %9138 = vmatpush.msra.mxu0 %v8873
    %9139 = vmatpush.msra.mxu0 %v8872
    %9140 = vmatpush.msra.mxu0 %v8871
    %9141 = vmatpush.msra.mxu0 %v8870
    %9142 = vmatpush.msra.mxu0 %v8869
    %9143 = vmatpush.msra.mxu0 %v8868
    %9144 = vmatpush.msra.mxu0 %v8867
    %9145 = vmatpush.msra.mxu0 %v8866
    %9146 = vmatpush.msra.mxu0 %v8865
    %9147 = vmatpush.msra.mxu0 %v8864
    %9148 = vmatpush.msra.mxu0 %v8863
    %9149 = vmatpush.msra.mxu0 %v8862
    %9150 = vmatmul.f32.gmra.mxu0 %v8936
    %v9151 = vpop.f32.mrf.mxu0
    %v9152 = vadd.f32 %v9132, %v9151
    %9153 = vdwg.mxu0
    %9154 = vmatpush.msra.mxu0 %v8893
    %9155 = vmatpush.msra.mxu0 %v8892
    %9156 = vmatpush.msra.mxu0 %v8891
    %9157 = vmatpush.msra.mxu0 %v8890
    %9158 = vmatpush.msra.mxu0 %v8889
    %9159 = vmatpush.msra.mxu0 %v8888
    %9160 = vmatpush.msra.mxu0 %v8887
    %9161 = vmatpush.msra.mxu0 %v8886
    %9162 = vmatpush.msra.mxu0 %v8885
    %9163 = vmatpush.msra.mxu0 %v8884
    %9164 = vmatpush.msra.mxu0 %v8883
    %9165 = vmatpush.msra.mxu0 %v8882
    %9166 = vmatpush.msra.mxu0 %v8881
    %9167 = vmatpush.msra.mxu0 %v8880
    %9168 = vmatpush.msra.mxu0 %v8879
    %9169 = vmatpush.msra.mxu0 %v8878
    %9170 = vmatmul.f32.gmra.mxu0 %v8937
    %v9171 = vpop.f32.mrf.mxu0
    %v9172 = vadd.f32 %v9152, %v9171
    %9173 = vdwg.mxu0
    %9174 = vmatpush.msra.mxu0 %v8909
    %9175 = vmatpush.msra.mxu0 %v8908
    %9176 = vmatpush.msra.mxu0 %v8907
    %9177 = vmatpush.msra.mxu0 %v8906
    %9178 = vmatpush.msra.mxu0 %v8905
    %9179 = vmatpush.msra.mxu0 %v8904
    %9180 = vmatpush.msra.mxu0 %v8903
    %9181 = vmatpush.msra.mxu0 %v8902
    %9182 = vmatpush.msra.mxu0 %v8901
    %9183 = vmatpush.msra.mxu0 %v8900
    %9184 = vmatpush.msra.mxu0 %v8899
    %9185 = vmatpush.msra.mxu0 %v8898
    %9186 = vmatpush.msra.mxu0 %v8897
    %9187 = vmatpush.msra.mxu0 %v8896
    %9188 = vmatpush.msra.mxu0 %v8895
    %9189 = vmatpush.msra.mxu0 %v8894
    %9190 = vmatmul.f32.gmra.mxu0 %v8938
    %v9191 = vpop.f32.mrf.mxu0
    %v9192 = vadd.f32 %v9172, %v9191
    %9193 = vdwg.mxu0
    %9194 = vmatpush.msra.mxu0 0.0
    %9195 = vmatpush.msra.mxu0 0.0
    %9196 = vmatpush.msra.mxu0 0.0
    %9197 = vmatpush.msra.mxu0 0.0
    %9198 = vmatpush.msra.mxu0 0.0
    %9199 = vmatpush.msra.mxu0 0.0
    %9200 = vmatpush.msra.mxu0 0.0
    %9201 = vmatpush.msra.mxu0 0.0
    %9202 = vmatpush.msra.mxu0 0.0
    %9203 = vmatpush.msra.mxu0 0.0
    %9204 = vmatpush.msra.mxu0 0.0
    %9205 = vmatpush.msra.mxu0 0.0
    %9206 = vmatpush.msra.mxu0 %v8913
    %9207 = vmatpush.msra.mxu0 %v8912
    %9208 = vmatpush.msra.mxu0 %v8911
    %9209 = vmatpush.msra.mxu0 %v8910
    %9210 = vmatmul.f32.gmra.mxu0 %v8952
    %v9211 = vpop.f32.mrf.mxu0
    %v9212 = vadd.f32 %v9192, %v9211
    %9213 = vdwg.mxu0
    %v9214 = vmax.f32 %v9212, 0.0
    %v9215 = vld [vmem:[%s7] sm:$0xff]
    %v9216 = vld [vmem:[%s7 + $0x8] sm:$0xff]
    %v9217 = vld [vmem:[%s7 + $0x10] sm:$0xff]
    %v9218 = vld [vmem:[%s7 + $0x18] sm:$0xff]
    %v9219 = vld [vmem:[%s7 + $0x20] sm:$0xff]
    %v9220 = vld [vmem:[%s7 + $0x28] sm:$0xff]
    %v9221 = vld [vmem:[%s7 + $0x30] sm:$0xff]
    %v9222 = vld [vmem:[%s7 + $0x38] sm:$0xff]
    %v9223 = vld [vmem:[%s7 + $0x40] sm:$0xff]
    %v9224 = vld [vmem:[%s7 + $0x48] sm:$0xff]
    %v9225 = vld [vmem:[%s7 + $0x50] sm:$0xff]
    %v9226 = vld [vmem:[%s7 + $0x58] sm:$0xff]
    %v9227 = vld [vmem:[%s7 + $0x60] sm:$0xff]
    %v9228 = vld [vmem:[%s7 + $0x68] sm:$0xff]
    %v9229 = vld [vmem:[%s7 + $0x70] sm:$0xff]
    %v9230 = vld [vmem:[%s7 + $0x78] sm:$0xff]
    %v9231 = vld [vmem:[%s8] sm:$0x1]
    %v9233 = vperm.slane %v9231, 0
    %9235 = vmatpush.msra.mxu0 %v9230
    %9236 = vmatpush.msra.mxu0 %v9229
    %9237 = vmatpush.msra.mxu0 %v9228
    %9238 = vmatpush.msra.mxu0 %v9227
    %9239 = vmatpush.msra.mxu0 %v9226
    %9240 = vmatpush.msra.mxu0 %v9225
    %9241 = vmatpush.msra.mxu0 %v9224
    %9242 = vmatpush.msra.mxu0 %v9223
    %9243 = vmatpush.msra.mxu0 %v9222
    %9244 = vmatpush.msra.mxu0 %v9221
    %9245 = vmatpush.msra.mxu0 %v9220
    %9246 = vmatpush.msra.mxu0 %v9219
    %9247 = vmatpush.msra.mxu0 %v9218
    %9248 = vmatpush.msra.mxu0 %v9217
    %9249 = vmatpush.msra.mxu0 %v9216
    %9250 = vmatpush.msra.mxu0 %v9215
    %9251 = vmatmul.f32.gmra.mxu0 %v9214
    %v9252 = vpop.f32.mrf.mxu0
    %v9253 = vadd.f32 %v9233, %v9252
    %9254 = vdwg.mxu0
    %vm9255 = vcmask 74752
    %9256 = vst.msk [vmem:[#allocation9] sm:$0x3] %vm9255, %v9253
    // Predicated region
    $region42: #{inference_forward.1} parent=1 // pred_check
      _
    $region43: #{inference_forward.1} parent=1 // pred_check_branch
      %9258 = sbr.rel (0) target = $region45
    $region44: #{inference_forward.1} parent=1 // pred_region
      %9260 = vsyncadd [#allocation8], 0
      %s9262 = sshll.u32 [#allocation9], 4
      %s9263 = int_to_ptr.vmem [resolvable:$true] %s9262
      %s9264 = sshll.u32 %s9, 4
      %s9265 = int_to_ptr.hbm [resolvable:$true] %s9264
      %9267 = dma.vmem_to_hbm [thread:$0]  %s9263, 32, %s9265, [#allocation8]
    $region45: #{inference_forward.1} parent=1 // pred_fallthru
      _
    // Predicated region
    $region46: #{inference_forward.1} parent=1 // pred_check
      _
    $region47: #{inference_forward.1} parent=1 // pred_check_branch
      %9269 = sbr.rel (0) target = $region49
    $region48: #{inference_forward.1} parent=1 // pred_region
      %9271 = dma.done [#allocation8], 32
    $region49: #{inference_forward.1} parent=1 // pred_fallthru
      _
    %9272 = vsyncpa [#allocation7], 1
    %9273 = vsyncpa [#allocation8], 1

</llo_original>
